<compile_context>
chip_gen: v7x
topology: tpu7x:2x2x1
jax: 0.10.0
libtpu: 0.0.40
codegen_flags: <defaults>
</compile_context>

<pallas_src>
import functools
import math

import jax
import jax.numpy as jnp
from jax.experimental import pallas as pl
from jax.experimental.pallas import tpu as pltpu

_BN_EPS = 1e-5
_REF_PREC = jax.lax.Precision.HIGHEST   # reference (ground truth) only


# ----------------------------------------------------------------------------
# In-kernel helpers (operate on VMEM refs / values).
# ----------------------------------------------------------------------------
def _fill_pad_scratch(pad_ref, interior, h, w):
  """Zero only the 1-px halo of pad_ref, then write the interior."""
  b, hp, wp, c = pad_ref.shape
  zrow = jnp.zeros((b, 1, wp, c), pad_ref.dtype)
  zcol = jnp.zeros((b, hp, 1, c), pad_ref.dtype)
  pad_ref[:, 0:1, :, :] = zrow
  pad_ref[:, h + 1:h + 2, :, :] = zrow
  pad_ref[:, :, 0:1, :] = zcol
  pad_ref[:, :, w + 1:w + 2, :] = zcol
  pad_ref[:, 1:h + 1, 1:w + 1, :] = interior


def _conv3x3_im2col(xpad_ref, im_ref, w_ref, b, ho, wo, cin, stride):
  """3x3 conv as ONE MXU matmul.

  xpad_ref: (B, Hp, Wp, Cin) zero-haloed f32 VMEM scratch.
  im_ref:   (rows, 9*Cin) f32 VMEM scratch (im2col tile), rows = B*Ho*Wo.
  w_ref:    (9*Cin, Cout) bf16 weights, rows ordered (kh, kw, cin).
  Returns f32 (rows, Cout).
  """
  rows = b * ho * wo
  for kh in range(3):
    for kw in range(3):
      if stride == 1:
        tap = xpad_ref[:, kh:kh + ho, kw:kw + wo, :]
      else:
        # TODO(synk): stride>1 tap extraction via strided pl.ds is not
        # exercised by the in-script test (all test blocks use stride=1).
        tap = xpad_ref[:, pl.ds(kh, ho, stride=stride),
                       pl.ds(kw, wo, stride=stride), :]
      c0 = (kh * 3 + kw) * cin
      im_ref[:, c0:c0 + cin] = tap.reshape(rows, cin)
  return jnp.dot(im_ref[...].astype(jnp.bfloat16), w_ref[...],
                 preferred_element_type=jnp.float32)


def _bn_train(y, g_ref, b_ref):
  """Training-mode BatchNorm over rows of y (rows = N*H*W).

  One-pass stats (E[x], E[x^2] in f32), folded affine -> single FMA.
  """
  mean = jnp.mean(y, axis=0, keepdims=True)                    # (1, C)
  meansq = jnp.mean(y * y, axis=0, keepdims=True)              # (1, C)
  var = meansq - mean * mean                                   # biased
  scale = g_ref[...] * jax.lax.rsqrt(var + _BN_EPS)            # (1, C)
  shift = b_ref[...] - mean * scale
  return y * scale + shift


def _store_lane_dense(out_ref, y, b, ho, wo, cout):
  """y: (rows, cout) f32 -> out_ref (b, ho, wo*cout) lane-dense block."""
  y4 = y.reshape(b, ho, wo, cout)   # leading-dim split only (layout-trivial)
  for wi in range(wo):
    out_ref[:, :, wi * cout:(wi + 1) * cout] = y4[:, :, wi, :]


# ----------------------------------------------------------------------------
# Fused kernels (one launch for the whole block).
# ----------------------------------------------------------------------------
def _block_identity_kernel(x_ref, w1_ref, w2_ref, g1_ref, b1_ref,
                           g2_ref, b2_ref, out_ref,
                           xpad, h1pad, im1, im2, *, stride):
  """Identity shortcut: stride == 1 and Cin == Cout."""
  b, h, w, cin = x_ref.shape
  cout = g2_ref.shape[-1]
  ho = (h + 2 - 3) // stride + 1
  wo = (w + 2 - 3) // stride + 1
  rows = b * ho * wo

  # conv1(pad=1, stride=s) + bn1 + relu -- intermediate stays in VMEM.
  _fill_pad_scratch(xpad, x_ref[...], h, w)
  y1 = _conv3x3_im2col(xpad, im1, w1_ref, b, ho, wo, cin, stride)
  h1 = jnp.maximum(_bn_train(y1, g1_ref, b1_ref), 0.0)

  # conv2(pad=1, stride=1) + bn2.
  _fill_pad_scratch(h1pad, h1.reshape(b, ho, wo, cout), ho, wo)
  y2 = _bn_train(_conv3x3_im2col(h1pad, im2, w2_ref, b, ho, wo, cout, 1),
                 g2_ref, b2_ref)

  sc = x_ref[...].reshape(rows, cout)         # identity shortcut
  _store_lane_dense(out_ref, jnp.maximum(y2 + sc, 0.0), b, ho, wo, cout)


def _block_projection_kernel(x_ref, w1_ref, w2_ref, wsc_ref,
                             g1_ref, b1_ref, g2_ref, b2_ref,
                             gsc_ref, bsc_ref, out_ref,
                             xpad, h1pad, im1, im2, *, stride):
  """Projection shortcut: bn_sc(conv1x1(x, stride=s))."""
  b, h, w, cin = x_ref.shape
  cout = g2_ref.shape[-1]
  ho = (h + 2 - 3) // stride + 1
  wo = (w + 2 - 3) // stride + 1
  rows = b * ho * wo

  _fill_pad_scratch(xpad, x_ref[...], h, w)
  y1 = _conv3x3_im2col(xpad, im1, w1_ref, b, ho, wo, cin, stride)
  h1 = jnp.maximum(_bn_train(y1, g1_ref, b1_ref), 0.0)

  _fill_pad_scratch(h1pad, h1.reshape(b, ho, wo, cout), ho, wo)
  y2 = _bn_train(_conv3x3_im2col(h1pad, im2, w2_ref, b, ho, wo, cout, 1),
                 g2_ref, b2_ref)

  if stride == 1:
    xs = x_ref[...]
  else:
    # TODO(synk): strided shortcut subsample is not exercised by the test.
    xs = x_ref[:, pl.ds(0, ho, stride=stride), pl.ds(0, wo, stride=stride), :]
  sc = jnp.dot(xs.reshape(rows, cin).astype(jnp.bfloat16), wsc_ref[...],
               preferred_element_type=jnp.float32)
  sc = _bn_train(sc, gsc_ref, bsc_ref)
  _store_lane_dense(out_ref, jnp.maximum(y2 + sc, 0.0), b, ho, wo, cout)


# ----------------------------------------------------------------------------
# pallas_call plumbing.
# ----------------------------------------------------------------------------
def _full_spec(shape):
  zeros = (0,) * len(shape)
  return pl.BlockSpec(shape, lambda i: zeros)


# ----------------------------------------------------------------------------
# Parameters (deterministic, shapes per the module __init__).
# ----------------------------------------------------------------------------
def init_basic_block_params(key, in_planes, planes, stride):
  k1, k2, k3 = jax.random.split(key, 3)

  def conv_init(k, shape):  # OIHW, deterministic kaiming-like normal
    fan_in = shape[1] * shape[2] * shape[3]
    return jax.random.normal(k, shape, jnp.float32) / math.sqrt(fan_in)

  params = {
      "conv1_w": conv_init(k1, (planes, in_planes, 3, 3)),
      "bn1_gamma": jnp.ones((planes,), jnp.float32),   # nn.BatchNorm2d init
      "bn1_beta": jnp.zeros((planes,), jnp.float32),
      "conv2_w": conv_init(k2, (planes, planes, 3, 3)),
      "bn2_gamma": jnp.ones((planes,), jnp.float32),
      "bn2_beta": jnp.zeros((planes,), jnp.float32),
  }
  if stride != 1 or in_planes != planes:
    params["sc_w"] = conv_init(k3, (planes, in_planes, 1, 1))
    params["sc_gamma"] = jnp.ones((planes,), jnp.float32)
    params["sc_beta"] = jnp.zeros((planes,), jnp.float32)
  return params


# ----------------------------------------------------------------------------
# BasicBlock forward (wrapper = layout glue; hot path is one fused kernel).
# ----------------------------------------------------------------------------
def basic_block_forward(params, x_nchw, stride=1):
  x = jnp.transpose(x_nchw, (0, 2, 3, 1)).astype(jnp.float32)  # NCHW -> NHWC
  b, h, w, cin = x.shape
  cout = params["conv1_w"].shape[0]
  ho = (h + 2 - 3) // stride + 1
  wo = (w + 2 - 3) // stride + 1
  rows = b * ho * wo

  # OIHW -> HWIO -> (9*Cin, Cout) bf16 matmul weights (rows ordered kh,kw,cin).
  w1 = (jnp.transpose(params["conv1_w"], (2, 3, 1, 0))
        .reshape(9 * cin, cout).astype(jnp.bfloat16))
  w2 = (jnp.transpose(params["conv2_w"], (2, 3, 1, 0))
        .reshape(9 * cout, cout).astype(jnp.bfloat16))

  def bnv(v):
    return v.reshape(1, -1).astype(jnp.float32)

  has_proj = "sc_w" in params
  if has_proj:
    wsc = params["sc_w"][:, :, 0, 0].T.astype(jnp.bfloat16)     # (Cin, Cout)
    inputs = [x, w1, w2, wsc,
              bnv(params["bn1_gamma"]), bnv(params["bn1_beta"]),
              bnv(params["bn2_gamma"]), bnv(params["bn2_beta"]),
              bnv(params["sc_gamma"]), bnv(params["sc_beta"])]
    kernel = functools.partial(_block_projection_kernel, stride=stride)
  else:
    inputs = [x, w1, w2,
              bnv(params["bn1_gamma"]), bnv(params["bn1_beta"]),
              bnv(params["bn2_gamma"]), bnv(params["bn2_beta"])]
    kernel = functools.partial(_block_identity_kernel, stride=stride)

  out3d = pl.pallas_call(
      kernel,
      grid=(1,),   # single step: training-mode BN needs full-batch statistics
      in_specs=[_full_spec(tuple(a.shape)) for a in inputs],
      out_specs=_full_spec((b, ho, wo * cout)),        # lane-dense output
      out_shape=jax.ShapeDtypeStruct((b, ho, wo * cout), jnp.float32),
      scratch_shapes=[
          pltpu.VMEM((b, h + 2, w + 2, cin), jnp.float32),     # padded x
          pltpu.VMEM((b, ho + 2, wo + 2, cout), jnp.float32),  # padded out1
          pltpu.VMEM((rows, 9 * cin), jnp.float32),            # im2col conv1
          pltpu.VMEM((rows, 9 * cout), jnp.float32),           # im2col conv2
      ],
      compiler_params=pltpu.CompilerParams(
          dimension_semantics=("arbitrary",)),
  )(*inputs)

  out = out3d.reshape(b, ho, wo, cout)
  return jnp.transpose(out, (0, 3, 1, 2))                       # NHWC -> NCHW


# ----------------------------------------------------------------------------
# Pure-JAX reference (mirrors the PyTorch forward exactly, NCHW, f32 HIGHEST).
# ----------------------------------------------------------------------------
def _reference_forward(params, x_nchw, stride=1):
  def conv(x, w, s, pad):
    return jax.lax.conv_general_dilated(
        x, w, window_strides=(s, s), padding=((pad, pad), (pad, pad)),
        dimension_numbers=("NCHW", "OIHW", "NCHW"), precision=_REF_PREC)

  def bn(x, gamma, beta):
    mean = jnp.mean(x, axis=(0, 2, 3), keepdims=True)
    var = jnp.mean(jnp.square(x - mean), axis=(0, 2, 3), keepdims=True)
    xn = (x - mean) * jax.lax.rsqrt(var + _BN_EPS)
    return xn * gamma.reshape(1, -1, 1, 1) + beta.reshape(1, -1, 1, 1)

  out = jax.nn.relu(bn(conv(x_nchw, params["conv1_w"], stride, 1),
                       params["bn1_gamma"], params["bn1_beta"]))
  out = bn(conv(out, params["conv2_w"], 1, 1),
           params["bn2_gamma"], params["bn2_beta"])
  if "sc_w" in params:
    sc = bn(conv(x_nchw, params["sc_w"], stride, 0),
            params["sc_gamma"], params["sc_beta"])
  else:
    sc = x_nchw
  return jax.nn.relu(out + sc)


if __name__ == "__main__":
  key = jax.random.PRNGKey(0)
  kx1, kx2, kp1, kp2 = jax.random.split(key, 4)

  # Tolerances: kernel matmuls are single-pass bf16 (per perf review), the
  # reference is f32 HIGHEST, so allow bf16-level error.
  MAX_ABS_TOL = 1e-1
  REL_TOL = 5e-2

  # Case 1: projection shortcut (in_planes=4 != planes=8), stride=1.
  in_planes, planes, stride = 4, 8, 1
  x1 = jax.random.normal(kx1, (2, in_planes, 16, 16), jnp.float32)  # NCHW
  p1 = init_basic_block_params(kp1, in_planes, planes, stride)
  out1 = jax.block_until_ready(basic_block_forward(p1, x1, stride=stride))
  ref1 = jax.block_until_ready(_reference_forward(p1, x1, stride=stride))
  assert out1.shape == ref1.shape == (2, planes, 16, 16), (out1.shape,)
  err1 = float(jnp.max(jnp.abs(out1 - ref1)))
  rel1 = float(jnp.linalg.norm(out1 - ref1) /
               (jnp.linalg.norm(ref1) + 1e-12))
  assert err1 < MAX_ABS_TOL and rel1 < REL_TOL, (err1, rel1)

  # Case 2: identity shortcut (in_planes == planes == 8), stride=1.
  p2 = init_basic_block_params(kp2, planes, planes, 1)
  x2 = jax.random.normal(kx2, (2, planes, 16, 16), jnp.float32)
  out2 = jax.block_until_ready(basic_block_forward(p2, x2, stride=1))
  ref2 = jax.block_until_ready(_reference_forward(p2, x2, stride=1))
  assert out2.shape == ref2.shape == (2, planes, 16, 16), (out2.shape,)
  err2 = float(jnp.max(jnp.abs(out2 - ref2)))
  rel2 = float(jnp.linalg.norm(out2 - ref2) /
               (jnp.linalg.norm(ref2) + 1e-12))
  assert err2 < MAX_ABS_TOL and rel2 < REL_TOL, (err2, rel2)

  print("KERNEL_OK")
</pallas_src>

<mosaic_0001>
module attributes {stable_mosaic.version = 11 : i64} {
  func.func @_block_projection_kernel(%arg0: i32, %arg1: memref<2x16x16x4xf32, #tpu.memory_space<vmem>>, %arg2: memref<36x8xbf16, #tpu.memory_space<vmem>>, %arg3: memref<72x8xbf16, #tpu.memory_space<vmem>>, %arg4: memref<4x8xbf16, #tpu.memory_space<vmem>>, %arg5: memref<1x8xf32, #tpu.memory_space<vmem>>, %arg6: memref<1x8xf32, #tpu.memory_space<vmem>>, %arg7: memref<1x8xf32, #tpu.memory_space<vmem>>, %arg8: memref<1x8xf32, #tpu.memory_space<vmem>>, %arg9: memref<1x8xf32, #tpu.memory_space<vmem>>, %arg10: memref<1x8xf32, #tpu.memory_space<vmem>>, %arg11: memref<2x16x128xf32, #tpu.memory_space<vmem>>, %arg12: memref<2x18x18x4xf32, #tpu.memory_space<vmem>>, %arg13: memref<2x18x18x8xf32, #tpu.memory_space<vmem>>, %arg14: memref<512x36xf32, #tpu.memory_space<vmem>>, %arg15: memref<512x72xf32, #tpu.memory_space<vmem>>) attributes {dimension_semantics = [#tpu.dimension_semantics<arbitrary>], iteration_bounds = array<i64: 1>, scalar_prefetch = 0 : i64, scratch_operands = 4 : i64, tpu.core_type = #tpu.core_type<tc>, window_params = [{pipeline_mode = #tpu.pipeline_mode<synchronous>, transform_indices = @transform_0, window_bounds = array<i64: 2, 16, 16, 4>}, {pipeline_mode = #tpu.pipeline_mode<synchronous>, transform_indices = @transform_1, window_bounds = array<i64: 36, 8>}, {pipeline_mode = #tpu.pipeline_mode<synchronous>, transform_indices = @transform_2, window_bounds = array<i64: 72, 8>}, {pipeline_mode = #tpu.pipeline_mode<synchronous>, transform_indices = @transform_3, window_bounds = array<i64: 4, 8>}, {pipeline_mode = #tpu.pipeline_mode<synchronous>, transform_indices = @transform_4, window_bounds = array<i64: 1, 8>}, {pipeline_mode = #tpu.pipeline_mode<synchronous>, transform_indices = @transform_5, window_bounds = array<i64: 1, 8>}, {pipeline_mode = #tpu.pipeline_mode<synchronous>, transform_indices = @transform_6, window_bounds = array<i64: 1, 8>}, {pipeline_mode = #tpu.pipeline_mode<synchronous>, transform_indices = @transform_7, window_bounds = array<i64: 1, 8>}, {pipeline_mode = #tpu.pipeline_mode<synchronous>, transform_indices = @transform_8, window_bounds = array<i64: 1, 8>}, {pipeline_mode = #tpu.pipeline_mode<synchronous>, transform_indices = @transform_9, window_bounds = array<i64: 1, 8>}, {pipeline_mode = #tpu.pipeline_mode<synchronous>, transform_indices = @transform_10, window_bounds = array<i64: 2, 16, 128>}]} {
    %c0 = arith.constant 0 : index
    %c0_0 = arith.constant 0 : index
    %c0_1 = arith.constant 0 : index
    %c0_2 = arith.constant 0 : index
    %0 = vector.load %arg1[%c0, %c0_0, %c0_1, %c0_2] : memref<2x16x16x4xf32, #tpu.memory_space<vmem>>, vector<2x16x16x4xf32>
    %cst = arith.constant 0.000000e+00 : f32
    %1 = vector.broadcast %cst : f32 to vector<2x1x18x4xf32>
    %cst_3 = arith.constant 0.000000e+00 : f32
    %2 = vector.broadcast %cst_3 : f32 to vector<2x18x1x4xf32>
    %c0_4 = arith.constant 0 : index
    %c0_5 = arith.constant 0 : index
    %c0_6 = arith.constant 0 : index
    %c0_7 = arith.constant 0 : index
    %3 = vector.load %arg12[%c0_4, %c0_5, %c0_6, %c0_7] : memref<2x18x18x4xf32, #tpu.memory_space<vmem>>, vector<2x1x18x4xf32>
    tpu.vector_store %arg12[%c0_4, %c0_5, %c0_6, %c0_7], %1 {strides = array<i32>} : memref<2x18x18x4xf32, #tpu.memory_space<vmem>>, vector<2x1x18x4xf32>,
    %c0_8 = arith.constant 0 : index
    %c17 = arith.constant 17 : index
    %c0_9 = arith.constant 0 : index
    %c0_10 = arith.constant 0 : index
    %4 = vector.load %arg12[%c0_8, %c17, %c0_9, %c0_10] : memref<2x18x18x4xf32, #tpu.memory_space<vmem>>, vector<2x1x18x4xf32>
    tpu.vector_store %arg12[%c0_8, %c17, %c0_9, %c0_10], %1 {strides = array<i32>} : memref<2x18x18x4xf32, #tpu.memory_space<vmem>>, vector<2x1x18x4xf32>,
    %c0_11 = arith.constant 0 : index
    %c0_12 = arith.constant 0 : index
    %c0_13 = arith.constant 0 : index
    %c0_14 = arith.constant 0 : index
    %5 = vector.load %arg12[%c0_11, %c0_12, %c0_13, %c0_14] : memref<2x18x18x4xf32, #tpu.memory_space<vmem>>, vector<2x18x1x4xf32>
    tpu.vector_store %arg12[%c0_11, %c0_12, %c0_13, %c0_14], %2 {strides = array<i32>} : memref<2x18x18x4xf32, #tpu.memory_space<vmem>>, vector<2x18x1x4xf32>,
    %c0_15 = arith.constant 0 : index
    %c0_16 = arith.constant 0 : index
    %c17_17 = arith.constant 17 : index
    %c0_18 = arith.constant 0 : index
    %6 = vector.load %arg12[%c0_15, %c0_16, %c17_17, %c0_18] : memref<2x18x18x4xf32, #tpu.memory_space<vmem>>, vector<2x18x1x4xf32>
    tpu.vector_store %arg12[%c0_15, %c0_16, %c17_17, %c0_18], %2 {strides = array<i32>} : memref<2x18x18x4xf32, #tpu.memory_space<vmem>>, vector<2x18x1x4xf32>,
    %c0_19 = arith.constant 0 : index
    %c1 = arith.constant 1 : index
    %c1_20 = arith.constant 1 : index
    %c0_21 = arith.constant 0 : index
    %7 = vector.load %arg12[%c0_19, %c1, %c1_20, %c0_21] : memref<2x18x18x4xf32, #tpu.memory_space<vmem>>, vector<2x16x16x4xf32>
    tpu.vector_store %arg12[%c0_19, %c1, %c1_20, %c0_21], %0 {strides = array<i32>} : memref<2x18x18x4xf32, #tpu.memory_space<vmem>>, vector<2x16x16x4xf32>,
    %c0_22 = arith.constant 0 : index
    %c0_23 = arith.constant 0 : index
    %c0_24 = arith.constant 0 : index
    %c0_25 = arith.constant 0 : index
    %8 = vector.load %arg12[%c0_22, %c0_23, %c0_24, %c0_25] : memref<2x18x18x4xf32, #tpu.memory_space<vmem>>, vector<2x16x16x4xf32>
    %9 = vector.shape_cast %8 : vector<2x16x16x4xf32> to vector<512x4xf32>
    %c0_26 = arith.constant 0 : index
    %c0_27 = arith.constant 0 : index
    %10 = vector.load %arg14[%c0_26, %c0_27] : memref<512x36xf32, #tpu.memory_space<vmem>>, vector<512x4xf32>
    tpu.vector_store %arg14[%c0_26, %c0_27], %9 {strides = array<i32>} : memref<512x36xf32, #tpu.memory_space<vmem>>, vector<512x4xf32>,
    %c0_28 = arith.constant 0 : index
    %c0_29 = arith.constant 0 : index
    %c1_30 = arith.constant 1 : index
    %c0_31 = arith.constant 0 : index
    %11 = vector.load %arg12[%c0_28, %c0_29, %c1_30, %c0_31] : memref<2x18x18x4xf32, #tpu.memory_space<vmem>>, vector<2x16x16x4xf32>
    %12 = vector.shape_cast %11 : vector<2x16x16x4xf32> to vector<512x4xf32>
    %c0_32 = arith.constant 0 : index
    %c4 = arith.constant 4 : index
    %13 = vector.load %arg14[%c0_32, %c4] : memref<512x36xf32, #tpu.memory_space<vmem>>, vector<512x4xf32>
    tpu.vector_store %arg14[%c0_32, %c4], %12 {strides = array<i32>} : memref<512x36xf32, #tpu.memory_space<vmem>>, vector<512x4xf32>,
    %c0_33 = arith.constant 0 : index
    %c0_34 = arith.constant 0 : index
    %c2 = arith.constant 2 : index
    %c0_35 = arith.constant 0 : index
    %14 = vector.load %arg12[%c0_33, %c0_34, %c2, %c0_35] : memref<2x18x18x4xf32, #tpu.memory_space<vmem>>, vector<2x16x16x4xf32>
    %15 = vector.shape_cast %14 : vector<2x16x16x4xf32> to vector<512x4xf32>
    %c0_36 = arith.constant 0 : index
    %c8 = arith.constant 8 : index
    %16 = vector.load %arg14[%c0_36, %c8] : memref<512x36xf32, #tpu.memory_space<vmem>>, vector<512x4xf32>
    tpu.vector_store %arg14[%c0_36, %c8], %15 {strides = array<i32>} : memref<512x36xf32, #tpu.memory_space<vmem>>, vector<512x4xf32>,
    %c0_37 = arith.constant 0 : index
    %c1_38 = arith.constant 1 : index
    %c0_39 = arith.constant 0 : index
    %c0_40 = arith.constant 0 : index
    %17 = vector.load %arg12[%c0_37, %c1_38, %c0_39, %c0_40] : memref<2x18x18x4xf32, #tpu.memory_space<vmem>>, vector<2x16x16x4xf32>
    %18 = vector.shape_cast %17 : vector<2x16x16x4xf32> to vector<512x4xf32>
    %c0_41 = arith.constant 0 : index
    %c12 = arith.constant 12 : index
    %19 = vector.load %arg14[%c0_41, %c12] : memref<512x36xf32, #tpu.memory_space<vmem>>, vector<512x4xf32>
    tpu.vector_store %arg14[%c0_41, %c12], %18 {strides = array<i32>} : memref<512x36xf32, #tpu.memory_space<vmem>>, vector<512x4xf32>,
    %c0_42 = arith.constant 0 : index
    %c1_43 = arith.constant 1 : index
    %c1_44 = arith.constant 1 : index
    %c0_45 = arith.constant 0 : index
    %20 = vector.load %arg12[%c0_42, %c1_43, %c1_44, %c0_45] : memref<2x18x18x4xf32, #tpu.memory_space<vmem>>, vector<2x16x16x4xf32>
    %21 = vector.shape_cast %20 : vector<2x16x16x4xf32> to vector<512x4xf32>
    %c0_46 = arith.constant 0 : index
    %c16 = arith.constant 16 : index
    %22 = vector.load %arg14[%c0_46, %c16] : memref<512x36xf32, #tpu.memory_space<vmem>>, vector<512x4xf32>
    tpu.vector_store %arg14[%c0_46, %c16], %21 {strides = array<i32>} : memref<512x36xf32, #tpu.memory_space<vmem>>, vector<512x4xf32>,
    %c0_47 = arith.constant 0 : index
    %c1_48 = arith.constant 1 : index
    %c2_49 = arith.constant 2 : index
    %c0_50 = arith.constant 0 : index
    %23 = vector.load %arg12[%c0_47, %c1_48, %c2_49, %c0_50] : memref<2x18x18x4xf32, #tpu.memory_space<vmem>>, vector<2x16x16x4xf32>
    %24 = vector.shape_cast %23 : vector<2x16x16x4xf32> to vector<512x4xf32>
    %c0_51 = arith.constant 0 : index
    %c20 = arith.constant 20 : index
    %25 = vector.load %arg14[%c0_51, %c20] : memref<512x36xf32, #tpu.memory_space<vmem>>, vector<512x4xf32>
    tpu.vector_store %arg14[%c0_51, %c20], %24 {strides = array<i32>} : memref<512x36xf32, #tpu.memory_space<vmem>>, vector<512x4xf32>,
    %c0_52 = arith.constant 0 : index
    %c2_53 = arith.constant 2 : index
    %c0_54 = arith.constant 0 : index
    %c0_55 = arith.constant 0 : index
    %26 = vector.load %arg12[%c0_52, %c2_53, %c0_54, %c0_55] : memref<2x18x18x4xf32, #tpu.memory_space<vmem>>, vector<2x16x16x4xf32>
    %27 = vector.shape_cast %26 : vector<2x16x16x4xf32> to vector<512x4xf32>
    %c0_56 = arith.constant 0 : index
    %c24 = arith.constant 24 : index
    %28 = vector.load %arg14[%c0_56, %c24] : memref<512x36xf32, #tpu.memory_space<vmem>>, vector<512x4xf32>
    tpu.vector_store %arg14[%c0_56, %c24], %27 {strides = array<i32>} : memref<512x36xf32, #tpu.memory_space<vmem>>, vector<512x4xf32>,
    %c0_57 = arith.constant 0 : index
    %c2_58 = arith.constant 2 : index
    %c1_59 = arith.constant 1 : index
    %c0_60 = arith.constant 0 : index
    %29 = vector.load %arg12[%c0_57, %c2_58, %c1_59, %c0_60] : memref<2x18x18x4xf32, #tpu.memory_space<vmem>>, vector<2x16x16x4xf32>
    %30 = vector.shape_cast %29 : vector<2x16x16x4xf32> to vector<512x4xf32>
    %c0_61 = arith.constant 0 : index
    %c28 = arith.constant 28 : index
    %31 = vector.load %arg14[%c0_61, %c28] : memref<512x36xf32, #tpu.memory_space<vmem>>, vector<512x4xf32>
    tpu.vector_store %arg14[%c0_61, %c28], %30 {strides = array<i32>} : memref<512x36xf32, #tpu.memory_space<vmem>>, vector<512x4xf32>,
    %c0_62 = arith.constant 0 : index
    %c2_63 = arith.constant 2 : index
    %c2_64 = arith.constant 2 : index
    %c0_65 = arith.constant 0 : index
    %32 = vector.load %arg12[%c0_62, %c2_63, %c2_64, %c0_65] : memref<2x18x18x4xf32, #tpu.memory_space<vmem>>, vector<2x16x16x4xf32>
    %33 = vector.shape_cast %32 : vector<2x16x16x4xf32> to vector<512x4xf32>
    %c0_66 = arith.constant 0 : index
    %c32 = arith.constant 32 : index
    %34 = vector.load %arg14[%c0_66, %c32] : memref<512x36xf32, #tpu.memory_space<vmem>>, vector<512x4xf32>
    tpu.vector_store %arg14[%c0_66, %c32], %33 {strides = array<i32>} : memref<512x36xf32, #tpu.memory_space<vmem>>, vector<512x4xf32>,
    %c0_67 = arith.constant 0 : index
    %c0_68 = arith.constant 0 : index
    %35 = vector.load %arg14[%c0_67, %c0_68] : memref<512x36xf32, #tpu.memory_space<vmem>>, vector<512x36xf32>
    %36 = arith.truncf %35 : vector<512x36xf32> to vector<512x36xbf16>
    %c0_69 = arith.constant 0 : index
    %c0_70 = arith.constant 0 : index
    %37 = vector.load %arg2[%c0_69, %c0_70] : memref<36x8xbf16, #tpu.memory_space<vmem>>, vector<36x8xbf16>
    %cst_71 = arith.constant dense<0.000000e+00> : vector<512x8xf32>
    %38 = tpu.matmul %36, %37, %cst_71 {dimension_numbers = #tpu.dot_dimension_numbers<[1], [0], [0], [1], [0, 0, 1, 1], [], []>} : vector<512x36xbf16>, vector<36x8xbf16>, vector<512x8xf32> -> vector<512x8xf32>
    %cst_72 = arith.constant dense<0.000000e+00> : vector<8xf32>
    %39 = vector.multi_reduction <add>, %38, %cst_72 [0] : vector<512x8xf32> to vector<8xf32>
    %40 = vector.shape_cast %39 : vector<8xf32> to vector<1x8xf32>
    %cst_73 = arith.constant 5.120000e+02 : f32
    %41 = vector.broadcast %cst_73 : f32 to vector<1x8xf32>
    %42 = arith.divf %40, %41 : vector<1x8xf32>
    %43 = arith.mulf %38, %38 : vector<512x8xf32>
    %cst_74 = arith.constant dense<0.000000e+00> : vector<8xf32>
    %44 = vector.multi_reduction <add>, %43, %cst_74 [0] : vector<512x8xf32> to vector<8xf32>
    %45 = vector.shape_cast %44 : vector<8xf32> to vector<1x8xf32>
    %cst_75 = arith.constant 5.120000e+02 : f32
    %46 = vector.broadcast %cst_75 : f32 to vector<1x8xf32>
    %47 = arith.divf %45, %46 : vector<1x8xf32>
    %48 = arith.mulf %42, %42 : vector<1x8xf32>
    %49 = arith.subf %47, %48 : vector<1x8xf32>
    %c0_76 = arith.constant 0 : index
    %c0_77 = arith.constant 0 : index
    %50 = vector.load %arg5[%c0_76, %c0_77] : memref<1x8xf32, #tpu.memory_space<vmem>>, vector<1x8xf32>
    %cst_78 = arith.constant 9.99999974E-6 : f32
    %51 = vector.broadcast %cst_78 : f32 to vector<1x8xf32>
    %52 = arith.addf %49, %51 : vector<1x8xf32>
    %53 = math.rsqrt %52 : vector<1x8xf32>
    %54 = arith.mulf %50, %53 : vector<1x8xf32>
    %c0_79 = arith.constant 0 : index
    %c0_80 = arith.constant 0 : index
    %55 = vector.load %arg6[%c0_79, %c0_80] : memref<1x8xf32, #tpu.memory_space<vmem>>, vector<1x8xf32>
    %56 = arith.mulf %42, %54 : vector<1x8xf32>
    %57 = arith.subf %55, %56 : vector<1x8xf32>
    %58 = vector.broadcast %54 : vector<1x8xf32> to vector<512x8xf32>
    %59 = arith.mulf %38, %58 : vector<512x8xf32>
    %60 = vector.broadcast %57 : vector<1x8xf32> to vector<512x8xf32>
    %61 = arith.addf %59, %60 : vector<512x8xf32>
    %cst_81 = arith.constant 0.000000e+00 : f32
    %62 = vector.broadcast %cst_81 : f32 to vector<512x8xf32>
    %63 = arith.maximumf %61, %62 : vector<512x8xf32>
    %64 = vector.shape_cast %63 : vector<512x8xf32> to vector<2x16x16x8xf32>
    %cst_82 = arith.constant 0.000000e+00 : f32
    %65 = vector.broadcast %cst_82 : f32 to vector<2x1x18x8xf32>
    %cst_83 = arith.constant 0.000000e+00 : f32
    %66 = vector.broadcast %cst_83 : f32 to vector<2x18x1x8xf32>
    %c0_84 = arith.constant 0 : index
    %c0_85 = arith.constant 0 : index
    %c0_86 = arith.constant 0 : index
    %c0_87 = arith.constant 0 : index
    %67 = vector.load %arg13[%c0_84, %c0_85, %c0_86, %c0_87] : memref<2x18x18x8xf32, #tpu.memory_space<vmem>>, vector<2x1x18x8xf32>
    tpu.vector_store %arg13[%c0_84, %c0_85, %c0_86, %c0_87], %65 {strides = array<i32>} : memref<2x18x18x8xf32, #tpu.memory_space<vmem>>, vector<2x1x18x8xf32>,
    %c0_88 = arith.constant 0 : index
    %c17_89 = arith.constant 17 : index
    %c0_90 = arith.constant 0 : index
    %c0_91 = arith.constant 0 : index
    %68 = vector.load %arg13[%c0_88, %c17_89, %c0_90, %c0_91] : memref<2x18x18x8xf32, #tpu.memory_space<vmem>>, vector<2x1x18x8xf32>
    tpu.vector_store %arg13[%c0_88, %c17_89, %c0_90, %c0_91], %65 {strides = array<i32>} : memref<2x18x18x8xf32, #tpu.memory_space<vmem>>, vector<2x1x18x8xf32>,
    %c0_92 = arith.constant 0 : index
    %c0_93 = arith.constant 0 : index
    %c0_94 = arith.constant 0 : index
    %c0_95 = arith.constant 0 : index
    %69 = vector.load %arg13[%c0_92, %c0_93, %c0_94, %c0_95] : memref<2x18x18x8xf32, #tpu.memory_space<vmem>>, vector<2x18x1x8xf32>
    tpu.vector_store %arg13[%c0_92, %c0_93, %c0_94, %c0_95], %66 {strides = array<i32>} : memref<2x18x18x8xf32, #tpu.memory_space<vmem>>, vector<2x18x1x8xf32>,
    %c0_96 = arith.constant 0 : index
    %c0_97 = arith.constant 0 : index
    %c17_98 = arith.constant 17 : index
    %c0_99 = arith.constant 0 : index
    %70 = vector.load %arg13[%c0_96, %c0_97, %c17_98, %c0_99] : memref<2x18x18x8xf32, #tpu.memory_space<vmem>>, vector<2x18x1x8xf32>
    tpu.vector_store %arg13[%c0_96, %c0_97, %c17_98, %c0_99], %66 {strides = array<i32>} : memref<2x18x18x8xf32, #tpu.memory_space<vmem>>, vector<2x18x1x8xf32>,
    %c0_100 = arith.constant 0 : index
    %c1_101 = arith.constant 1 : index
    %c1_102 = arith.constant 1 : index
    %c0_103 = arith.constant 0 : index
    %71 = vector.load %arg13[%c0_100, %c1_101, %c1_102, %c0_103] : memref<2x18x18x8xf32, #tpu.memory_space<vmem>>, vector<2x16x16x8xf32>
    tpu.vector_store %arg13[%c0_100, %c1_101, %c1_102, %c0_103], %64 {strides = array<i32>} : memref<2x18x18x8xf32, #tpu.memory_space<vmem>>, vector<2x16x16x8xf32>,
    %c0_104 = arith.constant 0 : index
    %c0_105 = arith.constant 0 : index
    %c0_106 = arith.constant 0 : index
    %c0_107 = arith.constant 0 : index
    %72 = vector.load %arg13[%c0_104, %c0_105, %c0_106, %c0_107] : memref<2x18x18x8xf32, #tpu.memory_space<vmem>>, vector<2x16x16x8xf32>
    %73 = vector.shape_cast %72 : vector<2x16x16x8xf32> to vector<512x8xf32>
    %c0_108 = arith.constant 0 : index
    %c0_109 = arith.constant 0 : index
    %74 = vector.load %arg15[%c0_108, %c0_109] : memref<512x72xf32, #tpu.memory_space<vmem>>, vector<512x8xf32>
    tpu.vector_store %arg15[%c0_108, %c0_109], %73 {strides = array<i32>} : memref<512x72xf32, #tpu.memory_space<vmem>>, vector<512x8xf32>,
    %c0_110 = arith.constant 0 : index
    %c0_111 = arith.constant 0 : index
    %c1_112 = arith.constant 1 : index
    %c0_113 = arith.constant 0 : index
    %75 = vector.load %arg13[%c0_110, %c0_111, %c1_112, %c0_113] : memref<2x18x18x8xf32, #tpu.memory_space<vmem>>, vector<2x16x16x8xf32>
    %76 = vector.shape_cast %75 : vector<2x16x16x8xf32> to vector<512x8xf32>
    %c0_114 = arith.constant 0 : index
    %c8_115 = arith.constant 8 : index
    %77 = vector.load %arg15[%c0_114, %c8_115] : memref<512x72xf32, #tpu.memory_space<vmem>>, vector<512x8xf32>
    tpu.vector_store %arg15[%c0_114, %c8_115], %76 {strides = array<i32>} : memref<512x72xf32, #tpu.memory_space<vmem>>, vector<512x8xf32>,
    %c0_116 = arith.constant 0 : index
    %c0_117 = arith.constant 0 : index
    %c2_118 = arith.constant 2 : index
    %c0_119 = arith.constant 0 : index
    %78 = vector.load %arg13[%c0_116, %c0_117, %c2_118, %c0_119] : memref<2x18x18x8xf32, #tpu.memory_space<vmem>>, vector<2x16x16x8xf32>
    %79 = vector.shape_cast %78 : vector<2x16x16x8xf32> to vector<512x8xf32>
    %c0_120 = arith.constant 0 : index
    %c16_121 = arith.constant 16 : index
    %80 = vector.load %arg15[%c0_120, %c16_121] : memref<512x72xf32, #tpu.memory_space<vmem>>, vector<512x8xf32>
    tpu.vector_store %arg15[%c0_120, %c16_121], %79 {strides = array<i32>} : memref<512x72xf32, #tpu.memory_space<vmem>>, vector<512x8xf32>,
    %c0_122 = arith.constant 0 : index
    %c1_123 = arith.constant 1 : index
    %c0_124 = arith.constant 0 : index
    %c0_125 = arith.constant 0 : index
    %81 = vector.load %arg13[%c0_122, %c1_123, %c0_124, %c0_125] : memref<2x18x18x8xf32, #tpu.memory_space<vmem>>, vector<2x16x16x8xf32>
    %82 = vector.shape_cast %81 : vector<2x16x16x8xf32> to vector<512x8xf32>
    %c0_126 = arith.constant 0 : index
    %c24_127 = arith.constant 24 : index
    %83 = vector.load %arg15[%c0_126, %c24_127] : memref<512x72xf32, #tpu.memory_space<vmem>>, vector<512x8xf32>
    tpu.vector_store %arg15[%c0_126, %c24_127], %82 {strides = array<i32>} : memref<512x72xf32, #tpu.memory_space<vmem>>, vector<512x8xf32>,
    %c0_128 = arith.constant 0 : index
    %c1_129 = arith.constant 1 : index
    %c1_130 = arith.constant 1 : index
    %c0_131 = arith.constant 0 : index
    %84 = vector.load %arg13[%c0_128, %c1_129, %c1_130, %c0_131] : memref<2x18x18x8xf32, #tpu.memory_space<vmem>>, vector<2x16x16x8xf32>
    %85 = vector.shape_cast %84 : vector<2x16x16x8xf32> to vector<512x8xf32>
    %c0_132 = arith.constant 0 : index
    %c32_133 = arith.constant 32 : index
    %86 = vector.load %arg15[%c0_132, %c32_133] : memref<512x72xf32, #tpu.memory_space<vmem>>, vector<512x8xf32>
    tpu.vector_store %arg15[%c0_132, %c32_133], %85 {strides = array<i32>} : memref<512x72xf32, #tpu.memory_space<vmem>>, vector<512x8xf32>,
    %c0_134 = arith.constant 0 : index
    %c1_135 = arith.constant 1 : index
    %c2_136 = arith.constant 2 : index
    %c0_137 = arith.constant 0 : index
    %87 = vector.load %arg13[%c0_134, %c1_135, %c2_136, %c0_137] : memref<2x18x18x8xf32, #tpu.memory_space<vmem>>, vector<2x16x16x8xf32>
    %88 = vector.shape_cast %87 : vector<2x16x16x8xf32> to vector<512x8xf32>
    %c0_138 = arith.constant 0 : index
    %c40 = arith.constant 40 : index
    %89 = vector.load %arg15[%c0_138, %c40] : memref<512x72xf32, #tpu.memory_space<vmem>>, vector<512x8xf32>
    tpu.vector_store %arg15[%c0_138, %c40], %88 {strides = array<i32>} : memref<512x72xf32, #tpu.memory_space<vmem>>, vector<512x8xf32>,
    %c0_139 = arith.constant 0 : index
    %c2_140 = arith.constant 2 : index
    %c0_141 = arith.constant 0 : index
    %c0_142 = arith.constant 0 : index
    %90 = vector.load %arg13[%c0_139, %c2_140, %c0_141, %c0_142] : memref<2x18x18x8xf32, #tpu.memory_space<vmem>>, vector<2x16x16x8xf32>
    %91 = vector.shape_cast %90 : vector<2x16x16x8xf32> to vector<512x8xf32>
    %c0_143 = arith.constant 0 : index
    %c48 = arith.constant 48 : index
    %92 = vector.load %arg15[%c0_143, %c48] : memref<512x72xf32, #tpu.memory_space<vmem>>, vector<512x8xf32>
    tpu.vector_store %arg15[%c0_143, %c48], %91 {strides = array<i32>} : memref<512x72xf32, #tpu.memory_space<vmem>>, vector<512x8xf32>,
    %c0_144 = arith.constant 0 : index
    %c2_145 = arith.constant 2 : index
    %c1_146 = arith.constant 1 : index
    %c0_147 = arith.constant 0 : index
    %93 = vector.load %arg13[%c0_144, %c2_145, %c1_146, %c0_147] : memref<2x18x18x8xf32, #tpu.memory_space<vmem>>, vector<2x16x16x8xf32>
    %94 = vector.shape_cast %93 : vector<2x16x16x8xf32> to vector<512x8xf32>
    %c0_148 = arith.constant 0 : index
    %c56 = arith.constant 56 : index
    %95 = vector.load %arg15[%c0_148, %c56] : memref<512x72xf32, #tpu.memory_space<vmem>>, vector<512x8xf32>
    tpu.vector_store %arg15[%c0_148, %c56], %94 {strides = array<i32>} : memref<512x72xf32, #tpu.memory_space<vmem>>, vector<512x8xf32>,
    %c0_149 = arith.constant 0 : index
    %c2_150 = arith.constant 2 : index
    %c2_151 = arith.constant 2 : index
    %c0_152 = arith.constant 0 : index
    %96 = vector.load %arg13[%c0_149, %c2_150, %c2_151, %c0_152] : memref<2x18x18x8xf32, #tpu.memory_space<vmem>>, vector<2x16x16x8xf32>
    %97 = vector.shape_cast %96 : vector<2x16x16x8xf32> to vector<512x8xf32>
    %c0_153 = arith.constant 0 : index
    %c64 = arith.constant 64 : index
    %98 = vector.load %arg15[%c0_153, %c64] : memref<512x72xf32, #tpu.memory_space<vmem>>, vector<512x8xf32>
    tpu.vector_store %arg15[%c0_153, %c64], %97 {strides = array<i32>} : memref<512x72xf32, #tpu.memory_space<vmem>>, vector<512x8xf32>,
    %c0_154 = arith.constant 0 : index
    %c0_155 = arith.constant 0 : index
    %99 = vector.load %arg15[%c0_154, %c0_155] : memref<512x72xf32, #tpu.memory_space<vmem>>, vector<512x72xf32>
    %100 = arith.truncf %99 : vector<512x72xf32> to vector<512x72xbf16>
    %c0_156 = arith.constant 0 : index
    %c0_157 = arith.constant 0 : index
    %101 = vector.load %arg3[%c0_156, %c0_157] : memref<72x8xbf16, #tpu.memory_space<vmem>>, vector<72x8xbf16>
    %cst_158 = arith.constant dense<0.000000e+00> : vector<512x8xf32>
    %102 = tpu.matmul %100, %101, %cst_158 {dimension_numbers = #tpu.dot_dimension_numbers<[1], [0], [0], [1], [0, 0, 1, 1], [], []>} : vector<512x72xbf16>, vector<72x8xbf16>, vector<512x8xf32> -> vector<512x8xf32>
    %cst_159 = arith.constant dense<0.000000e+00> : vector<8xf32>
    %103 = vector.multi_reduction <add>, %102, %cst_159 [0] : vector<512x8xf32> to vector<8xf32>
    %104 = vector.shape_cast %103 : vector<8xf32> to vector<1x8xf32>
    %cst_160 = arith.constant 5.120000e+02 : f32
    %105 = vector.broadcast %cst_160 : f32 to vector<1x8xf32>
    %106 = arith.divf %104, %105 : vector<1x8xf32>
    %107 = arith.mulf %102, %102 : vector<512x8xf32>
    %cst_161 = arith.constant dense<0.000000e+00> : vector<8xf32>
    %108 = vector.multi_reduction <add>, %107, %cst_161 [0] : vector<512x8xf32> to vector<8xf32>
    %109 = vector.shape_cast %108 : vector<8xf32> to vector<1x8xf32>
    %cst_162 = arith.constant 5.120000e+02 : f32
    %110 = vector.broadcast %cst_162 : f32 to vector<1x8xf32>
    %111 = arith.divf %109, %110 : vector<1x8xf32>
    %112 = arith.mulf %106, %106 : vector<1x8xf32>
    %113 = arith.subf %111, %112 : vector<1x8xf32>
    %c0_163 = arith.constant 0 : index
    %c0_164 = arith.constant 0 : index
    %114 = vector.load %arg7[%c0_163, %c0_164] : memref<1x8xf32, #tpu.memory_space<vmem>>, vector<1x8xf32>
    %cst_165 = arith.constant 9.99999974E-6 : f32
    %115 = vector.broadcast %cst_165 : f32 to vector<1x8xf32>
    %116 = arith.addf %113, %115 : vector<1x8xf32>
    %117 = math.rsqrt %116 : vector<1x8xf32>
    %118 = arith.mulf %114, %117 : vector<1x8xf32>
    %c0_166 = arith.constant 0 : index
    %c0_167 = arith.constant 0 : index
    %119 = vector.load %arg8[%c0_166, %c0_167] : memref<1x8xf32, #tpu.memory_space<vmem>>, vector<1x8xf32>
    %120 = arith.mulf %106, %118 : vector<1x8xf32>
    %121 = arith.subf %119, %120 : vector<1x8xf32>
    %122 = vector.broadcast %118 : vector<1x8xf32> to vector<512x8xf32>
    %123 = arith.mulf %102, %122 : vector<512x8xf32>
    %124 = vector.broadcast %121 : vector<1x8xf32> to vector<512x8xf32>
    %125 = arith.addf %123, %124 : vector<512x8xf32>
    %c0_168 = arith.constant 0 : index
    %c0_169 = arith.constant 0 : index
    %c0_170 = arith.constant 0 : index
    %c0_171 = arith.constant 0 : index
    %126 = vector.load %arg1[%c0_168, %c0_169, %c0_170, %c0_171] : memref<2x16x16x4xf32, #tpu.memory_space<vmem>>, vector<2x16x16x4xf32>
    %127 = vector.shape_cast %126 : vector<2x16x16x4xf32> to vector<512x4xf32>
    %128 = arith.truncf %127 : vector<512x4xf32> to vector<512x4xbf16>
    %c0_172 = arith.constant 0 : index
    %c0_173 = arith.constant 0 : index
    %129 = vector.load %arg4[%c0_172, %c0_173] : memref<4x8xbf16, #tpu.memory_space<vmem>>, vector<4x8xbf16>
    %cst_174 = arith.constant dense<0.000000e+00> : vector<512x8xf32>
    %130 = tpu.matmul %128, %129, %cst_174 {dimension_numbers = #tpu.dot_dimension_numbers<[1], [0], [0], [1], [0, 0, 1, 1], [], []>} : vector<512x4xbf16>, vector<4x8xbf16>, vector<512x8xf32> -> vector<512x8xf32>
    %cst_175 = arith.constant dense<0.000000e+00> : vector<8xf32>
    %131 = vector.multi_reduction <add>, %130, %cst_175 [0] : vector<512x8xf32> to vector<8xf32>
    %132 = vector.shape_cast %131 : vector<8xf32> to vector<1x8xf32>
    %cst_176 = arith.constant 5.120000e+02 : f32
    %133 = vector.broadcast %cst_176 : f32 to vector<1x8xf32>
    %134 = arith.divf %132, %133 : vector<1x8xf32>
    %135 = arith.mulf %130, %130 : vector<512x8xf32>
    %cst_177 = arith.constant dense<0.000000e+00> : vector<8xf32>
    %136 = vector.multi_reduction <add>, %135, %cst_177 [0] : vector<512x8xf32> to vector<8xf32>
    %137 = vector.shape_cast %136 : vector<8xf32> to vector<1x8xf32>
    %cst_178 = arith.constant 5.120000e+02 : f32
    %138 = vector.broadcast %cst_178 : f32 to vector<1x8xf32>
    %139 = arith.divf %137, %138 : vector<1x8xf32>
    %140 = arith.mulf %134, %134 : vector<1x8xf32>
    %141 = arith.subf %139, %140 : vector<1x8xf32>
    %c0_179 = arith.constant 0 : index
    %c0_180 = arith.constant 0 : index
    %142 = vector.load %arg9[%c0_179, %c0_180] : memref<1x8xf32, #tpu.memory_space<vmem>>, vector<1x8xf32>
    %cst_181 = arith.constant 9.99999974E-6 : f32
    %143 = vector.broadcast %cst_181 : f32 to vector<1x8xf32>
    %144 = arith.addf %141, %143 : vector<1x8xf32>
    %145 = math.rsqrt %144 : vector<1x8xf32>
    %146 = arith.mulf %142, %145 : vector<1x8xf32>
    %c0_182 = arith.constant 0 : index
    %c0_183 = arith.constant 0 : index
    %147 = vector.load %arg10[%c0_182, %c0_183] : memref<1x8xf32, #tpu.memory_space<vmem>>, vector<1x8xf32>
    %148 = arith.mulf %134, %146 : vector<1x8xf32>
    %149 = arith.subf %147, %148 : vector<1x8xf32>
    %150 = vector.broadcast %146 : vector<1x8xf32> to vector<512x8xf32>
    %151 = arith.mulf %130, %150 : vector<512x8xf32>
    %152 = vector.broadcast %149 : vector<1x8xf32> to vector<512x8xf32>
    %153 = arith.addf %151, %152 : vector<512x8xf32>
    %154 = arith.addf %125, %153 : vector<512x8xf32>
    %cst_184 = arith.constant 0.000000e+00 : f32
    %155 = vector.broadcast %cst_184 : f32 to vector<512x8xf32>
    %156 = arith.maximumf %154, %155 : vector<512x8xf32>
    %157 = vector.shape_cast %156 : vector<512x8xf32> to vector<2x16x16x8xf32>
    %158 = vector.extract_strided_slice %157 {offsets = [0, 0, 0, 0], sizes = [2, 16, 1, 8], strides = [1, 1, 1, 1]} : vector<2x16x16x8xf32> to vector<2x16x1x8xf32>
    %159 = vector.shape_cast %158 : vector<2x16x1x8xf32> to vector<2x16x8xf32>
    %c0_185 = arith.constant 0 : index
    %c0_186 = arith.constant 0 : index
    %c0_187 = arith.constant 0 : index
    %160 = vector.load %arg11[%c0_185, %c0_186, %c0_187] : memref<2x16x128xf32, #tpu.memory_space<vmem>>, vector<2x16x8xf32>
    tpu.vector_store %arg11[%c0_185, %c0_186, %c0_187], %159 {strides = array<i32>} : memref<2x16x128xf32, #tpu.memory_space<vmem>>, vector<2x16x8xf32>,
    %161 = vector.extract_strided_slice %157 {offsets = [0, 0, 1, 0], sizes = [2, 16, 1, 8], strides = [1, 1, 1, 1]} : vector<2x16x16x8xf32> to vector<2x16x1x8xf32>
    %162 = vector.shape_cast %161 : vector<2x16x1x8xf32> to vector<2x16x8xf32>
    %c0_188 = arith.constant 0 : index
    %c0_189 = arith.constant 0 : index
    %c8_190 = arith.constant 8 : index
    %163 = vector.load %arg11[%c0_188, %c0_189, %c8_190] : memref<2x16x128xf32, #tpu.memory_space<vmem>>, vector<2x16x8xf32>
    tpu.vector_store %arg11[%c0_188, %c0_189, %c8_190], %162 {strides = array<i32>} : memref<2x16x128xf32, #tpu.memory_space<vmem>>, vector<2x16x8xf32>,
    %164 = vector.extract_strided_slice %157 {offsets = [0, 0, 2, 0], sizes = [2, 16, 1, 8], strides = [1, 1, 1, 1]} : vector<2x16x16x8xf32> to vector<2x16x1x8xf32>
    %165 = vector.shape_cast %164 : vector<2x16x1x8xf32> to vector<2x16x8xf32>
    %c0_191 = arith.constant 0 : index
    %c0_192 = arith.constant 0 : index
    %c16_193 = arith.constant 16 : index
    %166 = vector.load %arg11[%c0_191, %c0_192, %c16_193] : memref<2x16x128xf32, #tpu.memory_space<vmem>>, vector<2x16x8xf32>
    tpu.vector_store %arg11[%c0_191, %c0_192, %c16_193], %165 {strides = array<i32>} : memref<2x16x128xf32, #tpu.memory_space<vmem>>, vector<2x16x8xf32>,
    %167 = vector.extract_strided_slice %157 {offsets = [0, 0, 3, 0], sizes = [2, 16, 1, 8], strides = [1, 1, 1, 1]} : vector<2x16x16x8xf32> to vector<2x16x1x8xf32>
    %168 = vector.shape_cast %167 : vector<2x16x1x8xf32> to vector<2x16x8xf32>
    %c0_194 = arith.constant 0 : index
    %c0_195 = arith.constant 0 : index
    %c24_196 = arith.constant 24 : index
    %169 = vector.load %arg11[%c0_194, %c0_195, %c24_196] : memref<2x16x128xf32, #tpu.memory_space<vmem>>, vector<2x16x8xf32>
    tpu.vector_store %arg11[%c0_194, %c0_195, %c24_196], %168 {strides = array<i32>} : memref<2x16x128xf32, #tpu.memory_space<vmem>>, vector<2x16x8xf32>,
    %170 = vector.extract_strided_slice %157 {offsets = [0, 0, 4, 0], sizes = [2, 16, 1, 8], strides = [1, 1, 1, 1]} : vector<2x16x16x8xf32> to vector<2x16x1x8xf32>
    %171 = vector.shape_cast %170 : vector<2x16x1x8xf32> to vector<2x16x8xf32>
    %c0_197 = arith.constant 0 : index
    %c0_198 = arith.constant 0 : index
    %c32_199 = arith.constant 32 : index
    %172 = vector.load %arg11[%c0_197, %c0_198, %c32_199] : memref<2x16x128xf32, #tpu.memory_space<vmem>>, vector<2x16x8xf32>
    tpu.vector_store %arg11[%c0_197, %c0_198, %c32_199], %171 {strides = array<i32>} : memref<2x16x128xf32, #tpu.memory_space<vmem>>, vector<2x16x8xf32>,
    %173 = vector.extract_strided_slice %157 {offsets = [0, 0, 5, 0], sizes = [2, 16, 1, 8], strides = [1, 1, 1, 1]} : vector<2x16x16x8xf32> to vector<2x16x1x8xf32>
    %174 = vector.shape_cast %173 : vector<2x16x1x8xf32> to vector<2x16x8xf32>
    %c0_200 = arith.constant 0 : index
    %c0_201 = arith.constant 0 : index
    %c40_202 = arith.constant 40 : index
    %175 = vector.load %arg11[%c0_200, %c0_201, %c40_202] : memref<2x16x128xf32, #tpu.memory_space<vmem>>, vector<2x16x8xf32>
    tpu.vector_store %arg11[%c0_200, %c0_201, %c40_202], %174 {strides = array<i32>} : memref<2x16x128xf32, #tpu.memory_space<vmem>>, vector<2x16x8xf32>,
    %176 = vector.extract_strided_slice %157 {offsets = [0, 0, 6, 0], sizes = [2, 16, 1, 8], strides = [1, 1, 1, 1]} : vector<2x16x16x8xf32> to vector<2x16x1x8xf32>
    %177 = vector.shape_cast %176 : vector<2x16x1x8xf32> to vector<2x16x8xf32>
    %c0_203 = arith.constant 0 : index
    %c0_204 = arith.constant 0 : index
    %c48_205 = arith.constant 48 : index
    %178 = vector.load %arg11[%c0_203, %c0_204, %c48_205] : memref<2x16x128xf32, #tpu.memory_space<vmem>>, vector<2x16x8xf32>
    tpu.vector_store %arg11[%c0_203, %c0_204, %c48_205], %177 {strides = array<i32>} : memref<2x16x128xf32, #tpu.memory_space<vmem>>, vector<2x16x8xf32>,
    %179 = vector.extract_strided_slice %157 {offsets = [0, 0, 7, 0], sizes = [2, 16, 1, 8], strides = [1, 1, 1, 1]} : vector<2x16x16x8xf32> to vector<2x16x1x8xf32>
    %180 = vector.shape_cast %179 : vector<2x16x1x8xf32> to vector<2x16x8xf32>
    %c0_206 = arith.constant 0 : index
    %c0_207 = arith.constant 0 : index
    %c56_208 = arith.constant 56 : index
    %181 = vector.load %arg11[%c0_206, %c0_207, %c56_208] : memref<2x16x128xf32, #tpu.memory_space<vmem>>, vector<2x16x8xf32>
    tpu.vector_store %arg11[%c0_206, %c0_207, %c56_208], %180 {strides = array<i32>} : memref<2x16x128xf32, #tpu.memory_space<vmem>>, vector<2x16x8xf32>,
    %182 = vector.extract_strided_slice %157 {offsets = [0, 0, 8, 0], sizes = [2, 16, 1, 8], strides = [1, 1, 1, 1]} : vector<2x16x16x8xf32> to vector<2x16x1x8xf32>
    %183 = vector.shape_cast %182 : vector<2x16x1x8xf32> to vector<2x16x8xf32>
    %c0_209 = arith.constant 0 : index
    %c0_210 = arith.constant 0 : index
    %c64_211 = arith.constant 64 : index
    %184 = vector.load %arg11[%c0_209, %c0_210, %c64_211] : memref<2x16x128xf32, #tpu.memory_space<vmem>>, vector<2x16x8xf32>
    tpu.vector_store %arg11[%c0_209, %c0_210, %c64_211], %183 {strides = array<i32>} : memref<2x16x128xf32, #tpu.memory_space<vmem>>, vector<2x16x8xf32>,
    %185 = vector.extract_strided_slice %157 {offsets = [0, 0, 9, 0], sizes = [2, 16, 1, 8], strides = [1, 1, 1, 1]} : vector<2x16x16x8xf32> to vector<2x16x1x8xf32>
    %186 = vector.shape_cast %185 : vector<2x16x1x8xf32> to vector<2x16x8xf32>
    %c0_212 = arith.constant 0 : index
    %c0_213 = arith.constant 0 : index
    %c72 = arith.constant 72 : index
    %187 = vector.load %arg11[%c0_212, %c0_213, %c72] : memref<2x16x128xf32, #tpu.memory_space<vmem>>, vector<2x16x8xf32>
    tpu.vector_store %arg11[%c0_212, %c0_213, %c72], %186 {strides = array<i32>} : memref<2x16x128xf32, #tpu.memory_space<vmem>>, vector<2x16x8xf32>,
    %188 = vector.extract_strided_slice %157 {offsets = [0, 0, 10, 0], sizes = [2, 16, 1, 8], strides = [1, 1, 1, 1]} : vector<2x16x16x8xf32> to vector<2x16x1x8xf32>
    %189 = vector.shape_cast %188 : vector<2x16x1x8xf32> to vector<2x16x8xf32>
    %c0_214 = arith.constant 0 : index
    %c0_215 = arith.constant 0 : index
    %c80 = arith.constant 80 : index
    %190 = vector.load %arg11[%c0_214, %c0_215, %c80] : memref<2x16x128xf32, #tpu.memory_space<vmem>>, vector<2x16x8xf32>
    tpu.vector_store %arg11[%c0_214, %c0_215, %c80], %189 {strides = array<i32>} : memref<2x16x128xf32, #tpu.memory_space<vmem>>, vector<2x16x8xf32>,
    %191 = vector.extract_strided_slice %157 {offsets = [0, 0, 11, 0], sizes = [2, 16, 1, 8], strides = [1, 1, 1, 1]} : vector<2x16x16x8xf32> to vector<2x16x1x8xf32>
    %192 = vector.shape_cast %191 : vector<2x16x1x8xf32> to vector<2x16x8xf32>
    %c0_216 = arith.constant 0 : index
    %c0_217 = arith.constant 0 : index
    %c88 = arith.constant 88 : index
    %193 = vector.load %arg11[%c0_216, %c0_217, %c88] : memref<2x16x128xf32, #tpu.memory_space<vmem>>, vector<2x16x8xf32>
    tpu.vector_store %arg11[%c0_216, %c0_217, %c88], %192 {strides = array<i32>} : memref<2x16x128xf32, #tpu.memory_space<vmem>>, vector<2x16x8xf32>,
    %194 = vector.extract_strided_slice %157 {offsets = [0, 0, 12, 0], sizes = [2, 16, 1, 8], strides = [1, 1, 1, 1]} : vector<2x16x16x8xf32> to vector<2x16x1x8xf32>
    %195 = vector.shape_cast %194 : vector<2x16x1x8xf32> to vector<2x16x8xf32>
    %c0_218 = arith.constant 0 : index
    %c0_219 = arith.constant 0 : index
    %c96 = arith.constant 96 : index
    %196 = vector.load %arg11[%c0_218, %c0_219, %c96] : memref<2x16x128xf32, #tpu.memory_space<vmem>>, vector<2x16x8xf32>
    tpu.vector_store %arg11[%c0_218, %c0_219, %c96], %195 {strides = array<i32>} : memref<2x16x128xf32, #tpu.memory_space<vmem>>, vector<2x16x8xf32>,
    %197 = vector.extract_strided_slice %157 {offsets = [0, 0, 13, 0], sizes = [2, 16, 1, 8], strides = [1, 1, 1, 1]} : vector<2x16x16x8xf32> to vector<2x16x1x8xf32>
    %198 = vector.shape_cast %197 : vector<2x16x1x8xf32> to vector<2x16x8xf32>
    %c0_220 = arith.constant 0 : index
    %c0_221 = arith.constant 0 : index
    %c104 = arith.constant 104 : index
    %199 = vector.load %arg11[%c0_220, %c0_221, %c104] : memref<2x16x128xf32, #tpu.memory_space<vmem>>, vector<2x16x8xf32>
    tpu.vector_store %arg11[%c0_220, %c0_221, %c104], %198 {strides = array<i32>} : memref<2x16x128xf32, #tpu.memory_space<vmem>>, vector<2x16x8xf32>,
    %200 = vector.extract_strided_slice %157 {offsets = [0, 0, 14, 0], sizes = [2, 16, 1, 8], strides = [1, 1, 1, 1]} : vector<2x16x16x8xf32> to vector<2x16x1x8xf32>
    %201 = vector.shape_cast %200 : vector<2x16x1x8xf32> to vector<2x16x8xf32>
    %c0_222 = arith.constant 0 : index
    %c0_223 = arith.constant 0 : index
    %c112 = arith.constant 112 : index
    %202 = vector.load %arg11[%c0_222, %c0_223, %c112] : memref<2x16x128xf32, #tpu.memory_space<vmem>>, vector<2x16x8xf32>
    tpu.vector_store %arg11[%c0_222, %c0_223, %c112], %201 {strides = array<i32>} : memref<2x16x128xf32, #tpu.memory_space<vmem>>, vector<2x16x8xf32>,
    %203 = vector.extract_strided_slice %157 {offsets = [0, 0, 15, 0], sizes = [2, 16, 1, 8], strides = [1, 1, 1, 1]} : vector<2x16x16x8xf32> to vector<2x16x1x8xf32>
    %204 = vector.shape_cast %203 : vector<2x16x1x8xf32> to vector<2x16x8xf32>
    %c0_224 = arith.constant 0 : index
    %c0_225 = arith.constant 0 : index
    %c120 = arith.constant 120 : index
    %205 = vector.load %arg11[%c0_224, %c0_225, %c120] : memref<2x16x128xf32, #tpu.memory_space<vmem>>, vector<2x16x8xf32>
    tpu.vector_store %arg11[%c0_224, %c0_225, %c120], %204 {strides = array<i32>} : memref<2x16x128xf32, #tpu.memory_space<vmem>>, vector<2x16x8xf32>,
    return
  }
  func.func @transform_0(%arg0: i32) -> (i32, i32, i32, i32) {
    %c0_i32 = arith.constant 0 : i32
    %c0_i32_0 = arith.constant 0 : i32
    %c0_i32_1 = arith.constant 0 : i32
    %c0_i32_2 = arith.constant 0 : i32
    %c0_i32_3 = arith.constant 0 : i32
    return %c0_i32, %c0_i32_0, %c0_i32_1, %c0_i32_2 : i32, i32, i32, i32
  }
  func.func @transform_1(%arg0: i32) -> (i32, i32) {
    %c0_i32 = arith.constant 0 : i32
    %c0_i32_0 = arith.constant 0 : i32
    %c0_i32_1 = arith.constant 0 : i32
    return %c0_i32, %c0_i32_0 : i32, i32
  }
  func.func @transform_2(%arg0: i32) -> (i32, i32) {
    %c0_i32 = arith.constant 0 : i32
    %c0_i32_0 = arith.constant 0 : i32
    %c0_i32_1 = arith.constant 0 : i32
    return %c0_i32, %c0_i32_0 : i32, i32
  }
  func.func @transform_3(%arg0: i32) -> (i32, i32) {
    %c0_i32 = arith.constant 0 : i32
    %c0_i32_0 = arith.constant 0 : i32
    %c0_i32_1 = arith.constant 0 : i32
    return %c0_i32, %c0_i32_0 : i32, i32
  }
  func.func @transform_4(%arg0: i32) -> (i32, i32) {
    %c0_i32 = arith.constant 0 : i32
    %c0_i32_0 = arith.constant 0 : i32
    %c0_i32_1 = arith.constant 0 : i32
    return %c0_i32, %c0_i32_0 : i32, i32
  }
  func.func @transform_5(%arg0: i32) -> (i32, i32) {
    %c0_i32 = arith.constant 0 : i32
    %c0_i32_0 = arith.constant 0 : i32
    %c0_i32_1 = arith.constant 0 : i32
    return %c0_i32, %c0_i32_0 : i32, i32
  }
  func.func @transform_6(%arg0: i32) -> (i32, i32) {
    %c0_i32 = arith.constant 0 : i32
    %c0_i32_0 = arith.constant 0 : i32
    %c0_i32_1 = arith.constant 0 : i32
    return %c0_i32, %c0_i32_0 : i32, i32
  }
  func.func @transform_7(%arg0: i32) -> (i32, i32) {
    %c0_i32 = arith.constant 0 : i32
    %c0_i32_0 = arith.constant 0 : i32
    %c0_i32_1 = arith.constant 0 : i32
    return %c0_i32, %c0_i32_0 : i32, i32
  }
  func.func @transform_8(%arg0: i32) -> (i32, i32) {
    %c0_i32 = arith.constant 0 : i32
    %c0_i32_0 = arith.constant 0 : i32
    %c0_i32_1 = arith.constant 0 : i32
    return %c0_i32, %c0_i32_0 : i32, i32
  }
  func.func @transform_9(%arg0: i32) -> (i32, i32) {
    %c0_i32 = arith.constant 0 : i32
    %c0_i32_0 = arith.constant 0 : i32
    %c0_i32_1 = arith.constant 0 : i32
    return %c0_i32, %c0_i32_0 : i32, i32
  }
  func.func @transform_10(%arg0: i32) -> (i32, i32, i32) {
    %c0_i32 = arith.constant 0 : i32
    %c0_i32_0 = arith.constant 0 : i32
    %c0_i32_1 = arith.constant 0 : i32
    %c0_i32_2 = arith.constant 0 : i32
    return %c0_i32, %c0_i32_0, %c0_i32_1 : i32, i32, i32
  }
}

</mosaic_0001>

<llo_original>
// kernel: tpu_custom_call.1
$region0: #{tpu_custom_call.1}
  #allocation0 [shape = 'u32[]', space=smem, size = 0x4, offset = 0x4, fixed_abs, tag = 'smem constant byte address 0x4 - core index']
  #allocation1 [shape = 'u32[144,128]{1,0:T(1,128)}', space=vmem, size = 0x12000, scoped, tag = 'internal scratch']
  #allocation2 [shape = 'f32[2,18,18,4]{3,2,1,0:T(8,128)}', space=vmem, size = 0x6c000, scoped, tag = 'scratch operand']
  #allocation3 [shape = 'f32[2,18,18,8]{3,2,1,0:T(8,128)}', space=vmem, size = 0x6c000, scoped, tag = 'scratch operand']
  #allocation4 [shape = 'f32[512,36]{1,0:T(8,128)}', space=vmem, size = 0x40000, scoped, tag = 'scratch operand']
  #allocation5 [shape = 'f32[512,72]{1,0:T(8,128)}', space=vmem, size = 0x40000, scoped, tag = 'scratch operand']
  %s0 = inlined_call_operand.vmem [shape: f32[2,16,16,4], index: 0, kind: input, shape index: {}]
  %s1 = inlined_call_operand.vmem [shape: bf16[36,8], index: 1, kind: input, shape index: {}]
  %s2 = inlined_call_operand.vmem [shape: bf16[72,8], index: 2, kind: input, shape index: {}]
  %s3 = inlined_call_operand.vmem [shape: bf16[4,8], index: 3, kind: input, shape index: {}]
  %s4 = inlined_call_operand.vmem [shape: f32[1,8], index: 4, kind: input, shape index: {}]
  %s5 = inlined_call_operand.vmem [shape: f32[1,8], index: 5, kind: input, shape index: {}]
  %s6 = inlined_call_operand.vmem [shape: f32[1,8], index: 6, kind: input, shape index: {}]
  %s7 = inlined_call_operand.vmem [shape: f32[1,8], index: 7, kind: input, shape index: {}]
  %s8 = inlined_call_operand.vmem [shape: f32[1,8], index: 8, kind: input, shape index: {}]
  %s9 = inlined_call_operand.vmem [shape: f32[1,8], index: 9, kind: input, shape index: {}]
  %s10 = inlined_call_operand.hbm [shape: f32[2,16,128], index: 10, kind: output, shape index: {}]
  %s11 = sld [smem:[#allocation0]]
  $region50: #{tpu_custom_call.1} parent=0
    _
  %s13 = ssub.s32 1, %s11
  %s14 = scalar_select 0, %s13, %s11
  $region1: #{tpu_custom_call.1} parent=0
    #allocation6 [shape = 'u8[16384]{0}', space=vmem, size = 0x4000, scoped, tag = 'output window, operand 0, single buffered']
    #allocation7 [shape = 's32[1]{0}', space=sflag, size = 0x4, scoped, tag = 'scoped memory for tpu_custom_call.1']
    %15 = vsyncpa [#allocation7], 0
    // Predicated region
    $region2: #{tpu_custom_call.1} parent=1 // pred_check
      _
    $region3: #{tpu_custom_call.1} parent=1 // pred_check_branch
      %17 = sbr.rel (0) target = $region5
    $region4: #{tpu_custom_call.1} parent=1 // pred_region
      _
    $region5: #{tpu_custom_call.1} parent=1 // pred_fallthru
      _
    // Predicated region
    $region6: #{tpu_custom_call.1} parent=1 // pred_check
      _
    $region7: #{tpu_custom_call.1} parent=1 // pred_check_branch
      %19 = sbr.rel (0) target = $region9
    $region8: #{tpu_custom_call.1} parent=1 // pred_region
      _
    $region9: #{tpu_custom_call.1} parent=1 // pred_fallthru
      _
    // Predicated region
    $region10: #{tpu_custom_call.1} parent=1 // pred_check
      _
    $region11: #{tpu_custom_call.1} parent=1 // pred_check_branch
      %21 = sbr.rel (0) target = $region13
    $region12: #{tpu_custom_call.1} parent=1 // pred_region
      _
    $region13: #{tpu_custom_call.1} parent=1 // pred_fallthru
      _
    // Predicated region
    $region14: #{tpu_custom_call.1} parent=1 // pred_check
      _
    $region15: #{tpu_custom_call.1} parent=1 // pred_check_branch
      %23 = sbr.rel (0) target = $region17
    $region16: #{tpu_custom_call.1} parent=1 // pred_region
      _
    $region17: #{tpu_custom_call.1} parent=1 // pred_fallthru
      _
    // Predicated region
    $region18: #{tpu_custom_call.1} parent=1 // pred_check
      _
    $region19: #{tpu_custom_call.1} parent=1 // pred_check_branch
      %25 = sbr.rel (0) target = $region21
    $region20: #{tpu_custom_call.1} parent=1 // pred_region
      _
    $region21: #{tpu_custom_call.1} parent=1 // pred_fallthru
      _
    // Predicated region
    $region22: #{tpu_custom_call.1} parent=1 // pred_check
      _
    $region23: #{tpu_custom_call.1} parent=1 // pred_check_branch
      %27 = sbr.rel (0) target = $region25
    $region24: #{tpu_custom_call.1} parent=1 // pred_region
      _
    $region25: #{tpu_custom_call.1} parent=1 // pred_fallthru
      _
    // Predicated region
    $region26: #{tpu_custom_call.1} parent=1 // pred_check
      _
    $region27: #{tpu_custom_call.1} parent=1 // pred_check_branch
      %29 = sbr.rel (0) target = $region29
    $region28: #{tpu_custom_call.1} parent=1 // pred_region
      _
    $region29: #{tpu_custom_call.1} parent=1 // pred_fallthru
      _
    // Predicated region
    $region30: #{tpu_custom_call.1} parent=1 // pred_check
      _
    $region31: #{tpu_custom_call.1} parent=1 // pred_check_branch
      %31 = sbr.rel (0) target = $region33
    $region32: #{tpu_custom_call.1} parent=1 // pred_region
      _
    $region33: #{tpu_custom_call.1} parent=1 // pred_fallthru
      _
    // Predicated region
    $region34: #{tpu_custom_call.1} parent=1 // pred_check
      _
    $region35: #{tpu_custom_call.1} parent=1 // pred_check_branch
      %33 = sbr.rel (0) target = $region37
    $region36: #{tpu_custom_call.1} parent=1 // pred_region
      _
    $region37: #{tpu_custom_call.1} parent=1 // pred_fallthru
      _
    // Predicated region
    $region38: #{tpu_custom_call.1} parent=1 // pred_check
      _
    $region39: #{tpu_custom_call.1} parent=1 // pred_check_branch
      %35 = sbr.rel (0) target = $region41
    $region40: #{tpu_custom_call.1} parent=1 // pred_region
      _
    $region41: #{tpu_custom_call.1} parent=1 // pred_fallthru
      _
    %v37 = vld [vmem:[%s0] sm:$0xff]
    %v38 = vld [vmem:[%s0 + $0x8] sm:$0xff]
    %v39 = vld [vmem:[%s0 + $0x10] sm:$0xff]
    %v40 = vld [vmem:[%s0 + $0x18] sm:$0xff]
    %v41 = vld [vmem:[%s0 + $0x20] sm:$0xff]
    %v42 = vld [vmem:[%s0 + $0x28] sm:$0xff]
    %v43 = vld [vmem:[%s0 + $0x30] sm:$0xff]
    %v44 = vld [vmem:[%s0 + $0x38] sm:$0xff]
    %v45 = vld [vmem:[%s0 + $0x40] sm:$0xff]
    %v46 = vld [vmem:[%s0 + $0x48] sm:$0xff]
    %v47 = vld [vmem:[%s0 + $0x50] sm:$0xff]
    %v48 = vld [vmem:[%s0 + $0x58] sm:$0xff]
    %v49 = vld [vmem:[%s0 + $0x60] sm:$0xff]
    %v50 = vld [vmem:[%s0 + $0x68] sm:$0xff]
    %v51 = vld [vmem:[%s0 + $0x70] sm:$0xff]
    %v52 = vld [vmem:[%s0 + $0x78] sm:$0xff]
    %v53 = vld [vmem:[%s0 + $0x80] sm:$0xff]
    %v54 = vld [vmem:[%s0 + $0x88] sm:$0xff]
    %v55 = vld [vmem:[%s0 + $0x90] sm:$0xff]
    %v56 = vld [vmem:[%s0 + $0x98] sm:$0xff]
    %v57 = vld [vmem:[%s0 + $0xa0] sm:$0xff]
    %v58 = vld [vmem:[%s0 + $0xa8] sm:$0xff]
    %v59 = vld [vmem:[%s0 + $0xb0] sm:$0xff]
    %v60 = vld [vmem:[%s0 + $0xb8] sm:$0xff]
    %v61 = vld [vmem:[%s0 + $0xc0] sm:$0xff]
    %v62 = vld [vmem:[%s0 + $0xc8] sm:$0xff]
    %v63 = vld [vmem:[%s0 + $0xd0] sm:$0xff]
    %v64 = vld [vmem:[%s0 + $0xd8] sm:$0xff]
    %v65 = vld [vmem:[%s0 + $0xe0] sm:$0xff]
    %v66 = vld [vmem:[%s0 + $0xe8] sm:$0xff]
    %v67 = vld [vmem:[%s0 + $0xf0] sm:$0xff]
    %v68 = vld [vmem:[%s0 + $0xf8] sm:$0xff]
    %v69 = vld [vmem:[%s0 + $0x100] sm:$0xff]
    %v70 = vld [vmem:[%s0 + $0x108] sm:$0xff]
    %v71 = vld [vmem:[%s0 + $0x110] sm:$0xff]
    %v72 = vld [vmem:[%s0 + $0x118] sm:$0xff]
    %v73 = vld [vmem:[%s0 + $0x120] sm:$0xff]
    %v74 = vld [vmem:[%s0 + $0x128] sm:$0xff]
    %v75 = vld [vmem:[%s0 + $0x130] sm:$0xff]
    %v76 = vld [vmem:[%s0 + $0x138] sm:$0xff]
    %v77 = vld [vmem:[%s0 + $0x140] sm:$0xff]
    %v78 = vld [vmem:[%s0 + $0x148] sm:$0xff]
    %v79 = vld [vmem:[%s0 + $0x150] sm:$0xff]
    %v80 = vld [vmem:[%s0 + $0x158] sm:$0xff]
    %v81 = vld [vmem:[%s0 + $0x160] sm:$0xff]
    %v82 = vld [vmem:[%s0 + $0x168] sm:$0xff]
    %v83 = vld [vmem:[%s0 + $0x170] sm:$0xff]
    %v84 = vld [vmem:[%s0 + $0x178] sm:$0xff]
    %v85 = vld [vmem:[%s0 + $0x180] sm:$0xff]
    %v86 = vld [vmem:[%s0 + $0x188] sm:$0xff]
    %v87 = vld [vmem:[%s0 + $0x190] sm:$0xff]
    %v88 = vld [vmem:[%s0 + $0x198] sm:$0xff]
    %v89 = vld [vmem:[%s0 + $0x1a0] sm:$0xff]
    %v90 = vld [vmem:[%s0 + $0x1a8] sm:$0xff]
    %v91 = vld [vmem:[%s0 + $0x1b0] sm:$0xff]
    %v92 = vld [vmem:[%s0 + $0x1b8] sm:$0xff]
    %v93 = vld [vmem:[%s0 + $0x1c0] sm:$0xff]
    %v94 = vld [vmem:[%s0 + $0x1c8] sm:$0xff]
    %v95 = vld [vmem:[%s0 + $0x1d0] sm:$0xff]
    %v96 = vld [vmem:[%s0 + $0x1d8] sm:$0xff]
    %v97 = vld [vmem:[%s0 + $0x1e0] sm:$0xff]
    %v98 = vld [vmem:[%s0 + $0x1e8] sm:$0xff]
    %v99 = vld [vmem:[%s0 + $0x1f0] sm:$0xff]
    %v100 = vld [vmem:[%s0 + $0x1f8] sm:$0xff]
    %vm101 = vcmask 31744
    %102 = vst.msk [vmem:[#allocation2] sm:$0xff] %vm101, 0.0
    %103 = vst.msk [vmem:[#allocation2 + $0x8] sm:$0xff] %vm101, 0.0
    %vm104 = vcmask 25600
    %105 = vst.msk [vmem:[#allocation2 + $0x10] sm:$0x3] %vm104, 0.0
    %106 = vst.msk [vmem:[#allocation2 + $0x1b0] sm:$0xff] %vm101, 0.0
    %107 = vst.msk [vmem:[#allocation2 + $0x1b8] sm:$0xff] %vm101, 0.0
    %108 = vst.msk [vmem:[#allocation2 + $0x1c0] sm:$0x3] %vm104, 0.0
    %s109 = scalar_lea.vmem [#allocation2], 408
    %110 = vst.msk [vmem:[%s109] sm:$0xff] %vm101, 0.0
    %111 = vst.msk [vmem:[%s109 + $0x8] sm:$0xff] %vm101, 0.0
    %112 = vst.msk [vmem:[%s109 + $0x10] sm:$0x3] %vm104, 0.0
    %113 = vst.msk [vmem:[%s109 + $0x1b0] sm:$0xff] %vm101, 0.0
    %114 = vst.msk [vmem:[%s109 + $0x1b8] sm:$0xff] %vm101, 0.0
    %115 = vst.msk [vmem:[%s109 + $0x1c0] sm:$0x3] %vm104, 0.0
    %vm116 = vcmask 24576
    %117 = vst.msk [vmem:[#allocation2] sm:$0x1] %vm116, 0.0
    %118 = vst.msk [vmem:[#allocation2 + $0x18] sm:$0x1] %vm116, 0.0
    %119 = vst.msk [vmem:[#allocation2 + $0x30] sm:$0x1] %vm116, 0.0
    %120 = vst.msk [vmem:[#allocation2 + $0x48] sm:$0x1] %vm116, 0.0
    %121 = vst.msk [vmem:[#allocation2 + $0x60] sm:$0x1] %vm116, 0.0
    %122 = vst.msk [vmem:[#allocation2 + $0x78] sm:$0x1] %vm116, 0.0
    %123 = vst.msk [vmem:[#allocation2 + $0x90] sm:$0x1] %vm116, 0.0
    %124 = vst.msk [vmem:[#allocation2 + $0xa8] sm:$0x1] %vm116, 0.0
    %125 = vst.msk [vmem:[#allocation2 + $0xc0] sm:$0x1] %vm116, 0.0
    %126 = vst.msk [vmem:[#allocation2 + $0xd8] sm:$0x1] %vm116, 0.0
    %127 = vst.msk [vmem:[#allocation2 + $0xf0] sm:$0x1] %vm116, 0.0
    %128 = vst.msk [vmem:[#allocation2 + $0x108] sm:$0x1] %vm116, 0.0
    %129 = vst.msk [vmem:[#allocation2 + $0x120] sm:$0x1] %vm116, 0.0
    %130 = vst.msk [vmem:[#allocation2 + $0x138] sm:$0x1] %vm116, 0.0
    %131 = vst.msk [vmem:[#allocation2 + $0x150] sm:$0x1] %vm116, 0.0
    %132 = vst.msk [vmem:[#allocation2 + $0x168] sm:$0x1] %vm116, 0.0
    %133 = vst.msk [vmem:[#allocation2 + $0x180] sm:$0x1] %vm116, 0.0
    %134 = vst.msk [vmem:[#allocation2 + $0x198] sm:$0x1] %vm116, 0.0
    %135 = vst.msk [vmem:[#allocation2 + $0x1b0] sm:$0x1] %vm116, 0.0
    %136 = vst.msk [vmem:[#allocation2 + $0x1c8] sm:$0x1] %vm116, 0.0
    %137 = vst.msk [vmem:[#allocation2 + $0x1e0] sm:$0x1] %vm116, 0.0
    %138 = vst.msk [vmem:[#allocation2 + $0x1f8] sm:$0x1] %vm116, 0.0
    %139 = vst.msk [vmem:[#allocation2 + $0x210] sm:$0x1] %vm116, 0.0
    %140 = vst.msk [vmem:[#allocation2 + $0x228] sm:$0x1] %vm116, 0.0
    %141 = vst.msk [vmem:[#allocation2 + $0x240] sm:$0x1] %vm116, 0.0
    %142 = vst.msk [vmem:[#allocation2 + $0x258] sm:$0x1] %vm116, 0.0
    %143 = vst.msk [vmem:[#allocation2 + $0x270] sm:$0x1] %vm116, 0.0
    %144 = vst.msk [vmem:[#allocation2 + $0x288] sm:$0x1] %vm116, 0.0
    %145 = vst.msk [vmem:[#allocation2 + $0x2a0] sm:$0x1] %vm116, 0.0
    %146 = vst.msk [vmem:[#allocation2 + $0x2b8] sm:$0x1] %vm116, 0.0
    %147 = vst.msk [vmem:[#allocation2 + $0x2d0] sm:$0x1] %vm116, 0.0
    %148 = vst.msk [vmem:[#allocation2 + $0x2e8] sm:$0x1] %vm116, 0.0
    %149 = vst.msk [vmem:[#allocation2 + $0x300] sm:$0x1] %vm116, 0.0
    %150 = vst.msk [vmem:[#allocation2 + $0x318] sm:$0x1] %vm116, 0.0
    %151 = vst.msk [vmem:[#allocation2 + $0x330] sm:$0x1] %vm116, 0.0
    %152 = vst.msk [vmem:[#allocation2 + $0x348] sm:$0x1] %vm116, 0.0
    %153 = vst.msk [vmem:[#allocation2 + $0x11] sm:$0x1] %vm116, 0.0
    %154 = vst.msk [vmem:[#allocation2 + $0x29] sm:$0x1] %vm116, 0.0
    %155 = vst.msk [vmem:[#allocation2 + $0x41] sm:$0x1] %vm116, 0.0
    %156 = vst.msk [vmem:[#allocation2 + $0x59] sm:$0x1] %vm116, 0.0
    %157 = vst.msk [vmem:[#allocation2 + $0x71] sm:$0x1] %vm116, 0.0
    %158 = vst.msk [vmem:[#allocation2 + $0x89] sm:$0x1] %vm116, 0.0
    %159 = vst.msk [vmem:[#allocation2 + $0xa1] sm:$0x1] %vm116, 0.0
    %160 = vst.msk [vmem:[#allocation2 + $0xb9] sm:$0x1] %vm116, 0.0
    %161 = vst.msk [vmem:[#allocation2 + $0xd1] sm:$0x1] %vm116, 0.0
    %162 = vst.msk [vmem:[#allocation2 + $0xe9] sm:$0x1] %vm116, 0.0
    %163 = vst.msk [vmem:[#allocation2 + $0x101] sm:$0x1] %vm116, 0.0
    %164 = vst.msk [vmem:[#allocation2 + $0x119] sm:$0x1] %vm116, 0.0
    %165 = vst.msk [vmem:[#allocation2 + $0x131] sm:$0x1] %vm116, 0.0
    %166 = vst.msk [vmem:[#allocation2 + $0x149] sm:$0x1] %vm116, 0.0
    %167 = vst.msk [vmem:[#allocation2 + $0x161] sm:$0x1] %vm116, 0.0
    %168 = vst.msk [vmem:[#allocation2 + $0x179] sm:$0x1] %vm116, 0.0
    %169 = vst.msk [vmem:[#allocation2 + $0x191] sm:$0x1] %vm116, 0.0
    %170 = vst.msk [vmem:[#allocation2 + $0x1a9] sm:$0x1] %vm116, 0.0
    %171 = vst.msk [vmem:[#allocation2 + $0x1c1] sm:$0x1] %vm116, 0.0
    %172 = vst.msk [vmem:[#allocation2 + $0x1d9] sm:$0x1] %vm116, 0.0
    %173 = vst.msk [vmem:[#allocation2 + $0x1f1] sm:$0x1] %vm116, 0.0
    %174 = vst.msk [vmem:[#allocation2 + $0x209] sm:$0x1] %vm116, 0.0
    %175 = vst.msk [vmem:[#allocation2 + $0x221] sm:$0x1] %vm116, 0.0
    %176 = vst.msk [vmem:[#allocation2 + $0x239] sm:$0x1] %vm116, 0.0
    %177 = vst.msk [vmem:[#allocation2 + $0x251] sm:$0x1] %vm116, 0.0
    %178 = vst.msk [vmem:[#allocation2 + $0x269] sm:$0x1] %vm116, 0.0
    %179 = vst.msk [vmem:[#allocation2 + $0x281] sm:$0x1] %vm116, 0.0
    %180 = vst.msk [vmem:[#allocation2 + $0x299] sm:$0x1] %vm116, 0.0
    %181 = vst.msk [vmem:[#allocation2 + $0x2b1] sm:$0x1] %vm116, 0.0
    %182 = vst.msk [vmem:[#allocation2 + $0x2c9] sm:$0x1] %vm116, 0.0
    %183 = vst.msk [vmem:[#allocation2 + $0x2e1] sm:$0x1] %vm116, 0.0
    %184 = vst.msk [vmem:[#allocation2 + $0x2f9] sm:$0x1] %vm116, 0.0
    %185 = vst.msk [vmem:[#allocation2 + $0x311] sm:$0x1] %vm116, 0.0
    %186 = vst.msk [vmem:[#allocation2 + $0x329] sm:$0x1] %vm116, 0.0
    %187 = vst.msk [vmem:[#allocation2 + $0x341] sm:$0x1] %vm116, 0.0
    %188 = vst.msk [vmem:[#allocation2 + $0x359] sm:$0x1] %vm116, 0.0
    %s189 = scalar_lea.vmem [#allocation2], 24
    %190 = vst.msk [vmem:[%s189 + $0x1] sm:$0xff] %vm101, %v37
    %191 = vst.msk [vmem:[%s189 + $0x9] sm:$0xff] %vm101, %v38
    %192 = vst.msk [vmem:[%s189 + $0x19] sm:$0xff] %vm101, %v39
    %193 = vst.msk [vmem:[%s189 + $0x21] sm:$0xff] %vm101, %v40
    %194 = vst.msk [vmem:[%s189 + $0x31] sm:$0xff] %vm101, %v41
    %195 = vst.msk [vmem:[%s189 + $0x39] sm:$0xff] %vm101, %v42
    %196 = vst.msk [vmem:[%s189 + $0x49] sm:$0xff] %vm101, %v43
    %197 = vst.msk [vmem:[%s189 + $0x51] sm:$0xff] %vm101, %v44
    %198 = vst.msk [vmem:[%s189 + $0x61] sm:$0xff] %vm101, %v45
    %199 = vst.msk [vmem:[%s189 + $0x69] sm:$0xff] %vm101, %v46
    %200 = vst.msk [vmem:[%s189 + $0x79] sm:$0xff] %vm101, %v47
    %201 = vst.msk [vmem:[%s189 + $0x81] sm:$0xff] %vm101, %v48
    %202 = vst.msk [vmem:[%s189 + $0x91] sm:$0xff] %vm101, %v49
    %203 = vst.msk [vmem:[%s189 + $0x99] sm:$0xff] %vm101, %v50
    %204 = vst.msk [vmem:[%s189 + $0xa9] sm:$0xff] %vm101, %v51
    %205 = vst.msk [vmem:[%s189 + $0xb1] sm:$0xff] %vm101, %v52
    %206 = vst.msk [vmem:[%s189 + $0xc1] sm:$0xff] %vm101, %v53
    %207 = vst.msk [vmem:[%s189 + $0xc9] sm:$0xff] %vm101, %v54
    %208 = vst.msk [vmem:[%s189 + $0xd9] sm:$0xff] %vm101, %v55
    %209 = vst.msk [vmem:[%s189 + $0xe1] sm:$0xff] %vm101, %v56
    %210 = vst.msk [vmem:[%s189 + $0xf1] sm:$0xff] %vm101, %v57
    %211 = vst.msk [vmem:[%s189 + $0xf9] sm:$0xff] %vm101, %v58
    %212 = vst.msk [vmem:[%s189 + $0x109] sm:$0xff] %vm101, %v59
    %213 = vst.msk [vmem:[%s189 + $0x111] sm:$0xff] %vm101, %v60
    %214 = vst.msk [vmem:[%s189 + $0x121] sm:$0xff] %vm101, %v61
    %215 = vst.msk [vmem:[%s189 + $0x129] sm:$0xff] %vm101, %v62
    %216 = vst.msk [vmem:[%s189 + $0x139] sm:$0xff] %vm101, %v63
    %217 = vst.msk [vmem:[%s189 + $0x141] sm:$0xff] %vm101, %v64
    %218 = vst.msk [vmem:[%s189 + $0x151] sm:$0xff] %vm101, %v65
    %219 = vst.msk [vmem:[%s189 + $0x159] sm:$0xff] %vm101, %v66
    %220 = vst.msk [vmem:[%s189 + $0x169] sm:$0xff] %vm101, %v67
    %221 = vst.msk [vmem:[%s189 + $0x171] sm:$0xff] %vm101, %v68
    %222 = vst.msk [vmem:[%s189 + $0x1b1] sm:$0xff] %vm101, %v69
    %223 = vst.msk [vmem:[%s189 + $0x1b9] sm:$0xff] %vm101, %v70
    %224 = vst.msk [vmem:[%s189 + $0x1c9] sm:$0xff] %vm101, %v71
    %225 = vst.msk [vmem:[%s189 + $0x1d1] sm:$0xff] %vm101, %v72
    %226 = vst.msk [vmem:[%s189 + $0x1e1] sm:$0xff] %vm101, %v73
    %227 = vst.msk [vmem:[%s189 + $0x1e9] sm:$0xff] %vm101, %v74
    %228 = vst.msk [vmem:[%s189 + $0x1f9] sm:$0xff] %vm101, %v75
    %229 = vst.msk [vmem:[%s189 + $0x201] sm:$0xff] %vm101, %v76
    %230 = vst.msk [vmem:[%s189 + $0x211] sm:$0xff] %vm101, %v77
    %231 = vst.msk [vmem:[%s189 + $0x219] sm:$0xff] %vm101, %v78
    %232 = vst.msk [vmem:[%s189 + $0x229] sm:$0xff] %vm101, %v79
    %233 = vst.msk [vmem:[%s189 + $0x231] sm:$0xff] %vm101, %v80
    %234 = vst.msk [vmem:[%s189 + $0x241] sm:$0xff] %vm101, %v81
    %235 = vst.msk [vmem:[%s189 + $0x249] sm:$0xff] %vm101, %v82
    %236 = vst.msk [vmem:[%s189 + $0x259] sm:$0xff] %vm101, %v83
    %237 = vst.msk [vmem:[%s189 + $0x261] sm:$0xff] %vm101, %v84
    %238 = vst.msk [vmem:[%s189 + $0x271] sm:$0xff] %vm101, %v85
    %239 = vst.msk [vmem:[%s189 + $0x279] sm:$0xff] %vm101, %v86
    %240 = vst.msk [vmem:[%s189 + $0x289] sm:$0xff] %vm101, %v87
    %241 = vst.msk [vmem:[%s189 + $0x291] sm:$0xff] %vm101, %v88
    %242 = vst.msk [vmem:[%s189 + $0x2a1] sm:$0xff] %vm101, %v89
    %243 = vst.msk [vmem:[%s189 + $0x2a9] sm:$0xff] %vm101, %v90
    %244 = vst.msk [vmem:[%s189 + $0x2b9] sm:$0xff] %vm101, %v91
    %245 = vst.msk [vmem:[%s189 + $0x2c1] sm:$0xff] %vm101, %v92
    %246 = vst.msk [vmem:[%s189 + $0x2d1] sm:$0xff] %vm101, %v93
    %247 = vst.msk [vmem:[%s189 + $0x2d9] sm:$0xff] %vm101, %v94
    %248 = vst.msk [vmem:[%s189 + $0x2e9] sm:$0xff] %vm101, %v95
    %249 = vst.msk [vmem:[%s189 + $0x2f1] sm:$0xff] %vm101, %v96
    %250 = vst.msk [vmem:[%s189 + $0x301] sm:$0xff] %vm101, %v97
    %251 = vst.msk [vmem:[%s189 + $0x309] sm:$0xff] %vm101, %v98
    %252 = vst.msk [vmem:[%s189 + $0x319] sm:$0xff] %vm101, %v99
    %253 = vst.msk [vmem:[%s189 + $0x321] sm:$0xff] %vm101, %v100
    %v254 = vld [vmem:[#allocation2] sm:$0xff]
    %v255 = vld [vmem:[#allocation2 + $0x8] sm:$0xff]
    %v256 = vld [vmem:[#allocation2 + $0x18] sm:$0xff]
    %v257 = vld [vmem:[#allocation2 + $0x20] sm:$0xff]
    %v258 = vld [vmem:[#allocation2 + $0x30] sm:$0xff]
    %v259 = vld [vmem:[#allocation2 + $0x38] sm:$0xff]
    %v260 = vld [vmem:[#allocation2 + $0x48] sm:$0xff]
    %v261 = vld [vmem:[#allocation2 + $0x50] sm:$0xff]
    %v262 = vld [vmem:[#allocation2 + $0x60] sm:$0xff]
    %v263 = vld [vmem:[#allocation2 + $0x68] sm:$0xff]
    %v264 = vld [vmem:[#allocation2 + $0x78] sm:$0xff]
    %v265 = vld [vmem:[#allocation2 + $0x80] sm:$0xff]
    %v266 = vld [vmem:[#allocation2 + $0x90] sm:$0xff]
    %v267 = vld [vmem:[#allocation2 + $0x98] sm:$0xff]
    %v268 = vld [vmem:[#allocation2 + $0xa8] sm:$0xff]
    %v269 = vld [vmem:[#allocation2 + $0xb0] sm:$0xff]
    %v270 = vld [vmem:[#allocation2 + $0xc0] sm:$0xff]
    %v271 = vld [vmem:[#allocation2 + $0xc8] sm:$0xff]
    %v272 = vld [vmem:[#allocation2 + $0xd8] sm:$0xff]
    %v273 = vld [vmem:[#allocation2 + $0xe0] sm:$0xff]
    %v274 = vld [vmem:[#allocation2 + $0xf0] sm:$0xff]
    %v275 = vld [vmem:[#allocation2 + $0xf8] sm:$0xff]
    %v276 = vld [vmem:[#allocation2 + $0x108] sm:$0xff]
    %v277 = vld [vmem:[#allocation2 + $0x110] sm:$0xff]
    %v278 = vld [vmem:[#allocation2 + $0x120] sm:$0xff]
    %v279 = vld [vmem:[#allocation2 + $0x128] sm:$0xff]
    %v280 = vld [vmem:[#allocation2 + $0x138] sm:$0xff]
    %v281 = vld [vmem:[#allocation2 + $0x140] sm:$0xff]
    %v282 = vld [vmem:[#allocation2 + $0x150] sm:$0xff]
    %v283 = vld [vmem:[#allocation2 + $0x158] sm:$0xff]
    %v284 = vld [vmem:[#allocation2 + $0x168] sm:$0xff]
    %v285 = vld [vmem:[#allocation2 + $0x170] sm:$0xff]
    %v286 = vld [vmem:[#allocation2 + $0x1b0] sm:$0xff]
    %v287 = vld [vmem:[#allocation2 + $0x1b8] sm:$0xff]
    %v288 = vld [vmem:[#allocation2 + $0x1c8] sm:$0xff]
    %v289 = vld [vmem:[#allocation2 + $0x1d0] sm:$0xff]
    %v290 = vld [vmem:[#allocation2 + $0x1e0] sm:$0xff]
    %v291 = vld [vmem:[#allocation2 + $0x1e8] sm:$0xff]
    %v292 = vld [vmem:[#allocation2 + $0x1f8] sm:$0xff]
    %v293 = vld [vmem:[#allocation2 + $0x200] sm:$0xff]
    %v294 = vld [vmem:[#allocation2 + $0x210] sm:$0xff]
    %v295 = vld [vmem:[#allocation2 + $0x218] sm:$0xff]
    %v296 = vld [vmem:[#allocation2 + $0x228] sm:$0xff]
    %v297 = vld [vmem:[#allocation2 + $0x230] sm:$0xff]
    %v298 = vld [vmem:[#allocation2 + $0x240] sm:$0xff]
    %v299 = vld [vmem:[#allocation2 + $0x248] sm:$0xff]
    %v300 = vld [vmem:[#allocation2 + $0x258] sm:$0xff]
    %v301 = vld [vmem:[#allocation2 + $0x260] sm:$0xff]
    %v302 = vld [vmem:[#allocation2 + $0x270] sm:$0xff]
    %v303 = vld [vmem:[#allocation2 + $0x278] sm:$0xff]
    %v304 = vld [vmem:[#allocation2 + $0x288] sm:$0xff]
    %v305 = vld [vmem:[#allocation2 + $0x290] sm:$0xff]
    %v306 = vld [vmem:[#allocation2 + $0x2a0] sm:$0xff]
    %v307 = vld [vmem:[#allocation2 + $0x2a8] sm:$0xff]
    %v308 = vld [vmem:[#allocation2 + $0x2b8] sm:$0xff]
    %v309 = vld [vmem:[#allocation2 + $0x2c0] sm:$0xff]
    %v310 = vld [vmem:[#allocation2 + $0x2d0] sm:$0xff]
    %v311 = vld [vmem:[#allocation2 + $0x2d8] sm:$0xff]
    %v312 = vld [vmem:[#allocation2 + $0x2e8] sm:$0xff]
    %v313 = vld [vmem:[#allocation2 + $0x2f0] sm:$0xff]
    %v314 = vld [vmem:[#allocation2 + $0x300] sm:$0xff]
    %v315 = vld [vmem:[#allocation2 + $0x308] sm:$0xff]
    %v316 = vld [vmem:[#allocation2 + $0x318] sm:$0xff]
    %v317 = vld [vmem:[#allocation2 + $0x320] sm:$0xff]
    %318 = vst.msk [vmem:[#allocation4] sm:$0xff] %vm101, %v254
    %319 = vst.msk [vmem:[#allocation4 + $0x8] sm:$0xff] %vm101, %v255
    %320 = vst.msk [vmem:[#allocation4 + $0x10] sm:$0xff] %vm101, %v256
    %321 = vst.msk [vmem:[#allocation4 + $0x18] sm:$0xff] %vm101, %v257
    %322 = vst.msk [vmem:[#allocation4 + $0x20] sm:$0xff] %vm101, %v258
    %323 = vst.msk [vmem:[#allocation4 + $0x28] sm:$0xff] %vm101, %v259
    %324 = vst.msk [vmem:[#allocation4 + $0x30] sm:$0xff] %vm101, %v260
    %325 = vst.msk [vmem:[#allocation4 + $0x38] sm:$0xff] %vm101, %v261
    %326 = vst.msk [vmem:[#allocation4 + $0x40] sm:$0xff] %vm101, %v262
    %327 = vst.msk [vmem:[#allocation4 + $0x48] sm:$0xff] %vm101, %v263
    %328 = vst.msk [vmem:[#allocation4 + $0x50] sm:$0xff] %vm101, %v264
    %329 = vst.msk [vmem:[#allocation4 + $0x58] sm:$0xff] %vm101, %v265
    %330 = vst.msk [vmem:[#allocation4 + $0x60] sm:$0xff] %vm101, %v266
    %331 = vst.msk [vmem:[#allocation4 + $0x68] sm:$0xff] %vm101, %v267
    %332 = vst.msk [vmem:[#allocation4 + $0x70] sm:$0xff] %vm101, %v268
    %333 = vst.msk [vmem:[#allocation4 + $0x78] sm:$0xff] %vm101, %v269
    %334 = vst.msk [vmem:[#allocation4 + $0x80] sm:$0xff] %vm101, %v270
    %335 = vst.msk [vmem:[#allocation4 + $0x88] sm:$0xff] %vm101, %v271
    %336 = vst.msk [vmem:[#allocation4 + $0x90] sm:$0xff] %vm101, %v272
    %337 = vst.msk [vmem:[#allocation4 + $0x98] sm:$0xff] %vm101, %v273
    %338 = vst.msk [vmem:[#allocation4 + $0xa0] sm:$0xff] %vm101, %v274
    %339 = vst.msk [vmem:[#allocation4 + $0xa8] sm:$0xff] %vm101, %v275
    %340 = vst.msk [vmem:[#allocation4 + $0xb0] sm:$0xff] %vm101, %v276
    %341 = vst.msk [vmem:[#allocation4 + $0xb8] sm:$0xff] %vm101, %v277
    %342 = vst.msk [vmem:[#allocation4 + $0xc0] sm:$0xff] %vm101, %v278
    %343 = vst.msk [vmem:[#allocation4 + $0xc8] sm:$0xff] %vm101, %v279
    %344 = vst.msk [vmem:[#allocation4 + $0xd0] sm:$0xff] %vm101, %v280
    %345 = vst.msk [vmem:[#allocation4 + $0xd8] sm:$0xff] %vm101, %v281
    %346 = vst.msk [vmem:[#allocation4 + $0xe0] sm:$0xff] %vm101, %v282
    %347 = vst.msk [vmem:[#allocation4 + $0xe8] sm:$0xff] %vm101, %v283
    %348 = vst.msk [vmem:[#allocation4 + $0xf0] sm:$0xff] %vm101, %v284
    %349 = vst.msk [vmem:[#allocation4 + $0xf8] sm:$0xff] %vm101, %v285
    %350 = vst.msk [vmem:[#allocation4 + $0x100] sm:$0xff] %vm101, %v286
    %351 = vst.msk [vmem:[#allocation4 + $0x108] sm:$0xff] %vm101, %v287
    %352 = vst.msk [vmem:[#allocation4 + $0x110] sm:$0xff] %vm101, %v288
    %353 = vst.msk [vmem:[#allocation4 + $0x118] sm:$0xff] %vm101, %v289
    %354 = vst.msk [vmem:[#allocation4 + $0x120] sm:$0xff] %vm101, %v290
    %355 = vst.msk [vmem:[#allocation4 + $0x128] sm:$0xff] %vm101, %v291
    %356 = vst.msk [vmem:[#allocation4 + $0x130] sm:$0xff] %vm101, %v292
    %357 = vst.msk [vmem:[#allocation4 + $0x138] sm:$0xff] %vm101, %v293
    %358 = vst.msk [vmem:[#allocation4 + $0x140] sm:$0xff] %vm101, %v294
    %359 = vst.msk [vmem:[#allocation4 + $0x148] sm:$0xff] %vm101, %v295
    %360 = vst.msk [vmem:[#allocation4 + $0x150] sm:$0xff] %vm101, %v296
    %361 = vst.msk [vmem:[#allocation4 + $0x158] sm:$0xff] %vm101, %v297
    %362 = vst.msk [vmem:[#allocation4 + $0x160] sm:$0xff] %vm101, %v298
    %363 = vst.msk [vmem:[#allocation4 + $0x168] sm:$0xff] %vm101, %v299
    %364 = vst.msk [vmem:[#allocation4 + $0x170] sm:$0xff] %vm101, %v300
    %365 = vst.msk [vmem:[#allocation4 + $0x178] sm:$0xff] %vm101, %v301
    %366 = vst.msk [vmem:[#allocation4 + $0x180] sm:$0xff] %vm101, %v302
    %367 = vst.msk [vmem:[#allocation4 + $0x188] sm:$0xff] %vm101, %v303
    %368 = vst.msk [vmem:[#allocation4 + $0x190] sm:$0xff] %vm101, %v304
    %369 = vst.msk [vmem:[#allocation4 + $0x198] sm:$0xff] %vm101, %v305
    %370 = vst.msk [vmem:[#allocation4 + $0x1a0] sm:$0xff] %vm101, %v306
    %371 = vst.msk [vmem:[#allocation4 + $0x1a8] sm:$0xff] %vm101, %v307
    %372 = vst.msk [vmem:[#allocation4 + $0x1b0] sm:$0xff] %vm101, %v308
    %373 = vst.msk [vmem:[#allocation4 + $0x1b8] sm:$0xff] %vm101, %v309
    %374 = vst.msk [vmem:[#allocation4 + $0x1c0] sm:$0xff] %vm101, %v310
    %375 = vst.msk [vmem:[#allocation4 + $0x1c8] sm:$0xff] %vm101, %v311
    %376 = vst.msk [vmem:[#allocation4 + $0x1d0] sm:$0xff] %vm101, %v312
    %377 = vst.msk [vmem:[#allocation4 + $0x1d8] sm:$0xff] %vm101, %v313
    %378 = vst.msk [vmem:[#allocation4 + $0x1e0] sm:$0xff] %vm101, %v314
    %379 = vst.msk [vmem:[#allocation4 + $0x1e8] sm:$0xff] %vm101, %v315
    %380 = vst.msk [vmem:[#allocation4 + $0x1f0] sm:$0xff] %vm101, %v316
    %381 = vst.msk [vmem:[#allocation4 + $0x1f8] sm:$0xff] %vm101, %v317
    %v382 = vld [vmem:[#allocation2 + $0x1] sm:$0xff]
    %v383 = vld [vmem:[#allocation2 + $0x9] sm:$0xff]
    %v384 = vld [vmem:[#allocation2 + $0x19] sm:$0xff]
    %v385 = vld [vmem:[#allocation2 + $0x21] sm:$0xff]
    %v386 = vld [vmem:[#allocation2 + $0x31] sm:$0xff]
    %v387 = vld [vmem:[#allocation2 + $0x39] sm:$0xff]
    %v388 = vld [vmem:[#allocation2 + $0x49] sm:$0xff]
    %v389 = vld [vmem:[#allocation2 + $0x51] sm:$0xff]
    %v390 = vld [vmem:[#allocation2 + $0x61] sm:$0xff]
    %v391 = vld [vmem:[#allocation2 + $0x69] sm:$0xff]
    %v392 = vld [vmem:[#allocation2 + $0x79] sm:$0xff]
    %v393 = vld [vmem:[#allocation2 + $0x81] sm:$0xff]
    %v394 = vld [vmem:[#allocation2 + $0x91] sm:$0xff]
    %v395 = vld [vmem:[#allocation2 + $0x99] sm:$0xff]
    %v396 = vld [vmem:[#allocation2 + $0xa9] sm:$0xff]
    %v397 = vld [vmem:[#allocation2 + $0xb1] sm:$0xff]
    %v398 = vld [vmem:[#allocation2 + $0xc1] sm:$0xff]
    %v399 = vld [vmem:[#allocation2 + $0xc9] sm:$0xff]
    %v400 = vld [vmem:[#allocation2 + $0xd9] sm:$0xff]
    %v401 = vld [vmem:[#allocation2 + $0xe1] sm:$0xff]
    %v402 = vld [vmem:[#allocation2 + $0xf1] sm:$0xff]
    %v403 = vld [vmem:[#allocation2 + $0xf9] sm:$0xff]
    %v404 = vld [vmem:[#allocation2 + $0x109] sm:$0xff]
    %v405 = vld [vmem:[#allocation2 + $0x111] sm:$0xff]
    %v406 = vld [vmem:[#allocation2 + $0x121] sm:$0xff]
    %v407 = vld [vmem:[#allocation2 + $0x129] sm:$0xff]
    %v408 = vld [vmem:[#allocation2 + $0x139] sm:$0xff]
    %v409 = vld [vmem:[#allocation2 + $0x141] sm:$0xff]
    %v410 = vld [vmem:[#allocation2 + $0x151] sm:$0xff]
    %v411 = vld [vmem:[#allocation2 + $0x159] sm:$0xff]
    %v412 = vld [vmem:[#allocation2 + $0x169] sm:$0xff]
    %v413 = vld [vmem:[#allocation2 + $0x171] sm:$0xff]
    %v414 = vld [vmem:[#allocation2 + $0x1b1] sm:$0xff]
    %v415 = vld [vmem:[#allocation2 + $0x1b9] sm:$0xff]
    %v416 = vld [vmem:[#allocation2 + $0x1c9] sm:$0xff]
    %v417 = vld [vmem:[#allocation2 + $0x1d1] sm:$0xff]
    %v418 = vld [vmem:[#allocation2 + $0x1e1] sm:$0xff]
    %v419 = vld [vmem:[#allocation2 + $0x1e9] sm:$0xff]
    %v420 = vld [vmem:[#allocation2 + $0x1f9] sm:$0xff]
    %v421 = vld [vmem:[#allocation2 + $0x201] sm:$0xff]
    %v422 = vld [vmem:[#allocation2 + $0x211] sm:$0xff]
    %v423 = vld [vmem:[#allocation2 + $0x219] sm:$0xff]
    %v424 = vld [vmem:[#allocation2 + $0x229] sm:$0xff]
    %v425 = vld [vmem:[#allocation2 + $0x231] sm:$0xff]
    %v426 = vld [vmem:[#allocation2 + $0x241] sm:$0xff]
    %v427 = vld [vmem:[#allocation2 + $0x249] sm:$0xff]
    %v428 = vld [vmem:[#allocation2 + $0x259] sm:$0xff]
    %v429 = vld [vmem:[#allocation2 + $0x261] sm:$0xff]
    %v430 = vld [vmem:[#allocation2 + $0x271] sm:$0xff]
    %v431 = vld [vmem:[#allocation2 + $0x279] sm:$0xff]
    %v432 = vld [vmem:[#allocation2 + $0x289] sm:$0xff]
    %v433 = vld [vmem:[#allocation2 + $0x291] sm:$0xff]
    %v434 = vld [vmem:[#allocation2 + $0x2a1] sm:$0xff]
    %v435 = vld [vmem:[#allocation2 + $0x2a9] sm:$0xff]
    %v436 = vld [vmem:[#allocation2 + $0x2b9] sm:$0xff]
    %v437 = vld [vmem:[#allocation2 + $0x2c1] sm:$0xff]
    %v438 = vld [vmem:[#allocation2 + $0x2d1] sm:$0xff]
    %v439 = vld [vmem:[#allocation2 + $0x2d9] sm:$0xff]
    %v440 = vld [vmem:[#allocation2 + $0x2e9] sm:$0xff]
    %v441 = vld [vmem:[#allocation2 + $0x2f1] sm:$0xff]
    %v442 = vld [vmem:[#allocation2 + $0x301] sm:$0xff]
    %v443 = vld [vmem:[#allocation2 + $0x309] sm:$0xff]
    %v444 = vld [vmem:[#allocation2 + $0x319] sm:$0xff]
    %v445 = vld [vmem:[#allocation2 + $0x321] sm:$0xff]
    %510 = vrot.lane.b32.xlu0 %v382, 4
    %v511 = vpop.permute.xlu0 %510
    %512 = vrot.lane.b32.xlu0 %v383, 4
    %v513 = vpop.permute.xlu0 %512
    %514 = vrot.lane.b32.xlu0 %v384, 4
    %v515 = vpop.permute.xlu0 %514
    %516 = vrot.lane.b32.xlu0 %v385, 4
    %v517 = vpop.permute.xlu0 %516
    %518 = vrot.lane.b32.xlu0 %v386, 4
    %v519 = vpop.permute.xlu0 %518
    %520 = vrot.lane.b32.xlu0 %v387, 4
    %v521 = vpop.permute.xlu0 %520
    %522 = vrot.lane.b32.xlu0 %v388, 4
    %v523 = vpop.permute.xlu0 %522
    %524 = vrot.lane.b32.xlu0 %v389, 4
    %v525 = vpop.permute.xlu0 %524
    %526 = vrot.lane.b32.xlu0 %v390, 4
    %v527 = vpop.permute.xlu0 %526
    %528 = vrot.lane.b32.xlu0 %v391, 4
    %v529 = vpop.permute.xlu0 %528
    %530 = vrot.lane.b32.xlu0 %v392, 4
    %v531 = vpop.permute.xlu0 %530
    %532 = vrot.lane.b32.xlu0 %v393, 4
    %v533 = vpop.permute.xlu0 %532
    %534 = vrot.lane.b32.xlu0 %v394, 4
    %v535 = vpop.permute.xlu0 %534
    %536 = vrot.lane.b32.xlu0 %v395, 4
    %v537 = vpop.permute.xlu0 %536
    %538 = vrot.lane.b32.xlu0 %v396, 4
    %v539 = vpop.permute.xlu0 %538
    %540 = vrot.lane.b32.xlu0 %v397, 4
    %v541 = vpop.permute.xlu0 %540
    %542 = vrot.lane.b32.xlu0 %v398, 4
    %v543 = vpop.permute.xlu0 %542
    %544 = vrot.lane.b32.xlu0 %v399, 4
    %v545 = vpop.permute.xlu0 %544
    %546 = vrot.lane.b32.xlu0 %v400, 4
    %v547 = vpop.permute.xlu0 %546
    %548 = vrot.lane.b32.xlu0 %v401, 4
    %v549 = vpop.permute.xlu0 %548
    %550 = vrot.lane.b32.xlu0 %v402, 4
    %v551 = vpop.permute.xlu0 %550
    %552 = vrot.lane.b32.xlu0 %v403, 4
    %v553 = vpop.permute.xlu0 %552
    %554 = vrot.lane.b32.xlu0 %v404, 4
    %v555 = vpop.permute.xlu0 %554
    %556 = vrot.lane.b32.xlu0 %v405, 4
    %v557 = vpop.permute.xlu0 %556
    %558 = vrot.lane.b32.xlu0 %v406, 4
    %v559 = vpop.permute.xlu0 %558
    %560 = vrot.lane.b32.xlu0 %v407, 4
    %v561 = vpop.permute.xlu0 %560
    %562 = vrot.lane.b32.xlu0 %v408, 4
    %v563 = vpop.permute.xlu0 %562
    %564 = vrot.lane.b32.xlu0 %v409, 4
    %v565 = vpop.permute.xlu0 %564
    %566 = vrot.lane.b32.xlu0 %v410, 4
    %v567 = vpop.permute.xlu0 %566
    %568 = vrot.lane.b32.xlu0 %v411, 4
    %v569 = vpop.permute.xlu0 %568
    %570 = vrot.lane.b32.xlu0 %v412, 4
    %v571 = vpop.permute.xlu0 %570
    %572 = vrot.lane.b32.xlu0 %v413, 4
    %v573 = vpop.permute.xlu0 %572
    %574 = vrot.lane.b32.xlu0 %v414, 4
    %v575 = vpop.permute.xlu0 %574
    %576 = vrot.lane.b32.xlu0 %v415, 4
    %v577 = vpop.permute.xlu0 %576
    %578 = vrot.lane.b32.xlu0 %v416, 4
    %v579 = vpop.permute.xlu0 %578
    %580 = vrot.lane.b32.xlu0 %v417, 4
    %v581 = vpop.permute.xlu0 %580
    %582 = vrot.lane.b32.xlu0 %v418, 4
    %v583 = vpop.permute.xlu0 %582
    %584 = vrot.lane.b32.xlu0 %v419, 4
    %v585 = vpop.permute.xlu0 %584
    %586 = vrot.lane.b32.xlu0 %v420, 4
    %v587 = vpop.permute.xlu0 %586
    %588 = vrot.lane.b32.xlu0 %v421, 4
    %v589 = vpop.permute.xlu0 %588
    %590 = vrot.lane.b32.xlu0 %v422, 4
    %v591 = vpop.permute.xlu0 %590
    %592 = vrot.lane.b32.xlu0 %v423, 4
    %v593 = vpop.permute.xlu0 %592
    %594 = vrot.lane.b32.xlu0 %v424, 4
    %v595 = vpop.permute.xlu0 %594
    %596 = vrot.lane.b32.xlu0 %v425, 4
    %v597 = vpop.permute.xlu0 %596
    %598 = vrot.lane.b32.xlu0 %v426, 4
    %v599 = vpop.permute.xlu0 %598
    %600 = vrot.lane.b32.xlu0 %v427, 4
    %v601 = vpop.permute.xlu0 %600
    %602 = vrot.lane.b32.xlu0 %v428, 4
    %v603 = vpop.permute.xlu0 %602
    %604 = vrot.lane.b32.xlu0 %v429, 4
    %v605 = vpop.permute.xlu0 %604
    %606 = vrot.lane.b32.xlu0 %v430, 4
    %v607 = vpop.permute.xlu0 %606
    %608 = vrot.lane.b32.xlu0 %v431, 4
    %v609 = vpop.permute.xlu0 %608
    %610 = vrot.lane.b32.xlu0 %v432, 4
    %v611 = vpop.permute.xlu0 %610
    %612 = vrot.lane.b32.xlu0 %v433, 4
    %v613 = vpop.permute.xlu0 %612
    %614 = vrot.lane.b32.xlu0 %v434, 4
    %v615 = vpop.permute.xlu0 %614
    %616 = vrot.lane.b32.xlu0 %v435, 4
    %v617 = vpop.permute.xlu0 %616
    %618 = vrot.lane.b32.xlu0 %v436, 4
    %v619 = vpop.permute.xlu0 %618
    %620 = vrot.lane.b32.xlu0 %v437, 4
    %v621 = vpop.permute.xlu0 %620
    %622 = vrot.lane.b32.xlu0 %v438, 4
    %v623 = vpop.permute.xlu0 %622
    %624 = vrot.lane.b32.xlu0 %v439, 4
    %v625 = vpop.permute.xlu0 %624
    %626 = vrot.lane.b32.xlu0 %v440, 4
    %v627 = vpop.permute.xlu0 %626
    %628 = vrot.lane.b32.xlu0 %v441, 4
    %v629 = vpop.permute.xlu0 %628
    %630 = vrot.lane.b32.xlu0 %v442, 4
    %v631 = vpop.permute.xlu0 %630
    %632 = vrot.lane.b32.xlu0 %v443, 4
    %v633 = vpop.permute.xlu0 %632
    %634 = vrot.lane.b32.xlu0 %v444, 4
    %v635 = vpop.permute.xlu0 %634
    %636 = vrot.lane.b32.xlu0 %v445, 4
    %v637 = vpop.permute.xlu0 %636
    %vm702 = vcmask 64544
    %703 = vst.msk [vmem:[#allocation4] sm:$0xff] %vm702, %v511
    %704 = vst.msk [vmem:[#allocation4 + $0x8] sm:$0xff] %vm702, %v513
    %705 = vst.msk [vmem:[#allocation4 + $0x10] sm:$0xff] %vm702, %v515
    %706 = vst.msk [vmem:[#allocation4 + $0x18] sm:$0xff] %vm702, %v517
    %707 = vst.msk [vmem:[#allocation4 + $0x20] sm:$0xff] %vm702, %v519
    %708 = vst.msk [vmem:[#allocation4 + $0x28] sm:$0xff] %vm702, %v521
    %709 = vst.msk [vmem:[#allocation4 + $0x30] sm:$0xff] %vm702, %v523
    %710 = vst.msk [vmem:[#allocation4 + $0x38] sm:$0xff] %vm702, %v525
    %711 = vst.msk [vmem:[#allocation4 + $0x40] sm:$0xff] %vm702, %v527
    %712 = vst.msk [vmem:[#allocation4 + $0x48] sm:$0xff] %vm702, %v529
    %713 = vst.msk [vmem:[#allocation4 + $0x50] sm:$0xff] %vm702, %v531
    %714 = vst.msk [vmem:[#allocation4 + $0x58] sm:$0xff] %vm702, %v533
    %715 = vst.msk [vmem:[#allocation4 + $0x60] sm:$0xff] %vm702, %v535
    %716 = vst.msk [vmem:[#allocation4 + $0x68] sm:$0xff] %vm702, %v537
    %717 = vst.msk [vmem:[#allocation4 + $0x70] sm:$0xff] %vm702, %v539
    %718 = vst.msk [vmem:[#allocation4 + $0x78] sm:$0xff] %vm702, %v541
    %719 = vst.msk [vmem:[#allocation4 + $0x80] sm:$0xff] %vm702, %v543
    %720 = vst.msk [vmem:[#allocation4 + $0x88] sm:$0xff] %vm702, %v545
    %721 = vst.msk [vmem:[#allocation4 + $0x90] sm:$0xff] %vm702, %v547
    %722 = vst.msk [vmem:[#allocation4 + $0x98] sm:$0xff] %vm702, %v549
    %723 = vst.msk [vmem:[#allocation4 + $0xa0] sm:$0xff] %vm702, %v551
    %724 = vst.msk [vmem:[#allocation4 + $0xa8] sm:$0xff] %vm702, %v553
    %725 = vst.msk [vmem:[#allocation4 + $0xb0] sm:$0xff] %vm702, %v555
    %726 = vst.msk [vmem:[#allocation4 + $0xb8] sm:$0xff] %vm702, %v557
    %727 = vst.msk [vmem:[#allocation4 + $0xc0] sm:$0xff] %vm702, %v559
    %728 = vst.msk [vmem:[#allocation4 + $0xc8] sm:$0xff] %vm702, %v561
    %729 = vst.msk [vmem:[#allocation4 + $0xd0] sm:$0xff] %vm702, %v563
    %730 = vst.msk [vmem:[#allocation4 + $0xd8] sm:$0xff] %vm702, %v565
    %731 = vst.msk [vmem:[#allocation4 + $0xe0] sm:$0xff] %vm702, %v567
    %732 = vst.msk [vmem:[#allocation4 + $0xe8] sm:$0xff] %vm702, %v569
    %733 = vst.msk [vmem:[#allocation4 + $0xf0] sm:$0xff] %vm702, %v571
    %734 = vst.msk [vmem:[#allocation4 + $0xf8] sm:$0xff] %vm702, %v573
    %735 = vst.msk [vmem:[#allocation4 + $0x100] sm:$0xff] %vm702, %v575
    %736 = vst.msk [vmem:[#allocation4 + $0x108] sm:$0xff] %vm702, %v577
    %737 = vst.msk [vmem:[#allocation4 + $0x110] sm:$0xff] %vm702, %v579
    %738 = vst.msk [vmem:[#allocation4 + $0x118] sm:$0xff] %vm702, %v581
    %739 = vst.msk [vmem:[#allocation4 + $0x120] sm:$0xff] %vm702, %v583
    %740 = vst.msk [vmem:[#allocation4 + $0x128] sm:$0xff] %vm702, %v585
    %741 = vst.msk [vmem:[#allocation4 + $0x130] sm:$0xff] %vm702, %v587
    %742 = vst.msk [vmem:[#allocation4 + $0x138] sm:$0xff] %vm702, %v589
    %743 = vst.msk [vmem:[#allocation4 + $0x140] sm:$0xff] %vm702, %v591
    %744 = vst.msk [vmem:[#allocation4 + $0x148] sm:$0xff] %vm702, %v593
    %745 = vst.msk [vmem:[#allocation4 + $0x150] sm:$0xff] %vm702, %v595
    %746 = vst.msk [vmem:[#allocation4 + $0x158] sm:$0xff] %vm702, %v597
    %747 = vst.msk [vmem:[#allocation4 + $0x160] sm:$0xff] %vm702, %v599
    %748 = vst.msk [vmem:[#allocation4 + $0x168] sm:$0xff] %vm702, %v601
    %749 = vst.msk [vmem:[#allocation4 + $0x170] sm:$0xff] %vm702, %v603
    %750 = vst.msk [vmem:[#allocation4 + $0x178] sm:$0xff] %vm702, %v605
    %751 = vst.msk [vmem:[#allocation4 + $0x180] sm:$0xff] %vm702, %v607
    %752 = vst.msk [vmem:[#allocation4 + $0x188] sm:$0xff] %vm702, %v609
    %753 = vst.msk [vmem:[#allocation4 + $0x190] sm:$0xff] %vm702, %v611
    %754 = vst.msk [vmem:[#allocation4 + $0x198] sm:$0xff] %vm702, %v613
    %755 = vst.msk [vmem:[#allocation4 + $0x1a0] sm:$0xff] %vm702, %v615
    %756 = vst.msk [vmem:[#allocation4 + $0x1a8] sm:$0xff] %vm702, %v617
    %757 = vst.msk [vmem:[#allocation4 + $0x1b0] sm:$0xff] %vm702, %v619
    %758 = vst.msk [vmem:[#allocation4 + $0x1b8] sm:$0xff] %vm702, %v621
    %759 = vst.msk [vmem:[#allocation4 + $0x1c0] sm:$0xff] %vm702, %v623
    %760 = vst.msk [vmem:[#allocation4 + $0x1c8] sm:$0xff] %vm702, %v625
    %761 = vst.msk [vmem:[#allocation4 + $0x1d0] sm:$0xff] %vm702, %v627
    %762 = vst.msk [vmem:[#allocation4 + $0x1d8] sm:$0xff] %vm702, %v629
    %763 = vst.msk [vmem:[#allocation4 + $0x1e0] sm:$0xff] %vm702, %v631
    %764 = vst.msk [vmem:[#allocation4 + $0x1e8] sm:$0xff] %vm702, %v633
    %765 = vst.msk [vmem:[#allocation4 + $0x1f0] sm:$0xff] %vm702, %v635
    %766 = vst.msk [vmem:[#allocation4 + $0x1f8] sm:$0xff] %vm702, %v637
    %v767 = vld [vmem:[#allocation2 + $0x2] sm:$0xff]
    %v768 = vld [vmem:[#allocation2 + $0xa] sm:$0xff]
    %v769 = vld [vmem:[#allocation2 + $0x1a] sm:$0xff]
    %v770 = vld [vmem:[#allocation2 + $0x22] sm:$0xff]
    %v771 = vld [vmem:[#allocation2 + $0x32] sm:$0xff]
    %v772 = vld [vmem:[#allocation2 + $0x3a] sm:$0xff]
    %v773 = vld [vmem:[#allocation2 + $0x4a] sm:$0xff]
    %v774 = vld [vmem:[#allocation2 + $0x52] sm:$0xff]
    %v775 = vld [vmem:[#allocation2 + $0x62] sm:$0xff]
    %v776 = vld [vmem:[#allocation2 + $0x6a] sm:$0xff]
    %v777 = vld [vmem:[#allocation2 + $0x7a] sm:$0xff]
    %v778 = vld [vmem:[#allocation2 + $0x82] sm:$0xff]
    %v779 = vld [vmem:[#allocation2 + $0x92] sm:$0xff]
    %v780 = vld [vmem:[#allocation2 + $0x9a] sm:$0xff]
    %v781 = vld [vmem:[#allocation2 + $0xaa] sm:$0xff]
    %v782 = vld [vmem:[#allocation2 + $0xb2] sm:$0xff]
    %v783 = vld [vmem:[#allocation2 + $0xc2] sm:$0xff]
    %v784 = vld [vmem:[#allocation2 + $0xca] sm:$0xff]
    %v785 = vld [vmem:[#allocation2 + $0xda] sm:$0xff]
    %v786 = vld [vmem:[#allocation2 + $0xe2] sm:$0xff]
    %v787 = vld [vmem:[#allocation2 + $0xf2] sm:$0xff]
    %v788 = vld [vmem:[#allocation2 + $0xfa] sm:$0xff]
    %v789 = vld [vmem:[#allocation2 + $0x10a] sm:$0xff]
    %v790 = vld [vmem:[#allocation2 + $0x112] sm:$0xff]
    %v791 = vld [vmem:[#allocation2 + $0x122] sm:$0xff]
    %v792 = vld [vmem:[#allocation2 + $0x12a] sm:$0xff]
    %v793 = vld [vmem:[#allocation2 + $0x13a] sm:$0xff]
    %v794 = vld [vmem:[#allocation2 + $0x142] sm:$0xff]
    %v795 = vld [vmem:[#allocation2 + $0x152] sm:$0xff]
    %v796 = vld [vmem:[#allocation2 + $0x15a] sm:$0xff]
    %v797 = vld [vmem:[#allocation2 + $0x16a] sm:$0xff]
    %v798 = vld [vmem:[#allocation2 + $0x172] sm:$0xff]
    %v799 = vld [vmem:[#allocation2 + $0x1b2] sm:$0xff]
    %v800 = vld [vmem:[#allocation2 + $0x1ba] sm:$0xff]
    %v801 = vld [vmem:[#allocation2 + $0x1ca] sm:$0xff]
    %v802 = vld [vmem:[#allocation2 + $0x1d2] sm:$0xff]
    %v803 = vld [vmem:[#allocation2 + $0x1e2] sm:$0xff]
    %v804 = vld [vmem:[#allocation2 + $0x1ea] sm:$0xff]
    %v805 = vld [vmem:[#allocation2 + $0x1fa] sm:$0xff]
    %v806 = vld [vmem:[#allocation2 + $0x202] sm:$0xff]
    %v807 = vld [vmem:[#allocation2 + $0x212] sm:$0xff]
    %v808 = vld [vmem:[#allocation2 + $0x21a] sm:$0xff]
    %v809 = vld [vmem:[#allocation2 + $0x22a] sm:$0xff]
    %v810 = vld [vmem:[#allocation2 + $0x232] sm:$0xff]
    %v811 = vld [vmem:[#allocation2 + $0x242] sm:$0xff]
    %v812 = vld [vmem:[#allocation2 + $0x24a] sm:$0xff]
    %v813 = vld [vmem:[#allocation2 + $0x25a] sm:$0xff]
    %v814 = vld [vmem:[#allocation2 + $0x262] sm:$0xff]
    %v815 = vld [vmem:[#allocation2 + $0x272] sm:$0xff]
    %v816 = vld [vmem:[#allocation2 + $0x27a] sm:$0xff]
    %v817 = vld [vmem:[#allocation2 + $0x28a] sm:$0xff]
    %v818 = vld [vmem:[#allocation2 + $0x292] sm:$0xff]
    %v819 = vld [vmem:[#allocation2 + $0x2a2] sm:$0xff]
    %v820 = vld [vmem:[#allocation2 + $0x2aa] sm:$0xff]
    %v821 = vld [vmem:[#allocation2 + $0x2ba] sm:$0xff]
    %v822 = vld [vmem:[#allocation2 + $0x2c2] sm:$0xff]
    %v823 = vld [vmem:[#allocation2 + $0x2d2] sm:$0xff]
    %v824 = vld [vmem:[#allocation2 + $0x2da] sm:$0xff]
    %v825 = vld [vmem:[#allocation2 + $0x2ea] sm:$0xff]
    %v826 = vld [vmem:[#allocation2 + $0x2f2] sm:$0xff]
    %v827 = vld [vmem:[#allocation2 + $0x302] sm:$0xff]
    %v828 = vld [vmem:[#allocation2 + $0x30a] sm:$0xff]
    %v829 = vld [vmem:[#allocation2 + $0x31a] sm:$0xff]
    %v830 = vld [vmem:[#allocation2 + $0x322] sm:$0xff]
    %895 = vrot.lane.b32.xlu0 %v767, 8
    %v896 = vpop.permute.xlu0 %895
    %897 = vrot.lane.b32.xlu0 %v768, 8
    %v898 = vpop.permute.xlu0 %897
    %899 = vrot.lane.b32.xlu0 %v769, 8
    %v900 = vpop.permute.xlu0 %899
    %901 = vrot.lane.b32.xlu0 %v770, 8
    %v902 = vpop.permute.xlu0 %901
    %903 = vrot.lane.b32.xlu0 %v771, 8
    %v904 = vpop.permute.xlu0 %903
    %905 = vrot.lane.b32.xlu0 %v772, 8
    %v906 = vpop.permute.xlu0 %905
    %907 = vrot.lane.b32.xlu0 %v773, 8
    %v908 = vpop.permute.xlu0 %907
    %909 = vrot.lane.b32.xlu0 %v774, 8
    %v910 = vpop.permute.xlu0 %909
    %911 = vrot.lane.b32.xlu0 %v775, 8
    %v912 = vpop.permute.xlu0 %911
    %913 = vrot.lane.b32.xlu0 %v776, 8
    %v914 = vpop.permute.xlu0 %913
    %915 = vrot.lane.b32.xlu0 %v777, 8
    %v916 = vpop.permute.xlu0 %915
    %917 = vrot.lane.b32.xlu0 %v778, 8
    %v918 = vpop.permute.xlu0 %917
    %919 = vrot.lane.b32.xlu0 %v779, 8
    %v920 = vpop.permute.xlu0 %919
    %921 = vrot.lane.b32.xlu0 %v780, 8
    %v922 = vpop.permute.xlu0 %921
    %923 = vrot.lane.b32.xlu0 %v781, 8
    %v924 = vpop.permute.xlu0 %923
    %925 = vrot.lane.b32.xlu0 %v782, 8
    %v926 = vpop.permute.xlu0 %925
    %927 = vrot.lane.b32.xlu0 %v783, 8
    %v928 = vpop.permute.xlu0 %927
    %929 = vrot.lane.b32.xlu0 %v784, 8
    %v930 = vpop.permute.xlu0 %929
    %931 = vrot.lane.b32.xlu0 %v785, 8
    %v932 = vpop.permute.xlu0 %931
    %933 = vrot.lane.b32.xlu0 %v786, 8
    %v934 = vpop.permute.xlu0 %933
    %935 = vrot.lane.b32.xlu0 %v787, 8
    %v936 = vpop.permute.xlu0 %935
    %937 = vrot.lane.b32.xlu0 %v788, 8
    %v938 = vpop.permute.xlu0 %937
    %939 = vrot.lane.b32.xlu0 %v789, 8
    %v940 = vpop.permute.xlu0 %939
    %941 = vrot.lane.b32.xlu0 %v790, 8
    %v942 = vpop.permute.xlu0 %941
    %943 = vrot.lane.b32.xlu0 %v791, 8
    %v944 = vpop.permute.xlu0 %943
    %945 = vrot.lane.b32.xlu0 %v792, 8
    %v946 = vpop.permute.xlu0 %945
    %947 = vrot.lane.b32.xlu0 %v793, 8
    %v948 = vpop.permute.xlu0 %947
    %949 = vrot.lane.b32.xlu0 %v794, 8
    %v950 = vpop.permute.xlu0 %949
    %951 = vrot.lane.b32.xlu0 %v795, 8
    %v952 = vpop.permute.xlu0 %951
    %953 = vrot.lane.b32.xlu0 %v796, 8
    %v954 = vpop.permute.xlu0 %953
    %955 = vrot.lane.b32.xlu0 %v797, 8
    %v956 = vpop.permute.xlu0 %955
    %957 = vrot.lane.b32.xlu0 %v798, 8
    %v958 = vpop.permute.xlu0 %957
    %959 = vrot.lane.b32.xlu0 %v799, 8
    %v960 = vpop.permute.xlu0 %959
    %961 = vrot.lane.b32.xlu0 %v800, 8
    %v962 = vpop.permute.xlu0 %961
    %963 = vrot.lane.b32.xlu0 %v801, 8
    %v964 = vpop.permute.xlu0 %963
    %965 = vrot.lane.b32.xlu0 %v802, 8
    %v966 = vpop.permute.xlu0 %965
    %967 = vrot.lane.b32.xlu0 %v803, 8
    %v968 = vpop.permute.xlu0 %967
    %969 = vrot.lane.b32.xlu0 %v804, 8
    %v970 = vpop.permute.xlu0 %969
    %971 = vrot.lane.b32.xlu0 %v805, 8
    %v972 = vpop.permute.xlu0 %971
    %973 = vrot.lane.b32.xlu0 %v806, 8
    %v974 = vpop.permute.xlu0 %973
    %975 = vrot.lane.b32.xlu0 %v807, 8
    %v976 = vpop.permute.xlu0 %975
    %977 = vrot.lane.b32.xlu0 %v808, 8
    %v978 = vpop.permute.xlu0 %977
    %979 = vrot.lane.b32.xlu0 %v809, 8
    %v980 = vpop.permute.xlu0 %979
    %981 = vrot.lane.b32.xlu0 %v810, 8
    %v982 = vpop.permute.xlu0 %981
    %983 = vrot.lane.b32.xlu0 %v811, 8
    %v984 = vpop.permute.xlu0 %983
    %985 = vrot.lane.b32.xlu0 %v812, 8
    %v986 = vpop.permute.xlu0 %985
    %987 = vrot.lane.b32.xlu0 %v813, 8
    %v988 = vpop.permute.xlu0 %987
    %989 = vrot.lane.b32.xlu0 %v814, 8
    %v990 = vpop.permute.xlu0 %989
    %991 = vrot.lane.b32.xlu0 %v815, 8
    %v992 = vpop.permute.xlu0 %991
    %993 = vrot.lane.b32.xlu0 %v816, 8
    %v994 = vpop.permute.xlu0 %993
    %995 = vrot.lane.b32.xlu0 %v817, 8
    %v996 = vpop.permute.xlu0 %995
    %997 = vrot.lane.b32.xlu0 %v818, 8
    %v998 = vpop.permute.xlu0 %997
    %999 = vrot.lane.b32.xlu0 %v819, 8
    %v1000 = vpop.permute.xlu0 %999
    %1001 = vrot.lane.b32.xlu0 %v820, 8
    %v1002 = vpop.permute.xlu0 %1001
    %1003 = vrot.lane.b32.xlu0 %v821, 8
    %v1004 = vpop.permute.xlu0 %1003
    %1005 = vrot.lane.b32.xlu0 %v822, 8
    %v1006 = vpop.permute.xlu0 %1005
    %1007 = vrot.lane.b32.xlu0 %v823, 8
    %v1008 = vpop.permute.xlu0 %1007
    %1009 = vrot.lane.b32.xlu0 %v824, 8
    %v1010 = vpop.permute.xlu0 %1009
    %1011 = vrot.lane.b32.xlu0 %v825, 8
    %v1012 = vpop.permute.xlu0 %1011
    %1013 = vrot.lane.b32.xlu0 %v826, 8
    %v1014 = vpop.permute.xlu0 %1013
    %1015 = vrot.lane.b32.xlu0 %v827, 8
    %v1016 = vpop.permute.xlu0 %1015
    %1017 = vrot.lane.b32.xlu0 %v828, 8
    %v1018 = vpop.permute.xlu0 %1017
    %1019 = vrot.lane.b32.xlu0 %v829, 8
    %v1020 = vpop.permute.xlu0 %1019
    %1021 = vrot.lane.b32.xlu0 %v830, 8
    %v1022 = vpop.permute.xlu0 %1021
    %vm1087 = vcmask 97344
    %1088 = vst.msk [vmem:[#allocation4] sm:$0xff] %vm1087, %v896
    %1089 = vst.msk [vmem:[#allocation4 + $0x8] sm:$0xff] %vm1087, %v898
    %1090 = vst.msk [vmem:[#allocation4 + $0x10] sm:$0xff] %vm1087, %v900
    %1091 = vst.msk [vmem:[#allocation4 + $0x18] sm:$0xff] %vm1087, %v902
    %1092 = vst.msk [vmem:[#allocation4 + $0x20] sm:$0xff] %vm1087, %v904
    %1093 = vst.msk [vmem:[#allocation4 + $0x28] sm:$0xff] %vm1087, %v906
    %1094 = vst.msk [vmem:[#allocation4 + $0x30] sm:$0xff] %vm1087, %v908
    %1095 = vst.msk [vmem:[#allocation4 + $0x38] sm:$0xff] %vm1087, %v910
    %1096 = vst.msk [vmem:[#allocation4 + $0x40] sm:$0xff] %vm1087, %v912
    %1097 = vst.msk [vmem:[#allocation4 + $0x48] sm:$0xff] %vm1087, %v914
    %1098 = vst.msk [vmem:[#allocation4 + $0x50] sm:$0xff] %vm1087, %v916
    %1099 = vst.msk [vmem:[#allocation4 + $0x58] sm:$0xff] %vm1087, %v918
    %1100 = vst.msk [vmem:[#allocation4 + $0x60] sm:$0xff] %vm1087, %v920
    %1101 = vst.msk [vmem:[#allocation4 + $0x68] sm:$0xff] %vm1087, %v922
    %1102 = vst.msk [vmem:[#allocation4 + $0x70] sm:$0xff] %vm1087, %v924
    %1103 = vst.msk [vmem:[#allocation4 + $0x78] sm:$0xff] %vm1087, %v926
    %1104 = vst.msk [vmem:[#allocation4 + $0x80] sm:$0xff] %vm1087, %v928
    %1105 = vst.msk [vmem:[#allocation4 + $0x88] sm:$0xff] %vm1087, %v930
    %1106 = vst.msk [vmem:[#allocation4 + $0x90] sm:$0xff] %vm1087, %v932
    %1107 = vst.msk [vmem:[#allocation4 + $0x98] sm:$0xff] %vm1087, %v934
    %1108 = vst.msk [vmem:[#allocation4 + $0xa0] sm:$0xff] %vm1087, %v936
    %1109 = vst.msk [vmem:[#allocation4 + $0xa8] sm:$0xff] %vm1087, %v938
    %1110 = vst.msk [vmem:[#allocation4 + $0xb0] sm:$0xff] %vm1087, %v940
    %1111 = vst.msk [vmem:[#allocation4 + $0xb8] sm:$0xff] %vm1087, %v942
    %1112 = vst.msk [vmem:[#allocation4 + $0xc0] sm:$0xff] %vm1087, %v944
    %1113 = vst.msk [vmem:[#allocation4 + $0xc8] sm:$0xff] %vm1087, %v946
    %1114 = vst.msk [vmem:[#allocation4 + $0xd0] sm:$0xff] %vm1087, %v948
    %1115 = vst.msk [vmem:[#allocation4 + $0xd8] sm:$0xff] %vm1087, %v950
    %1116 = vst.msk [vmem:[#allocation4 + $0xe0] sm:$0xff] %vm1087, %v952
    %1117 = vst.msk [vmem:[#allocation4 + $0xe8] sm:$0xff] %vm1087, %v954
    %1118 = vst.msk [vmem:[#allocation4 + $0xf0] sm:$0xff] %vm1087, %v956
    %1119 = vst.msk [vmem:[#allocation4 + $0xf8] sm:$0xff] %vm1087, %v958
    %1120 = vst.msk [vmem:[#allocation4 + $0x100] sm:$0xff] %vm1087, %v960
    %1121 = vst.msk [vmem:[#allocation4 + $0x108] sm:$0xff] %vm1087, %v962
    %1122 = vst.msk [vmem:[#allocation4 + $0x110] sm:$0xff] %vm1087, %v964
    %1123 = vst.msk [vmem:[#allocation4 + $0x118] sm:$0xff] %vm1087, %v966
    %1124 = vst.msk [vmem:[#allocation4 + $0x120] sm:$0xff] %vm1087, %v968
    %1125 = vst.msk [vmem:[#allocation4 + $0x128] sm:$0xff] %vm1087, %v970
    %1126 = vst.msk [vmem:[#allocation4 + $0x130] sm:$0xff] %vm1087, %v972
    %1127 = vst.msk [vmem:[#allocation4 + $0x138] sm:$0xff] %vm1087, %v974
    %1128 = vst.msk [vmem:[#allocation4 + $0x140] sm:$0xff] %vm1087, %v976
    %1129 = vst.msk [vmem:[#allocation4 + $0x148] sm:$0xff] %vm1087, %v978
    %1130 = vst.msk [vmem:[#allocation4 + $0x150] sm:$0xff] %vm1087, %v980
    %1131 = vst.msk [vmem:[#allocation4 + $0x158] sm:$0xff] %vm1087, %v982
    %1132 = vst.msk [vmem:[#allocation4 + $0x160] sm:$0xff] %vm1087, %v984
    %1133 = vst.msk [vmem:[#allocation4 + $0x168] sm:$0xff] %vm1087, %v986
    %1134 = vst.msk [vmem:[#allocation4 + $0x170] sm:$0xff] %vm1087, %v988
    %1135 = vst.msk [vmem:[#allocation4 + $0x178] sm:$0xff] %vm1087, %v990
    %1136 = vst.msk [vmem:[#allocation4 + $0x180] sm:$0xff] %vm1087, %v992
    %1137 = vst.msk [vmem:[#allocation4 + $0x188] sm:$0xff] %vm1087, %v994
    %1138 = vst.msk [vmem:[#allocation4 + $0x190] sm:$0xff] %vm1087, %v996
    %1139 = vst.msk [vmem:[#allocation4 + $0x198] sm:$0xff] %vm1087, %v998
    %1140 = vst.msk [vmem:[#allocation4 + $0x1a0] sm:$0xff] %vm1087, %v1000
    %1141 = vst.msk [vmem:[#allocation4 + $0x1a8] sm:$0xff] %vm1087, %v1002
    %1142 = vst.msk [vmem:[#allocation4 + $0x1b0] sm:$0xff] %vm1087, %v1004
    %1143 = vst.msk [vmem:[#allocation4 + $0x1b8] sm:$0xff] %vm1087, %v1006
    %1144 = vst.msk [vmem:[#allocation4 + $0x1c0] sm:$0xff] %vm1087, %v1008
    %1145 = vst.msk [vmem:[#allocation4 + $0x1c8] sm:$0xff] %vm1087, %v1010
    %1146 = vst.msk [vmem:[#allocation4 + $0x1d0] sm:$0xff] %vm1087, %v1012
    %1147 = vst.msk [vmem:[#allocation4 + $0x1d8] sm:$0xff] %vm1087, %v1014
    %1148 = vst.msk [vmem:[#allocation4 + $0x1e0] sm:$0xff] %vm1087, %v1016
    %1149 = vst.msk [vmem:[#allocation4 + $0x1e8] sm:$0xff] %vm1087, %v1018
    %1150 = vst.msk [vmem:[#allocation4 + $0x1f0] sm:$0xff] %vm1087, %v1020
    %1151 = vst.msk [vmem:[#allocation4 + $0x1f8] sm:$0xff] %vm1087, %v1022
    %v1152 = vld [vmem:[%s189] sm:$0xff]
    %v1153 = vld [vmem:[%s189 + $0x8] sm:$0xff]
    %v1154 = vld [vmem:[%s189 + $0x18] sm:$0xff]
    %v1155 = vld [vmem:[%s189 + $0x20] sm:$0xff]
    %v1156 = vld [vmem:[%s189 + $0x30] sm:$0xff]
    %v1157 = vld [vmem:[%s189 + $0x38] sm:$0xff]
    %v1158 = vld [vmem:[%s189 + $0x48] sm:$0xff]
    %v1159 = vld [vmem:[%s189 + $0x50] sm:$0xff]
    %v1160 = vld [vmem:[%s189 + $0x60] sm:$0xff]
    %v1161 = vld [vmem:[%s189 + $0x68] sm:$0xff]
    %v1162 = vld [vmem:[%s189 + $0x78] sm:$0xff]
    %v1163 = vld [vmem:[%s189 + $0x80] sm:$0xff]
    %v1164 = vld [vmem:[%s189 + $0x90] sm:$0xff]
    %v1165 = vld [vmem:[%s189 + $0x98] sm:$0xff]
    %v1166 = vld [vmem:[%s189 + $0xa8] sm:$0xff]
    %v1167 = vld [vmem:[%s189 + $0xb0] sm:$0xff]
    %v1168 = vld [vmem:[%s189 + $0xc0] sm:$0xff]
    %v1169 = vld [vmem:[%s189 + $0xc8] sm:$0xff]
    %v1170 = vld [vmem:[%s189 + $0xd8] sm:$0xff]
    %v1171 = vld [vmem:[%s189 + $0xe0] sm:$0xff]
    %v1172 = vld [vmem:[%s189 + $0xf0] sm:$0xff]
    %v1173 = vld [vmem:[%s189 + $0xf8] sm:$0xff]
    %v1174 = vld [vmem:[%s189 + $0x108] sm:$0xff]
    %v1175 = vld [vmem:[%s189 + $0x110] sm:$0xff]
    %v1176 = vld [vmem:[%s189 + $0x120] sm:$0xff]
    %v1177 = vld [vmem:[%s189 + $0x128] sm:$0xff]
    %v1178 = vld [vmem:[%s189 + $0x138] sm:$0xff]
    %v1179 = vld [vmem:[%s189 + $0x140] sm:$0xff]
    %v1180 = vld [vmem:[%s189 + $0x150] sm:$0xff]
    %v1181 = vld [vmem:[%s189 + $0x158] sm:$0xff]
    %v1182 = vld [vmem:[%s189 + $0x168] sm:$0xff]
    %v1183 = vld [vmem:[%s189 + $0x170] sm:$0xff]
    %v1184 = vld [vmem:[%s189 + $0x1b0] sm:$0xff]
    %v1185 = vld [vmem:[%s189 + $0x1b8] sm:$0xff]
    %v1186 = vld [vmem:[%s189 + $0x1c8] sm:$0xff]
    %v1187 = vld [vmem:[%s189 + $0x1d0] sm:$0xff]
    %v1188 = vld [vmem:[%s189 + $0x1e0] sm:$0xff]
    %v1189 = vld [vmem:[%s189 + $0x1e8] sm:$0xff]
    %v1190 = vld [vmem:[%s189 + $0x1f8] sm:$0xff]
    %v1191 = vld [vmem:[%s189 + $0x200] sm:$0xff]
    %v1192 = vld [vmem:[%s189 + $0x210] sm:$0xff]
    %v1193 = vld [vmem:[%s189 + $0x218] sm:$0xff]
    %v1194 = vld [vmem:[%s189 + $0x228] sm:$0xff]
    %v1195 = vld [vmem:[%s189 + $0x230] sm:$0xff]
    %v1196 = vld [vmem:[%s189 + $0x240] sm:$0xff]
    %v1197 = vld [vmem:[%s189 + $0x248] sm:$0xff]
    %v1198 = vld [vmem:[%s189 + $0x258] sm:$0xff]
    %v1199 = vld [vmem:[%s189 + $0x260] sm:$0xff]
    %v1200 = vld [vmem:[%s189 + $0x270] sm:$0xff]
    %v1201 = vld [vmem:[%s189 + $0x278] sm:$0xff]
    %v1202 = vld [vmem:[%s189 + $0x288] sm:$0xff]
    %v1203 = vld [vmem:[%s189 + $0x290] sm:$0xff]
    %v1204 = vld [vmem:[%s189 + $0x2a0] sm:$0xff]
    %v1205 = vld [vmem:[%s189 + $0x2a8] sm:$0xff]
    %v1206 = vld [vmem:[%s189 + $0x2b8] sm:$0xff]
    %v1207 = vld [vmem:[%s189 + $0x2c0] sm:$0xff]
    %v1208 = vld [vmem:[%s189 + $0x2d0] sm:$0xff]
    %v1209 = vld [vmem:[%s189 + $0x2d8] sm:$0xff]
    %v1210 = vld [vmem:[%s189 + $0x2e8] sm:$0xff]
    %v1211 = vld [vmem:[%s189 + $0x2f0] sm:$0xff]
    %v1212 = vld [vmem:[%s189 + $0x300] sm:$0xff]
    %v1213 = vld [vmem:[%s189 + $0x308] sm:$0xff]
    %v1214 = vld [vmem:[%s189 + $0x318] sm:$0xff]
    %v1215 = vld [vmem:[%s189 + $0x320] sm:$0xff]
    %1280 = vrot.lane.b32.xlu0 %v1152, 12
    %v1281 = vpop.permute.xlu0 %1280
    %1282 = vrot.lane.b32.xlu0 %v1153, 12
    %v1283 = vpop.permute.xlu0 %1282
    %1284 = vrot.lane.b32.xlu0 %v1154, 12
    %v1285 = vpop.permute.xlu0 %1284
    %1286 = vrot.lane.b32.xlu0 %v1155, 12
    %v1287 = vpop.permute.xlu0 %1286
    %1288 = vrot.lane.b32.xlu0 %v1156, 12
    %v1289 = vpop.permute.xlu0 %1288
    %1290 = vrot.lane.b32.xlu0 %v1157, 12
    %v1291 = vpop.permute.xlu0 %1290
    %1292 = vrot.lane.b32.xlu0 %v1158, 12
    %v1293 = vpop.permute.xlu0 %1292
    %1294 = vrot.lane.b32.xlu0 %v1159, 12
    %v1295 = vpop.permute.xlu0 %1294
    %1296 = vrot.lane.b32.xlu0 %v1160, 12
    %v1297 = vpop.permute.xlu0 %1296
    %1298 = vrot.lane.b32.xlu0 %v1161, 12
    %v1299 = vpop.permute.xlu0 %1298
    %1300 = vrot.lane.b32.xlu0 %v1162, 12
    %v1301 = vpop.permute.xlu0 %1300
    %1302 = vrot.lane.b32.xlu0 %v1163, 12
    %v1303 = vpop.permute.xlu0 %1302
    %1304 = vrot.lane.b32.xlu0 %v1164, 12
    %v1305 = vpop.permute.xlu0 %1304
    %1306 = vrot.lane.b32.xlu0 %v1165, 12
    %v1307 = vpop.permute.xlu0 %1306
    %1308 = vrot.lane.b32.xlu0 %v1166, 12
    %v1309 = vpop.permute.xlu0 %1308
    %1310 = vrot.lane.b32.xlu0 %v1167, 12
    %v1311 = vpop.permute.xlu0 %1310
    %1312 = vrot.lane.b32.xlu0 %v1168, 12
    %v1313 = vpop.permute.xlu0 %1312
    %1314 = vrot.lane.b32.xlu0 %v1169, 12
    %v1315 = vpop.permute.xlu0 %1314
    %1316 = vrot.lane.b32.xlu0 %v1170, 12
    %v1317 = vpop.permute.xlu0 %1316
    %1318 = vrot.lane.b32.xlu0 %v1171, 12
    %v1319 = vpop.permute.xlu0 %1318
    %1320 = vrot.lane.b32.xlu0 %v1172, 12
    %v1321 = vpop.permute.xlu0 %1320
    %1322 = vrot.lane.b32.xlu0 %v1173, 12
    %v1323 = vpop.permute.xlu0 %1322
    %1324 = vrot.lane.b32.xlu0 %v1174, 12
    %v1325 = vpop.permute.xlu0 %1324
    %1326 = vrot.lane.b32.xlu0 %v1175, 12
    %v1327 = vpop.permute.xlu0 %1326
    %1328 = vrot.lane.b32.xlu0 %v1176, 12
    %v1329 = vpop.permute.xlu0 %1328
    %1330 = vrot.lane.b32.xlu0 %v1177, 12
    %v1331 = vpop.permute.xlu0 %1330
    %1332 = vrot.lane.b32.xlu0 %v1178, 12
    %v1333 = vpop.permute.xlu0 %1332
    %1334 = vrot.lane.b32.xlu0 %v1179, 12
    %v1335 = vpop.permute.xlu0 %1334
    %1336 = vrot.lane.b32.xlu0 %v1180, 12
    %v1337 = vpop.permute.xlu0 %1336
    %1338 = vrot.lane.b32.xlu0 %v1181, 12
    %v1339 = vpop.permute.xlu0 %1338
    %1340 = vrot.lane.b32.xlu0 %v1182, 12
    %v1341 = vpop.permute.xlu0 %1340
    %1342 = vrot.lane.b32.xlu0 %v1183, 12
    %v1343 = vpop.permute.xlu0 %1342
    %1344 = vrot.lane.b32.xlu0 %v1184, 12
    %v1345 = vpop.permute.xlu0 %1344
    %1346 = vrot.lane.b32.xlu0 %v1185, 12
    %v1347 = vpop.permute.xlu0 %1346
    %1348 = vrot.lane.b32.xlu0 %v1186, 12
    %v1349 = vpop.permute.xlu0 %1348
    %1350 = vrot.lane.b32.xlu0 %v1187, 12
    %v1351 = vpop.permute.xlu0 %1350
    %1352 = vrot.lane.b32.xlu0 %v1188, 12
    %v1353 = vpop.permute.xlu0 %1352
    %1354 = vrot.lane.b32.xlu0 %v1189, 12
    %v1355 = vpop.permute.xlu0 %1354
    %1356 = vrot.lane.b32.xlu0 %v1190, 12
    %v1357 = vpop.permute.xlu0 %1356
    %1358 = vrot.lane.b32.xlu0 %v1191, 12
    %v1359 = vpop.permute.xlu0 %1358
    %1360 = vrot.lane.b32.xlu0 %v1192, 12
    %v1361 = vpop.permute.xlu0 %1360
    %1362 = vrot.lane.b32.xlu0 %v1193, 12
    %v1363 = vpop.permute.xlu0 %1362
    %1364 = vrot.lane.b32.xlu0 %v1194, 12
    %v1365 = vpop.permute.xlu0 %1364
    %1366 = vrot.lane.b32.xlu0 %v1195, 12
    %v1367 = vpop.permute.xlu0 %1366
    %1368 = vrot.lane.b32.xlu0 %v1196, 12
    %v1369 = vpop.permute.xlu0 %1368
    %1370 = vrot.lane.b32.xlu0 %v1197, 12
    %v1371 = vpop.permute.xlu0 %1370
    %1372 = vrot.lane.b32.xlu0 %v1198, 12
    %v1373 = vpop.permute.xlu0 %1372
    %1374 = vrot.lane.b32.xlu0 %v1199, 12
    %v1375 = vpop.permute.xlu0 %1374
    %1376 = vrot.lane.b32.xlu0 %v1200, 12
    %v1377 = vpop.permute.xlu0 %1376
    %1378 = vrot.lane.b32.xlu0 %v1201, 12
    %v1379 = vpop.permute.xlu0 %1378
    %1380 = vrot.lane.b32.xlu0 %v1202, 12
    %v1381 = vpop.permute.xlu0 %1380
    %1382 = vrot.lane.b32.xlu0 %v1203, 12
    %v1383 = vpop.permute.xlu0 %1382
    %1384 = vrot.lane.b32.xlu0 %v1204, 12
    %v1385 = vpop.permute.xlu0 %1384
    %1386 = vrot.lane.b32.xlu0 %v1205, 12
    %v1387 = vpop.permute.xlu0 %1386
    %1388 = vrot.lane.b32.xlu0 %v1206, 12
    %v1389 = vpop.permute.xlu0 %1388
    %1390 = vrot.lane.b32.xlu0 %v1207, 12
    %v1391 = vpop.permute.xlu0 %1390
    %1392 = vrot.lane.b32.xlu0 %v1208, 12
    %v1393 = vpop.permute.xlu0 %1392
    %1394 = vrot.lane.b32.xlu0 %v1209, 12
    %v1395 = vpop.permute.xlu0 %1394
    %1396 = vrot.lane.b32.xlu0 %v1210, 12
    %v1397 = vpop.permute.xlu0 %1396
    %1398 = vrot.lane.b32.xlu0 %v1211, 12
    %v1399 = vpop.permute.xlu0 %1398
    %1400 = vrot.lane.b32.xlu0 %v1212, 12
    %v1401 = vpop.permute.xlu0 %1400
    %1402 = vrot.lane.b32.xlu0 %v1213, 12
    %v1403 = vpop.permute.xlu0 %1402
    %1404 = vrot.lane.b32.xlu0 %v1214, 12
    %v1405 = vpop.permute.xlu0 %1404
    %1406 = vrot.lane.b32.xlu0 %v1215, 12
    %v1407 = vpop.permute.xlu0 %1406
    %vm1472 = vcmask 130144
    %1473 = vst.msk [vmem:[#allocation4] sm:$0xff] %vm1472, %v1281
    %1474 = vst.msk [vmem:[#allocation4 + $0x8] sm:$0xff] %vm1472, %v1283
    %1475 = vst.msk [vmem:[#allocation4 + $0x10] sm:$0xff] %vm1472, %v1285
    %1476 = vst.msk [vmem:[#allocation4 + $0x18] sm:$0xff] %vm1472, %v1287
    %1477 = vst.msk [vmem:[#allocation4 + $0x20] sm:$0xff] %vm1472, %v1289
    %1478 = vst.msk [vmem:[#allocation4 + $0x28] sm:$0xff] %vm1472, %v1291
    %1479 = vst.msk [vmem:[#allocation4 + $0x30] sm:$0xff] %vm1472, %v1293
    %1480 = vst.msk [vmem:[#allocation4 + $0x38] sm:$0xff] %vm1472, %v1295
    %1481 = vst.msk [vmem:[#allocation4 + $0x40] sm:$0xff] %vm1472, %v1297
    %1482 = vst.msk [vmem:[#allocation4 + $0x48] sm:$0xff] %vm1472, %v1299
    %1483 = vst.msk [vmem:[#allocation4 + $0x50] sm:$0xff] %vm1472, %v1301
    %1484 = vst.msk [vmem:[#allocation4 + $0x58] sm:$0xff] %vm1472, %v1303
    %1485 = vst.msk [vmem:[#allocation4 + $0x60] sm:$0xff] %vm1472, %v1305
    %1486 = vst.msk [vmem:[#allocation4 + $0x68] sm:$0xff] %vm1472, %v1307
    %1487 = vst.msk [vmem:[#allocation4 + $0x70] sm:$0xff] %vm1472, %v1309
    %1488 = vst.msk [vmem:[#allocation4 + $0x78] sm:$0xff] %vm1472, %v1311
    %1489 = vst.msk [vmem:[#allocation4 + $0x80] sm:$0xff] %vm1472, %v1313
    %1490 = vst.msk [vmem:[#allocation4 + $0x88] sm:$0xff] %vm1472, %v1315
    %1491 = vst.msk [vmem:[#allocation4 + $0x90] sm:$0xff] %vm1472, %v1317
    %1492 = vst.msk [vmem:[#allocation4 + $0x98] sm:$0xff] %vm1472, %v1319
    %1493 = vst.msk [vmem:[#allocation4 + $0xa0] sm:$0xff] %vm1472, %v1321
    %1494 = vst.msk [vmem:[#allocation4 + $0xa8] sm:$0xff] %vm1472, %v1323
    %1495 = vst.msk [vmem:[#allocation4 + $0xb0] sm:$0xff] %vm1472, %v1325
    %1496 = vst.msk [vmem:[#allocation4 + $0xb8] sm:$0xff] %vm1472, %v1327
    %1497 = vst.msk [vmem:[#allocation4 + $0xc0] sm:$0xff] %vm1472, %v1329
    %1498 = vst.msk [vmem:[#allocation4 + $0xc8] sm:$0xff] %vm1472, %v1331
    %1499 = vst.msk [vmem:[#allocation4 + $0xd0] sm:$0xff] %vm1472, %v1333
    %1500 = vst.msk [vmem:[#allocation4 + $0xd8] sm:$0xff] %vm1472, %v1335
    %1501 = vst.msk [vmem:[#allocation4 + $0xe0] sm:$0xff] %vm1472, %v1337
    %1502 = vst.msk [vmem:[#allocation4 + $0xe8] sm:$0xff] %vm1472, %v1339
    %1503 = vst.msk [vmem:[#allocation4 + $0xf0] sm:$0xff] %vm1472, %v1341
    %1504 = vst.msk [vmem:[#allocation4 + $0xf8] sm:$0xff] %vm1472, %v1343
    %1505 = vst.msk [vmem:[#allocation4 + $0x100] sm:$0xff] %vm1472, %v1345
    %1506 = vst.msk [vmem:[#allocation4 + $0x108] sm:$0xff] %vm1472, %v1347
    %1507 = vst.msk [vmem:[#allocation4 + $0x110] sm:$0xff] %vm1472, %v1349
    %1508 = vst.msk [vmem:[#allocation4 + $0x118] sm:$0xff] %vm1472, %v1351
    %1509 = vst.msk [vmem:[#allocation4 + $0x120] sm:$0xff] %vm1472, %v1353
    %1510 = vst.msk [vmem:[#allocation4 + $0x128] sm:$0xff] %vm1472, %v1355
    %1511 = vst.msk [vmem:[#allocation4 + $0x130] sm:$0xff] %vm1472, %v1357
    %1512 = vst.msk [vmem:[#allocation4 + $0x138] sm:$0xff] %vm1472, %v1359
    %1513 = vst.msk [vmem:[#allocation4 + $0x140] sm:$0xff] %vm1472, %v1361
    %1514 = vst.msk [vmem:[#allocation4 + $0x148] sm:$0xff] %vm1472, %v1363
    %1515 = vst.msk [vmem:[#allocation4 + $0x150] sm:$0xff] %vm1472, %v1365
    %1516 = vst.msk [vmem:[#allocation4 + $0x158] sm:$0xff] %vm1472, %v1367
    %1517 = vst.msk [vmem:[#allocation4 + $0x160] sm:$0xff] %vm1472, %v1369
    %1518 = vst.msk [vmem:[#allocation4 + $0x168] sm:$0xff] %vm1472, %v1371
    %1519 = vst.msk [vmem:[#allocation4 + $0x170] sm:$0xff] %vm1472, %v1373
    %1520 = vst.msk [vmem:[#allocation4 + $0x178] sm:$0xff] %vm1472, %v1375
    %1521 = vst.msk [vmem:[#allocation4 + $0x180] sm:$0xff] %vm1472, %v1377
    %1522 = vst.msk [vmem:[#allocation4 + $0x188] sm:$0xff] %vm1472, %v1379
    %1523 = vst.msk [vmem:[#allocation4 + $0x190] sm:$0xff] %vm1472, %v1381
    %1524 = vst.msk [vmem:[#allocation4 + $0x198] sm:$0xff] %vm1472, %v1383
    %1525 = vst.msk [vmem:[#allocation4 + $0x1a0] sm:$0xff] %vm1472, %v1385
    %1526 = vst.msk [vmem:[#allocation4 + $0x1a8] sm:$0xff] %vm1472, %v1387
    %1527 = vst.msk [vmem:[#allocation4 + $0x1b0] sm:$0xff] %vm1472, %v1389
    %1528 = vst.msk [vmem:[#allocation4 + $0x1b8] sm:$0xff] %vm1472, %v1391
    %1529 = vst.msk [vmem:[#allocation4 + $0x1c0] sm:$0xff] %vm1472, %v1393
    %1530 = vst.msk [vmem:[#allocation4 + $0x1c8] sm:$0xff] %vm1472, %v1395
    %1531 = vst.msk [vmem:[#allocation4 + $0x1d0] sm:$0xff] %vm1472, %v1397
    %1532 = vst.msk [vmem:[#allocation4 + $0x1d8] sm:$0xff] %vm1472, %v1399
    %1533 = vst.msk [vmem:[#allocation4 + $0x1e0] sm:$0xff] %vm1472, %v1401
    %1534 = vst.msk [vmem:[#allocation4 + $0x1e8] sm:$0xff] %vm1472, %v1403
    %1535 = vst.msk [vmem:[#allocation4 + $0x1f0] sm:$0xff] %vm1472, %v1405
    %1536 = vst.msk [vmem:[#allocation4 + $0x1f8] sm:$0xff] %vm1472, %v1407
    %v1537 = vld [vmem:[%s189 + $0x1] sm:$0xff]
    %v1538 = vld [vmem:[%s189 + $0x9] sm:$0xff]
    %v1539 = vld [vmem:[%s189 + $0x19] sm:$0xff]
    %v1540 = vld [vmem:[%s189 + $0x21] sm:$0xff]
    %v1541 = vld [vmem:[%s189 + $0x31] sm:$0xff]
    %v1542 = vld [vmem:[%s189 + $0x39] sm:$0xff]
    %v1543 = vld [vmem:[%s189 + $0x49] sm:$0xff]
    %v1544 = vld [vmem:[%s189 + $0x51] sm:$0xff]
    %v1545 = vld [vmem:[%s189 + $0x61] sm:$0xff]
    %v1546 = vld [vmem:[%s189 + $0x69] sm:$0xff]
    %v1547 = vld [vmem:[%s189 + $0x79] sm:$0xff]
    %v1548 = vld [vmem:[%s189 + $0x81] sm:$0xff]
    %v1549 = vld [vmem:[%s189 + $0x91] sm:$0xff]
    %v1550 = vld [vmem:[%s189 + $0x99] sm:$0xff]
    %v1551 = vld [vmem:[%s189 + $0xa9] sm:$0xff]
    %v1552 = vld [vmem:[%s189 + $0xb1] sm:$0xff]
    %v1553 = vld [vmem:[%s189 + $0xc1] sm:$0xff]
    %v1554 = vld [vmem:[%s189 + $0xc9] sm:$0xff]
    %v1555 = vld [vmem:[%s189 + $0xd9] sm:$0xff]
    %v1556 = vld [vmem:[%s189 + $0xe1] sm:$0xff]
    %v1557 = vld [vmem:[%s189 + $0xf1] sm:$0xff]
    %v1558 = vld [vmem:[%s189 + $0xf9] sm:$0xff]
    %v1559 = vld [vmem:[%s189 + $0x109] sm:$0xff]
    %v1560 = vld [vmem:[%s189 + $0x111] sm:$0xff]
    %v1561 = vld [vmem:[%s189 + $0x121] sm:$0xff]
    %v1562 = vld [vmem:[%s189 + $0x129] sm:$0xff]
    %v1563 = vld [vmem:[%s189 + $0x139] sm:$0xff]
    %v1564 = vld [vmem:[%s189 + $0x141] sm:$0xff]
    %v1565 = vld [vmem:[%s189 + $0x151] sm:$0xff]
    %v1566 = vld [vmem:[%s189 + $0x159] sm:$0xff]
    %v1567 = vld [vmem:[%s189 + $0x169] sm:$0xff]
    %v1568 = vld [vmem:[%s189 + $0x171] sm:$0xff]
    %v1569 = vld [vmem:[%s189 + $0x1b1] sm:$0xff]
    %v1570 = vld [vmem:[%s189 + $0x1b9] sm:$0xff]
    %v1571 = vld [vmem:[%s189 + $0x1c9] sm:$0xff]
    %v1572 = vld [vmem:[%s189 + $0x1d1] sm:$0xff]
    %v1573 = vld [vmem:[%s189 + $0x1e1] sm:$0xff]
    %v1574 = vld [vmem:[%s189 + $0x1e9] sm:$0xff]
    %v1575 = vld [vmem:[%s189 + $0x1f9] sm:$0xff]
    %v1576 = vld [vmem:[%s189 + $0x201] sm:$0xff]
    %v1577 = vld [vmem:[%s189 + $0x211] sm:$0xff]
    %v1578 = vld [vmem:[%s189 + $0x219] sm:$0xff]
    %v1579 = vld [vmem:[%s189 + $0x229] sm:$0xff]
    %v1580 = vld [vmem:[%s189 + $0x231] sm:$0xff]
    %v1581 = vld [vmem:[%s189 + $0x241] sm:$0xff]
    %v1582 = vld [vmem:[%s189 + $0x249] sm:$0xff]
    %v1583 = vld [vmem:[%s189 + $0x259] sm:$0xff]
    %v1584 = vld [vmem:[%s189 + $0x261] sm:$0xff]
    %v1585 = vld [vmem:[%s189 + $0x271] sm:$0xff]
    %v1586 = vld [vmem:[%s189 + $0x279] sm:$0xff]
    %v1587 = vld [vmem:[%s189 + $0x289] sm:$0xff]
    %v1588 = vld [vmem:[%s189 + $0x291] sm:$0xff]
    %v1589 = vld [vmem:[%s189 + $0x2a1] sm:$0xff]
    %v1590 = vld [vmem:[%s189 + $0x2a9] sm:$0xff]
    %v1591 = vld [vmem:[%s189 + $0x2b9] sm:$0xff]
    %v1592 = vld [vmem:[%s189 + $0x2c1] sm:$0xff]
    %v1593 = vld [vmem:[%s189 + $0x2d1] sm:$0xff]
    %v1594 = vld [vmem:[%s189 + $0x2d9] sm:$0xff]
    %v1595 = vld [vmem:[%s189 + $0x2e9] sm:$0xff]
    %v1596 = vld [vmem:[%s189 + $0x2f1] sm:$0xff]
    %v1597 = vld [vmem:[%s189 + $0x301] sm:$0xff]
    %v1598 = vld [vmem:[%s189 + $0x309] sm:$0xff]
    %v1599 = vld [vmem:[%s189 + $0x319] sm:$0xff]
    %v1600 = vld [vmem:[%s189 + $0x321] sm:$0xff]
    %1665 = vrot.lane.b32.xlu0 %v1537, 16
    %v1666 = vpop.permute.xlu0 %1665
    %1667 = vrot.lane.b32.xlu0 %v1538, 16
    %v1668 = vpop.permute.xlu0 %1667
    %1669 = vrot.lane.b32.xlu0 %v1539, 16
    %v1670 = vpop.permute.xlu0 %1669
    %1671 = vrot.lane.b32.xlu0 %v1540, 16
    %v1672 = vpop.permute.xlu0 %1671
    %1673 = vrot.lane.b32.xlu0 %v1541, 16
    %v1674 = vpop.permute.xlu0 %1673
    %1675 = vrot.lane.b32.xlu0 %v1542, 16
    %v1676 = vpop.permute.xlu0 %1675
    %1677 = vrot.lane.b32.xlu0 %v1543, 16
    %v1678 = vpop.permute.xlu0 %1677
    %1679 = vrot.lane.b32.xlu0 %v1544, 16
    %v1680 = vpop.permute.xlu0 %1679
    %1681 = vrot.lane.b32.xlu0 %v1545, 16
    %v1682 = vpop.permute.xlu0 %1681
    %1683 = vrot.lane.b32.xlu0 %v1546, 16
    %v1684 = vpop.permute.xlu0 %1683
    %1685 = vrot.lane.b32.xlu0 %v1547, 16
    %v1686 = vpop.permute.xlu0 %1685
    %1687 = vrot.lane.b32.xlu0 %v1548, 16
    %v1688 = vpop.permute.xlu0 %1687
    %1689 = vrot.lane.b32.xlu0 %v1549, 16
    %v1690 = vpop.permute.xlu0 %1689
    %1691 = vrot.lane.b32.xlu0 %v1550, 16
    %v1692 = vpop.permute.xlu0 %1691
    %1693 = vrot.lane.b32.xlu0 %v1551, 16
    %v1694 = vpop.permute.xlu0 %1693
    %1695 = vrot.lane.b32.xlu0 %v1552, 16
    %v1696 = vpop.permute.xlu0 %1695
    %1697 = vrot.lane.b32.xlu0 %v1553, 16
    %v1698 = vpop.permute.xlu0 %1697
    %1699 = vrot.lane.b32.xlu0 %v1554, 16
    %v1700 = vpop.permute.xlu0 %1699
    %1701 = vrot.lane.b32.xlu0 %v1555, 16
    %v1702 = vpop.permute.xlu0 %1701
    %1703 = vrot.lane.b32.xlu0 %v1556, 16
    %v1704 = vpop.permute.xlu0 %1703
    %1705 = vrot.lane.b32.xlu0 %v1557, 16
    %v1706 = vpop.permute.xlu0 %1705
    %1707 = vrot.lane.b32.xlu0 %v1558, 16
    %v1708 = vpop.permute.xlu0 %1707
    %1709 = vrot.lane.b32.xlu0 %v1559, 16
    %v1710 = vpop.permute.xlu0 %1709
    %1711 = vrot.lane.b32.xlu0 %v1560, 16
    %v1712 = vpop.permute.xlu0 %1711
    %1713 = vrot.lane.b32.xlu0 %v1561, 16
    %v1714 = vpop.permute.xlu0 %1713
    %1715 = vrot.lane.b32.xlu0 %v1562, 16
    %v1716 = vpop.permute.xlu0 %1715
    %1717 = vrot.lane.b32.xlu0 %v1563, 16
    %v1718 = vpop.permute.xlu0 %1717
    %1719 = vrot.lane.b32.xlu0 %v1564, 16
    %v1720 = vpop.permute.xlu0 %1719
    %1721 = vrot.lane.b32.xlu0 %v1565, 16
    %v1722 = vpop.permute.xlu0 %1721
    %1723 = vrot.lane.b32.xlu0 %v1566, 16
    %v1724 = vpop.permute.xlu0 %1723
    %1725 = vrot.lane.b32.xlu0 %v1567, 16
    %v1726 = vpop.permute.xlu0 %1725
    %1727 = vrot.lane.b32.xlu0 %v1568, 16
    %v1728 = vpop.permute.xlu0 %1727
    %1729 = vrot.lane.b32.xlu0 %v1569, 16
    %v1730 = vpop.permute.xlu0 %1729
    %1731 = vrot.lane.b32.xlu0 %v1570, 16
    %v1732 = vpop.permute.xlu0 %1731
    %1733 = vrot.lane.b32.xlu0 %v1571, 16
    %v1734 = vpop.permute.xlu0 %1733
    %1735 = vrot.lane.b32.xlu0 %v1572, 16
    %v1736 = vpop.permute.xlu0 %1735
    %1737 = vrot.lane.b32.xlu0 %v1573, 16
    %v1738 = vpop.permute.xlu0 %1737
    %1739 = vrot.lane.b32.xlu0 %v1574, 16
    %v1740 = vpop.permute.xlu0 %1739
    %1741 = vrot.lane.b32.xlu0 %v1575, 16
    %v1742 = vpop.permute.xlu0 %1741
    %1743 = vrot.lane.b32.xlu0 %v1576, 16
    %v1744 = vpop.permute.xlu0 %1743
    %1745 = vrot.lane.b32.xlu0 %v1577, 16
    %v1746 = vpop.permute.xlu0 %1745
    %1747 = vrot.lane.b32.xlu0 %v1578, 16
    %v1748 = vpop.permute.xlu0 %1747
    %1749 = vrot.lane.b32.xlu0 %v1579, 16
    %v1750 = vpop.permute.xlu0 %1749
    %1751 = vrot.lane.b32.xlu0 %v1580, 16
    %v1752 = vpop.permute.xlu0 %1751
    %1753 = vrot.lane.b32.xlu0 %v1581, 16
    %v1754 = vpop.permute.xlu0 %1753
    %1755 = vrot.lane.b32.xlu0 %v1582, 16
    %v1756 = vpop.permute.xlu0 %1755
    %1757 = vrot.lane.b32.xlu0 %v1583, 16
    %v1758 = vpop.permute.xlu0 %1757
    %1759 = vrot.lane.b32.xlu0 %v1584, 16
    %v1760 = vpop.permute.xlu0 %1759
    %1761 = vrot.lane.b32.xlu0 %v1585, 16
    %v1762 = vpop.permute.xlu0 %1761
    %1763 = vrot.lane.b32.xlu0 %v1586, 16
    %v1764 = vpop.permute.xlu0 %1763
    %1765 = vrot.lane.b32.xlu0 %v1587, 16
    %v1766 = vpop.permute.xlu0 %1765
    %1767 = vrot.lane.b32.xlu0 %v1588, 16
    %v1768 = vpop.permute.xlu0 %1767
    %1769 = vrot.lane.b32.xlu0 %v1589, 16
    %v1770 = vpop.permute.xlu0 %1769
    %1771 = vrot.lane.b32.xlu0 %v1590, 16
    %v1772 = vpop.permute.xlu0 %1771
    %1773 = vrot.lane.b32.xlu0 %v1591, 16
    %v1774 = vpop.permute.xlu0 %1773
    %1775 = vrot.lane.b32.xlu0 %v1592, 16
    %v1776 = vpop.permute.xlu0 %1775
    %1777 = vrot.lane.b32.xlu0 %v1593, 16
    %v1778 = vpop.permute.xlu0 %1777
    %1779 = vrot.lane.b32.xlu0 %v1594, 16
    %v1780 = vpop.permute.xlu0 %1779
    %1781 = vrot.lane.b32.xlu0 %v1595, 16
    %v1782 = vpop.permute.xlu0 %1781
    %1783 = vrot.lane.b32.xlu0 %v1596, 16
    %v1784 = vpop.permute.xlu0 %1783
    %1785 = vrot.lane.b32.xlu0 %v1597, 16
    %v1786 = vpop.permute.xlu0 %1785
    %1787 = vrot.lane.b32.xlu0 %v1598, 16
    %v1788 = vpop.permute.xlu0 %1787
    %1789 = vrot.lane.b32.xlu0 %v1599, 16
    %v1790 = vpop.permute.xlu0 %1789
    %1791 = vrot.lane.b32.xlu0 %v1600, 16
    %v1792 = vpop.permute.xlu0 %1791
    %vm1857 = vcmask 162944
    %1858 = vst.msk [vmem:[#allocation4] sm:$0xff] %vm1857, %v1666
    %1859 = vst.msk [vmem:[#allocation4 + $0x8] sm:$0xff] %vm1857, %v1668
    %1860 = vst.msk [vmem:[#allocation4 + $0x10] sm:$0xff] %vm1857, %v1670
    %1861 = vst.msk [vmem:[#allocation4 + $0x18] sm:$0xff] %vm1857, %v1672
    %1862 = vst.msk [vmem:[#allocation4 + $0x20] sm:$0xff] %vm1857, %v1674
    %1863 = vst.msk [vmem:[#allocation4 + $0x28] sm:$0xff] %vm1857, %v1676
    %1864 = vst.msk [vmem:[#allocation4 + $0x30] sm:$0xff] %vm1857, %v1678
    %1865 = vst.msk [vmem:[#allocation4 + $0x38] sm:$0xff] %vm1857, %v1680
    %1866 = vst.msk [vmem:[#allocation4 + $0x40] sm:$0xff] %vm1857, %v1682
    %1867 = vst.msk [vmem:[#allocation4 + $0x48] sm:$0xff] %vm1857, %v1684
    %1868 = vst.msk [vmem:[#allocation4 + $0x50] sm:$0xff] %vm1857, %v1686
    %1869 = vst.msk [vmem:[#allocation4 + $0x58] sm:$0xff] %vm1857, %v1688
    %1870 = vst.msk [vmem:[#allocation4 + $0x60] sm:$0xff] %vm1857, %v1690
    %1871 = vst.msk [vmem:[#allocation4 + $0x68] sm:$0xff] %vm1857, %v1692
    %1872 = vst.msk [vmem:[#allocation4 + $0x70] sm:$0xff] %vm1857, %v1694
    %1873 = vst.msk [vmem:[#allocation4 + $0x78] sm:$0xff] %vm1857, %v1696
    %1874 = vst.msk [vmem:[#allocation4 + $0x80] sm:$0xff] %vm1857, %v1698
    %1875 = vst.msk [vmem:[#allocation4 + $0x88] sm:$0xff] %vm1857, %v1700
    %1876 = vst.msk [vmem:[#allocation4 + $0x90] sm:$0xff] %vm1857, %v1702
    %1877 = vst.msk [vmem:[#allocation4 + $0x98] sm:$0xff] %vm1857, %v1704
    %1878 = vst.msk [vmem:[#allocation4 + $0xa0] sm:$0xff] %vm1857, %v1706
    %1879 = vst.msk [vmem:[#allocation4 + $0xa8] sm:$0xff] %vm1857, %v1708
    %1880 = vst.msk [vmem:[#allocation4 + $0xb0] sm:$0xff] %vm1857, %v1710
    %1881 = vst.msk [vmem:[#allocation4 + $0xb8] sm:$0xff] %vm1857, %v1712
    %1882 = vst.msk [vmem:[#allocation4 + $0xc0] sm:$0xff] %vm1857, %v1714
    %1883 = vst.msk [vmem:[#allocation4 + $0xc8] sm:$0xff] %vm1857, %v1716
    %1884 = vst.msk [vmem:[#allocation4 + $0xd0] sm:$0xff] %vm1857, %v1718
    %1885 = vst.msk [vmem:[#allocation4 + $0xd8] sm:$0xff] %vm1857, %v1720
    %1886 = vst.msk [vmem:[#allocation4 + $0xe0] sm:$0xff] %vm1857, %v1722
    %1887 = vst.msk [vmem:[#allocation4 + $0xe8] sm:$0xff] %vm1857, %v1724
    %1888 = vst.msk [vmem:[#allocation4 + $0xf0] sm:$0xff] %vm1857, %v1726
    %1889 = vst.msk [vmem:[#allocation4 + $0xf8] sm:$0xff] %vm1857, %v1728
    %1890 = vst.msk [vmem:[#allocation4 + $0x100] sm:$0xff] %vm1857, %v1730
    %1891 = vst.msk [vmem:[#allocation4 + $0x108] sm:$0xff] %vm1857, %v1732
    %1892 = vst.msk [vmem:[#allocation4 + $0x110] sm:$0xff] %vm1857, %v1734
    %1893 = vst.msk [vmem:[#allocation4 + $0x118] sm:$0xff] %vm1857, %v1736
    %1894 = vst.msk [vmem:[#allocation4 + $0x120] sm:$0xff] %vm1857, %v1738
    %1895 = vst.msk [vmem:[#allocation4 + $0x128] sm:$0xff] %vm1857, %v1740
    %1896 = vst.msk [vmem:[#allocation4 + $0x130] sm:$0xff] %vm1857, %v1742
    %1897 = vst.msk [vmem:[#allocation4 + $0x138] sm:$0xff] %vm1857, %v1744
    %1898 = vst.msk [vmem:[#allocation4 + $0x140] sm:$0xff] %vm1857, %v1746
    %1899 = vst.msk [vmem:[#allocation4 + $0x148] sm:$0xff] %vm1857, %v1748
    %1900 = vst.msk [vmem:[#allocation4 + $0x150] sm:$0xff] %vm1857, %v1750
    %1901 = vst.msk [vmem:[#allocation4 + $0x158] sm:$0xff] %vm1857, %v1752
    %1902 = vst.msk [vmem:[#allocation4 + $0x160] sm:$0xff] %vm1857, %v1754
    %1903 = vst.msk [vmem:[#allocation4 + $0x168] sm:$0xff] %vm1857, %v1756
    %1904 = vst.msk [vmem:[#allocation4 + $0x170] sm:$0xff] %vm1857, %v1758
    %1905 = vst.msk [vmem:[#allocation4 + $0x178] sm:$0xff] %vm1857, %v1760
    %1906 = vst.msk [vmem:[#allocation4 + $0x180] sm:$0xff] %vm1857, %v1762
    %1907 = vst.msk [vmem:[#allocation4 + $0x188] sm:$0xff] %vm1857, %v1764
    %1908 = vst.msk [vmem:[#allocation4 + $0x190] sm:$0xff] %vm1857, %v1766
    %1909 = vst.msk [vmem:[#allocation4 + $0x198] sm:$0xff] %vm1857, %v1768
    %1910 = vst.msk [vmem:[#allocation4 + $0x1a0] sm:$0xff] %vm1857, %v1770
    %1911 = vst.msk [vmem:[#allocation4 + $0x1a8] sm:$0xff] %vm1857, %v1772
    %1912 = vst.msk [vmem:[#allocation4 + $0x1b0] sm:$0xff] %vm1857, %v1774
    %1913 = vst.msk [vmem:[#allocation4 + $0x1b8] sm:$0xff] %vm1857, %v1776
    %1914 = vst.msk [vmem:[#allocation4 + $0x1c0] sm:$0xff] %vm1857, %v1778
    %1915 = vst.msk [vmem:[#allocation4 + $0x1c8] sm:$0xff] %vm1857, %v1780
    %1916 = vst.msk [vmem:[#allocation4 + $0x1d0] sm:$0xff] %vm1857, %v1782
    %1917 = vst.msk [vmem:[#allocation4 + $0x1d8] sm:$0xff] %vm1857, %v1784
    %1918 = vst.msk [vmem:[#allocation4 + $0x1e0] sm:$0xff] %vm1857, %v1786
    %1919 = vst.msk [vmem:[#allocation4 + $0x1e8] sm:$0xff] %vm1857, %v1788
    %1920 = vst.msk [vmem:[#allocation4 + $0x1f0] sm:$0xff] %vm1857, %v1790
    %1921 = vst.msk [vmem:[#allocation4 + $0x1f8] sm:$0xff] %vm1857, %v1792
    %v1922 = vld [vmem:[%s189 + $0x2] sm:$0xff]
    %v1923 = vld [vmem:[%s189 + $0xa] sm:$0xff]
    %v1924 = vld [vmem:[%s189 + $0x1a] sm:$0xff]
    %v1925 = vld [vmem:[%s189 + $0x22] sm:$0xff]
    %v1926 = vld [vmem:[%s189 + $0x32] sm:$0xff]
    %v1927 = vld [vmem:[%s189 + $0x3a] sm:$0xff]
    %v1928 = vld [vmem:[%s189 + $0x4a] sm:$0xff]
    %v1929 = vld [vmem:[%s189 + $0x52] sm:$0xff]
    %v1930 = vld [vmem:[%s189 + $0x62] sm:$0xff]
    %v1931 = vld [vmem:[%s189 + $0x6a] sm:$0xff]
    %v1932 = vld [vmem:[%s189 + $0x7a] sm:$0xff]
    %v1933 = vld [vmem:[%s189 + $0x82] sm:$0xff]
    %v1934 = vld [vmem:[%s189 + $0x92] sm:$0xff]
    %v1935 = vld [vmem:[%s189 + $0x9a] sm:$0xff]
    %v1936 = vld [vmem:[%s189 + $0xaa] sm:$0xff]
    %v1937 = vld [vmem:[%s189 + $0xb2] sm:$0xff]
    %v1938 = vld [vmem:[%s189 + $0xc2] sm:$0xff]
    %v1939 = vld [vmem:[%s189 + $0xca] sm:$0xff]
    %v1940 = vld [vmem:[%s189 + $0xda] sm:$0xff]
    %v1941 = vld [vmem:[%s189 + $0xe2] sm:$0xff]
    %v1942 = vld [vmem:[%s189 + $0xf2] sm:$0xff]
    %v1943 = vld [vmem:[%s189 + $0xfa] sm:$0xff]
    %v1944 = vld [vmem:[%s189 + $0x10a] sm:$0xff]
    %v1945 = vld [vmem:[%s189 + $0x112] sm:$0xff]
    %v1946 = vld [vmem:[%s189 + $0x122] sm:$0xff]
    %v1947 = vld [vmem:[%s189 + $0x12a] sm:$0xff]
    %v1948 = vld [vmem:[%s189 + $0x13a] sm:$0xff]
    %v1949 = vld [vmem:[%s189 + $0x142] sm:$0xff]
    %v1950 = vld [vmem:[%s189 + $0x152] sm:$0xff]
    %v1951 = vld [vmem:[%s189 + $0x15a] sm:$0xff]
    %v1952 = vld [vmem:[%s189 + $0x16a] sm:$0xff]
    %v1953 = vld [vmem:[%s189 + $0x172] sm:$0xff]
    %v1954 = vld [vmem:[%s189 + $0x1b2] sm:$0xff]
    %v1955 = vld [vmem:[%s189 + $0x1ba] sm:$0xff]
    %v1956 = vld [vmem:[%s189 + $0x1ca] sm:$0xff]
    %v1957 = vld [vmem:[%s189 + $0x1d2] sm:$0xff]
    %v1958 = vld [vmem:[%s189 + $0x1e2] sm:$0xff]
    %v1959 = vld [vmem:[%s189 + $0x1ea] sm:$0xff]
    %v1960 = vld [vmem:[%s189 + $0x1fa] sm:$0xff]
    %v1961 = vld [vmem:[%s189 + $0x202] sm:$0xff]
    %v1962 = vld [vmem:[%s189 + $0x212] sm:$0xff]
    %v1963 = vld [vmem:[%s189 + $0x21a] sm:$0xff]
    %v1964 = vld [vmem:[%s189 + $0x22a] sm:$0xff]
    %v1965 = vld [vmem:[%s189 + $0x232] sm:$0xff]
    %v1966 = vld [vmem:[%s189 + $0x242] sm:$0xff]
    %v1967 = vld [vmem:[%s189 + $0x24a] sm:$0xff]
    %v1968 = vld [vmem:[%s189 + $0x25a] sm:$0xff]
    %v1969 = vld [vmem:[%s189 + $0x262] sm:$0xff]
    %v1970 = vld [vmem:[%s189 + $0x272] sm:$0xff]
    %v1971 = vld [vmem:[%s189 + $0x27a] sm:$0xff]
    %v1972 = vld [vmem:[%s189 + $0x28a] sm:$0xff]
    %v1973 = vld [vmem:[%s189 + $0x292] sm:$0xff]
    %v1974 = vld [vmem:[%s189 + $0x2a2] sm:$0xff]
    %v1975 = vld [vmem:[%s189 + $0x2aa] sm:$0xff]
    %v1976 = vld [vmem:[%s189 + $0x2ba] sm:$0xff]
    %v1977 = vld [vmem:[%s189 + $0x2c2] sm:$0xff]
    %v1978 = vld [vmem:[%s189 + $0x2d2] sm:$0xff]
    %v1979 = vld [vmem:[%s189 + $0x2da] sm:$0xff]
    %v1980 = vld [vmem:[%s189 + $0x2ea] sm:$0xff]
    %v1981 = vld [vmem:[%s189 + $0x2f2] sm:$0xff]
    %v1982 = vld [vmem:[%s189 + $0x302] sm:$0xff]
    %v1983 = vld [vmem:[%s189 + $0x30a] sm:$0xff]
    %v1984 = vld [vmem:[%s189 + $0x31a] sm:$0xff]
    %v1985 = vld [vmem:[%s189 + $0x322] sm:$0xff]
    %2050 = vrot.lane.b32.xlu0 %v1922, 20
    %v2051 = vpop.permute.xlu0 %2050
    %2052 = vrot.lane.b32.xlu0 %v1923, 20
    %v2053 = vpop.permute.xlu0 %2052
    %2054 = vrot.lane.b32.xlu0 %v1924, 20
    %v2055 = vpop.permute.xlu0 %2054
    %2056 = vrot.lane.b32.xlu0 %v1925, 20
    %v2057 = vpop.permute.xlu0 %2056
    %2058 = vrot.lane.b32.xlu0 %v1926, 20
    %v2059 = vpop.permute.xlu0 %2058
    %2060 = vrot.lane.b32.xlu0 %v1927, 20
    %v2061 = vpop.permute.xlu0 %2060
    %2062 = vrot.lane.b32.xlu0 %v1928, 20
    %v2063 = vpop.permute.xlu0 %2062
    %2064 = vrot.lane.b32.xlu0 %v1929, 20
    %v2065 = vpop.permute.xlu0 %2064
    %2066 = vrot.lane.b32.xlu0 %v1930, 20
    %v2067 = vpop.permute.xlu0 %2066
    %2068 = vrot.lane.b32.xlu0 %v1931, 20
    %v2069 = vpop.permute.xlu0 %2068
    %2070 = vrot.lane.b32.xlu0 %v1932, 20
    %v2071 = vpop.permute.xlu0 %2070
    %2072 = vrot.lane.b32.xlu0 %v1933, 20
    %v2073 = vpop.permute.xlu0 %2072
    %2074 = vrot.lane.b32.xlu0 %v1934, 20
    %v2075 = vpop.permute.xlu0 %2074
    %2076 = vrot.lane.b32.xlu0 %v1935, 20
    %v2077 = vpop.permute.xlu0 %2076
    %2078 = vrot.lane.b32.xlu0 %v1936, 20
    %v2079 = vpop.permute.xlu0 %2078
    %2080 = vrot.lane.b32.xlu0 %v1937, 20
    %v2081 = vpop.permute.xlu0 %2080
    %2082 = vrot.lane.b32.xlu0 %v1938, 20
    %v2083 = vpop.permute.xlu0 %2082
    %2084 = vrot.lane.b32.xlu0 %v1939, 20
    %v2085 = vpop.permute.xlu0 %2084
    %2086 = vrot.lane.b32.xlu0 %v1940, 20
    %v2087 = vpop.permute.xlu0 %2086
    %2088 = vrot.lane.b32.xlu0 %v1941, 20
    %v2089 = vpop.permute.xlu0 %2088
    %2090 = vrot.lane.b32.xlu0 %v1942, 20
    %v2091 = vpop.permute.xlu0 %2090
    %2092 = vrot.lane.b32.xlu0 %v1943, 20
    %v2093 = vpop.permute.xlu0 %2092
    %2094 = vrot.lane.b32.xlu0 %v1944, 20
    %v2095 = vpop.permute.xlu0 %2094
    %2096 = vrot.lane.b32.xlu0 %v1945, 20
    %v2097 = vpop.permute.xlu0 %2096
    %2098 = vrot.lane.b32.xlu0 %v1946, 20
    %v2099 = vpop.permute.xlu0 %2098
    %2100 = vrot.lane.b32.xlu0 %v1947, 20
    %v2101 = vpop.permute.xlu0 %2100
    %2102 = vrot.lane.b32.xlu0 %v1948, 20
    %v2103 = vpop.permute.xlu0 %2102
    %2104 = vrot.lane.b32.xlu0 %v1949, 20
    %v2105 = vpop.permute.xlu0 %2104
    %2106 = vrot.lane.b32.xlu0 %v1950, 20
    %v2107 = vpop.permute.xlu0 %2106
    %2108 = vrot.lane.b32.xlu0 %v1951, 20
    %v2109 = vpop.permute.xlu0 %2108
    %2110 = vrot.lane.b32.xlu0 %v1952, 20
    %v2111 = vpop.permute.xlu0 %2110
    %2112 = vrot.lane.b32.xlu0 %v1953, 20
    %v2113 = vpop.permute.xlu0 %2112
    %2114 = vrot.lane.b32.xlu0 %v1954, 20
    %v2115 = vpop.permute.xlu0 %2114
    %2116 = vrot.lane.b32.xlu0 %v1955, 20
    %v2117 = vpop.permute.xlu0 %2116
    %2118 = vrot.lane.b32.xlu0 %v1956, 20
    %v2119 = vpop.permute.xlu0 %2118
    %2120 = vrot.lane.b32.xlu0 %v1957, 20
    %v2121 = vpop.permute.xlu0 %2120
    %2122 = vrot.lane.b32.xlu0 %v1958, 20
    %v2123 = vpop.permute.xlu0 %2122
    %2124 = vrot.lane.b32.xlu0 %v1959, 20
    %v2125 = vpop.permute.xlu0 %2124
    %2126 = vrot.lane.b32.xlu0 %v1960, 20
    %v2127 = vpop.permute.xlu0 %2126
    %2128 = vrot.lane.b32.xlu0 %v1961, 20
    %v2129 = vpop.permute.xlu0 %2128
    %2130 = vrot.lane.b32.xlu0 %v1962, 20
    %v2131 = vpop.permute.xlu0 %2130
    %2132 = vrot.lane.b32.xlu0 %v1963, 20
    %v2133 = vpop.permute.xlu0 %2132
    %2134 = vrot.lane.b32.xlu0 %v1964, 20
    %v2135 = vpop.permute.xlu0 %2134
    %2136 = vrot.lane.b32.xlu0 %v1965, 20
    %v2137 = vpop.permute.xlu0 %2136
    %2138 = vrot.lane.b32.xlu0 %v1966, 20
    %v2139 = vpop.permute.xlu0 %2138
    %2140 = vrot.lane.b32.xlu0 %v1967, 20
    %v2141 = vpop.permute.xlu0 %2140
    %2142 = vrot.lane.b32.xlu0 %v1968, 20
    %v2143 = vpop.permute.xlu0 %2142
    %2144 = vrot.lane.b32.xlu0 %v1969, 20
    %v2145 = vpop.permute.xlu0 %2144
    %2146 = vrot.lane.b32.xlu0 %v1970, 20
    %v2147 = vpop.permute.xlu0 %2146
    %2148 = vrot.lane.b32.xlu0 %v1971, 20
    %v2149 = vpop.permute.xlu0 %2148
    %2150 = vrot.lane.b32.xlu0 %v1972, 20
    %v2151 = vpop.permute.xlu0 %2150
    %2152 = vrot.lane.b32.xlu0 %v1973, 20
    %v2153 = vpop.permute.xlu0 %2152
    %2154 = vrot.lane.b32.xlu0 %v1974, 20
    %v2155 = vpop.permute.xlu0 %2154
    %2156 = vrot.lane.b32.xlu0 %v1975, 20
    %v2157 = vpop.permute.xlu0 %2156
    %2158 = vrot.lane.b32.xlu0 %v1976, 20
    %v2159 = vpop.permute.xlu0 %2158
    %2160 = vrot.lane.b32.xlu0 %v1977, 20
    %v2161 = vpop.permute.xlu0 %2160
    %2162 = vrot.lane.b32.xlu0 %v1978, 20
    %v2163 = vpop.permute.xlu0 %2162
    %2164 = vrot.lane.b32.xlu0 %v1979, 20
    %v2165 = vpop.permute.xlu0 %2164
    %2166 = vrot.lane.b32.xlu0 %v1980, 20
    %v2167 = vpop.permute.xlu0 %2166
    %2168 = vrot.lane.b32.xlu0 %v1981, 20
    %v2169 = vpop.permute.xlu0 %2168
    %2170 = vrot.lane.b32.xlu0 %v1982, 20
    %v2171 = vpop.permute.xlu0 %2170
    %2172 = vrot.lane.b32.xlu0 %v1983, 20
    %v2173 = vpop.permute.xlu0 %2172
    %2174 = vrot.lane.b32.xlu0 %v1984, 20
    %v2175 = vpop.permute.xlu0 %2174
    %2176 = vrot.lane.b32.xlu0 %v1985, 20
    %v2177 = vpop.permute.xlu0 %2176
    %vm2242 = vcmask 195744
    %2243 = vst.msk [vmem:[#allocation4] sm:$0xff] %vm2242, %v2051
    %2244 = vst.msk [vmem:[#allocation4 + $0x8] sm:$0xff] %vm2242, %v2053
    %2245 = vst.msk [vmem:[#allocation4 + $0x10] sm:$0xff] %vm2242, %v2055
    %2246 = vst.msk [vmem:[#allocation4 + $0x18] sm:$0xff] %vm2242, %v2057
    %2247 = vst.msk [vmem:[#allocation4 + $0x20] sm:$0xff] %vm2242, %v2059
    %2248 = vst.msk [vmem:[#allocation4 + $0x28] sm:$0xff] %vm2242, %v2061
    %2249 = vst.msk [vmem:[#allocation4 + $0x30] sm:$0xff] %vm2242, %v2063
    %2250 = vst.msk [vmem:[#allocation4 + $0x38] sm:$0xff] %vm2242, %v2065
    %2251 = vst.msk [vmem:[#allocation4 + $0x40] sm:$0xff] %vm2242, %v2067
    %2252 = vst.msk [vmem:[#allocation4 + $0x48] sm:$0xff] %vm2242, %v2069
    %2253 = vst.msk [vmem:[#allocation4 + $0x50] sm:$0xff] %vm2242, %v2071
    %2254 = vst.msk [vmem:[#allocation4 + $0x58] sm:$0xff] %vm2242, %v2073
    %2255 = vst.msk [vmem:[#allocation4 + $0x60] sm:$0xff] %vm2242, %v2075
    %2256 = vst.msk [vmem:[#allocation4 + $0x68] sm:$0xff] %vm2242, %v2077
    %2257 = vst.msk [vmem:[#allocation4 + $0x70] sm:$0xff] %vm2242, %v2079
    %2258 = vst.msk [vmem:[#allocation4 + $0x78] sm:$0xff] %vm2242, %v2081
    %2259 = vst.msk [vmem:[#allocation4 + $0x80] sm:$0xff] %vm2242, %v2083
    %2260 = vst.msk [vmem:[#allocation4 + $0x88] sm:$0xff] %vm2242, %v2085
    %2261 = vst.msk [vmem:[#allocation4 + $0x90] sm:$0xff] %vm2242, %v2087
    %2262 = vst.msk [vmem:[#allocation4 + $0x98] sm:$0xff] %vm2242, %v2089
    %2263 = vst.msk [vmem:[#allocation4 + $0xa0] sm:$0xff] %vm2242, %v2091
    %2264 = vst.msk [vmem:[#allocation4 + $0xa8] sm:$0xff] %vm2242, %v2093
    %2265 = vst.msk [vmem:[#allocation4 + $0xb0] sm:$0xff] %vm2242, %v2095
    %2266 = vst.msk [vmem:[#allocation4 + $0xb8] sm:$0xff] %vm2242, %v2097
    %2267 = vst.msk [vmem:[#allocation4 + $0xc0] sm:$0xff] %vm2242, %v2099
    %2268 = vst.msk [vmem:[#allocation4 + $0xc8] sm:$0xff] %vm2242, %v2101
    %2269 = vst.msk [vmem:[#allocation4 + $0xd0] sm:$0xff] %vm2242, %v2103
    %2270 = vst.msk [vmem:[#allocation4 + $0xd8] sm:$0xff] %vm2242, %v2105
    %2271 = vst.msk [vmem:[#allocation4 + $0xe0] sm:$0xff] %vm2242, %v2107
    %2272 = vst.msk [vmem:[#allocation4 + $0xe8] sm:$0xff] %vm2242, %v2109
    %2273 = vst.msk [vmem:[#allocation4 + $0xf0] sm:$0xff] %vm2242, %v2111
    %2274 = vst.msk [vmem:[#allocation4 + $0xf8] sm:$0xff] %vm2242, %v2113
    %2275 = vst.msk [vmem:[#allocation4 + $0x100] sm:$0xff] %vm2242, %v2115
    %2276 = vst.msk [vmem:[#allocation4 + $0x108] sm:$0xff] %vm2242, %v2117
    %2277 = vst.msk [vmem:[#allocation4 + $0x110] sm:$0xff] %vm2242, %v2119
    %2278 = vst.msk [vmem:[#allocation4 + $0x118] sm:$0xff] %vm2242, %v2121
    %2279 = vst.msk [vmem:[#allocation4 + $0x120] sm:$0xff] %vm2242, %v2123
    %2280 = vst.msk [vmem:[#allocation4 + $0x128] sm:$0xff] %vm2242, %v2125
    %2281 = vst.msk [vmem:[#allocation4 + $0x130] sm:$0xff] %vm2242, %v2127
    %2282 = vst.msk [vmem:[#allocation4 + $0x138] sm:$0xff] %vm2242, %v2129
    %2283 = vst.msk [vmem:[#allocation4 + $0x140] sm:$0xff] %vm2242, %v2131
    %2284 = vst.msk [vmem:[#allocation4 + $0x148] sm:$0xff] %vm2242, %v2133
    %2285 = vst.msk [vmem:[#allocation4 + $0x150] sm:$0xff] %vm2242, %v2135
    %2286 = vst.msk [vmem:[#allocation4 + $0x158] sm:$0xff] %vm2242, %v2137
    %2287 = vst.msk [vmem:[#allocation4 + $0x160] sm:$0xff] %vm2242, %v2139
    %2288 = vst.msk [vmem:[#allocation4 + $0x168] sm:$0xff] %vm2242, %v2141
    %2289 = vst.msk [vmem:[#allocation4 + $0x170] sm:$0xff] %vm2242, %v2143
    %2290 = vst.msk [vmem:[#allocation4 + $0x178] sm:$0xff] %vm2242, %v2145
    %2291 = vst.msk [vmem:[#allocation4 + $0x180] sm:$0xff] %vm2242, %v2147
    %2292 = vst.msk [vmem:[#allocation4 + $0x188] sm:$0xff] %vm2242, %v2149
    %2293 = vst.msk [vmem:[#allocation4 + $0x190] sm:$0xff] %vm2242, %v2151
    %2294 = vst.msk [vmem:[#allocation4 + $0x198] sm:$0xff] %vm2242, %v2153
    %2295 = vst.msk [vmem:[#allocation4 + $0x1a0] sm:$0xff] %vm2242, %v2155
    %2296 = vst.msk [vmem:[#allocation4 + $0x1a8] sm:$0xff] %vm2242, %v2157
    %2297 = vst.msk [vmem:[#allocation4 + $0x1b0] sm:$0xff] %vm2242, %v2159
    %2298 = vst.msk [vmem:[#allocation4 + $0x1b8] sm:$0xff] %vm2242, %v2161
    %2299 = vst.msk [vmem:[#allocation4 + $0x1c0] sm:$0xff] %vm2242, %v2163
    %2300 = vst.msk [vmem:[#allocation4 + $0x1c8] sm:$0xff] %vm2242, %v2165
    %2301 = vst.msk [vmem:[#allocation4 + $0x1d0] sm:$0xff] %vm2242, %v2167
    %2302 = vst.msk [vmem:[#allocation4 + $0x1d8] sm:$0xff] %vm2242, %v2169
    %2303 = vst.msk [vmem:[#allocation4 + $0x1e0] sm:$0xff] %vm2242, %v2171
    %2304 = vst.msk [vmem:[#allocation4 + $0x1e8] sm:$0xff] %vm2242, %v2173
    %2305 = vst.msk [vmem:[#allocation4 + $0x1f0] sm:$0xff] %vm2242, %v2175
    %2306 = vst.msk [vmem:[#allocation4 + $0x1f8] sm:$0xff] %vm2242, %v2177
    %s2307 = scalar_lea.vmem [#allocation2], 48
    %v2308 = vld [vmem:[%s2307] sm:$0xff]
    %v2309 = vld [vmem:[%s2307 + $0x8] sm:$0xff]
    %v2310 = vld [vmem:[%s2307 + $0x18] sm:$0xff]
    %v2311 = vld [vmem:[%s2307 + $0x20] sm:$0xff]
    %v2312 = vld [vmem:[%s2307 + $0x30] sm:$0xff]
    %v2313 = vld [vmem:[%s2307 + $0x38] sm:$0xff]
    %v2314 = vld [vmem:[%s2307 + $0x48] sm:$0xff]
    %v2315 = vld [vmem:[%s2307 + $0x50] sm:$0xff]
    %v2316 = vld [vmem:[%s2307 + $0x60] sm:$0xff]
    %v2317 = vld [vmem:[%s2307 + $0x68] sm:$0xff]
    %v2318 = vld [vmem:[%s2307 + $0x78] sm:$0xff]
    %v2319 = vld [vmem:[%s2307 + $0x80] sm:$0xff]
    %v2320 = vld [vmem:[%s2307 + $0x90] sm:$0xff]
    %v2321 = vld [vmem:[%s2307 + $0x98] sm:$0xff]
    %v2322 = vld [vmem:[%s2307 + $0xa8] sm:$0xff]
    %v2323 = vld [vmem:[%s2307 + $0xb0] sm:$0xff]
    %v2324 = vld [vmem:[%s2307 + $0xc0] sm:$0xff]
    %v2325 = vld [vmem:[%s2307 + $0xc8] sm:$0xff]
    %v2326 = vld [vmem:[%s2307 + $0xd8] sm:$0xff]
    %v2327 = vld [vmem:[%s2307 + $0xe0] sm:$0xff]
    %v2328 = vld [vmem:[%s2307 + $0xf0] sm:$0xff]
    %v2329 = vld [vmem:[%s2307 + $0xf8] sm:$0xff]
    %v2330 = vld [vmem:[%s2307 + $0x108] sm:$0xff]
    %v2331 = vld [vmem:[%s2307 + $0x110] sm:$0xff]
    %v2332 = vld [vmem:[%s2307 + $0x120] sm:$0xff]
    %v2333 = vld [vmem:[%s2307 + $0x128] sm:$0xff]
    %v2334 = vld [vmem:[%s2307 + $0x138] sm:$0xff]
    %v2335 = vld [vmem:[%s2307 + $0x140] sm:$0xff]
    %v2336 = vld [vmem:[%s2307 + $0x150] sm:$0xff]
    %v2337 = vld [vmem:[%s2307 + $0x158] sm:$0xff]
    %v2338 = vld [vmem:[%s2307 + $0x168] sm:$0xff]
    %v2339 = vld [vmem:[%s2307 + $0x170] sm:$0xff]
    %v2340 = vld [vmem:[%s2307 + $0x1b0] sm:$0xff]
    %v2341 = vld [vmem:[%s2307 + $0x1b8] sm:$0xff]
    %v2342 = vld [vmem:[%s2307 + $0x1c8] sm:$0xff]
    %v2343 = vld [vmem:[%s2307 + $0x1d0] sm:$0xff]
    %v2344 = vld [vmem:[%s2307 + $0x1e0] sm:$0xff]
    %v2345 = vld [vmem:[%s2307 + $0x1e8] sm:$0xff]
    %v2346 = vld [vmem:[%s2307 + $0x1f8] sm:$0xff]
    %v2347 = vld [vmem:[%s2307 + $0x200] sm:$0xff]
    %v2348 = vld [vmem:[%s2307 + $0x210] sm:$0xff]
    %v2349 = vld [vmem:[%s2307 + $0x218] sm:$0xff]
    %v2350 = vld [vmem:[%s2307 + $0x228] sm:$0xff]
    %v2351 = vld [vmem:[%s2307 + $0x230] sm:$0xff]
    %v2352 = vld [vmem:[%s2307 + $0x240] sm:$0xff]
    %v2353 = vld [vmem:[%s2307 + $0x248] sm:$0xff]
    %v2354 = vld [vmem:[%s2307 + $0x258] sm:$0xff]
    %v2355 = vld [vmem:[%s2307 + $0x260] sm:$0xff]
    %v2356 = vld [vmem:[%s2307 + $0x270] sm:$0xff]
    %v2357 = vld [vmem:[%s2307 + $0x278] sm:$0xff]
    %v2358 = vld [vmem:[%s2307 + $0x288] sm:$0xff]
    %v2359 = vld [vmem:[%s2307 + $0x290] sm:$0xff]
    %v2360 = vld [vmem:[%s2307 + $0x2a0] sm:$0xff]
    %v2361 = vld [vmem:[%s2307 + $0x2a8] sm:$0xff]
    %v2362 = vld [vmem:[%s2307 + $0x2b8] sm:$0xff]
    %v2363 = vld [vmem:[%s2307 + $0x2c0] sm:$0xff]
    %v2364 = vld [vmem:[%s2307 + $0x2d0] sm:$0xff]
    %v2365 = vld [vmem:[%s2307 + $0x2d8] sm:$0xff]
    %v2366 = vld [vmem:[%s2307 + $0x2e8] sm:$0xff]
    %v2367 = vld [vmem:[%s2307 + $0x2f0] sm:$0xff]
    %v2368 = vld [vmem:[%s2307 + $0x300] sm:$0xff]
    %v2369 = vld [vmem:[%s2307 + $0x308] sm:$0xff]
    %v2370 = vld [vmem:[%s2307 + $0x318] sm:$0xff]
    %v2371 = vld [vmem:[%s2307 + $0x320] sm:$0xff]
    %2436 = vrot.lane.b32.xlu0 %v2308, 24
    %v2437 = vpop.permute.xlu0 %2436
    %2438 = vrot.lane.b32.xlu0 %v2309, 24
    %v2439 = vpop.permute.xlu0 %2438
    %2440 = vrot.lane.b32.xlu0 %v2310, 24
    %v2441 = vpop.permute.xlu0 %2440
    %2442 = vrot.lane.b32.xlu0 %v2311, 24
    %v2443 = vpop.permute.xlu0 %2442
    %2444 = vrot.lane.b32.xlu0 %v2312, 24
    %v2445 = vpop.permute.xlu0 %2444
    %2446 = vrot.lane.b32.xlu0 %v2313, 24
    %v2447 = vpop.permute.xlu0 %2446
    %2448 = vrot.lane.b32.xlu0 %v2314, 24
    %v2449 = vpop.permute.xlu0 %2448
    %2450 = vrot.lane.b32.xlu0 %v2315, 24
    %v2451 = vpop.permute.xlu0 %2450
    %2452 = vrot.lane.b32.xlu0 %v2316, 24
    %v2453 = vpop.permute.xlu0 %2452
    %2454 = vrot.lane.b32.xlu0 %v2317, 24
    %v2455 = vpop.permute.xlu0 %2454
    %2456 = vrot.lane.b32.xlu0 %v2318, 24
    %v2457 = vpop.permute.xlu0 %2456
    %2458 = vrot.lane.b32.xlu0 %v2319, 24
    %v2459 = vpop.permute.xlu0 %2458
    %2460 = vrot.lane.b32.xlu0 %v2320, 24
    %v2461 = vpop.permute.xlu0 %2460
    %2462 = vrot.lane.b32.xlu0 %v2321, 24
    %v2463 = vpop.permute.xlu0 %2462
    %2464 = vrot.lane.b32.xlu0 %v2322, 24
    %v2465 = vpop.permute.xlu0 %2464
    %2466 = vrot.lane.b32.xlu0 %v2323, 24
    %v2467 = vpop.permute.xlu0 %2466
    %2468 = vrot.lane.b32.xlu0 %v2324, 24
    %v2469 = vpop.permute.xlu0 %2468
    %2470 = vrot.lane.b32.xlu0 %v2325, 24
    %v2471 = vpop.permute.xlu0 %2470
    %2472 = vrot.lane.b32.xlu0 %v2326, 24
    %v2473 = vpop.permute.xlu0 %2472
    %2474 = vrot.lane.b32.xlu0 %v2327, 24
    %v2475 = vpop.permute.xlu0 %2474
    %2476 = vrot.lane.b32.xlu0 %v2328, 24
    %v2477 = vpop.permute.xlu0 %2476
    %2478 = vrot.lane.b32.xlu0 %v2329, 24
    %v2479 = vpop.permute.xlu0 %2478
    %2480 = vrot.lane.b32.xlu0 %v2330, 24
    %v2481 = vpop.permute.xlu0 %2480
    %2482 = vrot.lane.b32.xlu0 %v2331, 24
    %v2483 = vpop.permute.xlu0 %2482
    %2484 = vrot.lane.b32.xlu0 %v2332, 24
    %v2485 = vpop.permute.xlu0 %2484
    %2486 = vrot.lane.b32.xlu0 %v2333, 24
    %v2487 = vpop.permute.xlu0 %2486
    %2488 = vrot.lane.b32.xlu0 %v2334, 24
    %v2489 = vpop.permute.xlu0 %2488
    %2490 = vrot.lane.b32.xlu0 %v2335, 24
    %v2491 = vpop.permute.xlu0 %2490
    %2492 = vrot.lane.b32.xlu0 %v2336, 24
    %v2493 = vpop.permute.xlu0 %2492
    %2494 = vrot.lane.b32.xlu0 %v2337, 24
    %v2495 = vpop.permute.xlu0 %2494
    %2496 = vrot.lane.b32.xlu0 %v2338, 24
    %v2497 = vpop.permute.xlu0 %2496
    %2498 = vrot.lane.b32.xlu0 %v2339, 24
    %v2499 = vpop.permute.xlu0 %2498
    %2500 = vrot.lane.b32.xlu0 %v2340, 24
    %v2501 = vpop.permute.xlu0 %2500
    %2502 = vrot.lane.b32.xlu0 %v2341, 24
    %v2503 = vpop.permute.xlu0 %2502
    %2504 = vrot.lane.b32.xlu0 %v2342, 24
    %v2505 = vpop.permute.xlu0 %2504
    %2506 = vrot.lane.b32.xlu0 %v2343, 24
    %v2507 = vpop.permute.xlu0 %2506
    %2508 = vrot.lane.b32.xlu0 %v2344, 24
    %v2509 = vpop.permute.xlu0 %2508
    %2510 = vrot.lane.b32.xlu0 %v2345, 24
    %v2511 = vpop.permute.xlu0 %2510
    %2512 = vrot.lane.b32.xlu0 %v2346, 24
    %v2513 = vpop.permute.xlu0 %2512
    %2514 = vrot.lane.b32.xlu0 %v2347, 24
    %v2515 = vpop.permute.xlu0 %2514
    %2516 = vrot.lane.b32.xlu0 %v2348, 24
    %v2517 = vpop.permute.xlu0 %2516
    %2518 = vrot.lane.b32.xlu0 %v2349, 24
    %v2519 = vpop.permute.xlu0 %2518
    %2520 = vrot.lane.b32.xlu0 %v2350, 24
    %v2521 = vpop.permute.xlu0 %2520
    %2522 = vrot.lane.b32.xlu0 %v2351, 24
    %v2523 = vpop.permute.xlu0 %2522
    %2524 = vrot.lane.b32.xlu0 %v2352, 24
    %v2525 = vpop.permute.xlu0 %2524
    %2526 = vrot.lane.b32.xlu0 %v2353, 24
    %v2527 = vpop.permute.xlu0 %2526
    %2528 = vrot.lane.b32.xlu0 %v2354, 24
    %v2529 = vpop.permute.xlu0 %2528
    %2530 = vrot.lane.b32.xlu0 %v2355, 24
    %v2531 = vpop.permute.xlu0 %2530
    %2532 = vrot.lane.b32.xlu0 %v2356, 24
    %v2533 = vpop.permute.xlu0 %2532
    %2534 = vrot.lane.b32.xlu0 %v2357, 24
    %v2535 = vpop.permute.xlu0 %2534
    %2536 = vrot.lane.b32.xlu0 %v2358, 24
    %v2537 = vpop.permute.xlu0 %2536
    %2538 = vrot.lane.b32.xlu0 %v2359, 24
    %v2539 = vpop.permute.xlu0 %2538
    %2540 = vrot.lane.b32.xlu0 %v2360, 24
    %v2541 = vpop.permute.xlu0 %2540
    %2542 = vrot.lane.b32.xlu0 %v2361, 24
    %v2543 = vpop.permute.xlu0 %2542
    %2544 = vrot.lane.b32.xlu0 %v2362, 24
    %v2545 = vpop.permute.xlu0 %2544
    %2546 = vrot.lane.b32.xlu0 %v2363, 24
    %v2547 = vpop.permute.xlu0 %2546
    %2548 = vrot.lane.b32.xlu0 %v2364, 24
    %v2549 = vpop.permute.xlu0 %2548
    %2550 = vrot.lane.b32.xlu0 %v2365, 24
    %v2551 = vpop.permute.xlu0 %2550
    %2552 = vrot.lane.b32.xlu0 %v2366, 24
    %v2553 = vpop.permute.xlu0 %2552
    %2554 = vrot.lane.b32.xlu0 %v2367, 24
    %v2555 = vpop.permute.xlu0 %2554
    %2556 = vrot.lane.b32.xlu0 %v2368, 24
    %v2557 = vpop.permute.xlu0 %2556
    %2558 = vrot.lane.b32.xlu0 %v2369, 24
    %v2559 = vpop.permute.xlu0 %2558
    %2560 = vrot.lane.b32.xlu0 %v2370, 24
    %v2561 = vpop.permute.xlu0 %2560
    %2562 = vrot.lane.b32.xlu0 %v2371, 24
    %v2563 = vpop.permute.xlu0 %2562
    %vm2628 = vcmask 228544
    %2629 = vst.msk [vmem:[#allocation4] sm:$0xff] %vm2628, %v2437
    %2630 = vst.msk [vmem:[#allocation4 + $0x8] sm:$0xff] %vm2628, %v2439
    %2631 = vst.msk [vmem:[#allocation4 + $0x10] sm:$0xff] %vm2628, %v2441
    %2632 = vst.msk [vmem:[#allocation4 + $0x18] sm:$0xff] %vm2628, %v2443
    %2633 = vst.msk [vmem:[#allocation4 + $0x20] sm:$0xff] %vm2628, %v2445
    %2634 = vst.msk [vmem:[#allocation4 + $0x28] sm:$0xff] %vm2628, %v2447
    %2635 = vst.msk [vmem:[#allocation4 + $0x30] sm:$0xff] %vm2628, %v2449
    %2636 = vst.msk [vmem:[#allocation4 + $0x38] sm:$0xff] %vm2628, %v2451
    %2637 = vst.msk [vmem:[#allocation4 + $0x40] sm:$0xff] %vm2628, %v2453
    %2638 = vst.msk [vmem:[#allocation4 + $0x48] sm:$0xff] %vm2628, %v2455
    %2639 = vst.msk [vmem:[#allocation4 + $0x50] sm:$0xff] %vm2628, %v2457
    %2640 = vst.msk [vmem:[#allocation4 + $0x58] sm:$0xff] %vm2628, %v2459
    %2641 = vst.msk [vmem:[#allocation4 + $0x60] sm:$0xff] %vm2628, %v2461
    %2642 = vst.msk [vmem:[#allocation4 + $0x68] sm:$0xff] %vm2628, %v2463
    %2643 = vst.msk [vmem:[#allocation4 + $0x70] sm:$0xff] %vm2628, %v2465
    %2644 = vst.msk [vmem:[#allocation4 + $0x78] sm:$0xff] %vm2628, %v2467
    %2645 = vst.msk [vmem:[#allocation4 + $0x80] sm:$0xff] %vm2628, %v2469
    %2646 = vst.msk [vmem:[#allocation4 + $0x88] sm:$0xff] %vm2628, %v2471
    %2647 = vst.msk [vmem:[#allocation4 + $0x90] sm:$0xff] %vm2628, %v2473
    %2648 = vst.msk [vmem:[#allocation4 + $0x98] sm:$0xff] %vm2628, %v2475
    %2649 = vst.msk [vmem:[#allocation4 + $0xa0] sm:$0xff] %vm2628, %v2477
    %2650 = vst.msk [vmem:[#allocation4 + $0xa8] sm:$0xff] %vm2628, %v2479
    %2651 = vst.msk [vmem:[#allocation4 + $0xb0] sm:$0xff] %vm2628, %v2481
    %2652 = vst.msk [vmem:[#allocation4 + $0xb8] sm:$0xff] %vm2628, %v2483
    %2653 = vst.msk [vmem:[#allocation4 + $0xc0] sm:$0xff] %vm2628, %v2485
    %2654 = vst.msk [vmem:[#allocation4 + $0xc8] sm:$0xff] %vm2628, %v2487
    %2655 = vst.msk [vmem:[#allocation4 + $0xd0] sm:$0xff] %vm2628, %v2489
    %2656 = vst.msk [vmem:[#allocation4 + $0xd8] sm:$0xff] %vm2628, %v2491
    %2657 = vst.msk [vmem:[#allocation4 + $0xe0] sm:$0xff] %vm2628, %v2493
    %2658 = vst.msk [vmem:[#allocation4 + $0xe8] sm:$0xff] %vm2628, %v2495
    %2659 = vst.msk [vmem:[#allocation4 + $0xf0] sm:$0xff] %vm2628, %v2497
    %2660 = vst.msk [vmem:[#allocation4 + $0xf8] sm:$0xff] %vm2628, %v2499
    %2661 = vst.msk [vmem:[#allocation4 + $0x100] sm:$0xff] %vm2628, %v2501
    %2662 = vst.msk [vmem:[#allocation4 + $0x108] sm:$0xff] %vm2628, %v2503
    %2663 = vst.msk [vmem:[#allocation4 + $0x110] sm:$0xff] %vm2628, %v2505
    %2664 = vst.msk [vmem:[#allocation4 + $0x118] sm:$0xff] %vm2628, %v2507
    %2665 = vst.msk [vmem:[#allocation4 + $0x120] sm:$0xff] %vm2628, %v2509
    %2666 = vst.msk [vmem:[#allocation4 + $0x128] sm:$0xff] %vm2628, %v2511
    %2667 = vst.msk [vmem:[#allocation4 + $0x130] sm:$0xff] %vm2628, %v2513
    %2668 = vst.msk [vmem:[#allocation4 + $0x138] sm:$0xff] %vm2628, %v2515
    %2669 = vst.msk [vmem:[#allocation4 + $0x140] sm:$0xff] %vm2628, %v2517
    %2670 = vst.msk [vmem:[#allocation4 + $0x148] sm:$0xff] %vm2628, %v2519
    %2671 = vst.msk [vmem:[#allocation4 + $0x150] sm:$0xff] %vm2628, %v2521
    %2672 = vst.msk [vmem:[#allocation4 + $0x158] sm:$0xff] %vm2628, %v2523
    %2673 = vst.msk [vmem:[#allocation4 + $0x160] sm:$0xff] %vm2628, %v2525
    %2674 = vst.msk [vmem:[#allocation4 + $0x168] sm:$0xff] %vm2628, %v2527
    %2675 = vst.msk [vmem:[#allocation4 + $0x170] sm:$0xff] %vm2628, %v2529
    %2676 = vst.msk [vmem:[#allocation4 + $0x178] sm:$0xff] %vm2628, %v2531
    %2677 = vst.msk [vmem:[#allocation4 + $0x180] sm:$0xff] %vm2628, %v2533
    %2678 = vst.msk [vmem:[#allocation4 + $0x188] sm:$0xff] %vm2628, %v2535
    %2679 = vst.msk [vmem:[#allocation4 + $0x190] sm:$0xff] %vm2628, %v2537
    %2680 = vst.msk [vmem:[#allocation4 + $0x198] sm:$0xff] %vm2628, %v2539
    %2681 = vst.msk [vmem:[#allocation4 + $0x1a0] sm:$0xff] %vm2628, %v2541
    %2682 = vst.msk [vmem:[#allocation4 + $0x1a8] sm:$0xff] %vm2628, %v2543
    %2683 = vst.msk [vmem:[#allocation4 + $0x1b0] sm:$0xff] %vm2628, %v2545
    %2684 = vst.msk [vmem:[#allocation4 + $0x1b8] sm:$0xff] %vm2628, %v2547
    %2685 = vst.msk [vmem:[#allocation4 + $0x1c0] sm:$0xff] %vm2628, %v2549
    %2686 = vst.msk [vmem:[#allocation4 + $0x1c8] sm:$0xff] %vm2628, %v2551
    %2687 = vst.msk [vmem:[#allocation4 + $0x1d0] sm:$0xff] %vm2628, %v2553
    %2688 = vst.msk [vmem:[#allocation4 + $0x1d8] sm:$0xff] %vm2628, %v2555
    %2689 = vst.msk [vmem:[#allocation4 + $0x1e0] sm:$0xff] %vm2628, %v2557
    %2690 = vst.msk [vmem:[#allocation4 + $0x1e8] sm:$0xff] %vm2628, %v2559
    %2691 = vst.msk [vmem:[#allocation4 + $0x1f0] sm:$0xff] %vm2628, %v2561
    %2692 = vst.msk [vmem:[#allocation4 + $0x1f8] sm:$0xff] %vm2628, %v2563
    %v2693 = vld [vmem:[%s2307 + $0x1] sm:$0xff]
    %v2694 = vld [vmem:[%s2307 + $0x9] sm:$0xff]
    %v2695 = vld [vmem:[%s2307 + $0x19] sm:$0xff]
    %v2696 = vld [vmem:[%s2307 + $0x21] sm:$0xff]
    %v2697 = vld [vmem:[%s2307 + $0x31] sm:$0xff]
    %v2698 = vld [vmem:[%s2307 + $0x39] sm:$0xff]
    %v2699 = vld [vmem:[%s2307 + $0x49] sm:$0xff]
    %v2700 = vld [vmem:[%s2307 + $0x51] sm:$0xff]
    %v2701 = vld [vmem:[%s2307 + $0x61] sm:$0xff]
    %v2702 = vld [vmem:[%s2307 + $0x69] sm:$0xff]
    %v2703 = vld [vmem:[%s2307 + $0x79] sm:$0xff]
    %v2704 = vld [vmem:[%s2307 + $0x81] sm:$0xff]
    %v2705 = vld [vmem:[%s2307 + $0x91] sm:$0xff]
    %v2706 = vld [vmem:[%s2307 + $0x99] sm:$0xff]
    %v2707 = vld [vmem:[%s2307 + $0xa9] sm:$0xff]
    %v2708 = vld [vmem:[%s2307 + $0xb1] sm:$0xff]
    %v2709 = vld [vmem:[%s2307 + $0xc1] sm:$0xff]
    %v2710 = vld [vmem:[%s2307 + $0xc9] sm:$0xff]
    %v2711 = vld [vmem:[%s2307 + $0xd9] sm:$0xff]
    %v2712 = vld [vmem:[%s2307 + $0xe1] sm:$0xff]
    %v2713 = vld [vmem:[%s2307 + $0xf1] sm:$0xff]
    %v2714 = vld [vmem:[%s2307 + $0xf9] sm:$0xff]
    %v2715 = vld [vmem:[%s2307 + $0x109] sm:$0xff]
    %v2716 = vld [vmem:[%s2307 + $0x111] sm:$0xff]
    %v2717 = vld [vmem:[%s2307 + $0x121] sm:$0xff]
    %v2718 = vld [vmem:[%s2307 + $0x129] sm:$0xff]
    %v2719 = vld [vmem:[%s2307 + $0x139] sm:$0xff]
    %v2720 = vld [vmem:[%s2307 + $0x141] sm:$0xff]
    %v2721 = vld [vmem:[%s2307 + $0x151] sm:$0xff]
    %v2722 = vld [vmem:[%s2307 + $0x159] sm:$0xff]
    %v2723 = vld [vmem:[%s2307 + $0x169] sm:$0xff]
    %v2724 = vld [vmem:[%s2307 + $0x171] sm:$0xff]
    %v2725 = vld [vmem:[%s2307 + $0x1b1] sm:$0xff]
    %v2726 = vld [vmem:[%s2307 + $0x1b9] sm:$0xff]
    %v2727 = vld [vmem:[%s2307 + $0x1c9] sm:$0xff]
    %v2728 = vld [vmem:[%s2307 + $0x1d1] sm:$0xff]
    %v2729 = vld [vmem:[%s2307 + $0x1e1] sm:$0xff]
    %v2730 = vld [vmem:[%s2307 + $0x1e9] sm:$0xff]
    %v2731 = vld [vmem:[%s2307 + $0x1f9] sm:$0xff]
    %v2732 = vld [vmem:[%s2307 + $0x201] sm:$0xff]
    %v2733 = vld [vmem:[%s2307 + $0x211] sm:$0xff]
    %v2734 = vld [vmem:[%s2307 + $0x219] sm:$0xff]
    %v2735 = vld [vmem:[%s2307 + $0x229] sm:$0xff]
    %v2736 = vld [vmem:[%s2307 + $0x231] sm:$0xff]
    %v2737 = vld [vmem:[%s2307 + $0x241] sm:$0xff]
    %v2738 = vld [vmem:[%s2307 + $0x249] sm:$0xff]
    %v2739 = vld [vmem:[%s2307 + $0x259] sm:$0xff]
    %v2740 = vld [vmem:[%s2307 + $0x261] sm:$0xff]
    %v2741 = vld [vmem:[%s2307 + $0x271] sm:$0xff]
    %v2742 = vld [vmem:[%s2307 + $0x279] sm:$0xff]
    %v2743 = vld [vmem:[%s2307 + $0x289] sm:$0xff]
    %v2744 = vld [vmem:[%s2307 + $0x291] sm:$0xff]
    %v2745 = vld [vmem:[%s2307 + $0x2a1] sm:$0xff]
    %v2746 = vld [vmem:[%s2307 + $0x2a9] sm:$0xff]
    %v2747 = vld [vmem:[%s2307 + $0x2b9] sm:$0xff]
    %v2748 = vld [vmem:[%s2307 + $0x2c1] sm:$0xff]
    %v2749 = vld [vmem:[%s2307 + $0x2d1] sm:$0xff]
    %v2750 = vld [vmem:[%s2307 + $0x2d9] sm:$0xff]
    %v2751 = vld [vmem:[%s2307 + $0x2e9] sm:$0xff]
    %v2752 = vld [vmem:[%s2307 + $0x2f1] sm:$0xff]
    %v2753 = vld [vmem:[%s2307 + $0x301] sm:$0xff]
    %v2754 = vld [vmem:[%s2307 + $0x309] sm:$0xff]
    %v2755 = vld [vmem:[%s2307 + $0x319] sm:$0xff]
    %v2756 = vld [vmem:[%s2307 + $0x321] sm:$0xff]
    %2821 = vrot.lane.b32.xlu0 %v2693, 28
    %v2822 = vpop.permute.xlu0 %2821
    %2823 = vrot.lane.b32.xlu0 %v2694, 28
    %v2824 = vpop.permute.xlu0 %2823
    %2825 = vrot.lane.b32.xlu0 %v2695, 28
    %v2826 = vpop.permute.xlu0 %2825
    %2827 = vrot.lane.b32.xlu0 %v2696, 28
    %v2828 = vpop.permute.xlu0 %2827
    %2829 = vrot.lane.b32.xlu0 %v2697, 28
    %v2830 = vpop.permute.xlu0 %2829
    %2831 = vrot.lane.b32.xlu0 %v2698, 28
    %v2832 = vpop.permute.xlu0 %2831
    %2833 = vrot.lane.b32.xlu0 %v2699, 28
    %v2834 = vpop.permute.xlu0 %2833
    %2835 = vrot.lane.b32.xlu0 %v2700, 28
    %v2836 = vpop.permute.xlu0 %2835
    %2837 = vrot.lane.b32.xlu0 %v2701, 28
    %v2838 = vpop.permute.xlu0 %2837
    %2839 = vrot.lane.b32.xlu0 %v2702, 28
    %v2840 = vpop.permute.xlu0 %2839
    %2841 = vrot.lane.b32.xlu0 %v2703, 28
    %v2842 = vpop.permute.xlu0 %2841
    %2843 = vrot.lane.b32.xlu0 %v2704, 28
    %v2844 = vpop.permute.xlu0 %2843
    %2845 = vrot.lane.b32.xlu0 %v2705, 28
    %v2846 = vpop.permute.xlu0 %2845
    %2847 = vrot.lane.b32.xlu0 %v2706, 28
    %v2848 = vpop.permute.xlu0 %2847
    %2849 = vrot.lane.b32.xlu0 %v2707, 28
    %v2850 = vpop.permute.xlu0 %2849
    %2851 = vrot.lane.b32.xlu0 %v2708, 28
    %v2852 = vpop.permute.xlu0 %2851
    %2853 = vrot.lane.b32.xlu0 %v2709, 28
    %v2854 = vpop.permute.xlu0 %2853
    %2855 = vrot.lane.b32.xlu0 %v2710, 28
    %v2856 = vpop.permute.xlu0 %2855
    %2857 = vrot.lane.b32.xlu0 %v2711, 28
    %v2858 = vpop.permute.xlu0 %2857
    %2859 = vrot.lane.b32.xlu0 %v2712, 28
    %v2860 = vpop.permute.xlu0 %2859
    %2861 = vrot.lane.b32.xlu0 %v2713, 28
    %v2862 = vpop.permute.xlu0 %2861
    %2863 = vrot.lane.b32.xlu0 %v2714, 28
    %v2864 = vpop.permute.xlu0 %2863
    %2865 = vrot.lane.b32.xlu0 %v2715, 28
    %v2866 = vpop.permute.xlu0 %2865
    %2867 = vrot.lane.b32.xlu0 %v2716, 28
    %v2868 = vpop.permute.xlu0 %2867
    %2869 = vrot.lane.b32.xlu0 %v2717, 28
    %v2870 = vpop.permute.xlu0 %2869
    %2871 = vrot.lane.b32.xlu0 %v2718, 28
    %v2872 = vpop.permute.xlu0 %2871
    %2873 = vrot.lane.b32.xlu0 %v2719, 28
    %v2874 = vpop.permute.xlu0 %2873
    %2875 = vrot.lane.b32.xlu0 %v2720, 28
    %v2876 = vpop.permute.xlu0 %2875
    %2877 = vrot.lane.b32.xlu0 %v2721, 28
    %v2878 = vpop.permute.xlu0 %2877
    %2879 = vrot.lane.b32.xlu0 %v2722, 28
    %v2880 = vpop.permute.xlu0 %2879
    %2881 = vrot.lane.b32.xlu0 %v2723, 28
    %v2882 = vpop.permute.xlu0 %2881
    %2883 = vrot.lane.b32.xlu0 %v2724, 28
    %v2884 = vpop.permute.xlu0 %2883
    %2885 = vrot.lane.b32.xlu0 %v2725, 28
    %v2886 = vpop.permute.xlu0 %2885
    %2887 = vrot.lane.b32.xlu0 %v2726, 28
    %v2888 = vpop.permute.xlu0 %2887
    %2889 = vrot.lane.b32.xlu0 %v2727, 28
    %v2890 = vpop.permute.xlu0 %2889
    %2891 = vrot.lane.b32.xlu0 %v2728, 28
    %v2892 = vpop.permute.xlu0 %2891
    %2893 = vrot.lane.b32.xlu0 %v2729, 28
    %v2894 = vpop.permute.xlu0 %2893
    %2895 = vrot.lane.b32.xlu0 %v2730, 28
    %v2896 = vpop.permute.xlu0 %2895
    %2897 = vrot.lane.b32.xlu0 %v2731, 28
    %v2898 = vpop.permute.xlu0 %2897
    %2899 = vrot.lane.b32.xlu0 %v2732, 28
    %v2900 = vpop.permute.xlu0 %2899
    %2901 = vrot.lane.b32.xlu0 %v2733, 28
    %v2902 = vpop.permute.xlu0 %2901
    %2903 = vrot.lane.b32.xlu0 %v2734, 28
    %v2904 = vpop.permute.xlu0 %2903
    %2905 = vrot.lane.b32.xlu0 %v2735, 28
    %v2906 = vpop.permute.xlu0 %2905
    %2907 = vrot.lane.b32.xlu0 %v2736, 28
    %v2908 = vpop.permute.xlu0 %2907
    %2909 = vrot.lane.b32.xlu0 %v2737, 28
    %v2910 = vpop.permute.xlu0 %2909
    %2911 = vrot.lane.b32.xlu0 %v2738, 28
    %v2912 = vpop.permute.xlu0 %2911
    %2913 = vrot.lane.b32.xlu0 %v2739, 28
    %v2914 = vpop.permute.xlu0 %2913
    %2915 = vrot.lane.b32.xlu0 %v2740, 28
    %v2916 = vpop.permute.xlu0 %2915
    %2917 = vrot.lane.b32.xlu0 %v2741, 28
    %v2918 = vpop.permute.xlu0 %2917
    %2919 = vrot.lane.b32.xlu0 %v2742, 28
    %v2920 = vpop.permute.xlu0 %2919
    %2921 = vrot.lane.b32.xlu0 %v2743, 28
    %v2922 = vpop.permute.xlu0 %2921
    %2923 = vrot.lane.b32.xlu0 %v2744, 28
    %v2924 = vpop.permute.xlu0 %2923
    %2925 = vrot.lane.b32.xlu0 %v2745, 28
    %v2926 = vpop.permute.xlu0 %2925
    %2927 = vrot.lane.b32.xlu0 %v2746, 28
    %v2928 = vpop.permute.xlu0 %2927
    %2929 = vrot.lane.b32.xlu0 %v2747, 28
    %v2930 = vpop.permute.xlu0 %2929
    %2931 = vrot.lane.b32.xlu0 %v2748, 28
    %v2932 = vpop.permute.xlu0 %2931
    %2933 = vrot.lane.b32.xlu0 %v2749, 28
    %v2934 = vpop.permute.xlu0 %2933
    %2935 = vrot.lane.b32.xlu0 %v2750, 28
    %v2936 = vpop.permute.xlu0 %2935
    %2937 = vrot.lane.b32.xlu0 %v2751, 28
    %v2938 = vpop.permute.xlu0 %2937
    %2939 = vrot.lane.b32.xlu0 %v2752, 28
    %v2940 = vpop.permute.xlu0 %2939
    %2941 = vrot.lane.b32.xlu0 %v2753, 28
    %v2942 = vpop.permute.xlu0 %2941
    %2943 = vrot.lane.b32.xlu0 %v2754, 28
    %v2944 = vpop.permute.xlu0 %2943
    %2945 = vrot.lane.b32.xlu0 %v2755, 28
    %v2946 = vpop.permute.xlu0 %2945
    %2947 = vrot.lane.b32.xlu0 %v2756, 28
    %v2948 = vpop.permute.xlu0 %2947
    %vm3013 = vcmask 261344
    %3014 = vst.msk [vmem:[#allocation4] sm:$0xff] %vm3013, %v2822
    %3015 = vst.msk [vmem:[#allocation4 + $0x8] sm:$0xff] %vm3013, %v2824
    %3016 = vst.msk [vmem:[#allocation4 + $0x10] sm:$0xff] %vm3013, %v2826
    %3017 = vst.msk [vmem:[#allocation4 + $0x18] sm:$0xff] %vm3013, %v2828
    %3018 = vst.msk [vmem:[#allocation4 + $0x20] sm:$0xff] %vm3013, %v2830
    %3019 = vst.msk [vmem:[#allocation4 + $0x28] sm:$0xff] %vm3013, %v2832
    %3020 = vst.msk [vmem:[#allocation4 + $0x30] sm:$0xff] %vm3013, %v2834
    %3021 = vst.msk [vmem:[#allocation4 + $0x38] sm:$0xff] %vm3013, %v2836
    %3022 = vst.msk [vmem:[#allocation4 + $0x40] sm:$0xff] %vm3013, %v2838
    %3023 = vst.msk [vmem:[#allocation4 + $0x48] sm:$0xff] %vm3013, %v2840
    %3024 = vst.msk [vmem:[#allocation4 + $0x50] sm:$0xff] %vm3013, %v2842
    %3025 = vst.msk [vmem:[#allocation4 + $0x58] sm:$0xff] %vm3013, %v2844
    %3026 = vst.msk [vmem:[#allocation4 + $0x60] sm:$0xff] %vm3013, %v2846
    %3027 = vst.msk [vmem:[#allocation4 + $0x68] sm:$0xff] %vm3013, %v2848
    %3028 = vst.msk [vmem:[#allocation4 + $0x70] sm:$0xff] %vm3013, %v2850
    %3029 = vst.msk [vmem:[#allocation4 + $0x78] sm:$0xff] %vm3013, %v2852
    %3030 = vst.msk [vmem:[#allocation4 + $0x80] sm:$0xff] %vm3013, %v2854
    %3031 = vst.msk [vmem:[#allocation4 + $0x88] sm:$0xff] %vm3013, %v2856
    %3032 = vst.msk [vmem:[#allocation4 + $0x90] sm:$0xff] %vm3013, %v2858
    %3033 = vst.msk [vmem:[#allocation4 + $0x98] sm:$0xff] %vm3013, %v2860
    %3034 = vst.msk [vmem:[#allocation4 + $0xa0] sm:$0xff] %vm3013, %v2862
    %3035 = vst.msk [vmem:[#allocation4 + $0xa8] sm:$0xff] %vm3013, %v2864
    %3036 = vst.msk [vmem:[#allocation4 + $0xb0] sm:$0xff] %vm3013, %v2866
    %3037 = vst.msk [vmem:[#allocation4 + $0xb8] sm:$0xff] %vm3013, %v2868
    %3038 = vst.msk [vmem:[#allocation4 + $0xc0] sm:$0xff] %vm3013, %v2870
    %3039 = vst.msk [vmem:[#allocation4 + $0xc8] sm:$0xff] %vm3013, %v2872
    %3040 = vst.msk [vmem:[#allocation4 + $0xd0] sm:$0xff] %vm3013, %v2874
    %3041 = vst.msk [vmem:[#allocation4 + $0xd8] sm:$0xff] %vm3013, %v2876
    %3042 = vst.msk [vmem:[#allocation4 + $0xe0] sm:$0xff] %vm3013, %v2878
    %3043 = vst.msk [vmem:[#allocation4 + $0xe8] sm:$0xff] %vm3013, %v2880
    %3044 = vst.msk [vmem:[#allocation4 + $0xf0] sm:$0xff] %vm3013, %v2882
    %3045 = vst.msk [vmem:[#allocation4 + $0xf8] sm:$0xff] %vm3013, %v2884
    %3046 = vst.msk [vmem:[#allocation4 + $0x100] sm:$0xff] %vm3013, %v2886
    %3047 = vst.msk [vmem:[#allocation4 + $0x108] sm:$0xff] %vm3013, %v2888
    %3048 = vst.msk [vmem:[#allocation4 + $0x110] sm:$0xff] %vm3013, %v2890
    %3049 = vst.msk [vmem:[#allocation4 + $0x118] sm:$0xff] %vm3013, %v2892
    %3050 = vst.msk [vmem:[#allocation4 + $0x120] sm:$0xff] %vm3013, %v2894
    %3051 = vst.msk [vmem:[#allocation4 + $0x128] sm:$0xff] %vm3013, %v2896
    %3052 = vst.msk [vmem:[#allocation4 + $0x130] sm:$0xff] %vm3013, %v2898
    %3053 = vst.msk [vmem:[#allocation4 + $0x138] sm:$0xff] %vm3013, %v2900
    %3054 = vst.msk [vmem:[#allocation4 + $0x140] sm:$0xff] %vm3013, %v2902
    %3055 = vst.msk [vmem:[#allocation4 + $0x148] sm:$0xff] %vm3013, %v2904
    %3056 = vst.msk [vmem:[#allocation4 + $0x150] sm:$0xff] %vm3013, %v2906
    %3057 = vst.msk [vmem:[#allocation4 + $0x158] sm:$0xff] %vm3013, %v2908
    %3058 = vst.msk [vmem:[#allocation4 + $0x160] sm:$0xff] %vm3013, %v2910
    %3059 = vst.msk [vmem:[#allocation4 + $0x168] sm:$0xff] %vm3013, %v2912
    %3060 = vst.msk [vmem:[#allocation4 + $0x170] sm:$0xff] %vm3013, %v2914
    %3061 = vst.msk [vmem:[#allocation4 + $0x178] sm:$0xff] %vm3013, %v2916
    %3062 = vst.msk [vmem:[#allocation4 + $0x180] sm:$0xff] %vm3013, %v2918
    %3063 = vst.msk [vmem:[#allocation4 + $0x188] sm:$0xff] %vm3013, %v2920
    %3064 = vst.msk [vmem:[#allocation4 + $0x190] sm:$0xff] %vm3013, %v2922
    %3065 = vst.msk [vmem:[#allocation4 + $0x198] sm:$0xff] %vm3013, %v2924
    %3066 = vst.msk [vmem:[#allocation4 + $0x1a0] sm:$0xff] %vm3013, %v2926
    %3067 = vst.msk [vmem:[#allocation4 + $0x1a8] sm:$0xff] %vm3013, %v2928
    %3068 = vst.msk [vmem:[#allocation4 + $0x1b0] sm:$0xff] %vm3013, %v2930
    %3069 = vst.msk [vmem:[#allocation4 + $0x1b8] sm:$0xff] %vm3013, %v2932
    %3070 = vst.msk [vmem:[#allocation4 + $0x1c0] sm:$0xff] %vm3013, %v2934
    %3071 = vst.msk [vmem:[#allocation4 + $0x1c8] sm:$0xff] %vm3013, %v2936
    %3072 = vst.msk [vmem:[#allocation4 + $0x1d0] sm:$0xff] %vm3013, %v2938
    %3073 = vst.msk [vmem:[#allocation4 + $0x1d8] sm:$0xff] %vm3013, %v2940
    %3074 = vst.msk [vmem:[#allocation4 + $0x1e0] sm:$0xff] %vm3013, %v2942
    %3075 = vst.msk [vmem:[#allocation4 + $0x1e8] sm:$0xff] %vm3013, %v2944
    %3076 = vst.msk [vmem:[#allocation4 + $0x1f0] sm:$0xff] %vm3013, %v2946
    %3077 = vst.msk [vmem:[#allocation4 + $0x1f8] sm:$0xff] %vm3013, %v2948
    %v3078 = vld [vmem:[%s2307 + $0x2] sm:$0xff]
    %v3079 = vld [vmem:[%s2307 + $0xa] sm:$0xff]
    %v3080 = vld [vmem:[%s2307 + $0x1a] sm:$0xff]
    %v3081 = vld [vmem:[%s2307 + $0x22] sm:$0xff]
    %v3082 = vld [vmem:[%s2307 + $0x32] sm:$0xff]
    %v3083 = vld [vmem:[%s2307 + $0x3a] sm:$0xff]
    %v3084 = vld [vmem:[%s2307 + $0x4a] sm:$0xff]
    %v3085 = vld [vmem:[%s2307 + $0x52] sm:$0xff]
    %v3086 = vld [vmem:[%s2307 + $0x62] sm:$0xff]
    %v3087 = vld [vmem:[%s2307 + $0x6a] sm:$0xff]
    %v3088 = vld [vmem:[%s2307 + $0x7a] sm:$0xff]
    %v3089 = vld [vmem:[%s2307 + $0x82] sm:$0xff]
    %v3090 = vld [vmem:[%s2307 + $0x92] sm:$0xff]
    %v3091 = vld [vmem:[%s2307 + $0x9a] sm:$0xff]
    %v3092 = vld [vmem:[%s2307 + $0xaa] sm:$0xff]
    %v3093 = vld [vmem:[%s2307 + $0xb2] sm:$0xff]
    %v3094 = vld [vmem:[%s2307 + $0xc2] sm:$0xff]
    %v3095 = vld [vmem:[%s2307 + $0xca] sm:$0xff]
    %v3096 = vld [vmem:[%s2307 + $0xda] sm:$0xff]
    %v3097 = vld [vmem:[%s2307 + $0xe2] sm:$0xff]
    %v3098 = vld [vmem:[%s2307 + $0xf2] sm:$0xff]
    %v3099 = vld [vmem:[%s2307 + $0xfa] sm:$0xff]
    %v3100 = vld [vmem:[%s2307 + $0x10a] sm:$0xff]
    %v3101 = vld [vmem:[%s2307 + $0x112] sm:$0xff]
    %v3102 = vld [vmem:[%s2307 + $0x122] sm:$0xff]
    %v3103 = vld [vmem:[%s2307 + $0x12a] sm:$0xff]
    %v3104 = vld [vmem:[%s2307 + $0x13a] sm:$0xff]
    %v3105 = vld [vmem:[%s2307 + $0x142] sm:$0xff]
    %v3106 = vld [vmem:[%s2307 + $0x152] sm:$0xff]
    %v3107 = vld [vmem:[%s2307 + $0x15a] sm:$0xff]
    %v3108 = vld [vmem:[%s2307 + $0x16a] sm:$0xff]
    %v3109 = vld [vmem:[%s2307 + $0x172] sm:$0xff]
    %v3110 = vld [vmem:[%s2307 + $0x1b2] sm:$0xff]
    %v3111 = vld [vmem:[%s2307 + $0x1ba] sm:$0xff]
    %v3112 = vld [vmem:[%s2307 + $0x1ca] sm:$0xff]
    %v3113 = vld [vmem:[%s2307 + $0x1d2] sm:$0xff]
    %v3114 = vld [vmem:[%s2307 + $0x1e2] sm:$0xff]
    %v3115 = vld [vmem:[%s2307 + $0x1ea] sm:$0xff]
    %v3116 = vld [vmem:[%s2307 + $0x1fa] sm:$0xff]
    %v3117 = vld [vmem:[%s2307 + $0x202] sm:$0xff]
    %v3118 = vld [vmem:[%s2307 + $0x212] sm:$0xff]
    %v3119 = vld [vmem:[%s2307 + $0x21a] sm:$0xff]
    %v3120 = vld [vmem:[%s2307 + $0x22a] sm:$0xff]
    %v3121 = vld [vmem:[%s2307 + $0x232] sm:$0xff]
    %v3122 = vld [vmem:[%s2307 + $0x242] sm:$0xff]
    %v3123 = vld [vmem:[%s2307 + $0x24a] sm:$0xff]
    %v3124 = vld [vmem:[%s2307 + $0x25a] sm:$0xff]
    %v3125 = vld [vmem:[%s2307 + $0x262] sm:$0xff]
    %v3126 = vld [vmem:[%s2307 + $0x272] sm:$0xff]
    %v3127 = vld [vmem:[%s2307 + $0x27a] sm:$0xff]
    %v3128 = vld [vmem:[%s2307 + $0x28a] sm:$0xff]
    %v3129 = vld [vmem:[%s2307 + $0x292] sm:$0xff]
    %v3130 = vld [vmem:[%s2307 + $0x2a2] sm:$0xff]
    %v3131 = vld [vmem:[%s2307 + $0x2aa] sm:$0xff]
    %v3132 = vld [vmem:[%s2307 + $0x2ba] sm:$0xff]
    %v3133 = vld [vmem:[%s2307 + $0x2c2] sm:$0xff]
    %v3134 = vld [vmem:[%s2307 + $0x2d2] sm:$0xff]
    %v3135 = vld [vmem:[%s2307 + $0x2da] sm:$0xff]
    %v3136 = vld [vmem:[%s2307 + $0x2ea] sm:$0xff]
    %v3137 = vld [vmem:[%s2307 + $0x2f2] sm:$0xff]
    %v3138 = vld [vmem:[%s2307 + $0x302] sm:$0xff]
    %v3139 = vld [vmem:[%s2307 + $0x30a] sm:$0xff]
    %v3140 = vld [vmem:[%s2307 + $0x31a] sm:$0xff]
    %v3141 = vld [vmem:[%s2307 + $0x322] sm:$0xff]
    %3206 = vrot.lane.b32.xlu0 %v3078, 32
    %v3207 = vpop.permute.xlu0 %3206
    %3208 = vrot.lane.b32.xlu0 %v3079, 32
    %v3209 = vpop.permute.xlu0 %3208
    %3210 = vrot.lane.b32.xlu0 %v3080, 32
    %v3211 = vpop.permute.xlu0 %3210
    %3212 = vrot.lane.b32.xlu0 %v3081, 32
    %v3213 = vpop.permute.xlu0 %3212
    %3214 = vrot.lane.b32.xlu0 %v3082, 32
    %v3215 = vpop.permute.xlu0 %3214
    %3216 = vrot.lane.b32.xlu0 %v3083, 32
    %v3217 = vpop.permute.xlu0 %3216
    %3218 = vrot.lane.b32.xlu0 %v3084, 32
    %v3219 = vpop.permute.xlu0 %3218
    %3220 = vrot.lane.b32.xlu0 %v3085, 32
    %v3221 = vpop.permute.xlu0 %3220
    %3222 = vrot.lane.b32.xlu0 %v3086, 32
    %v3223 = vpop.permute.xlu0 %3222
    %3224 = vrot.lane.b32.xlu0 %v3087, 32
    %v3225 = vpop.permute.xlu0 %3224
    %3226 = vrot.lane.b32.xlu0 %v3088, 32
    %v3227 = vpop.permute.xlu0 %3226
    %3228 = vrot.lane.b32.xlu0 %v3089, 32
    %v3229 = vpop.permute.xlu0 %3228
    %3230 = vrot.lane.b32.xlu0 %v3090, 32
    %v3231 = vpop.permute.xlu0 %3230
    %3232 = vrot.lane.b32.xlu0 %v3091, 32
    %v3233 = vpop.permute.xlu0 %3232
    %3234 = vrot.lane.b32.xlu0 %v3092, 32
    %v3235 = vpop.permute.xlu0 %3234
    %3236 = vrot.lane.b32.xlu0 %v3093, 32
    %v3237 = vpop.permute.xlu0 %3236
    %3238 = vrot.lane.b32.xlu0 %v3094, 32
    %v3239 = vpop.permute.xlu0 %3238
    %3240 = vrot.lane.b32.xlu0 %v3095, 32
    %v3241 = vpop.permute.xlu0 %3240
    %3242 = vrot.lane.b32.xlu0 %v3096, 32
    %v3243 = vpop.permute.xlu0 %3242
    %3244 = vrot.lane.b32.xlu0 %v3097, 32
    %v3245 = vpop.permute.xlu0 %3244
    %3246 = vrot.lane.b32.xlu0 %v3098, 32
    %v3247 = vpop.permute.xlu0 %3246
    %3248 = vrot.lane.b32.xlu0 %v3099, 32
    %v3249 = vpop.permute.xlu0 %3248
    %3250 = vrot.lane.b32.xlu0 %v3100, 32
    %v3251 = vpop.permute.xlu0 %3250
    %3252 = vrot.lane.b32.xlu0 %v3101, 32
    %v3253 = vpop.permute.xlu0 %3252
    %3254 = vrot.lane.b32.xlu0 %v3102, 32
    %v3255 = vpop.permute.xlu0 %3254
    %3256 = vrot.lane.b32.xlu0 %v3103, 32
    %v3257 = vpop.permute.xlu0 %3256
    %3258 = vrot.lane.b32.xlu0 %v3104, 32
    %v3259 = vpop.permute.xlu0 %3258
    %3260 = vrot.lane.b32.xlu0 %v3105, 32
    %v3261 = vpop.permute.xlu0 %3260
    %3262 = vrot.lane.b32.xlu0 %v3106, 32
    %v3263 = vpop.permute.xlu0 %3262
    %3264 = vrot.lane.b32.xlu0 %v3107, 32
    %v3265 = vpop.permute.xlu0 %3264
    %3266 = vrot.lane.b32.xlu0 %v3108, 32
    %v3267 = vpop.permute.xlu0 %3266
    %3268 = vrot.lane.b32.xlu0 %v3109, 32
    %v3269 = vpop.permute.xlu0 %3268
    %3270 = vrot.lane.b32.xlu0 %v3110, 32
    %v3271 = vpop.permute.xlu0 %3270
    %3272 = vrot.lane.b32.xlu0 %v3111, 32
    %v3273 = vpop.permute.xlu0 %3272
    %3274 = vrot.lane.b32.xlu0 %v3112, 32
    %v3275 = vpop.permute.xlu0 %3274
    %3276 = vrot.lane.b32.xlu0 %v3113, 32
    %v3277 = vpop.permute.xlu0 %3276
    %3278 = vrot.lane.b32.xlu0 %v3114, 32
    %v3279 = vpop.permute.xlu0 %3278
    %3280 = vrot.lane.b32.xlu0 %v3115, 32
    %v3281 = vpop.permute.xlu0 %3280
    %3282 = vrot.lane.b32.xlu0 %v3116, 32
    %v3283 = vpop.permute.xlu0 %3282
    %3284 = vrot.lane.b32.xlu0 %v3117, 32
    %v3285 = vpop.permute.xlu0 %3284
    %3286 = vrot.lane.b32.xlu0 %v3118, 32
    %v3287 = vpop.permute.xlu0 %3286
    %3288 = vrot.lane.b32.xlu0 %v3119, 32
    %v3289 = vpop.permute.xlu0 %3288
    %3290 = vrot.lane.b32.xlu0 %v3120, 32
    %v3291 = vpop.permute.xlu0 %3290
    %3292 = vrot.lane.b32.xlu0 %v3121, 32
    %v3293 = vpop.permute.xlu0 %3292
    %3294 = vrot.lane.b32.xlu0 %v3122, 32
    %v3295 = vpop.permute.xlu0 %3294
    %3296 = vrot.lane.b32.xlu0 %v3123, 32
    %v3297 = vpop.permute.xlu0 %3296
    %3298 = vrot.lane.b32.xlu0 %v3124, 32
    %v3299 = vpop.permute.xlu0 %3298
    %3300 = vrot.lane.b32.xlu0 %v3125, 32
    %v3301 = vpop.permute.xlu0 %3300
    %3302 = vrot.lane.b32.xlu0 %v3126, 32
    %v3303 = vpop.permute.xlu0 %3302
    %3304 = vrot.lane.b32.xlu0 %v3127, 32
    %v3305 = vpop.permute.xlu0 %3304
    %3306 = vrot.lane.b32.xlu0 %v3128, 32
    %v3307 = vpop.permute.xlu0 %3306
    %3308 = vrot.lane.b32.xlu0 %v3129, 32
    %v3309 = vpop.permute.xlu0 %3308
    %3310 = vrot.lane.b32.xlu0 %v3130, 32
    %v3311 = vpop.permute.xlu0 %3310
    %3312 = vrot.lane.b32.xlu0 %v3131, 32
    %v3313 = vpop.permute.xlu0 %3312
    %3314 = vrot.lane.b32.xlu0 %v3132, 32
    %v3315 = vpop.permute.xlu0 %3314
    %3316 = vrot.lane.b32.xlu0 %v3133, 32
    %v3317 = vpop.permute.xlu0 %3316
    %3318 = vrot.lane.b32.xlu0 %v3134, 32
    %v3319 = vpop.permute.xlu0 %3318
    %3320 = vrot.lane.b32.xlu0 %v3135, 32
    %v3321 = vpop.permute.xlu0 %3320
    %3322 = vrot.lane.b32.xlu0 %v3136, 32
    %v3323 = vpop.permute.xlu0 %3322
    %3324 = vrot.lane.b32.xlu0 %v3137, 32
    %v3325 = vpop.permute.xlu0 %3324
    %3326 = vrot.lane.b32.xlu0 %v3138, 32
    %v3327 = vpop.permute.xlu0 %3326
    %3328 = vrot.lane.b32.xlu0 %v3139, 32
    %v3329 = vpop.permute.xlu0 %3328
    %3330 = vrot.lane.b32.xlu0 %v3140, 32
    %v3331 = vpop.permute.xlu0 %3330
    %3332 = vrot.lane.b32.xlu0 %v3141, 32
    %v3333 = vpop.permute.xlu0 %3332
    %vm3398 = vcmask 294144
    %3399 = vst.msk [vmem:[#allocation4] sm:$0xff] %vm3398, %v3207
    %3400 = vst.msk [vmem:[#allocation4 + $0x8] sm:$0xff] %vm3398, %v3209
    %3401 = vst.msk [vmem:[#allocation4 + $0x10] sm:$0xff] %vm3398, %v3211
    %3402 = vst.msk [vmem:[#allocation4 + $0x18] sm:$0xff] %vm3398, %v3213
    %3403 = vst.msk [vmem:[#allocation4 + $0x20] sm:$0xff] %vm3398, %v3215
    %3404 = vst.msk [vmem:[#allocation4 + $0x28] sm:$0xff] %vm3398, %v3217
    %3405 = vst.msk [vmem:[#allocation4 + $0x30] sm:$0xff] %vm3398, %v3219
    %3406 = vst.msk [vmem:[#allocation4 + $0x38] sm:$0xff] %vm3398, %v3221
    %3407 = vst.msk [vmem:[#allocation4 + $0x40] sm:$0xff] %vm3398, %v3223
    %3408 = vst.msk [vmem:[#allocation4 + $0x48] sm:$0xff] %vm3398, %v3225
    %3409 = vst.msk [vmem:[#allocation4 + $0x50] sm:$0xff] %vm3398, %v3227
    %3410 = vst.msk [vmem:[#allocation4 + $0x58] sm:$0xff] %vm3398, %v3229
    %3411 = vst.msk [vmem:[#allocation4 + $0x60] sm:$0xff] %vm3398, %v3231
    %3412 = vst.msk [vmem:[#allocation4 + $0x68] sm:$0xff] %vm3398, %v3233
    %3413 = vst.msk [vmem:[#allocation4 + $0x70] sm:$0xff] %vm3398, %v3235
    %3414 = vst.msk [vmem:[#allocation4 + $0x78] sm:$0xff] %vm3398, %v3237
    %3415 = vst.msk [vmem:[#allocation4 + $0x80] sm:$0xff] %vm3398, %v3239
    %3416 = vst.msk [vmem:[#allocation4 + $0x88] sm:$0xff] %vm3398, %v3241
    %3417 = vst.msk [vmem:[#allocation4 + $0x90] sm:$0xff] %vm3398, %v3243
    %3418 = vst.msk [vmem:[#allocation4 + $0x98] sm:$0xff] %vm3398, %v3245
    %3419 = vst.msk [vmem:[#allocation4 + $0xa0] sm:$0xff] %vm3398, %v3247
    %3420 = vst.msk [vmem:[#allocation4 + $0xa8] sm:$0xff] %vm3398, %v3249
    %3421 = vst.msk [vmem:[#allocation4 + $0xb0] sm:$0xff] %vm3398, %v3251
    %3422 = vst.msk [vmem:[#allocation4 + $0xb8] sm:$0xff] %vm3398, %v3253
    %3423 = vst.msk [vmem:[#allocation4 + $0xc0] sm:$0xff] %vm3398, %v3255
    %3424 = vst.msk [vmem:[#allocation4 + $0xc8] sm:$0xff] %vm3398, %v3257
    %3425 = vst.msk [vmem:[#allocation4 + $0xd0] sm:$0xff] %vm3398, %v3259
    %3426 = vst.msk [vmem:[#allocation4 + $0xd8] sm:$0xff] %vm3398, %v3261
    %3427 = vst.msk [vmem:[#allocation4 + $0xe0] sm:$0xff] %vm3398, %v3263
    %3428 = vst.msk [vmem:[#allocation4 + $0xe8] sm:$0xff] %vm3398, %v3265
    %3429 = vst.msk [vmem:[#allocation4 + $0xf0] sm:$0xff] %vm3398, %v3267
    %3430 = vst.msk [vmem:[#allocation4 + $0xf8] sm:$0xff] %vm3398, %v3269
    %3431 = vst.msk [vmem:[#allocation4 + $0x100] sm:$0xff] %vm3398, %v3271
    %3432 = vst.msk [vmem:[#allocation4 + $0x108] sm:$0xff] %vm3398, %v3273
    %3433 = vst.msk [vmem:[#allocation4 + $0x110] sm:$0xff] %vm3398, %v3275
    %3434 = vst.msk [vmem:[#allocation4 + $0x118] sm:$0xff] %vm3398, %v3277
    %3435 = vst.msk [vmem:[#allocation4 + $0x120] sm:$0xff] %vm3398, %v3279
    %3436 = vst.msk [vmem:[#allocation4 + $0x128] sm:$0xff] %vm3398, %v3281
    %3437 = vst.msk [vmem:[#allocation4 + $0x130] sm:$0xff] %vm3398, %v3283
    %3438 = vst.msk [vmem:[#allocation4 + $0x138] sm:$0xff] %vm3398, %v3285
    %3439 = vst.msk [vmem:[#allocation4 + $0x140] sm:$0xff] %vm3398, %v3287
    %3440 = vst.msk [vmem:[#allocation4 + $0x148] sm:$0xff] %vm3398, %v3289
    %3441 = vst.msk [vmem:[#allocation4 + $0x150] sm:$0xff] %vm3398, %v3291
    %3442 = vst.msk [vmem:[#allocation4 + $0x158] sm:$0xff] %vm3398, %v3293
    %3443 = vst.msk [vmem:[#allocation4 + $0x160] sm:$0xff] %vm3398, %v3295
    %3444 = vst.msk [vmem:[#allocation4 + $0x168] sm:$0xff] %vm3398, %v3297
    %3445 = vst.msk [vmem:[#allocation4 + $0x170] sm:$0xff] %vm3398, %v3299
    %3446 = vst.msk [vmem:[#allocation4 + $0x178] sm:$0xff] %vm3398, %v3301
    %3447 = vst.msk [vmem:[#allocation4 + $0x180] sm:$0xff] %vm3398, %v3303
    %3448 = vst.msk [vmem:[#allocation4 + $0x188] sm:$0xff] %vm3398, %v3305
    %3449 = vst.msk [vmem:[#allocation4 + $0x190] sm:$0xff] %vm3398, %v3307
    %3450 = vst.msk [vmem:[#allocation4 + $0x198] sm:$0xff] %vm3398, %v3309
    %3451 = vst.msk [vmem:[#allocation4 + $0x1a0] sm:$0xff] %vm3398, %v3311
    %3452 = vst.msk [vmem:[#allocation4 + $0x1a8] sm:$0xff] %vm3398, %v3313
    %3453 = vst.msk [vmem:[#allocation4 + $0x1b0] sm:$0xff] %vm3398, %v3315
    %3454 = vst.msk [vmem:[#allocation4 + $0x1b8] sm:$0xff] %vm3398, %v3317
    %3455 = vst.msk [vmem:[#allocation4 + $0x1c0] sm:$0xff] %vm3398, %v3319
    %3456 = vst.msk [vmem:[#allocation4 + $0x1c8] sm:$0xff] %vm3398, %v3321
    %3457 = vst.msk [vmem:[#allocation4 + $0x1d0] sm:$0xff] %vm3398, %v3323
    %3458 = vst.msk [vmem:[#allocation4 + $0x1d8] sm:$0xff] %vm3398, %v3325
    %3459 = vst.msk [vmem:[#allocation4 + $0x1e0] sm:$0xff] %vm3398, %v3327
    %3460 = vst.msk [vmem:[#allocation4 + $0x1e8] sm:$0xff] %vm3398, %v3329
    %3461 = vst.msk [vmem:[#allocation4 + $0x1f0] sm:$0xff] %vm3398, %v3331
    %3462 = vst.msk [vmem:[#allocation4 + $0x1f8] sm:$0xff] %vm3398, %v3333
    %v3463 = vld [vmem:[#allocation4] sm:$0xff]
    %v3464 = vld [vmem:[#allocation4 + $0x8] sm:$0xff]
    %v3465 = vld [vmem:[#allocation4 + $0x10] sm:$0xff]
    %v3466 = vld [vmem:[#allocation4 + $0x18] sm:$0xff]
    %v3467 = vld [vmem:[#allocation4 + $0x20] sm:$0xff]
    %v3468 = vld [vmem:[#allocation4 + $0x28] sm:$0xff]
    %v3469 = vld [vmem:[#allocation4 + $0x30] sm:$0xff]
    %v3470 = vld [vmem:[#allocation4 + $0x38] sm:$0xff]
    %v3471 = vld [vmem:[#allocation4 + $0x40] sm:$0xff]
    %v3472 = vld [vmem:[#allocation4 + $0x48] sm:$0xff]
    %v3473 = vld [vmem:[#allocation4 + $0x50] sm:$0xff]
    %v3474 = vld [vmem:[#allocation4 + $0x58] sm:$0xff]
    %v3475 = vld [vmem:[#allocation4 + $0x60] sm:$0xff]
    %v3476 = vld [vmem:[#allocation4 + $0x68] sm:$0xff]
    %v3477 = vld [vmem:[#allocation4 + $0x70] sm:$0xff]
    %v3478 = vld [vmem:[#allocation4 + $0x78] sm:$0xff]
    %v3479 = vld [vmem:[#allocation4 + $0x80] sm:$0xff]
    %v3480 = vld [vmem:[#allocation4 + $0x88] sm:$0xff]
    %v3481 = vld [vmem:[#allocation4 + $0x90] sm:$0xff]
    %v3482 = vld [vmem:[#allocation4 + $0x98] sm:$0xff]
    %v3483 = vld [vmem:[#allocation4 + $0xa0] sm:$0xff]
    %v3484 = vld [vmem:[#allocation4 + $0xa8] sm:$0xff]
    %v3485 = vld [vmem:[#allocation4 + $0xb0] sm:$0xff]
    %v3486 = vld [vmem:[#allocation4 + $0xb8] sm:$0xff]
    %v3487 = vld [vmem:[#allocation4 + $0xc0] sm:$0xff]
    %v3488 = vld [vmem:[#allocation4 + $0xc8] sm:$0xff]
    %v3489 = vld [vmem:[#allocation4 + $0xd0] sm:$0xff]
    %v3490 = vld [vmem:[#allocation4 + $0xd8] sm:$0xff]
    %v3491 = vld [vmem:[#allocation4 + $0xe0] sm:$0xff]
    %v3492 = vld [vmem:[#allocation4 + $0xe8] sm:$0xff]
    %v3493 = vld [vmem:[#allocation4 + $0xf0] sm:$0xff]
    %v3494 = vld [vmem:[#allocation4 + $0xf8] sm:$0xff]
    %v3495 = vld [vmem:[#allocation4 + $0x100] sm:$0xff]
    %v3496 = vld [vmem:[#allocation4 + $0x108] sm:$0xff]
    %v3497 = vld [vmem:[#allocation4 + $0x110] sm:$0xff]
    %v3498 = vld [vmem:[#allocation4 + $0x118] sm:$0xff]
    %v3499 = vld [vmem:[#allocation4 + $0x120] sm:$0xff]
    %v3500 = vld [vmem:[#allocation4 + $0x128] sm:$0xff]
    %v3501 = vld [vmem:[#allocation4 + $0x130] sm:$0xff]
    %v3502 = vld [vmem:[#allocation4 + $0x138] sm:$0xff]
    %v3503 = vld [vmem:[#allocation4 + $0x140] sm:$0xff]
    %v3504 = vld [vmem:[#allocation4 + $0x148] sm:$0xff]
    %v3505 = vld [vmem:[#allocation4 + $0x150] sm:$0xff]
    %v3506 = vld [vmem:[#allocation4 + $0x158] sm:$0xff]
    %v3507 = vld [vmem:[#allocation4 + $0x160] sm:$0xff]
    %v3508 = vld [vmem:[#allocation4 + $0x168] sm:$0xff]
    %v3509 = vld [vmem:[#allocation4 + $0x170] sm:$0xff]
    %v3510 = vld [vmem:[#allocation4 + $0x178] sm:$0xff]
    %v3511 = vld [vmem:[#allocation4 + $0x180] sm:$0xff]
    %v3512 = vld [vmem:[#allocation4 + $0x188] sm:$0xff]
    %v3513 = vld [vmem:[#allocation4 + $0x190] sm:$0xff]
    %v3514 = vld [vmem:[#allocation4 + $0x198] sm:$0xff]
    %v3515 = vld [vmem:[#allocation4 + $0x1a0] sm:$0xff]
    %v3516 = vld [vmem:[#allocation4 + $0x1a8] sm:$0xff]
    %v3517 = vld [vmem:[#allocation4 + $0x1b0] sm:$0xff]
    %v3518 = vld [vmem:[#allocation4 + $0x1b8] sm:$0xff]
    %v3519 = vld [vmem:[#allocation4 + $0x1c0] sm:$0xff]
    %v3520 = vld [vmem:[#allocation4 + $0x1c8] sm:$0xff]
    %v3521 = vld [vmem:[#allocation4 + $0x1d0] sm:$0xff]
    %v3522 = vld [vmem:[#allocation4 + $0x1d8] sm:$0xff]
    %v3523 = vld [vmem:[#allocation4 + $0x1e0] sm:$0xff]
    %v3524 = vld [vmem:[#allocation4 + $0x1e8] sm:$0xff]
    %v3525 = vld [vmem:[#allocation4 + $0x1f0] sm:$0xff]
    %v3526 = vld [vmem:[#allocation4 + $0x1f8] sm:$0xff]
    %v3527 = vpack.c.bf16 %v3464, %v3463
    %v3528 = vpack.c.bf16 %v3466, %v3465
    %v3529 = vpack.c.bf16 %v3468, %v3467
    %v3530 = vpack.c.bf16 %v3470, %v3469
    %v3531 = vpack.c.bf16 %v3472, %v3471
    %v3532 = vpack.c.bf16 %v3474, %v3473
    %v3533 = vpack.c.bf16 %v3476, %v3475
    %v3534 = vpack.c.bf16 %v3478, %v3477
    %v3535 = vpack.c.bf16 %v3480, %v3479
    %v3536 = vpack.c.bf16 %v3482, %v3481
    %v3537 = vpack.c.bf16 %v3484, %v3483
    %v3538 = vpack.c.bf16 %v3486, %v3485
    %v3539 = vpack.c.bf16 %v3488, %v3487
    %v3540 = vpack.c.bf16 %v3490, %v3489
    %v3541 = vpack.c.bf16 %v3492, %v3491
    %v3542 = vpack.c.bf16 %v3494, %v3493
    %v3543 = vpack.c.bf16 %v3496, %v3495
    %v3544 = vpack.c.bf16 %v3498, %v3497
    %v3545 = vpack.c.bf16 %v3500, %v3499
    %v3546 = vpack.c.bf16 %v3502, %v3501
    %v3547 = vpack.c.bf16 %v3504, %v3503
    %v3548 = vpack.c.bf16 %v3506, %v3505
    %v3549 = vpack.c.bf16 %v3508, %v3507
    %v3550 = vpack.c.bf16 %v3510, %v3509
    %v3551 = vpack.c.bf16 %v3512, %v3511
    %v3552 = vpack.c.bf16 %v3514, %v3513
    %v3553 = vpack.c.bf16 %v3516, %v3515
    %v3554 = vpack.c.bf16 %v3518, %v3517
    %v3555 = vpack.c.bf16 %v3520, %v3519
    %v3556 = vpack.c.bf16 %v3522, %v3521
    %v3557 = vpack.c.bf16 %v3524, %v3523
    %v3558 = vpack.c.bf16 %v3526, %v3525
    %v3559 = vld [vmem:[%s1] sm:$0xf]
    %v3560 = vld [vmem:[%s1 + $0x4] sm:$0xf]
    %v3561 = vld [vmem:[%s1 + $0x8] sm:$0xf]
    %v3562 = vld [vmem:[%s1 + $0xc] sm:$0xf]
    %v3563 = vld [vmem:[%s1 + $0x10] sm:$0x3]
    %v3569 = vunpack.c.l.b16 %v3559
    %v3570 = vunpack.c.l.b16 %v3560
    %v3571 = vunpack.c.l.b16 %v3561
    %v3572 = vunpack.c.l.b16 %v3562
    %v3573 = vunpack.c.l.b16 %v3563
    %v3574 = vpack.c.b16 %v3570, %v3569
    %v3575 = vpack.c.b16 %v3572, %v3571
    %v3576 = vpack.c.b16 %v3573, %v3573
    %vm3579 = vcmask 293888
    %v3581 = vsel %vm3579, %v3527, 0
    %v3584 = vsel %vm3579, %v3528, 0
    %v3587 = vsel %vm3579, %v3529, 0
    %v3590 = vsel %vm3579, %v3530, 0
    %v3593 = vsel %vm3579, %v3531, 0
    %v3596 = vsel %vm3579, %v3532, 0
    %v3599 = vsel %vm3579, %v3533, 0
    %v3602 = vsel %vm3579, %v3534, 0
    %v3605 = vsel %vm3579, %v3535, 0
    %v3608 = vsel %vm3579, %v3536, 0
    %v3611 = vsel %vm3579, %v3537, 0
    %v3614 = vsel %vm3579, %v3538, 0
    %v3617 = vsel %vm3579, %v3539, 0
    %v3620 = vsel %vm3579, %v3540, 0
    %v3623 = vsel %vm3579, %v3541, 0
    %v3626 = vsel %vm3579, %v3542, 0
    %v3629 = vsel %vm3579, %v3543, 0
    %v3632 = vsel %vm3579, %v3544, 0
    %v3635 = vsel %vm3579, %v3545, 0
    %v3638 = vsel %vm3579, %v3546, 0
    %v3641 = vsel %vm3579, %v3547, 0
    %v3644 = vsel %vm3579, %v3548, 0
    %v3647 = vsel %vm3579, %v3549, 0
    %v3650 = vsel %vm3579, %v3550, 0
    %v3653 = vsel %vm3579, %v3551, 0
    %v3656 = vsel %vm3579, %v3552, 0
    %v3659 = vsel %vm3579, %v3553, 0
    %v3662 = vsel %vm3579, %v3554, 0
    %v3665 = vsel %vm3579, %v3555, 0
    %v3668 = vsel %vm3579, %v3556, 0
    %v3671 = vsel %vm3579, %v3557, 0
    %v3674 = vsel %vm3579, %v3558, 0
    %vm3676 = vcmask 1041408
    %v3678 = vsel %vm3676, %v3576, 0
    %3680 = vmatprep.subr.bf16.mxu0 0
    %3681 = vmatpush1.bf16.msra.mxu0 %v3574
    %3682 = vmatprep.subr.bf16.mxu0 0
    %3683 = vmatpush1.bf16.msra.mxu0 %v3575
    %3684 = vmatprep.subr.bf16.mxu0 0
    %3685 = vmatpush1.bf16.msra.mxu0 %v3678
    %3686 = vmatprep.subr.bf16.mxu0 0
    %3687 = vmatpush1.bf16.msra.mxu0 0
    %3688 = vmatprep.subr.bf16.mxu0 0
    %3689 = vmatpush1.bf16.msra.mxu0 0
    %3690 = vmatprep.subr.bf16.mxu0 0
    %3691 = vmatpush1.bf16.msra.mxu0 0
    %3692 = vmatprep.subr.bf16.mxu0 0
    %3693 = vmatpush1.bf16.msra.mxu0 0
    %3694 = vmatprep.subr.bf16.mxu0 0
    %3695 = vmatpush1.bf16.msra.mxu0 0
    %3696 = vmatprep.subr.bf16.mxu0 0
    %3697 = vmatpush1.bf16.msra.mxu0 0
    %3698 = vmatprep.subr.bf16.mxu0 0
    %3699 = vmatpush1.bf16.msra.mxu0 0
    %3700 = vmatprep.subr.bf16.mxu0 0
    %3701 = vmatpush1.bf16.msra.mxu0 0
    %3702 = vmatprep.subr.bf16.mxu0 0
    %3703 = vmatpush1.bf16.msra.mxu0 0
    %3704 = vmatprep.subr.bf16.mxu0 0
    %3705 = vmatpush1.bf16.msra.mxu0 0
    %3706 = vmatprep.subr.bf16.mxu0 0
    %3707 = vmatpush1.bf16.msra.mxu0 0
    %3708 = vmatprep.subr.bf16.mxu0 0
    %3709 = vmatpush1.bf16.msra.mxu0 0
    %3710 = vmatprep.subr.bf16.mxu0 0
    %3711 = vmatpush1.bf16.msra.mxu0 0
    %3712 = vmatprep.mubr.bf16.mxu0 0
    %3713 = vmatmul.mubr.bf16.gmra.mrb[0].mxu0 %v3581
    %v3714 = vpop.f32.mrb[0].mxu0
    %v3715 = vadd.f32 0.0, %v3714
    %v3716 = vpop.f32.mrb[0].mxu0
    %v3717 = vpop.f32.mrb[0].mxu0
    %v3718 = vadd.f32 0.0, %v3717
    %v3719 = vpop.f32.mrb[0].mxu0
    %3720 = vmatprep.mubr.bf16.mxu0 0
    %3721 = vmatmul.mubr.bf16.gmra.mrb[0].mxu0 %v3584
    %v3722 = vpop.f32.mrb[0].mxu0
    %v3723 = vadd.f32 0.0, %v3722
    %v3724 = vpop.f32.mrb[0].mxu0
    %v3725 = vpop.f32.mrb[0].mxu0
    %v3726 = vadd.f32 0.0, %v3725
    %v3727 = vpop.f32.mrb[0].mxu0
    %3728 = vmatprep.mubr.bf16.mxu0 0
    %3729 = vmatmul.mubr.bf16.gmra.mrb[0].mxu0 %v3587
    %v3730 = vpop.f32.mrb[0].mxu0
    %v3731 = vadd.f32 0.0, %v3730
    %v3732 = vpop.f32.mrb[0].mxu0
    %v3733 = vpop.f32.mrb[0].mxu0
    %v3734 = vadd.f32 0.0, %v3733
    %v3735 = vpop.f32.mrb[0].mxu0
    %3736 = vmatprep.mubr.bf16.mxu0 0
    %3737 = vmatmul.mubr.bf16.gmra.mrb[0].mxu0 %v3590
    %v3738 = vpop.f32.mrb[0].mxu0
    %v3739 = vadd.f32 0.0, %v3738
    %v3740 = vpop.f32.mrb[0].mxu0
    %v3741 = vpop.f32.mrb[0].mxu0
    %v3742 = vadd.f32 0.0, %v3741
    %v3743 = vpop.f32.mrb[0].mxu0
    %3744 = vmatprep.mubr.bf16.mxu0 0
    %3745 = vmatmul.mubr.bf16.gmra.mrb[0].mxu0 %v3593
    %v3746 = vpop.f32.mrb[0].mxu0
    %v3747 = vadd.f32 0.0, %v3746
    %v3748 = vpop.f32.mrb[0].mxu0
    %v3749 = vpop.f32.mrb[0].mxu0
    %v3750 = vadd.f32 0.0, %v3749
    %v3751 = vpop.f32.mrb[0].mxu0
    %3752 = vmatprep.mubr.bf16.mxu0 0
    %3753 = vmatmul.mubr.bf16.gmra.mrb[0].mxu0 %v3596
    %v3754 = vpop.f32.mrb[0].mxu0
    %v3755 = vadd.f32 0.0, %v3754
    %v3756 = vpop.f32.mrb[0].mxu0
    %v3757 = vpop.f32.mrb[0].mxu0
    %v3758 = vadd.f32 0.0, %v3757
    %v3759 = vpop.f32.mrb[0].mxu0
    %3760 = vmatprep.mubr.bf16.mxu0 0
    %3761 = vmatmul.mubr.bf16.gmra.mrb[0].mxu0 %v3599
    %v3762 = vpop.f32.mrb[0].mxu0
    %v3763 = vadd.f32 0.0, %v3762
    %v3764 = vpop.f32.mrb[0].mxu0
    %v3765 = vpop.f32.mrb[0].mxu0
    %v3766 = vadd.f32 0.0, %v3765
    %v3767 = vpop.f32.mrb[0].mxu0
    %3768 = vmatprep.mubr.bf16.mxu0 0
    %3769 = vmatmul.mubr.bf16.gmra.mrb[0].mxu0 %v3602
    %v3770 = vpop.f32.mrb[0].mxu0
    %v3771 = vadd.f32 0.0, %v3770
    %v3772 = vpop.f32.mrb[0].mxu0
    %v3773 = vpop.f32.mrb[0].mxu0
    %v3774 = vadd.f32 0.0, %v3773
    %v3775 = vpop.f32.mrb[0].mxu0
    %3776 = vmatprep.mubr.bf16.mxu0 0
    %3777 = vmatmul.mubr.bf16.gmra.mrb[0].mxu0 %v3605
    %v3778 = vpop.f32.mrb[0].mxu0
    %v3779 = vadd.f32 0.0, %v3778
    %v3780 = vpop.f32.mrb[0].mxu0
    %v3781 = vpop.f32.mrb[0].mxu0
    %v3782 = vadd.f32 0.0, %v3781
    %v3783 = vpop.f32.mrb[0].mxu0
    %3784 = vmatprep.mubr.bf16.mxu0 0
    %3785 = vmatmul.mubr.bf16.gmra.mrb[0].mxu0 %v3608
    %v3786 = vpop.f32.mrb[0].mxu0
    %v3787 = vadd.f32 0.0, %v3786
    %v3788 = vpop.f32.mrb[0].mxu0
    %v3789 = vpop.f32.mrb[0].mxu0
    %v3790 = vadd.f32 0.0, %v3789
    %v3791 = vpop.f32.mrb[0].mxu0
    %3792 = vmatprep.mubr.bf16.mxu0 0
    %3793 = vmatmul.mubr.bf16.gmra.mrb[0].mxu0 %v3611
    %v3794 = vpop.f32.mrb[0].mxu0
    %v3795 = vadd.f32 0.0, %v3794
    %v3796 = vpop.f32.mrb[0].mxu0
    %v3797 = vpop.f32.mrb[0].mxu0
    %v3798 = vadd.f32 0.0, %v3797
    %v3799 = vpop.f32.mrb[0].mxu0
    %3800 = vmatprep.mubr.bf16.mxu0 0
    %3801 = vmatmul.mubr.bf16.gmra.mrb[0].mxu0 %v3614
    %v3802 = vpop.f32.mrb[0].mxu0
    %v3803 = vadd.f32 0.0, %v3802
    %v3804 = vpop.f32.mrb[0].mxu0
    %v3805 = vpop.f32.mrb[0].mxu0
    %v3806 = vadd.f32 0.0, %v3805
    %v3807 = vpop.f32.mrb[0].mxu0
    %3808 = vmatprep.mubr.bf16.mxu0 0
    %3809 = vmatmul.mubr.bf16.gmra.mrb[0].mxu0 %v3617
    %v3810 = vpop.f32.mrb[0].mxu0
    %v3811 = vadd.f32 0.0, %v3810
    %v3812 = vpop.f32.mrb[0].mxu0
    %v3813 = vpop.f32.mrb[0].mxu0
    %v3814 = vadd.f32 0.0, %v3813
    %v3815 = vpop.f32.mrb[0].mxu0
    %3816 = vmatprep.mubr.bf16.mxu0 0
    %3817 = vmatmul.mubr.bf16.gmra.mrb[0].mxu0 %v3620
    %v3818 = vpop.f32.mrb[0].mxu0
    %v3819 = vadd.f32 0.0, %v3818
    %v3820 = vpop.f32.mrb[0].mxu0
    %v3821 = vpop.f32.mrb[0].mxu0
    %v3822 = vadd.f32 0.0, %v3821
    %v3823 = vpop.f32.mrb[0].mxu0
    %3824 = vmatprep.mubr.bf16.mxu0 0
    %3825 = vmatmul.mubr.bf16.gmra.mrb[0].mxu0 %v3623
    %v3826 = vpop.f32.mrb[0].mxu0
    %v3827 = vadd.f32 0.0, %v3826
    %v3828 = vpop.f32.mrb[0].mxu0
    %v3829 = vpop.f32.mrb[0].mxu0
    %v3830 = vadd.f32 0.0, %v3829
    %v3831 = vpop.f32.mrb[0].mxu0
    %3832 = vmatprep.mubr.bf16.mxu0 0
    %3833 = vmatmul.mubr.bf16.gmra.mrb[0].mxu0 %v3626
    %v3834 = vpop.f32.mrb[0].mxu0
    %v3835 = vadd.f32 0.0, %v3834
    %v3836 = vpop.f32.mrb[0].mxu0
    %v3837 = vpop.f32.mrb[0].mxu0
    %v3838 = vadd.f32 0.0, %v3837
    %v3839 = vpop.f32.mrb[0].mxu0
    %3840 = vmatprep.mubr.bf16.mxu0 0
    %3841 = vmatmul.mubr.bf16.gmra.mrb[0].mxu0 %v3629
    %v3842 = vpop.f32.mrb[0].mxu0
    %v3843 = vadd.f32 0.0, %v3842
    %v3844 = vpop.f32.mrb[0].mxu0
    %v3845 = vpop.f32.mrb[0].mxu0
    %v3846 = vadd.f32 0.0, %v3845
    %v3847 = vpop.f32.mrb[0].mxu0
    %3848 = vmatprep.mubr.bf16.mxu0 0
    %3849 = vmatmul.mubr.bf16.gmra.mrb[0].mxu0 %v3632
    %v3850 = vpop.f32.mrb[0].mxu0
    %v3851 = vadd.f32 0.0, %v3850
    %v3852 = vpop.f32.mrb[0].mxu0
    %v3853 = vpop.f32.mrb[0].mxu0
    %v3854 = vadd.f32 0.0, %v3853
    %v3855 = vpop.f32.mrb[0].mxu0
    %3856 = vmatprep.mubr.bf16.mxu0 0
    %3857 = vmatmul.mubr.bf16.gmra.mrb[0].mxu0 %v3635
    %v3858 = vpop.f32.mrb[0].mxu0
    %v3859 = vadd.f32 0.0, %v3858
    %v3860 = vpop.f32.mrb[0].mxu0
    %v3861 = vpop.f32.mrb[0].mxu0
    %v3862 = vadd.f32 0.0, %v3861
    %v3863 = vpop.f32.mrb[0].mxu0
    %3864 = vmatprep.mubr.bf16.mxu0 0
    %3865 = vmatmul.mubr.bf16.gmra.mrb[0].mxu0 %v3638
    %v3866 = vpop.f32.mrb[0].mxu0
    %v3867 = vadd.f32 0.0, %v3866
    %v3868 = vpop.f32.mrb[0].mxu0
    %v3869 = vpop.f32.mrb[0].mxu0
    %v3870 = vadd.f32 0.0, %v3869
    %v3871 = vpop.f32.mrb[0].mxu0
    %3872 = vmatprep.mubr.bf16.mxu0 0
    %3873 = vmatmul.mubr.bf16.gmra.mrb[0].mxu0 %v3641
    %v3874 = vpop.f32.mrb[0].mxu0
    %v3875 = vadd.f32 0.0, %v3874
    %v3876 = vpop.f32.mrb[0].mxu0
    %v3877 = vpop.f32.mrb[0].mxu0
    %v3878 = vadd.f32 0.0, %v3877
    %v3879 = vpop.f32.mrb[0].mxu0
    %3880 = vmatprep.mubr.bf16.mxu0 0
    %3881 = vmatmul.mubr.bf16.gmra.mrb[0].mxu0 %v3644
    %v3882 = vpop.f32.mrb[0].mxu0
    %v3883 = vadd.f32 0.0, %v3882
    %v3884 = vpop.f32.mrb[0].mxu0
    %v3885 = vpop.f32.mrb[0].mxu0
    %v3886 = vadd.f32 0.0, %v3885
    %v3887 = vpop.f32.mrb[0].mxu0
    %3888 = vmatprep.mubr.bf16.mxu0 0
    %3889 = vmatmul.mubr.bf16.gmra.mrb[0].mxu0 %v3647
    %v3890 = vpop.f32.mrb[0].mxu0
    %v3891 = vadd.f32 0.0, %v3890
    %v3892 = vpop.f32.mrb[0].mxu0
    %v3893 = vpop.f32.mrb[0].mxu0
    %v3894 = vadd.f32 0.0, %v3893
    %v3895 = vpop.f32.mrb[0].mxu0
    %3896 = vmatprep.mubr.bf16.mxu0 0
    %3897 = vmatmul.mubr.bf16.gmra.mrb[0].mxu0 %v3650
    %v3898 = vpop.f32.mrb[0].mxu0
    %v3899 = vadd.f32 0.0, %v3898
    %v3900 = vpop.f32.mrb[0].mxu0
    %v3901 = vpop.f32.mrb[0].mxu0
    %v3902 = vadd.f32 0.0, %v3901
    %v3903 = vpop.f32.mrb[0].mxu0
    %3904 = vmatprep.mubr.bf16.mxu0 0
    %3905 = vmatmul.mubr.bf16.gmra.mrb[0].mxu0 %v3653
    %v3906 = vpop.f32.mrb[0].mxu0
    %v3907 = vadd.f32 0.0, %v3906
    %v3908 = vpop.f32.mrb[0].mxu0
    %v3909 = vpop.f32.mrb[0].mxu0
    %v3910 = vadd.f32 0.0, %v3909
    %v3911 = vpop.f32.mrb[0].mxu0
    %3912 = vmatprep.mubr.bf16.mxu0 0
    %3913 = vmatmul.mubr.bf16.gmra.mrb[0].mxu0 %v3656
    %v3914 = vpop.f32.mrb[0].mxu0
    %v3915 = vadd.f32 0.0, %v3914
    %v3916 = vpop.f32.mrb[0].mxu0
    %v3917 = vpop.f32.mrb[0].mxu0
    %v3918 = vadd.f32 0.0, %v3917
    %v3919 = vpop.f32.mrb[0].mxu0
    %3920 = vmatprep.mubr.bf16.mxu0 0
    %3921 = vmatmul.mubr.bf16.gmra.mrb[0].mxu0 %v3659
    %v3922 = vpop.f32.mrb[0].mxu0
    %v3923 = vadd.f32 0.0, %v3922
    %v3924 = vpop.f32.mrb[0].mxu0
    %v3925 = vpop.f32.mrb[0].mxu0
    %v3926 = vadd.f32 0.0, %v3925
    %v3927 = vpop.f32.mrb[0].mxu0
    %3928 = vmatprep.mubr.bf16.mxu0 0
    %3929 = vmatmul.mubr.bf16.gmra.mrb[0].mxu0 %v3662
    %v3930 = vpop.f32.mrb[0].mxu0
    %v3931 = vadd.f32 0.0, %v3930
    %v3932 = vpop.f32.mrb[0].mxu0
    %v3933 = vpop.f32.mrb[0].mxu0
    %v3934 = vadd.f32 0.0, %v3933
    %v3935 = vpop.f32.mrb[0].mxu0
    %3936 = vmatprep.mubr.bf16.mxu0 0
    %3937 = vmatmul.mubr.bf16.gmra.mrb[0].mxu0 %v3665
    %v3938 = vpop.f32.mrb[0].mxu0
    %v3939 = vadd.f32 0.0, %v3938
    %v3940 = vpop.f32.mrb[0].mxu0
    %v3941 = vpop.f32.mrb[0].mxu0
    %v3942 = vadd.f32 0.0, %v3941
    %v3943 = vpop.f32.mrb[0].mxu0
    %3944 = vmatprep.mubr.bf16.mxu0 0
    %3945 = vmatmul.mubr.bf16.gmra.mrb[0].mxu0 %v3668
    %v3946 = vpop.f32.mrb[0].mxu0
    %v3947 = vadd.f32 0.0, %v3946
    %v3948 = vpop.f32.mrb[0].mxu0
    %v3949 = vpop.f32.mrb[0].mxu0
    %v3950 = vadd.f32 0.0, %v3949
    %v3951 = vpop.f32.mrb[0].mxu0
    %3952 = vmatprep.mubr.bf16.mxu0 0
    %3953 = vmatmul.mubr.bf16.gmra.mrb[0].mxu0 %v3671
    %v3954 = vpop.f32.mrb[0].mxu0
    %v3955 = vadd.f32 0.0, %v3954
    %v3956 = vpop.f32.mrb[0].mxu0
    %v3957 = vpop.f32.mrb[0].mxu0
    %v3958 = vadd.f32 0.0, %v3957
    %v3959 = vpop.f32.mrb[0].mxu0
    %3960 = vmatprep.mubr.bf16.mxu0 0
    %3961 = vmatmul.mubr.bf16.gmra.mrb[0].mxu0 %v3674
    %v3962 = vpop.f32.mrb[0].mxu0
    %v3963 = vadd.f32 0.0, %v3962
    %v3964 = vpop.f32.mrb[0].mxu0
    %v3965 = vpop.f32.mrb[0].mxu0
    %v3966 = vadd.f32 0.0, %v3965
    %v3967 = vpop.f32.mrb[0].mxu0
    %3968 = vdwg.mxu0
    %vm3969 = vcmask 64512
    %v3970 = vsel %vm3969, %v3715, 0.0
    %v3971 = vsel %vm3969, %v3718, 0.0
    %v3972 = vadd.f32 %v3970, %v3971
    %v3973 = vsel %vm3969, %v3723, 0.0
    %v3974 = vadd.f32 %v3972, %v3973
    %v3975 = vsel %vm3969, %v3726, 0.0
    %v3976 = vadd.f32 %v3974, %v3975
    %v3977 = vsel %vm3969, %v3731, 0.0
    %v3978 = vadd.f32 %v3976, %v3977
    %v3979 = vsel %vm3969, %v3734, 0.0
    %v3980 = vadd.f32 %v3978, %v3979
    %v3981 = vsel %vm3969, %v3739, 0.0
    %v3982 = vadd.f32 %v3980, %v3981
    %v3983 = vsel %vm3969, %v3742, 0.0
    %v3984 = vadd.f32 %v3982, %v3983
    %v3985 = vsel %vm3969, %v3747, 0.0
    %v3986 = vadd.f32 %v3984, %v3985
    %v3987 = vsel %vm3969, %v3750, 0.0
    %v3988 = vadd.f32 %v3986, %v3987
    %v3989 = vsel %vm3969, %v3755, 0.0
    %v3990 = vadd.f32 %v3988, %v3989
    %v3991 = vsel %vm3969, %v3758, 0.0
    %v3992 = vadd.f32 %v3990, %v3991
    %v3993 = vsel %vm3969, %v3763, 0.0
    %v3994 = vadd.f32 %v3992, %v3993
    %v3995 = vsel %vm3969, %v3766, 0.0
    %v3996 = vadd.f32 %v3994, %v3995
    %v3997 = vsel %vm3969, %v3771, 0.0
    %v3998 = vadd.f32 %v3996, %v3997
    %v3999 = vsel %vm3969, %v3774, 0.0
    %v4000 = vadd.f32 %v3998, %v3999
    %v4001 = vsel %vm3969, %v3779, 0.0
    %v4002 = vadd.f32 %v4000, %v4001
    %v4003 = vsel %vm3969, %v3782, 0.0
    %v4004 = vadd.f32 %v4002, %v4003
    %v4005 = vsel %vm3969, %v3787, 0.0
    %v4006 = vadd.f32 %v4004, %v4005
    %v4007 = vsel %vm3969, %v3790, 0.0
    %v4008 = vadd.f32 %v4006, %v4007
    %v4009 = vsel %vm3969, %v3795, 0.0
    %v4010 = vadd.f32 %v4008, %v4009
    %v4011 = vsel %vm3969, %v3798, 0.0
    %v4012 = vadd.f32 %v4010, %v4011
    %v4013 = vsel %vm3969, %v3803, 0.0
    %v4014 = vadd.f32 %v4012, %v4013
    %v4015 = vsel %vm3969, %v3806, 0.0
    %v4016 = vadd.f32 %v4014, %v4015
    %v4017 = vsel %vm3969, %v3811, 0.0
    %v4018 = vadd.f32 %v4016, %v4017
    %v4019 = vsel %vm3969, %v3814, 0.0
    %v4020 = vadd.f32 %v4018, %v4019
    %v4021 = vsel %vm3969, %v3819, 0.0
    %v4022 = vadd.f32 %v4020, %v4021
    %v4023 = vsel %vm3969, %v3822, 0.0
    %v4024 = vadd.f32 %v4022, %v4023
    %v4025 = vsel %vm3969, %v3827, 0.0
    %v4026 = vadd.f32 %v4024, %v4025
    %v4027 = vsel %vm3969, %v3830, 0.0
    %v4028 = vadd.f32 %v4026, %v4027
    %v4029 = vsel %vm3969, %v3835, 0.0
    %v4030 = vadd.f32 %v4028, %v4029
    %v4031 = vsel %vm3969, %v3838, 0.0
    %v4032 = vadd.f32 %v4030, %v4031
    %v4033 = vsel %vm3969, %v3843, 0.0
    %v4034 = vadd.f32 %v4032, %v4033
    %v4035 = vsel %vm3969, %v3846, 0.0
    %v4036 = vadd.f32 %v4034, %v4035
    %v4037 = vsel %vm3969, %v3851, 0.0
    %v4038 = vadd.f32 %v4036, %v4037
    %v4039 = vsel %vm3969, %v3854, 0.0
    %v4040 = vadd.f32 %v4038, %v4039
    %v4041 = vsel %vm3969, %v3859, 0.0
    %v4042 = vadd.f32 %v4040, %v4041
    %v4043 = vsel %vm3969, %v3862, 0.0
    %v4044 = vadd.f32 %v4042, %v4043
    %v4045 = vsel %vm3969, %v3867, 0.0
    %v4046 = vadd.f32 %v4044, %v4045
    %v4047 = vsel %vm3969, %v3870, 0.0
    %v4048 = vadd.f32 %v4046, %v4047
    %v4049 = vsel %vm3969, %v3875, 0.0
    %v4050 = vadd.f32 %v4048, %v4049
    %v4051 = vsel %vm3969, %v3878, 0.0
    %v4052 = vadd.f32 %v4050, %v4051
    %v4053 = vsel %vm3969, %v3883, 0.0
    %v4054 = vadd.f32 %v4052, %v4053
    %v4055 = vsel %vm3969, %v3886, 0.0
    %v4056 = vadd.f32 %v4054, %v4055
    %v4057 = vsel %vm3969, %v3891, 0.0
    %v4058 = vadd.f32 %v4056, %v4057
    %v4059 = vsel %vm3969, %v3894, 0.0
    %v4060 = vadd.f32 %v4058, %v4059
    %v4061 = vsel %vm3969, %v3899, 0.0
    %v4062 = vadd.f32 %v4060, %v4061
    %v4063 = vsel %vm3969, %v3902, 0.0
    %v4064 = vadd.f32 %v4062, %v4063
    %v4065 = vsel %vm3969, %v3907, 0.0
    %v4066 = vadd.f32 %v4064, %v4065
    %v4067 = vsel %vm3969, %v3910, 0.0
    %v4068 = vadd.f32 %v4066, %v4067
    %v4069 = vsel %vm3969, %v3915, 0.0
    %v4070 = vadd.f32 %v4068, %v4069
    %v4071 = vsel %vm3969, %v3918, 0.0
    %v4072 = vadd.f32 %v4070, %v4071
    %v4073 = vsel %vm3969, %v3923, 0.0
    %v4074 = vadd.f32 %v4072, %v4073
    %v4075 = vsel %vm3969, %v3926, 0.0
    %v4076 = vadd.f32 %v4074, %v4075
    %v4077 = vsel %vm3969, %v3931, 0.0
    %v4078 = vadd.f32 %v4076, %v4077
    %v4079 = vsel %vm3969, %v3934, 0.0
    %v4080 = vadd.f32 %v4078, %v4079
    %v4081 = vsel %vm3969, %v3939, 0.0
    %v4082 = vadd.f32 %v4080, %v4081
    %v4083 = vsel %vm3969, %v3942, 0.0
    %v4084 = vadd.f32 %v4082, %v4083
    %v4085 = vsel %vm3969, %v3947, 0.0
    %v4086 = vadd.f32 %v4084, %v4085
    %v4087 = vsel %vm3969, %v3950, 0.0
    %v4088 = vadd.f32 %v4086, %v4087
    %v4089 = vsel %vm3969, %v3955, 0.0
    %v4090 = vadd.f32 %v4088, %v4089
    %v4091 = vsel %vm3969, %v3958, 0.0
    %v4092 = vadd.f32 %v4090, %v4091
    %v4093 = vsel %vm3969, %v3963, 0.0
    %v4094 = vadd.f32 %v4092, %v4093
    %v4095 = vsel %vm3969, %v3966, 0.0
    %v4096 = vadd.f32 %v4094, %v4095
    %v4097 = vrot.slane %v4096, 4
    %v4098 = vadd.f32 %v4096, %v4097
    %v4099 = vrot.slane %v4098, 2
    %v4100 = vadd.f32 %v4098, %v4099
    %v4101 = vrot.slane %v4100, 1
    %v4102 = vadd.f32 %v4100, %v4101
    %v4103 = vrcp.pop 512.0
    %v4104 = vmul.f32 %v4102, %v4103
    %v4105 = vmul.f32 %v3715, %v3715
    %v4106 = vmul.f32 %v3718, %v3718
    %v4107 = vmul.f32 %v3723, %v3723
    %v4108 = vmul.f32 %v3726, %v3726
    %v4109 = vmul.f32 %v3731, %v3731
    %v4110 = vmul.f32 %v3734, %v3734
    %v4111 = vmul.f32 %v3739, %v3739
    %v4112 = vmul.f32 %v3742, %v3742
    %v4113 = vmul.f32 %v3747, %v3747
    %v4114 = vmul.f32 %v3750, %v3750
    %v4115 = vmul.f32 %v3755, %v3755
    %v4116 = vmul.f32 %v3758, %v3758
    %v4117 = vmul.f32 %v3763, %v3763
    %v4118 = vmul.f32 %v3766, %v3766
    %v4119 = vmul.f32 %v3771, %v3771
    %v4120 = vmul.f32 %v3774, %v3774
    %v4121 = vmul.f32 %v3779, %v3779
    %v4122 = vmul.f32 %v3782, %v3782
    %v4123 = vmul.f32 %v3787, %v3787
    %v4124 = vmul.f32 %v3790, %v3790
    %v4125 = vmul.f32 %v3795, %v3795
    %v4126 = vmul.f32 %v3798, %v3798
    %v4127 = vmul.f32 %v3803, %v3803
    %v4128 = vmul.f32 %v3806, %v3806
    %v4129 = vmul.f32 %v3811, %v3811
    %v4130 = vmul.f32 %v3814, %v3814
    %v4131 = vmul.f32 %v3819, %v3819
    %v4132 = vmul.f32 %v3822, %v3822
    %v4133 = vmul.f32 %v3827, %v3827
    %v4134 = vmul.f32 %v3830, %v3830
    %v4135 = vmul.f32 %v3835, %v3835
    %v4136 = vmul.f32 %v3838, %v3838
    %v4137 = vmul.f32 %v3843, %v3843
    %v4138 = vmul.f32 %v3846, %v3846
    %v4139 = vmul.f32 %v3851, %v3851
    %v4140 = vmul.f32 %v3854, %v3854
    %v4141 = vmul.f32 %v3859, %v3859
    %v4142 = vmul.f32 %v3862, %v3862
    %v4143 = vmul.f32 %v3867, %v3867
    %v4144 = vmul.f32 %v3870, %v3870
    %v4145 = vmul.f32 %v3875, %v3875
    %v4146 = vmul.f32 %v3878, %v3878
    %v4147 = vmul.f32 %v3883, %v3883
    %v4148 = vmul.f32 %v3886, %v3886
    %v4149 = vmul.f32 %v3891, %v3891
    %v4150 = vmul.f32 %v3894, %v3894
    %v4151 = vmul.f32 %v3899, %v3899
    %v4152 = vmul.f32 %v3902, %v3902
    %v4153 = vmul.f32 %v3907, %v3907
    %v4154 = vmul.f32 %v3910, %v3910
    %v4155 = vmul.f32 %v3915, %v3915
    %v4156 = vmul.f32 %v3918, %v3918
    %v4157 = vmul.f32 %v3923, %v3923
    %v4158 = vmul.f32 %v3926, %v3926
    %v4159 = vmul.f32 %v3931, %v3931
    %v4160 = vmul.f32 %v3934, %v3934
    %v4161 = vmul.f32 %v3939, %v3939
    %v4162 = vmul.f32 %v3942, %v3942
    %v4163 = vmul.f32 %v3947, %v3947
    %v4164 = vmul.f32 %v3950, %v3950
    %v4165 = vmul.f32 %v3955, %v3955
    %v4166 = vmul.f32 %v3958, %v3958
    %v4167 = vmul.f32 %v3963, %v3963
    %v4168 = vmul.f32 %v3966, %v3966
    %v4169 = vsel %vm3969, %v4105, 0.0
    %v4170 = vsel %vm3969, %v4106, 0.0
    %v4171 = vadd.f32 %v4169, %v4170
    %v4172 = vsel %vm3969, %v4107, 0.0
    %v4173 = vadd.f32 %v4171, %v4172
    %v4174 = vsel %vm3969, %v4108, 0.0
    %v4175 = vadd.f32 %v4173, %v4174
    %v4176 = vsel %vm3969, %v4109, 0.0
    %v4177 = vadd.f32 %v4175, %v4176
    %v4178 = vsel %vm3969, %v4110, 0.0
    %v4179 = vadd.f32 %v4177, %v4178
    %v4180 = vsel %vm3969, %v4111, 0.0
    %v4181 = vadd.f32 %v4179, %v4180
    %v4182 = vsel %vm3969, %v4112, 0.0
    %v4183 = vadd.f32 %v4181, %v4182
    %v4184 = vsel %vm3969, %v4113, 0.0
    %v4185 = vadd.f32 %v4183, %v4184
    %v4186 = vsel %vm3969, %v4114, 0.0
    %v4187 = vadd.f32 %v4185, %v4186
    %v4188 = vsel %vm3969, %v4115, 0.0
    %v4189 = vadd.f32 %v4187, %v4188
    %v4190 = vsel %vm3969, %v4116, 0.0
    %v4191 = vadd.f32 %v4189, %v4190
    %v4192 = vsel %vm3969, %v4117, 0.0
    %v4193 = vadd.f32 %v4191, %v4192
    %v4194 = vsel %vm3969, %v4118, 0.0
    %v4195 = vadd.f32 %v4193, %v4194
    %v4196 = vsel %vm3969, %v4119, 0.0
    %v4197 = vadd.f32 %v4195, %v4196
    %v4198 = vsel %vm3969, %v4120, 0.0
    %v4199 = vadd.f32 %v4197, %v4198
    %v4200 = vsel %vm3969, %v4121, 0.0
    %v4201 = vadd.f32 %v4199, %v4200
    %v4202 = vsel %vm3969, %v4122, 0.0
    %v4203 = vadd.f32 %v4201, %v4202
    %v4204 = vsel %vm3969, %v4123, 0.0
    %v4205 = vadd.f32 %v4203, %v4204
    %v4206 = vsel %vm3969, %v4124, 0.0
    %v4207 = vadd.f32 %v4205, %v4206
    %v4208 = vsel %vm3969, %v4125, 0.0
    %v4209 = vadd.f32 %v4207, %v4208
    %v4210 = vsel %vm3969, %v4126, 0.0
    %v4211 = vadd.f32 %v4209, %v4210
    %v4212 = vsel %vm3969, %v4127, 0.0
    %v4213 = vadd.f32 %v4211, %v4212
    %v4214 = vsel %vm3969, %v4128, 0.0
    %v4215 = vadd.f32 %v4213, %v4214
    %v4216 = vsel %vm3969, %v4129, 0.0
    %v4217 = vadd.f32 %v4215, %v4216
    %v4218 = vsel %vm3969, %v4130, 0.0
    %v4219 = vadd.f32 %v4217, %v4218
    %v4220 = vsel %vm3969, %v4131, 0.0
    %v4221 = vadd.f32 %v4219, %v4220
    %v4222 = vsel %vm3969, %v4132, 0.0
    %v4223 = vadd.f32 %v4221, %v4222
    %v4224 = vsel %vm3969, %v4133, 0.0
    %v4225 = vadd.f32 %v4223, %v4224
    %v4226 = vsel %vm3969, %v4134, 0.0
    %v4227 = vadd.f32 %v4225, %v4226
    %v4228 = vsel %vm3969, %v4135, 0.0
    %v4229 = vadd.f32 %v4227, %v4228
    %v4230 = vsel %vm3969, %v4136, 0.0
    %v4231 = vadd.f32 %v4229, %v4230
    %v4232 = vsel %vm3969, %v4137, 0.0
    %v4233 = vadd.f32 %v4231, %v4232
    %v4234 = vsel %vm3969, %v4138, 0.0
    %v4235 = vadd.f32 %v4233, %v4234
    %v4236 = vsel %vm3969, %v4139, 0.0
    %v4237 = vadd.f32 %v4235, %v4236
    %v4238 = vsel %vm3969, %v4140, 0.0
    %v4239 = vadd.f32 %v4237, %v4238
    %v4240 = vsel %vm3969, %v4141, 0.0
    %v4241 = vadd.f32 %v4239, %v4240
    %v4242 = vsel %vm3969, %v4142, 0.0
    %v4243 = vadd.f32 %v4241, %v4242
    %v4244 = vsel %vm3969, %v4143, 0.0
    %v4245 = vadd.f32 %v4243, %v4244
    %v4246 = vsel %vm3969, %v4144, 0.0
    %v4247 = vadd.f32 %v4245, %v4246
    %v4248 = vsel %vm3969, %v4145, 0.0
    %v4249 = vadd.f32 %v4247, %v4248
    %v4250 = vsel %vm3969, %v4146, 0.0
    %v4251 = vadd.f32 %v4249, %v4250
    %v4252 = vsel %vm3969, %v4147, 0.0
    %v4253 = vadd.f32 %v4251, %v4252
    %v4254 = vsel %vm3969, %v4148, 0.0
    %v4255 = vadd.f32 %v4253, %v4254
    %v4256 = vsel %vm3969, %v4149, 0.0
    %v4257 = vadd.f32 %v4255, %v4256
    %v4258 = vsel %vm3969, %v4150, 0.0
    %v4259 = vadd.f32 %v4257, %v4258
    %v4260 = vsel %vm3969, %v4151, 0.0
    %v4261 = vadd.f32 %v4259, %v4260
    %v4262 = vsel %vm3969, %v4152, 0.0
    %v4263 = vadd.f32 %v4261, %v4262
    %v4264 = vsel %vm3969, %v4153, 0.0
    %v4265 = vadd.f32 %v4263, %v4264
    %v4266 = vsel %vm3969, %v4154, 0.0
    %v4267 = vadd.f32 %v4265, %v4266
    %v4268 = vsel %vm3969, %v4155, 0.0
    %v4269 = vadd.f32 %v4267, %v4268
    %v4270 = vsel %vm3969, %v4156, 0.0
    %v4271 = vadd.f32 %v4269, %v4270
    %v4272 = vsel %vm3969, %v4157, 0.0
    %v4273 = vadd.f32 %v4271, %v4272
    %v4274 = vsel %vm3969, %v4158, 0.0
    %v4275 = vadd.f32 %v4273, %v4274
    %v4276 = vsel %vm3969, %v4159, 0.0
    %v4277 = vadd.f32 %v4275, %v4276
    %v4278 = vsel %vm3969, %v4160, 0.0
    %v4279 = vadd.f32 %v4277, %v4278
    %v4280 = vsel %vm3969, %v4161, 0.0
    %v4281 = vadd.f32 %v4279, %v4280
    %v4282 = vsel %vm3969, %v4162, 0.0
    %v4283 = vadd.f32 %v4281, %v4282
    %v4284 = vsel %vm3969, %v4163, 0.0
    %v4285 = vadd.f32 %v4283, %v4284
    %v4286 = vsel %vm3969, %v4164, 0.0
    %v4287 = vadd.f32 %v4285, %v4286
    %v4288 = vsel %vm3969, %v4165, 0.0
    %v4289 = vadd.f32 %v4287, %v4288
    %v4290 = vsel %vm3969, %v4166, 0.0
    %v4291 = vadd.f32 %v4289, %v4290
    %v4292 = vsel %vm3969, %v4167, 0.0
    %v4293 = vadd.f32 %v4291, %v4292
    %v4294 = vsel %vm3969, %v4168, 0.0
    %v4295 = vadd.f32 %v4293, %v4294
    %v4296 = vrot.slane %v4295, 4
    %v4297 = vadd.f32 %v4295, %v4296
    %v4298 = vrot.slane %v4297, 2
    %v4299 = vadd.f32 %v4297, %v4298
    %v4300 = vrot.slane %v4299, 1
    %v4301 = vadd.f32 %v4299, %v4300
    %v4302 = vmul.f32 %v4301, %v4103
    %v4303 = vmul.f32 %v4104, %v4104
    %v4304 = vsub.f32 %v4302, %v4303
    %v4305 = vld [vmem:[%s4] sm:$0x1]
    %v4306 = vadd.f32 %v4304, 1e-05
    %v4307 = vrsqrt.pop %v4306
    %v4308 = vmul.f32 %v4305, %v4307
    %v4309 = vld [vmem:[%s5] sm:$0x1]
    %v4310 = vmul.f32 %v4104, %v4308
    %v4311 = vsub.f32 %v4309, %v4310
    %v4313 = vlaneseq
    %v4314 = vshrl.u32 %v4313, 7
    %v4315 = vsub.s32 0, %v4314
    %v4316 = vrot.slane %v4308, %v4315
    %v4318 = vmul.f32 %v3715, %v4316
    %v4319 = vmul.f32 %v3718, %v4316
    %v4320 = vmul.f32 %v3723, %v4316
    %v4321 = vmul.f32 %v3726, %v4316
    %v4322 = vmul.f32 %v3731, %v4316
    %v4323 = vmul.f32 %v3734, %v4316
    %v4324 = vmul.f32 %v3739, %v4316
    %v4325 = vmul.f32 %v3742, %v4316
    %v4326 = vmul.f32 %v3747, %v4316
    %v4327 = vmul.f32 %v3750, %v4316
    %v4328 = vmul.f32 %v3755, %v4316
    %v4329 = vmul.f32 %v3758, %v4316
    %v4330 = vmul.f32 %v3763, %v4316
    %v4331 = vmul.f32 %v3766, %v4316
    %v4332 = vmul.f32 %v3771, %v4316
    %v4333 = vmul.f32 %v3774, %v4316
    %v4334 = vmul.f32 %v3779, %v4316
    %v4335 = vmul.f32 %v3782, %v4316
    %v4336 = vmul.f32 %v3787, %v4316
    %v4337 = vmul.f32 %v3790, %v4316
    %v4338 = vmul.f32 %v3795, %v4316
    %v4339 = vmul.f32 %v3798, %v4316
    %v4340 = vmul.f32 %v3803, %v4316
    %v4341 = vmul.f32 %v3806, %v4316
    %v4342 = vmul.f32 %v3811, %v4316
    %v4343 = vmul.f32 %v3814, %v4316
    %v4344 = vmul.f32 %v3819, %v4316
    %v4345 = vmul.f32 %v3822, %v4316
    %v4346 = vmul.f32 %v3827, %v4316
    %v4347 = vmul.f32 %v3830, %v4316
    %v4348 = vmul.f32 %v3835, %v4316
    %v4349 = vmul.f32 %v3838, %v4316
    %v4350 = vmul.f32 %v3843, %v4316
    %v4351 = vmul.f32 %v3846, %v4316
    %v4352 = vmul.f32 %v3851, %v4316
    %v4353 = vmul.f32 %v3854, %v4316
    %v4354 = vmul.f32 %v3859, %v4316
    %v4355 = vmul.f32 %v3862, %v4316
    %v4356 = vmul.f32 %v3867, %v4316
    %v4357 = vmul.f32 %v3870, %v4316
    %v4358 = vmul.f32 %v3875, %v4316
    %v4359 = vmul.f32 %v3878, %v4316
    %v4360 = vmul.f32 %v3883, %v4316
    %v4361 = vmul.f32 %v3886, %v4316
    %v4362 = vmul.f32 %v3891, %v4316
    %v4363 = vmul.f32 %v3894, %v4316
    %v4364 = vmul.f32 %v3899, %v4316
    %v4365 = vmul.f32 %v3902, %v4316
    %v4366 = vmul.f32 %v3907, %v4316
    %v4367 = vmul.f32 %v3910, %v4316
    %v4368 = vmul.f32 %v3915, %v4316
    %v4369 = vmul.f32 %v3918, %v4316
    %v4370 = vmul.f32 %v3923, %v4316
    %v4371 = vmul.f32 %v3926, %v4316
    %v4372 = vmul.f32 %v3931, %v4316
    %v4373 = vmul.f32 %v3934, %v4316
    %v4374 = vmul.f32 %v3939, %v4316
    %v4375 = vmul.f32 %v3942, %v4316
    %v4376 = vmul.f32 %v3947, %v4316
    %v4377 = vmul.f32 %v3950, %v4316
    %v4378 = vmul.f32 %v3955, %v4316
    %v4379 = vmul.f32 %v3958, %v4316
    %v4380 = vmul.f32 %v3963, %v4316
    %v4381 = vmul.f32 %v3966, %v4316
    %v4383 = vlaneseq
    %v4384 = vshrl.u32 %v4383, 7
    %v4385 = vsub.s32 0, %v4384
    %v4386 = vrot.slane %v4311, %v4385
    %v4388 = vadd.f32 %v4318, %v4386
    %v4389 = vadd.f32 %v4319, %v4386
    %v4390 = vadd.f32 %v4320, %v4386
    %v4391 = vadd.f32 %v4321, %v4386
    %v4392 = vadd.f32 %v4322, %v4386
    %v4393 = vadd.f32 %v4323, %v4386
    %v4394 = vadd.f32 %v4324, %v4386
    %v4395 = vadd.f32 %v4325, %v4386
    %v4396 = vadd.f32 %v4326, %v4386
    %v4397 = vadd.f32 %v4327, %v4386
    %v4398 = vadd.f32 %v4328, %v4386
    %v4399 = vadd.f32 %v4329, %v4386
    %v4400 = vadd.f32 %v4330, %v4386
    %v4401 = vadd.f32 %v4331, %v4386
    %v4402 = vadd.f32 %v4332, %v4386
    %v4403 = vadd.f32 %v4333, %v4386
    %v4404 = vadd.f32 %v4334, %v4386
    %v4405 = vadd.f32 %v4335, %v4386
    %v4406 = vadd.f32 %v4336, %v4386
    %v4407 = vadd.f32 %v4337, %v4386
    %v4408 = vadd.f32 %v4338, %v4386
    %v4409 = vadd.f32 %v4339, %v4386
    %v4410 = vadd.f32 %v4340, %v4386
    %v4411 = vadd.f32 %v4341, %v4386
    %v4412 = vadd.f32 %v4342, %v4386
    %v4413 = vadd.f32 %v4343, %v4386
    %v4414 = vadd.f32 %v4344, %v4386
    %v4415 = vadd.f32 %v4345, %v4386
    %v4416 = vadd.f32 %v4346, %v4386
    %v4417 = vadd.f32 %v4347, %v4386
    %v4418 = vadd.f32 %v4348, %v4386
    %v4419 = vadd.f32 %v4349, %v4386
    %v4420 = vadd.f32 %v4350, %v4386
    %v4421 = vadd.f32 %v4351, %v4386
    %v4422 = vadd.f32 %v4352, %v4386
    %v4423 = vadd.f32 %v4353, %v4386
    %v4424 = vadd.f32 %v4354, %v4386
    %v4425 = vadd.f32 %v4355, %v4386
    %v4426 = vadd.f32 %v4356, %v4386
    %v4427 = vadd.f32 %v4357, %v4386
    %v4428 = vadd.f32 %v4358, %v4386
    %v4429 = vadd.f32 %v4359, %v4386
    %v4430 = vadd.f32 %v4360, %v4386
    %v4431 = vadd.f32 %v4361, %v4386
    %v4432 = vadd.f32 %v4362, %v4386
    %v4433 = vadd.f32 %v4363, %v4386
    %v4434 = vadd.f32 %v4364, %v4386
    %v4435 = vadd.f32 %v4365, %v4386
    %v4436 = vadd.f32 %v4366, %v4386
    %v4437 = vadd.f32 %v4367, %v4386
    %v4438 = vadd.f32 %v4368, %v4386
    %v4439 = vadd.f32 %v4369, %v4386
    %v4440 = vadd.f32 %v4370, %v4386
    %v4441 = vadd.f32 %v4371, %v4386
    %v4442 = vadd.f32 %v4372, %v4386
    %v4443 = vadd.f32 %v4373, %v4386
    %v4444 = vadd.f32 %v4374, %v4386
    %v4445 = vadd.f32 %v4375, %v4386
    %v4446 = vadd.f32 %v4376, %v4386
    %v4447 = vadd.f32 %v4377, %v4386
    %v4448 = vadd.f32 %v4378, %v4386
    %v4449 = vadd.f32 %v4379, %v4386
    %v4450 = vadd.f32 %v4380, %v4386
    %v4451 = vadd.f32 %v4381, %v4386
    %v4452 = vmax.f32 %v4388, 0.0
    %v4453 = vmax.f32 %v4389, 0.0
    %v4454 = vmax.f32 %v4390, 0.0
    %v4455 = vmax.f32 %v4391, 0.0
    %v4456 = vmax.f32 %v4392, 0.0
    %v4457 = vmax.f32 %v4393, 0.0
    %v4458 = vmax.f32 %v4394, 0.0
    %v4459 = vmax.f32 %v4395, 0.0
    %v4460 = vmax.f32 %v4396, 0.0
    %v4461 = vmax.f32 %v4397, 0.0
    %v4462 = vmax.f32 %v4398, 0.0
    %v4463 = vmax.f32 %v4399, 0.0
    %v4464 = vmax.f32 %v4400, 0.0
    %v4465 = vmax.f32 %v4401, 0.0
    %v4466 = vmax.f32 %v4402, 0.0
    %v4467 = vmax.f32 %v4403, 0.0
    %v4468 = vmax.f32 %v4404, 0.0
    %v4469 = vmax.f32 %v4405, 0.0
    %v4470 = vmax.f32 %v4406, 0.0
    %v4471 = vmax.f32 %v4407, 0.0
    %v4472 = vmax.f32 %v4408, 0.0
    %v4473 = vmax.f32 %v4409, 0.0
    %v4474 = vmax.f32 %v4410, 0.0
    %v4475 = vmax.f32 %v4411, 0.0
    %v4476 = vmax.f32 %v4412, 0.0
    %v4477 = vmax.f32 %v4413, 0.0
    %v4478 = vmax.f32 %v4414, 0.0
    %v4479 = vmax.f32 %v4415, 0.0
    %v4480 = vmax.f32 %v4416, 0.0
    %v4481 = vmax.f32 %v4417, 0.0
    %v4482 = vmax.f32 %v4418, 0.0
    %v4483 = vmax.f32 %v4419, 0.0
    %v4484 = vmax.f32 %v4420, 0.0
    %v4485 = vmax.f32 %v4421, 0.0
    %v4486 = vmax.f32 %v4422, 0.0
    %v4487 = vmax.f32 %v4423, 0.0
    %v4488 = vmax.f32 %v4424, 0.0
    %v4489 = vmax.f32 %v4425, 0.0
    %v4490 = vmax.f32 %v4426, 0.0
    %v4491 = vmax.f32 %v4427, 0.0
    %v4492 = vmax.f32 %v4428, 0.0
    %v4493 = vmax.f32 %v4429, 0.0
    %v4494 = vmax.f32 %v4430, 0.0
    %v4495 = vmax.f32 %v4431, 0.0
    %v4496 = vmax.f32 %v4432, 0.0
    %v4497 = vmax.f32 %v4433, 0.0
    %v4498 = vmax.f32 %v4434, 0.0
    %v4499 = vmax.f32 %v4435, 0.0
    %v4500 = vmax.f32 %v4436, 0.0
    %v4501 = vmax.f32 %v4437, 0.0
    %v4502 = vmax.f32 %v4438, 0.0
    %v4503 = vmax.f32 %v4439, 0.0
    %v4504 = vmax.f32 %v4440, 0.0
    %v4505 = vmax.f32 %v4441, 0.0
    %v4506 = vmax.f32 %v4442, 0.0
    %v4507 = vmax.f32 %v4443, 0.0
    %v4508 = vmax.f32 %v4444, 0.0
    %v4509 = vmax.f32 %v4445, 0.0
    %v4510 = vmax.f32 %v4446, 0.0
    %v4511 = vmax.f32 %v4447, 0.0
    %v4512 = vmax.f32 %v4448, 0.0
    %v4513 = vmax.f32 %v4449, 0.0
    %v4514 = vmax.f32 %v4450, 0.0
    %v4515 = vmax.f32 %v4451, 0.0
    %4516 = vst.msk [vmem:[#allocation3] sm:$0xff] %vm3969, 0.0
    %4517 = vst.msk [vmem:[#allocation3 + $0x8] sm:$0xff] %vm3969, 0.0
    %vm4518 = vcmask 58368
    %4519 = vst.msk [vmem:[#allocation3 + $0x10] sm:$0x3] %vm4518, 0.0
    %4520 = vst.msk [vmem:[#allocation3 + $0x1b0] sm:$0xff] %vm3969, 0.0
    %4521 = vst.msk [vmem:[#allocation3 + $0x1b8] sm:$0xff] %vm3969, 0.0
    %4522 = vst.msk [vmem:[#allocation3 + $0x1c0] sm:$0x3] %vm4518, 0.0
    %s4523 = scalar_lea.vmem [#allocation3], 408
    %4524 = vst.msk [vmem:[%s4523] sm:$0xff] %vm3969, 0.0
    %4525 = vst.msk [vmem:[%s4523 + $0x8] sm:$0xff] %vm3969, 0.0
    %4526 = vst.msk [vmem:[%s4523 + $0x10] sm:$0x3] %vm4518, 0.0
    %4527 = vst.msk [vmem:[%s4523 + $0x1b0] sm:$0xff] %vm3969, 0.0
    %4528 = vst.msk [vmem:[%s4523 + $0x1b8] sm:$0xff] %vm3969, 0.0
    %4529 = vst.msk [vmem:[%s4523 + $0x1c0] sm:$0x3] %vm4518, 0.0
    %vm4530 = vcmask 57344
    %4531 = vst.msk [vmem:[#allocation3] sm:$0x1] %vm4530, 0.0
    %4532 = vst.msk [vmem:[#allocation3 + $0x18] sm:$0x1] %vm4530, 0.0
    %4533 = vst.msk [vmem:[#allocation3 + $0x30] sm:$0x1] %vm4530, 0.0
    %4534 = vst.msk [vmem:[#allocation3 + $0x48] sm:$0x1] %vm4530, 0.0
    %4535 = vst.msk [vmem:[#allocation3 + $0x60] sm:$0x1] %vm4530, 0.0
    %4536 = vst.msk [vmem:[#allocation3 + $0x78] sm:$0x1] %vm4530, 0.0
    %4537 = vst.msk [vmem:[#allocation3 + $0x90] sm:$0x1] %vm4530, 0.0
    %4538 = vst.msk [vmem:[#allocation3 + $0xa8] sm:$0x1] %vm4530, 0.0
    %4539 = vst.msk [vmem:[#allocation3 + $0xc0] sm:$0x1] %vm4530, 0.0
    %4540 = vst.msk [vmem:[#allocation3 + $0xd8] sm:$0x1] %vm4530, 0.0
    %4541 = vst.msk [vmem:[#allocation3 + $0xf0] sm:$0x1] %vm4530, 0.0
    %4542 = vst.msk [vmem:[#allocation3 + $0x108] sm:$0x1] %vm4530, 0.0
    %4543 = vst.msk [vmem:[#allocation3 + $0x120] sm:$0x1] %vm4530, 0.0
    %4544 = vst.msk [vmem:[#allocation3 + $0x138] sm:$0x1] %vm4530, 0.0
    %4545 = vst.msk [vmem:[#allocation3 + $0x150] sm:$0x1] %vm4530, 0.0
    %4546 = vst.msk [vmem:[#allocation3 + $0x168] sm:$0x1] %vm4530, 0.0
    %4547 = vst.msk [vmem:[#allocation3 + $0x180] sm:$0x1] %vm4530, 0.0
    %4548 = vst.msk [vmem:[#allocation3 + $0x198] sm:$0x1] %vm4530, 0.0
    %4549 = vst.msk [vmem:[#allocation3 + $0x1b0] sm:$0x1] %vm4530, 0.0
    %4550 = vst.msk [vmem:[#allocation3 + $0x1c8] sm:$0x1] %vm4530, 0.0
    %4551 = vst.msk [vmem:[#allocation3 + $0x1e0] sm:$0x1] %vm4530, 0.0
    %4552 = vst.msk [vmem:[#allocation3 + $0x1f8] sm:$0x1] %vm4530, 0.0
    %4553 = vst.msk [vmem:[#allocation3 + $0x210] sm:$0x1] %vm4530, 0.0
    %4554 = vst.msk [vmem:[#allocation3 + $0x228] sm:$0x1] %vm4530, 0.0
    %4555 = vst.msk [vmem:[#allocation3 + $0x240] sm:$0x1] %vm4530, 0.0
    %4556 = vst.msk [vmem:[#allocation3 + $0x258] sm:$0x1] %vm4530, 0.0
    %4557 = vst.msk [vmem:[#allocation3 + $0x270] sm:$0x1] %vm4530, 0.0
    %4558 = vst.msk [vmem:[#allocation3 + $0x288] sm:$0x1] %vm4530, 0.0
    %4559 = vst.msk [vmem:[#allocation3 + $0x2a0] sm:$0x1] %vm4530, 0.0
    %4560 = vst.msk [vmem:[#allocation3 + $0x2b8] sm:$0x1] %vm4530, 0.0
    %4561 = vst.msk [vmem:[#allocation3 + $0x2d0] sm:$0x1] %vm4530, 0.0
    %4562 = vst.msk [vmem:[#allocation3 + $0x2e8] sm:$0x1] %vm4530, 0.0
    %4563 = vst.msk [vmem:[#allocation3 + $0x300] sm:$0x1] %vm4530, 0.0
    %4564 = vst.msk [vmem:[#allocation3 + $0x318] sm:$0x1] %vm4530, 0.0
    %4565 = vst.msk [vmem:[#allocation3 + $0x330] sm:$0x1] %vm4530, 0.0
    %4566 = vst.msk [vmem:[#allocation3 + $0x348] sm:$0x1] %vm4530, 0.0
    %4567 = vst.msk [vmem:[#allocation3 + $0x11] sm:$0x1] %vm4530, 0.0
    %4568 = vst.msk [vmem:[#allocation3 + $0x29] sm:$0x1] %vm4530, 0.0
    %4569 = vst.msk [vmem:[#allocation3 + $0x41] sm:$0x1] %vm4530, 0.0
    %4570 = vst.msk [vmem:[#allocation3 + $0x59] sm:$0x1] %vm4530, 0.0
    %4571 = vst.msk [vmem:[#allocation3 + $0x71] sm:$0x1] %vm4530, 0.0
    %4572 = vst.msk [vmem:[#allocation3 + $0x89] sm:$0x1] %vm4530, 0.0
    %4573 = vst.msk [vmem:[#allocation3 + $0xa1] sm:$0x1] %vm4530, 0.0
    %4574 = vst.msk [vmem:[#allocation3 + $0xb9] sm:$0x1] %vm4530, 0.0
    %4575 = vst.msk [vmem:[#allocation3 + $0xd1] sm:$0x1] %vm4530, 0.0
    %4576 = vst.msk [vmem:[#allocation3 + $0xe9] sm:$0x1] %vm4530, 0.0
    %4577 = vst.msk [vmem:[#allocation3 + $0x101] sm:$0x1] %vm4530, 0.0
    %4578 = vst.msk [vmem:[#allocation3 + $0x119] sm:$0x1] %vm4530, 0.0
    %4579 = vst.msk [vmem:[#allocation3 + $0x131] sm:$0x1] %vm4530, 0.0
    %4580 = vst.msk [vmem:[#allocation3 + $0x149] sm:$0x1] %vm4530, 0.0
    %4581 = vst.msk [vmem:[#allocation3 + $0x161] sm:$0x1] %vm4530, 0.0
    %4582 = vst.msk [vmem:[#allocation3 + $0x179] sm:$0x1] %vm4530, 0.0
    %4583 = vst.msk [vmem:[#allocation3 + $0x191] sm:$0x1] %vm4530, 0.0
    %4584 = vst.msk [vmem:[#allocation3 + $0x1a9] sm:$0x1] %vm4530, 0.0
    %4585 = vst.msk [vmem:[#allocation3 + $0x1c1] sm:$0x1] %vm4530, 0.0
    %4586 = vst.msk [vmem:[#allocation3 + $0x1d9] sm:$0x1] %vm4530, 0.0
    %4587 = vst.msk [vmem:[#allocation3 + $0x1f1] sm:$0x1] %vm4530, 0.0
    %4588 = vst.msk [vmem:[#allocation3 + $0x209] sm:$0x1] %vm4530, 0.0
    %4589 = vst.msk [vmem:[#allocation3 + $0x221] sm:$0x1] %vm4530, 0.0
    %4590 = vst.msk [vmem:[#allocation3 + $0x239] sm:$0x1] %vm4530, 0.0
    %4591 = vst.msk [vmem:[#allocation3 + $0x251] sm:$0x1] %vm4530, 0.0
    %4592 = vst.msk [vmem:[#allocation3 + $0x269] sm:$0x1] %vm4530, 0.0
    %4593 = vst.msk [vmem:[#allocation3 + $0x281] sm:$0x1] %vm4530, 0.0
    %4594 = vst.msk [vmem:[#allocation3 + $0x299] sm:$0x1] %vm4530, 0.0
    %4595 = vst.msk [vmem:[#allocation3 + $0x2b1] sm:$0x1] %vm4530, 0.0
    %4596 = vst.msk [vmem:[#allocation3 + $0x2c9] sm:$0x1] %vm4530, 0.0
    %4597 = vst.msk [vmem:[#allocation3 + $0x2e1] sm:$0x1] %vm4530, 0.0
    %4598 = vst.msk [vmem:[#allocation3 + $0x2f9] sm:$0x1] %vm4530, 0.0
    %4599 = vst.msk [vmem:[#allocation3 + $0x311] sm:$0x1] %vm4530, 0.0
    %4600 = vst.msk [vmem:[#allocation3 + $0x329] sm:$0x1] %vm4530, 0.0
    %4601 = vst.msk [vmem:[#allocation3 + $0x341] sm:$0x1] %vm4530, 0.0
    %4602 = vst.msk [vmem:[#allocation3 + $0x359] sm:$0x1] %vm4530, 0.0
    %s4603 = scalar_lea.vmem [#allocation3], 24
    %4604 = vst.msk [vmem:[%s4603 + $0x1] sm:$0xff] %vm3969, %v4452
    %4605 = vst.msk [vmem:[%s4603 + $0x9] sm:$0xff] %vm3969, %v4453
    %4606 = vst.msk [vmem:[%s4603 + $0x19] sm:$0xff] %vm3969, %v4454
    %4607 = vst.msk [vmem:[%s4603 + $0x21] sm:$0xff] %vm3969, %v4455
    %4608 = vst.msk [vmem:[%s4603 + $0x31] sm:$0xff] %vm3969, %v4456
    %4609 = vst.msk [vmem:[%s4603 + $0x39] sm:$0xff] %vm3969, %v4457
    %4610 = vst.msk [vmem:[%s4603 + $0x49] sm:$0xff] %vm3969, %v4458
    %4611 = vst.msk [vmem:[%s4603 + $0x51] sm:$0xff] %vm3969, %v4459
    %4612 = vst.msk [vmem:[%s4603 + $0x61] sm:$0xff] %vm3969, %v4460
    %4613 = vst.msk [vmem:[%s4603 + $0x69] sm:$0xff] %vm3969, %v4461
    %4614 = vst.msk [vmem:[%s4603 + $0x79] sm:$0xff] %vm3969, %v4462
    %4615 = vst.msk [vmem:[%s4603 + $0x81] sm:$0xff] %vm3969, %v4463
    %4616 = vst.msk [vmem:[%s4603 + $0x91] sm:$0xff] %vm3969, %v4464
    %4617 = vst.msk [vmem:[%s4603 + $0x99] sm:$0xff] %vm3969, %v4465
    %4618 = vst.msk [vmem:[%s4603 + $0xa9] sm:$0xff] %vm3969, %v4466
    %4619 = vst.msk [vmem:[%s4603 + $0xb1] sm:$0xff] %vm3969, %v4467
    %4620 = vst.msk [vmem:[%s4603 + $0xc1] sm:$0xff] %vm3969, %v4468
    %4621 = vst.msk [vmem:[%s4603 + $0xc9] sm:$0xff] %vm3969, %v4469
    %4622 = vst.msk [vmem:[%s4603 + $0xd9] sm:$0xff] %vm3969, %v4470
    %4623 = vst.msk [vmem:[%s4603 + $0xe1] sm:$0xff] %vm3969, %v4471
    %4624 = vst.msk [vmem:[%s4603 + $0xf1] sm:$0xff] %vm3969, %v4472
    %4625 = vst.msk [vmem:[%s4603 + $0xf9] sm:$0xff] %vm3969, %v4473
    %4626 = vst.msk [vmem:[%s4603 + $0x109] sm:$0xff] %vm3969, %v4474
    %4627 = vst.msk [vmem:[%s4603 + $0x111] sm:$0xff] %vm3969, %v4475
    %4628 = vst.msk [vmem:[%s4603 + $0x121] sm:$0xff] %vm3969, %v4476
    %4629 = vst.msk [vmem:[%s4603 + $0x129] sm:$0xff] %vm3969, %v4477
    %4630 = vst.msk [vmem:[%s4603 + $0x139] sm:$0xff] %vm3969, %v4478
    %4631 = vst.msk [vmem:[%s4603 + $0x141] sm:$0xff] %vm3969, %v4479
    %4632 = vst.msk [vmem:[%s4603 + $0x151] sm:$0xff] %vm3969, %v4480
    %4633 = vst.msk [vmem:[%s4603 + $0x159] sm:$0xff] %vm3969, %v4481
    %4634 = vst.msk [vmem:[%s4603 + $0x169] sm:$0xff] %vm3969, %v4482
    %4635 = vst.msk [vmem:[%s4603 + $0x171] sm:$0xff] %vm3969, %v4483
    %4636 = vst.msk [vmem:[%s4603 + $0x1b1] sm:$0xff] %vm3969, %v4484
    %4637 = vst.msk [vmem:[%s4603 + $0x1b9] sm:$0xff] %vm3969, %v4485
    %4638 = vst.msk [vmem:[%s4603 + $0x1c9] sm:$0xff] %vm3969, %v4486
    %4639 = vst.msk [vmem:[%s4603 + $0x1d1] sm:$0xff] %vm3969, %v4487
    %4640 = vst.msk [vmem:[%s4603 + $0x1e1] sm:$0xff] %vm3969, %v4488
    %4641 = vst.msk [vmem:[%s4603 + $0x1e9] sm:$0xff] %vm3969, %v4489
    %4642 = vst.msk [vmem:[%s4603 + $0x1f9] sm:$0xff] %vm3969, %v4490
    %4643 = vst.msk [vmem:[%s4603 + $0x201] sm:$0xff] %vm3969, %v4491
    %4644 = vst.msk [vmem:[%s4603 + $0x211] sm:$0xff] %vm3969, %v4492
    %4645 = vst.msk [vmem:[%s4603 + $0x219] sm:$0xff] %vm3969, %v4493
    %4646 = vst.msk [vmem:[%s4603 + $0x229] sm:$0xff] %vm3969, %v4494
    %4647 = vst.msk [vmem:[%s4603 + $0x231] sm:$0xff] %vm3969, %v4495
    %4648 = vst.msk [vmem:[%s4603 + $0x241] sm:$0xff] %vm3969, %v4496
    %4649 = vst.msk [vmem:[%s4603 + $0x249] sm:$0xff] %vm3969, %v4497
    %4650 = vst.msk [vmem:[%s4603 + $0x259] sm:$0xff] %vm3969, %v4498
    %4651 = vst.msk [vmem:[%s4603 + $0x261] sm:$0xff] %vm3969, %v4499
    %4652 = vst.msk [vmem:[%s4603 + $0x271] sm:$0xff] %vm3969, %v4500
    %4653 = vst.msk [vmem:[%s4603 + $0x279] sm:$0xff] %vm3969, %v4501
    %4654 = vst.msk [vmem:[%s4603 + $0x289] sm:$0xff] %vm3969, %v4502
    %4655 = vst.msk [vmem:[%s4603 + $0x291] sm:$0xff] %vm3969, %v4503
    %4656 = vst.msk [vmem:[%s4603 + $0x2a1] sm:$0xff] %vm3969, %v4504
    %4657 = vst.msk [vmem:[%s4603 + $0x2a9] sm:$0xff] %vm3969, %v4505
    %4658 = vst.msk [vmem:[%s4603 + $0x2b9] sm:$0xff] %vm3969, %v4506
    %4659 = vst.msk [vmem:[%s4603 + $0x2c1] sm:$0xff] %vm3969, %v4507
    %4660 = vst.msk [vmem:[%s4603 + $0x2d1] sm:$0xff] %vm3969, %v4508
    %4661 = vst.msk [vmem:[%s4603 + $0x2d9] sm:$0xff] %vm3969, %v4509
    %4662 = vst.msk [vmem:[%s4603 + $0x2e9] sm:$0xff] %vm3969, %v4510
    %4663 = vst.msk [vmem:[%s4603 + $0x2f1] sm:$0xff] %vm3969, %v4511
    %4664 = vst.msk [vmem:[%s4603 + $0x301] sm:$0xff] %vm3969, %v4512
    %4665 = vst.msk [vmem:[%s4603 + $0x309] sm:$0xff] %vm3969, %v4513
    %4666 = vst.msk [vmem:[%s4603 + $0x319] sm:$0xff] %vm3969, %v4514
    %4667 = vst.msk [vmem:[%s4603 + $0x321] sm:$0xff] %vm3969, %v4515
    %v4668 = vld [vmem:[#allocation3] sm:$0xff]
    %v4669 = vld [vmem:[#allocation3 + $0x8] sm:$0xff]
    %v4670 = vld [vmem:[#allocation3 + $0x18] sm:$0xff]
    %v4671 = vld [vmem:[#allocation3 + $0x20] sm:$0xff]
    %v4672 = vld [vmem:[#allocation3 + $0x30] sm:$0xff]
    %v4673 = vld [vmem:[#allocation3 + $0x38] sm:$0xff]
    %v4674 = vld [vmem:[#allocation3 + $0x48] sm:$0xff]
    %v4675 = vld [vmem:[#allocation3 + $0x50] sm:$0xff]
    %v4676 = vld [vmem:[#allocation3 + $0x60] sm:$0xff]
    %v4677 = vld [vmem:[#allocation3 + $0x68] sm:$0xff]
    %v4678 = vld [vmem:[#allocation3 + $0x78] sm:$0xff]
    %v4679 = vld [vmem:[#allocation3 + $0x80] sm:$0xff]
    %v4680 = vld [vmem:[#allocation3 + $0x90] sm:$0xff]
    %v4681 = vld [vmem:[#allocation3 + $0x98] sm:$0xff]
    %v4682 = vld [vmem:[#allocation3 + $0xa8] sm:$0xff]
    %v4683 = vld [vmem:[#allocation3 + $0xb0] sm:$0xff]
    %v4684 = vld [vmem:[#allocation3 + $0xc0] sm:$0xff]
    %v4685 = vld [vmem:[#allocation3 + $0xc8] sm:$0xff]
    %v4686 = vld [vmem:[#allocation3 + $0xd8] sm:$0xff]
    %v4687 = vld [vmem:[#allocation3 + $0xe0] sm:$0xff]
    %v4688 = vld [vmem:[#allocation3 + $0xf0] sm:$0xff]
    %v4689 = vld [vmem:[#allocation3 + $0xf8] sm:$0xff]
    %v4690 = vld [vmem:[#allocation3 + $0x108] sm:$0xff]
    %v4691 = vld [vmem:[#allocation3 + $0x110] sm:$0xff]
    %v4692 = vld [vmem:[#allocation3 + $0x120] sm:$0xff]
    %v4693 = vld [vmem:[#allocation3 + $0x128] sm:$0xff]
    %v4694 = vld [vmem:[#allocation3 + $0x138] sm:$0xff]
    %v4695 = vld [vmem:[#allocation3 + $0x140] sm:$0xff]
    %v4696 = vld [vmem:[#allocation3 + $0x150] sm:$0xff]
    %v4697 = vld [vmem:[#allocation3 + $0x158] sm:$0xff]
    %v4698 = vld [vmem:[#allocation3 + $0x168] sm:$0xff]
    %v4699 = vld [vmem:[#allocation3 + $0x170] sm:$0xff]
    %v4700 = vld [vmem:[#allocation3 + $0x1b0] sm:$0xff]
    %v4701 = vld [vmem:[#allocation3 + $0x1b8] sm:$0xff]
    %v4702 = vld [vmem:[#allocation3 + $0x1c8] sm:$0xff]
    %v4703 = vld [vmem:[#allocation3 + $0x1d0] sm:$0xff]
    %v4704 = vld [vmem:[#allocation3 + $0x1e0] sm:$0xff]
    %v4705 = vld [vmem:[#allocation3 + $0x1e8] sm:$0xff]
    %v4706 = vld [vmem:[#allocation3 + $0x1f8] sm:$0xff]
    %v4707 = vld [vmem:[#allocation3 + $0x200] sm:$0xff]
    %v4708 = vld [vmem:[#allocation3 + $0x210] sm:$0xff]
    %v4709 = vld [vmem:[#allocation3 + $0x218] sm:$0xff]
    %v4710 = vld [vmem:[#allocation3 + $0x228] sm:$0xff]
    %v4711 = vld [vmem:[#allocation3 + $0x230] sm:$0xff]
    %v4712 = vld [vmem:[#allocation3 + $0x240] sm:$0xff]
    %v4713 = vld [vmem:[#allocation3 + $0x248] sm:$0xff]
    %v4714 = vld [vmem:[#allocation3 + $0x258] sm:$0xff]
    %v4715 = vld [vmem:[#allocation3 + $0x260] sm:$0xff]
    %v4716 = vld [vmem:[#allocation3 + $0x270] sm:$0xff]
    %v4717 = vld [vmem:[#allocation3 + $0x278] sm:$0xff]
    %v4718 = vld [vmem:[#allocation3 + $0x288] sm:$0xff]
    %v4719 = vld [vmem:[#allocation3 + $0x290] sm:$0xff]
    %v4720 = vld [vmem:[#allocation3 + $0x2a0] sm:$0xff]
    %v4721 = vld [vmem:[#allocation3 + $0x2a8] sm:$0xff]
    %v4722 = vld [vmem:[#allocation3 + $0x2b8] sm:$0xff]
    %v4723 = vld [vmem:[#allocation3 + $0x2c0] sm:$0xff]
    %v4724 = vld [vmem:[#allocation3 + $0x2d0] sm:$0xff]
    %v4725 = vld [vmem:[#allocation3 + $0x2d8] sm:$0xff]
    %v4726 = vld [vmem:[#allocation3 + $0x2e8] sm:$0xff]
    %v4727 = vld [vmem:[#allocation3 + $0x2f0] sm:$0xff]
    %v4728 = vld [vmem:[#allocation3 + $0x300] sm:$0xff]
    %v4729 = vld [vmem:[#allocation3 + $0x308] sm:$0xff]
    %v4730 = vld [vmem:[#allocation3 + $0x318] sm:$0xff]
    %v4731 = vld [vmem:[#allocation3 + $0x320] sm:$0xff]
    %4732 = vst.msk [vmem:[#allocation5] sm:$0xff] %vm3969, %v4668
    %4733 = vst.msk [vmem:[#allocation5 + $0x8] sm:$0xff] %vm3969, %v4669
    %4734 = vst.msk [vmem:[#allocation5 + $0x10] sm:$0xff] %vm3969, %v4670
    %4735 = vst.msk [vmem:[#allocation5 + $0x18] sm:$0xff] %vm3969, %v4671
    %4736 = vst.msk [vmem:[#allocation5 + $0x20] sm:$0xff] %vm3969, %v4672
    %4737 = vst.msk [vmem:[#allocation5 + $0x28] sm:$0xff] %vm3969, %v4673
    %4738 = vst.msk [vmem:[#allocation5 + $0x30] sm:$0xff] %vm3969, %v4674
    %4739 = vst.msk [vmem:[#allocation5 + $0x38] sm:$0xff] %vm3969, %v4675
    %4740 = vst.msk [vmem:[#allocation5 + $0x40] sm:$0xff] %vm3969, %v4676
    %4741 = vst.msk [vmem:[#allocation5 + $0x48] sm:$0xff] %vm3969, %v4677
    %4742 = vst.msk [vmem:[#allocation5 + $0x50] sm:$0xff] %vm3969, %v4678
    %4743 = vst.msk [vmem:[#allocation5 + $0x58] sm:$0xff] %vm3969, %v4679
    %4744 = vst.msk [vmem:[#allocation5 + $0x60] sm:$0xff] %vm3969, %v4680
    %4745 = vst.msk [vmem:[#allocation5 + $0x68] sm:$0xff] %vm3969, %v4681
    %4746 = vst.msk [vmem:[#allocation5 + $0x70] sm:$0xff] %vm3969, %v4682
    %4747 = vst.msk [vmem:[#allocation5 + $0x78] sm:$0xff] %vm3969, %v4683
    %4748 = vst.msk [vmem:[#allocation5 + $0x80] sm:$0xff] %vm3969, %v4684
    %4749 = vst.msk [vmem:[#allocation5 + $0x88] sm:$0xff] %vm3969, %v4685
    %4750 = vst.msk [vmem:[#allocation5 + $0x90] sm:$0xff] %vm3969, %v4686
    %4751 = vst.msk [vmem:[#allocation5 + $0x98] sm:$0xff] %vm3969, %v4687
    %4752 = vst.msk [vmem:[#allocation5 + $0xa0] sm:$0xff] %vm3969, %v4688
    %4753 = vst.msk [vmem:[#allocation5 + $0xa8] sm:$0xff] %vm3969, %v4689
    %4754 = vst.msk [vmem:[#allocation5 + $0xb0] sm:$0xff] %vm3969, %v4690
    %4755 = vst.msk [vmem:[#allocation5 + $0xb8] sm:$0xff] %vm3969, %v4691
    %4756 = vst.msk [vmem:[#allocation5 + $0xc0] sm:$0xff] %vm3969, %v4692
    %4757 = vst.msk [vmem:[#allocation5 + $0xc8] sm:$0xff] %vm3969, %v4693
    %4758 = vst.msk [vmem:[#allocation5 + $0xd0] sm:$0xff] %vm3969, %v4694
    %4759 = vst.msk [vmem:[#allocation5 + $0xd8] sm:$0xff] %vm3969, %v4695
    %4760 = vst.msk [vmem:[#allocation5 + $0xe0] sm:$0xff] %vm3969, %v4696
    %4761 = vst.msk [vmem:[#allocation5 + $0xe8] sm:$0xff] %vm3969, %v4697
    %4762 = vst.msk [vmem:[#allocation5 + $0xf0] sm:$0xff] %vm3969, %v4698
    %4763 = vst.msk [vmem:[#allocation5 + $0xf8] sm:$0xff] %vm3969, %v4699
    %4764 = vst.msk [vmem:[#allocation5 + $0x100] sm:$0xff] %vm3969, %v4700
    %4765 = vst.msk [vmem:[#allocation5 + $0x108] sm:$0xff] %vm3969, %v4701
    %4766 = vst.msk [vmem:[#allocation5 + $0x110] sm:$0xff] %vm3969, %v4702
    %4767 = vst.msk [vmem:[#allocation5 + $0x118] sm:$0xff] %vm3969, %v4703
    %4768 = vst.msk [vmem:[#allocation5 + $0x120] sm:$0xff] %vm3969, %v4704
    %4769 = vst.msk [vmem:[#allocation5 + $0x128] sm:$0xff] %vm3969, %v4705
    %4770 = vst.msk [vmem:[#allocation5 + $0x130] sm:$0xff] %vm3969, %v4706
    %4771 = vst.msk [vmem:[#allocation5 + $0x138] sm:$0xff] %vm3969, %v4707
    %4772 = vst.msk [vmem:[#allocation5 + $0x140] sm:$0xff] %vm3969, %v4708
    %4773 = vst.msk [vmem:[#allocation5 + $0x148] sm:$0xff] %vm3969, %v4709
    %4774 = vst.msk [vmem:[#allocation5 + $0x150] sm:$0xff] %vm3969, %v4710
    %4775 = vst.msk [vmem:[#allocation5 + $0x158] sm:$0xff] %vm3969, %v4711
    %4776 = vst.msk [vmem:[#allocation5 + $0x160] sm:$0xff] %vm3969, %v4712
    %4777 = vst.msk [vmem:[#allocation5 + $0x168] sm:$0xff] %vm3969, %v4713
    %4778 = vst.msk [vmem:[#allocation5 + $0x170] sm:$0xff] %vm3969, %v4714
    %4779 = vst.msk [vmem:[#allocation5 + $0x178] sm:$0xff] %vm3969, %v4715
    %4780 = vst.msk [vmem:[#allocation5 + $0x180] sm:$0xff] %vm3969, %v4716
    %4781 = vst.msk [vmem:[#allocation5 + $0x188] sm:$0xff] %vm3969, %v4717
    %4782 = vst.msk [vmem:[#allocation5 + $0x190] sm:$0xff] %vm3969, %v4718
    %4783 = vst.msk [vmem:[#allocation5 + $0x198] sm:$0xff] %vm3969, %v4719
    %4784 = vst.msk [vmem:[#allocation5 + $0x1a0] sm:$0xff] %vm3969, %v4720
    %4785 = vst.msk [vmem:[#allocation5 + $0x1a8] sm:$0xff] %vm3969, %v4721
    %4786 = vst.msk [vmem:[#allocation5 + $0x1b0] sm:$0xff] %vm3969, %v4722
    %4787 = vst.msk [vmem:[#allocation5 + $0x1b8] sm:$0xff] %vm3969, %v4723
    %4788 = vst.msk [vmem:[#allocation5 + $0x1c0] sm:$0xff] %vm3969, %v4724
    %4789 = vst.msk [vmem:[#allocation5 + $0x1c8] sm:$0xff] %vm3969, %v4725
    %4790 = vst.msk [vmem:[#allocation5 + $0x1d0] sm:$0xff] %vm3969, %v4726
    %4791 = vst.msk [vmem:[#allocation5 + $0x1d8] sm:$0xff] %vm3969, %v4727
    %4792 = vst.msk [vmem:[#allocation5 + $0x1e0] sm:$0xff] %vm3969, %v4728
    %4793 = vst.msk [vmem:[#allocation5 + $0x1e8] sm:$0xff] %vm3969, %v4729
    %4794 = vst.msk [vmem:[#allocation5 + $0x1f0] sm:$0xff] %vm3969, %v4730
    %4795 = vst.msk [vmem:[#allocation5 + $0x1f8] sm:$0xff] %vm3969, %v4731
    %v4796 = vld [vmem:[#allocation3 + $0x1] sm:$0xff]
    %v4797 = vld [vmem:[#allocation3 + $0x9] sm:$0xff]
    %v4798 = vld [vmem:[#allocation3 + $0x19] sm:$0xff]
    %v4799 = vld [vmem:[#allocation3 + $0x21] sm:$0xff]
    %v4800 = vld [vmem:[#allocation3 + $0x31] sm:$0xff]
    %v4801 = vld [vmem:[#allocation3 + $0x39] sm:$0xff]
    %v4802 = vld [vmem:[#allocation3 + $0x49] sm:$0xff]
    %v4803 = vld [vmem:[#allocation3 + $0x51] sm:$0xff]
    %v4804 = vld [vmem:[#allocation3 + $0x61] sm:$0xff]
    %v4805 = vld [vmem:[#allocation3 + $0x69] sm:$0xff]
    %v4806 = vld [vmem:[#allocation3 + $0x79] sm:$0xff]
    %v4807 = vld [vmem:[#allocation3 + $0x81] sm:$0xff]
    %v4808 = vld [vmem:[#allocation3 + $0x91] sm:$0xff]
    %v4809 = vld [vmem:[#allocation3 + $0x99] sm:$0xff]
    %v4810 = vld [vmem:[#allocation3 + $0xa9] sm:$0xff]
    %v4811 = vld [vmem:[#allocation3 + $0xb1] sm:$0xff]
    %v4812 = vld [vmem:[#allocation3 + $0xc1] sm:$0xff]
    %v4813 = vld [vmem:[#allocation3 + $0xc9] sm:$0xff]
    %v4814 = vld [vmem:[#allocation3 + $0xd9] sm:$0xff]
    %v4815 = vld [vmem:[#allocation3 + $0xe1] sm:$0xff]
    %v4816 = vld [vmem:[#allocation3 + $0xf1] sm:$0xff]
    %v4817 = vld [vmem:[#allocation3 + $0xf9] sm:$0xff]
    %v4818 = vld [vmem:[#allocation3 + $0x109] sm:$0xff]
    %v4819 = vld [vmem:[#allocation3 + $0x111] sm:$0xff]
    %v4820 = vld [vmem:[#allocation3 + $0x121] sm:$0xff]
    %v4821 = vld [vmem:[#allocation3 + $0x129] sm:$0xff]
    %v4822 = vld [vmem:[#allocation3 + $0x139] sm:$0xff]
    %v4823 = vld [vmem:[#allocation3 + $0x141] sm:$0xff]
    %v4824 = vld [vmem:[#allocation3 + $0x151] sm:$0xff]
    %v4825 = vld [vmem:[#allocation3 + $0x159] sm:$0xff]
    %v4826 = vld [vmem:[#allocation3 + $0x169] sm:$0xff]
    %v4827 = vld [vmem:[#allocation3 + $0x171] sm:$0xff]
    %v4828 = vld [vmem:[#allocation3 + $0x1b1] sm:$0xff]
    %v4829 = vld [vmem:[#allocation3 + $0x1b9] sm:$0xff]
    %v4830 = vld [vmem:[#allocation3 + $0x1c9] sm:$0xff]
    %v4831 = vld [vmem:[#allocation3 + $0x1d1] sm:$0xff]
    %v4832 = vld [vmem:[#allocation3 + $0x1e1] sm:$0xff]
    %v4833 = vld [vmem:[#allocation3 + $0x1e9] sm:$0xff]
    %v4834 = vld [vmem:[#allocation3 + $0x1f9] sm:$0xff]
    %v4835 = vld [vmem:[#allocation3 + $0x201] sm:$0xff]
    %v4836 = vld [vmem:[#allocation3 + $0x211] sm:$0xff]
    %v4837 = vld [vmem:[#allocation3 + $0x219] sm:$0xff]
    %v4838 = vld [vmem:[#allocation3 + $0x229] sm:$0xff]
    %v4839 = vld [vmem:[#allocation3 + $0x231] sm:$0xff]
    %v4840 = vld [vmem:[#allocation3 + $0x241] sm:$0xff]
    %v4841 = vld [vmem:[#allocation3 + $0x249] sm:$0xff]
    %v4842 = vld [vmem:[#allocation3 + $0x259] sm:$0xff]
    %v4843 = vld [vmem:[#allocation3 + $0x261] sm:$0xff]
    %v4844 = vld [vmem:[#allocation3 + $0x271] sm:$0xff]
    %v4845 = vld [vmem:[#allocation3 + $0x279] sm:$0xff]
    %v4846 = vld [vmem:[#allocation3 + $0x289] sm:$0xff]
    %v4847 = vld [vmem:[#allocation3 + $0x291] sm:$0xff]
    %v4848 = vld [vmem:[#allocation3 + $0x2a1] sm:$0xff]
    %v4849 = vld [vmem:[#allocation3 + $0x2a9] sm:$0xff]
    %v4850 = vld [vmem:[#allocation3 + $0x2b9] sm:$0xff]
    %v4851 = vld [vmem:[#allocation3 + $0x2c1] sm:$0xff]
    %v4852 = vld [vmem:[#allocation3 + $0x2d1] sm:$0xff]
    %v4853 = vld [vmem:[#allocation3 + $0x2d9] sm:$0xff]
    %v4854 = vld [vmem:[#allocation3 + $0x2e9] sm:$0xff]
    %v4855 = vld [vmem:[#allocation3 + $0x2f1] sm:$0xff]
    %v4856 = vld [vmem:[#allocation3 + $0x301] sm:$0xff]
    %v4857 = vld [vmem:[#allocation3 + $0x309] sm:$0xff]
    %v4858 = vld [vmem:[#allocation3 + $0x319] sm:$0xff]
    %v4859 = vld [vmem:[#allocation3 + $0x321] sm:$0xff]
    %4924 = vrot.lane.b32.xlu0 %v4796, 8
    %v4925 = vpop.permute.xlu0 %4924
    %4926 = vrot.lane.b32.xlu0 %v4797, 8
    %v4927 = vpop.permute.xlu0 %4926
    %4928 = vrot.lane.b32.xlu0 %v4798, 8
    %v4929 = vpop.permute.xlu0 %4928
    %4930 = vrot.lane.b32.xlu0 %v4799, 8
    %v4931 = vpop.permute.xlu0 %4930
    %4932 = vrot.lane.b32.xlu0 %v4800, 8
    %v4933 = vpop.permute.xlu0 %4932
    %4934 = vrot.lane.b32.xlu0 %v4801, 8
    %v4935 = vpop.permute.xlu0 %4934
    %4936 = vrot.lane.b32.xlu0 %v4802, 8
    %v4937 = vpop.permute.xlu0 %4936
    %4938 = vrot.lane.b32.xlu0 %v4803, 8
    %v4939 = vpop.permute.xlu0 %4938
    %4940 = vrot.lane.b32.xlu0 %v4804, 8
    %v4941 = vpop.permute.xlu0 %4940
    %4942 = vrot.lane.b32.xlu0 %v4805, 8
    %v4943 = vpop.permute.xlu0 %4942
    %4944 = vrot.lane.b32.xlu0 %v4806, 8
    %v4945 = vpop.permute.xlu0 %4944
    %4946 = vrot.lane.b32.xlu0 %v4807, 8
    %v4947 = vpop.permute.xlu0 %4946
    %4948 = vrot.lane.b32.xlu0 %v4808, 8
    %v4949 = vpop.permute.xlu0 %4948
    %4950 = vrot.lane.b32.xlu0 %v4809, 8
    %v4951 = vpop.permute.xlu0 %4950
    %4952 = vrot.lane.b32.xlu0 %v4810, 8
    %v4953 = vpop.permute.xlu0 %4952
    %4954 = vrot.lane.b32.xlu0 %v4811, 8
    %v4955 = vpop.permute.xlu0 %4954
    %4956 = vrot.lane.b32.xlu0 %v4812, 8
    %v4957 = vpop.permute.xlu0 %4956
    %4958 = vrot.lane.b32.xlu0 %v4813, 8
    %v4959 = vpop.permute.xlu0 %4958
    %4960 = vrot.lane.b32.xlu0 %v4814, 8
    %v4961 = vpop.permute.xlu0 %4960
    %4962 = vrot.lane.b32.xlu0 %v4815, 8
    %v4963 = vpop.permute.xlu0 %4962
    %4964 = vrot.lane.b32.xlu0 %v4816, 8
    %v4965 = vpop.permute.xlu0 %4964
    %4966 = vrot.lane.b32.xlu0 %v4817, 8
    %v4967 = vpop.permute.xlu0 %4966
    %4968 = vrot.lane.b32.xlu0 %v4818, 8
    %v4969 = vpop.permute.xlu0 %4968
    %4970 = vrot.lane.b32.xlu0 %v4819, 8
    %v4971 = vpop.permute.xlu0 %4970
    %4972 = vrot.lane.b32.xlu0 %v4820, 8
    %v4973 = vpop.permute.xlu0 %4972
    %4974 = vrot.lane.b32.xlu0 %v4821, 8
    %v4975 = vpop.permute.xlu0 %4974
    %4976 = vrot.lane.b32.xlu0 %v4822, 8
    %v4977 = vpop.permute.xlu0 %4976
    %4978 = vrot.lane.b32.xlu0 %v4823, 8
    %v4979 = vpop.permute.xlu0 %4978
    %4980 = vrot.lane.b32.xlu0 %v4824, 8
    %v4981 = vpop.permute.xlu0 %4980
    %4982 = vrot.lane.b32.xlu0 %v4825, 8
    %v4983 = vpop.permute.xlu0 %4982
    %4984 = vrot.lane.b32.xlu0 %v4826, 8
    %v4985 = vpop.permute.xlu0 %4984
    %4986 = vrot.lane.b32.xlu0 %v4827, 8
    %v4987 = vpop.permute.xlu0 %4986
    %4988 = vrot.lane.b32.xlu0 %v4828, 8
    %v4989 = vpop.permute.xlu0 %4988
    %4990 = vrot.lane.b32.xlu0 %v4829, 8
    %v4991 = vpop.permute.xlu0 %4990
    %4992 = vrot.lane.b32.xlu0 %v4830, 8
    %v4993 = vpop.permute.xlu0 %4992
    %4994 = vrot.lane.b32.xlu0 %v4831, 8
    %v4995 = vpop.permute.xlu0 %4994
    %4996 = vrot.lane.b32.xlu0 %v4832, 8
    %v4997 = vpop.permute.xlu0 %4996
    %4998 = vrot.lane.b32.xlu0 %v4833, 8
    %v4999 = vpop.permute.xlu0 %4998
    %5000 = vrot.lane.b32.xlu0 %v4834, 8
    %v5001 = vpop.permute.xlu0 %5000
    %5002 = vrot.lane.b32.xlu0 %v4835, 8
    %v5003 = vpop.permute.xlu0 %5002
    %5004 = vrot.lane.b32.xlu0 %v4836, 8
    %v5005 = vpop.permute.xlu0 %5004
    %5006 = vrot.lane.b32.xlu0 %v4837, 8
    %v5007 = vpop.permute.xlu0 %5006
    %5008 = vrot.lane.b32.xlu0 %v4838, 8
    %v5009 = vpop.permute.xlu0 %5008
    %5010 = vrot.lane.b32.xlu0 %v4839, 8
    %v5011 = vpop.permute.xlu0 %5010
    %5012 = vrot.lane.b32.xlu0 %v4840, 8
    %v5013 = vpop.permute.xlu0 %5012
    %5014 = vrot.lane.b32.xlu0 %v4841, 8
    %v5015 = vpop.permute.xlu0 %5014
    %5016 = vrot.lane.b32.xlu0 %v4842, 8
    %v5017 = vpop.permute.xlu0 %5016
    %5018 = vrot.lane.b32.xlu0 %v4843, 8
    %v5019 = vpop.permute.xlu0 %5018
    %5020 = vrot.lane.b32.xlu0 %v4844, 8
    %v5021 = vpop.permute.xlu0 %5020
    %5022 = vrot.lane.b32.xlu0 %v4845, 8
    %v5023 = vpop.permute.xlu0 %5022
    %5024 = vrot.lane.b32.xlu0 %v4846, 8
    %v5025 = vpop.permute.xlu0 %5024
    %5026 = vrot.lane.b32.xlu0 %v4847, 8
    %v5027 = vpop.permute.xlu0 %5026
    %5028 = vrot.lane.b32.xlu0 %v4848, 8
    %v5029 = vpop.permute.xlu0 %5028
    %5030 = vrot.lane.b32.xlu0 %v4849, 8
    %v5031 = vpop.permute.xlu0 %5030
    %5032 = vrot.lane.b32.xlu0 %v4850, 8
    %v5033 = vpop.permute.xlu0 %5032
    %5034 = vrot.lane.b32.xlu0 %v4851, 8
    %v5035 = vpop.permute.xlu0 %5034
    %5036 = vrot.lane.b32.xlu0 %v4852, 8
    %v5037 = vpop.permute.xlu0 %5036
    %5038 = vrot.lane.b32.xlu0 %v4853, 8
    %v5039 = vpop.permute.xlu0 %5038
    %5040 = vrot.lane.b32.xlu0 %v4854, 8
    %v5041 = vpop.permute.xlu0 %5040
    %5042 = vrot.lane.b32.xlu0 %v4855, 8
    %v5043 = vpop.permute.xlu0 %5042
    %5044 = vrot.lane.b32.xlu0 %v4856, 8
    %v5045 = vpop.permute.xlu0 %5044
    %5046 = vrot.lane.b32.xlu0 %v4857, 8
    %v5047 = vpop.permute.xlu0 %5046
    %5048 = vrot.lane.b32.xlu0 %v4858, 8
    %v5049 = vpop.permute.xlu0 %5048
    %5050 = vrot.lane.b32.xlu0 %v4859, 8
    %v5051 = vpop.permute.xlu0 %5050
    %vm5116 = vcmask 130112
    %5117 = vst.msk [vmem:[#allocation5] sm:$0xff] %vm5116, %v4925
    %5118 = vst.msk [vmem:[#allocation5 + $0x8] sm:$0xff] %vm5116, %v4927
    %5119 = vst.msk [vmem:[#allocation5 + $0x10] sm:$0xff] %vm5116, %v4929
    %5120 = vst.msk [vmem:[#allocation5 + $0x18] sm:$0xff] %vm5116, %v4931
    %5121 = vst.msk [vmem:[#allocation5 + $0x20] sm:$0xff] %vm5116, %v4933
    %5122 = vst.msk [vmem:[#allocation5 + $0x28] sm:$0xff] %vm5116, %v4935
    %5123 = vst.msk [vmem:[#allocation5 + $0x30] sm:$0xff] %vm5116, %v4937
    %5124 = vst.msk [vmem:[#allocation5 + $0x38] sm:$0xff] %vm5116, %v4939
    %5125 = vst.msk [vmem:[#allocation5 + $0x40] sm:$0xff] %vm5116, %v4941
    %5126 = vst.msk [vmem:[#allocation5 + $0x48] sm:$0xff] %vm5116, %v4943
    %5127 = vst.msk [vmem:[#allocation5 + $0x50] sm:$0xff] %vm5116, %v4945
    %5128 = vst.msk [vmem:[#allocation5 + $0x58] sm:$0xff] %vm5116, %v4947
    %5129 = vst.msk [vmem:[#allocation5 + $0x60] sm:$0xff] %vm5116, %v4949
    %5130 = vst.msk [vmem:[#allocation5 + $0x68] sm:$0xff] %vm5116, %v4951
    %5131 = vst.msk [vmem:[#allocation5 + $0x70] sm:$0xff] %vm5116, %v4953
    %5132 = vst.msk [vmem:[#allocation5 + $0x78] sm:$0xff] %vm5116, %v4955
    %5133 = vst.msk [vmem:[#allocation5 + $0x80] sm:$0xff] %vm5116, %v4957
    %5134 = vst.msk [vmem:[#allocation5 + $0x88] sm:$0xff] %vm5116, %v4959
    %5135 = vst.msk [vmem:[#allocation5 + $0x90] sm:$0xff] %vm5116, %v4961
    %5136 = vst.msk [vmem:[#allocation5 + $0x98] sm:$0xff] %vm5116, %v4963
    %5137 = vst.msk [vmem:[#allocation5 + $0xa0] sm:$0xff] %vm5116, %v4965
    %5138 = vst.msk [vmem:[#allocation5 + $0xa8] sm:$0xff] %vm5116, %v4967
    %5139 = vst.msk [vmem:[#allocation5 + $0xb0] sm:$0xff] %vm5116, %v4969
    %5140 = vst.msk [vmem:[#allocation5 + $0xb8] sm:$0xff] %vm5116, %v4971
    %5141 = vst.msk [vmem:[#allocation5 + $0xc0] sm:$0xff] %vm5116, %v4973
    %5142 = vst.msk [vmem:[#allocation5 + $0xc8] sm:$0xff] %vm5116, %v4975
    %5143 = vst.msk [vmem:[#allocation5 + $0xd0] sm:$0xff] %vm5116, %v4977
    %5144 = vst.msk [vmem:[#allocation5 + $0xd8] sm:$0xff] %vm5116, %v4979
    %5145 = vst.msk [vmem:[#allocation5 + $0xe0] sm:$0xff] %vm5116, %v4981
    %5146 = vst.msk [vmem:[#allocation5 + $0xe8] sm:$0xff] %vm5116, %v4983
    %5147 = vst.msk [vmem:[#allocation5 + $0xf0] sm:$0xff] %vm5116, %v4985
    %5148 = vst.msk [vmem:[#allocation5 + $0xf8] sm:$0xff] %vm5116, %v4987
    %5149 = vst.msk [vmem:[#allocation5 + $0x100] sm:$0xff] %vm5116, %v4989
    %5150 = vst.msk [vmem:[#allocation5 + $0x108] sm:$0xff] %vm5116, %v4991
    %5151 = vst.msk [vmem:[#allocation5 + $0x110] sm:$0xff] %vm5116, %v4993
    %5152 = vst.msk [vmem:[#allocation5 + $0x118] sm:$0xff] %vm5116, %v4995
    %5153 = vst.msk [vmem:[#allocation5 + $0x120] sm:$0xff] %vm5116, %v4997
    %5154 = vst.msk [vmem:[#allocation5 + $0x128] sm:$0xff] %vm5116, %v4999
    %5155 = vst.msk [vmem:[#allocation5 + $0x130] sm:$0xff] %vm5116, %v5001
    %5156 = vst.msk [vmem:[#allocation5 + $0x138] sm:$0xff] %vm5116, %v5003
    %5157 = vst.msk [vmem:[#allocation5 + $0x140] sm:$0xff] %vm5116, %v5005
    %5158 = vst.msk [vmem:[#allocation5 + $0x148] sm:$0xff] %vm5116, %v5007
    %5159 = vst.msk [vmem:[#allocation5 + $0x150] sm:$0xff] %vm5116, %v5009
    %5160 = vst.msk [vmem:[#allocation5 + $0x158] sm:$0xff] %vm5116, %v5011
    %5161 = vst.msk [vmem:[#allocation5 + $0x160] sm:$0xff] %vm5116, %v5013
    %5162 = vst.msk [vmem:[#allocation5 + $0x168] sm:$0xff] %vm5116, %v5015
    %5163 = vst.msk [vmem:[#allocation5 + $0x170] sm:$0xff] %vm5116, %v5017
    %5164 = vst.msk [vmem:[#allocation5 + $0x178] sm:$0xff] %vm5116, %v5019
    %5165 = vst.msk [vmem:[#allocation5 + $0x180] sm:$0xff] %vm5116, %v5021
    %5166 = vst.msk [vmem:[#allocation5 + $0x188] sm:$0xff] %vm5116, %v5023
    %5167 = vst.msk [vmem:[#allocation5 + $0x190] sm:$0xff] %vm5116, %v5025
    %5168 = vst.msk [vmem:[#allocation5 + $0x198] sm:$0xff] %vm5116, %v5027
    %5169 = vst.msk [vmem:[#allocation5 + $0x1a0] sm:$0xff] %vm5116, %v5029
    %5170 = vst.msk [vmem:[#allocation5 + $0x1a8] sm:$0xff] %vm5116, %v5031
    %5171 = vst.msk [vmem:[#allocation5 + $0x1b0] sm:$0xff] %vm5116, %v5033
    %5172 = vst.msk [vmem:[#allocation5 + $0x1b8] sm:$0xff] %vm5116, %v5035
    %5173 = vst.msk [vmem:[#allocation5 + $0x1c0] sm:$0xff] %vm5116, %v5037
    %5174 = vst.msk [vmem:[#allocation5 + $0x1c8] sm:$0xff] %vm5116, %v5039
    %5175 = vst.msk [vmem:[#allocation5 + $0x1d0] sm:$0xff] %vm5116, %v5041
    %5176 = vst.msk [vmem:[#allocation5 + $0x1d8] sm:$0xff] %vm5116, %v5043
    %5177 = vst.msk [vmem:[#allocation5 + $0x1e0] sm:$0xff] %vm5116, %v5045
    %5178 = vst.msk [vmem:[#allocation5 + $0x1e8] sm:$0xff] %vm5116, %v5047
    %5179 = vst.msk [vmem:[#allocation5 + $0x1f0] sm:$0xff] %vm5116, %v5049
    %5180 = vst.msk [vmem:[#allocation5 + $0x1f8] sm:$0xff] %vm5116, %v5051
    %v5181 = vld [vmem:[#allocation3 + $0x2] sm:$0xff]
    %v5182 = vld [vmem:[#allocation3 + $0xa] sm:$0xff]
    %v5183 = vld [vmem:[#allocation3 + $0x1a] sm:$0xff]
    %v5184 = vld [vmem:[#allocation3 + $0x22] sm:$0xff]
    %v5185 = vld [vmem:[#allocation3 + $0x32] sm:$0xff]
    %v5186 = vld [vmem:[#allocation3 + $0x3a] sm:$0xff]
    %v5187 = vld [vmem:[#allocation3 + $0x4a] sm:$0xff]
    %v5188 = vld [vmem:[#allocation3 + $0x52] sm:$0xff]
    %v5189 = vld [vmem:[#allocation3 + $0x62] sm:$0xff]
    %v5190 = vld [vmem:[#allocation3 + $0x6a] sm:$0xff]
    %v5191 = vld [vmem:[#allocation3 + $0x7a] sm:$0xff]
    %v5192 = vld [vmem:[#allocation3 + $0x82] sm:$0xff]
    %v5193 = vld [vmem:[#allocation3 + $0x92] sm:$0xff]
    %v5194 = vld [vmem:[#allocation3 + $0x9a] sm:$0xff]
    %v5195 = vld [vmem:[#allocation3 + $0xaa] sm:$0xff]
    %v5196 = vld [vmem:[#allocation3 + $0xb2] sm:$0xff]
    %v5197 = vld [vmem:[#allocation3 + $0xc2] sm:$0xff]
    %v5198 = vld [vmem:[#allocation3 + $0xca] sm:$0xff]
    %v5199 = vld [vmem:[#allocation3 + $0xda] sm:$0xff]
    %v5200 = vld [vmem:[#allocation3 + $0xe2] sm:$0xff]
    %v5201 = vld [vmem:[#allocation3 + $0xf2] sm:$0xff]
    %v5202 = vld [vmem:[#allocation3 + $0xfa] sm:$0xff]
    %v5203 = vld [vmem:[#allocation3 + $0x10a] sm:$0xff]
    %v5204 = vld [vmem:[#allocation3 + $0x112] sm:$0xff]
    %v5205 = vld [vmem:[#allocation3 + $0x122] sm:$0xff]
    %v5206 = vld [vmem:[#allocation3 + $0x12a] sm:$0xff]
    %v5207 = vld [vmem:[#allocation3 + $0x13a] sm:$0xff]
    %v5208 = vld [vmem:[#allocation3 + $0x142] sm:$0xff]
    %v5209 = vld [vmem:[#allocation3 + $0x152] sm:$0xff]
    %v5210 = vld [vmem:[#allocation3 + $0x15a] sm:$0xff]
    %v5211 = vld [vmem:[#allocation3 + $0x16a] sm:$0xff]
    %v5212 = vld [vmem:[#allocation3 + $0x172] sm:$0xff]
    %v5213 = vld [vmem:[#allocation3 + $0x1b2] sm:$0xff]
    %v5214 = vld [vmem:[#allocation3 + $0x1ba] sm:$0xff]
    %v5215 = vld [vmem:[#allocation3 + $0x1ca] sm:$0xff]
    %v5216 = vld [vmem:[#allocation3 + $0x1d2] sm:$0xff]
    %v5217 = vld [vmem:[#allocation3 + $0x1e2] sm:$0xff]
    %v5218 = vld [vmem:[#allocation3 + $0x1ea] sm:$0xff]
    %v5219 = vld [vmem:[#allocation3 + $0x1fa] sm:$0xff]
    %v5220 = vld [vmem:[#allocation3 + $0x202] sm:$0xff]
    %v5221 = vld [vmem:[#allocation3 + $0x212] sm:$0xff]
    %v5222 = vld [vmem:[#allocation3 + $0x21a] sm:$0xff]
    %v5223 = vld [vmem:[#allocation3 + $0x22a] sm:$0xff]
    %v5224 = vld [vmem:[#allocation3 + $0x232] sm:$0xff]
    %v5225 = vld [vmem:[#allocation3 + $0x242] sm:$0xff]
    %v5226 = vld [vmem:[#allocation3 + $0x24a] sm:$0xff]
    %v5227 = vld [vmem:[#allocation3 + $0x25a] sm:$0xff]
    %v5228 = vld [vmem:[#allocation3 + $0x262] sm:$0xff]
    %v5229 = vld [vmem:[#allocation3 + $0x272] sm:$0xff]
    %v5230 = vld [vmem:[#allocation3 + $0x27a] sm:$0xff]
    %v5231 = vld [vmem:[#allocation3 + $0x28a] sm:$0xff]
    %v5232 = vld [vmem:[#allocation3 + $0x292] sm:$0xff]
    %v5233 = vld [vmem:[#allocation3 + $0x2a2] sm:$0xff]
    %v5234 = vld [vmem:[#allocation3 + $0x2aa] sm:$0xff]
    %v5235 = vld [vmem:[#allocation3 + $0x2ba] sm:$0xff]
    %v5236 = vld [vmem:[#allocation3 + $0x2c2] sm:$0xff]
    %v5237 = vld [vmem:[#allocation3 + $0x2d2] sm:$0xff]
    %v5238 = vld [vmem:[#allocation3 + $0x2da] sm:$0xff]
    %v5239 = vld [vmem:[#allocation3 + $0x2ea] sm:$0xff]
    %v5240 = vld [vmem:[#allocation3 + $0x2f2] sm:$0xff]
    %v5241 = vld [vmem:[#allocation3 + $0x302] sm:$0xff]
    %v5242 = vld [vmem:[#allocation3 + $0x30a] sm:$0xff]
    %v5243 = vld [vmem:[#allocation3 + $0x31a] sm:$0xff]
    %v5244 = vld [vmem:[#allocation3 + $0x322] sm:$0xff]
    %5309 = vrot.lane.b32.xlu0 %v5181, 16
    %v5310 = vpop.permute.xlu0 %5309
    %5311 = vrot.lane.b32.xlu0 %v5182, 16
    %v5312 = vpop.permute.xlu0 %5311
    %5313 = vrot.lane.b32.xlu0 %v5183, 16
    %v5314 = vpop.permute.xlu0 %5313
    %5315 = vrot.lane.b32.xlu0 %v5184, 16
    %v5316 = vpop.permute.xlu0 %5315
    %5317 = vrot.lane.b32.xlu0 %v5185, 16
    %v5318 = vpop.permute.xlu0 %5317
    %5319 = vrot.lane.b32.xlu0 %v5186, 16
    %v5320 = vpop.permute.xlu0 %5319
    %5321 = vrot.lane.b32.xlu0 %v5187, 16
    %v5322 = vpop.permute.xlu0 %5321
    %5323 = vrot.lane.b32.xlu0 %v5188, 16
    %v5324 = vpop.permute.xlu0 %5323
    %5325 = vrot.lane.b32.xlu0 %v5189, 16
    %v5326 = vpop.permute.xlu0 %5325
    %5327 = vrot.lane.b32.xlu0 %v5190, 16
    %v5328 = vpop.permute.xlu0 %5327
    %5329 = vrot.lane.b32.xlu0 %v5191, 16
    %v5330 = vpop.permute.xlu0 %5329
    %5331 = vrot.lane.b32.xlu0 %v5192, 16
    %v5332 = vpop.permute.xlu0 %5331
    %5333 = vrot.lane.b32.xlu0 %v5193, 16
    %v5334 = vpop.permute.xlu0 %5333
    %5335 = vrot.lane.b32.xlu0 %v5194, 16
    %v5336 = vpop.permute.xlu0 %5335
    %5337 = vrot.lane.b32.xlu0 %v5195, 16
    %v5338 = vpop.permute.xlu0 %5337
    %5339 = vrot.lane.b32.xlu0 %v5196, 16
    %v5340 = vpop.permute.xlu0 %5339
    %5341 = vrot.lane.b32.xlu0 %v5197, 16
    %v5342 = vpop.permute.xlu0 %5341
    %5343 = vrot.lane.b32.xlu0 %v5198, 16
    %v5344 = vpop.permute.xlu0 %5343
    %5345 = vrot.lane.b32.xlu0 %v5199, 16
    %v5346 = vpop.permute.xlu0 %5345
    %5347 = vrot.lane.b32.xlu0 %v5200, 16
    %v5348 = vpop.permute.xlu0 %5347
    %5349 = vrot.lane.b32.xlu0 %v5201, 16
    %v5350 = vpop.permute.xlu0 %5349
    %5351 = vrot.lane.b32.xlu0 %v5202, 16
    %v5352 = vpop.permute.xlu0 %5351
    %5353 = vrot.lane.b32.xlu0 %v5203, 16
    %v5354 = vpop.permute.xlu0 %5353
    %5355 = vrot.lane.b32.xlu0 %v5204, 16
    %v5356 = vpop.permute.xlu0 %5355
    %5357 = vrot.lane.b32.xlu0 %v5205, 16
    %v5358 = vpop.permute.xlu0 %5357
    %5359 = vrot.lane.b32.xlu0 %v5206, 16
    %v5360 = vpop.permute.xlu0 %5359
    %5361 = vrot.lane.b32.xlu0 %v5207, 16
    %v5362 = vpop.permute.xlu0 %5361
    %5363 = vrot.lane.b32.xlu0 %v5208, 16
    %v5364 = vpop.permute.xlu0 %5363
    %5365 = vrot.lane.b32.xlu0 %v5209, 16
    %v5366 = vpop.permute.xlu0 %5365
    %5367 = vrot.lane.b32.xlu0 %v5210, 16
    %v5368 = vpop.permute.xlu0 %5367
    %5369 = vrot.lane.b32.xlu0 %v5211, 16
    %v5370 = vpop.permute.xlu0 %5369
    %5371 = vrot.lane.b32.xlu0 %v5212, 16
    %v5372 = vpop.permute.xlu0 %5371
    %5373 = vrot.lane.b32.xlu0 %v5213, 16
    %v5374 = vpop.permute.xlu0 %5373
    %5375 = vrot.lane.b32.xlu0 %v5214, 16
    %v5376 = vpop.permute.xlu0 %5375
    %5377 = vrot.lane.b32.xlu0 %v5215, 16
    %v5378 = vpop.permute.xlu0 %5377
    %5379 = vrot.lane.b32.xlu0 %v5216, 16
    %v5380 = vpop.permute.xlu0 %5379
    %5381 = vrot.lane.b32.xlu0 %v5217, 16
    %v5382 = vpop.permute.xlu0 %5381
    %5383 = vrot.lane.b32.xlu0 %v5218, 16
    %v5384 = vpop.permute.xlu0 %5383
    %5385 = vrot.lane.b32.xlu0 %v5219, 16
    %v5386 = vpop.permute.xlu0 %5385
    %5387 = vrot.lane.b32.xlu0 %v5220, 16
    %v5388 = vpop.permute.xlu0 %5387
    %5389 = vrot.lane.b32.xlu0 %v5221, 16
    %v5390 = vpop.permute.xlu0 %5389
    %5391 = vrot.lane.b32.xlu0 %v5222, 16
    %v5392 = vpop.permute.xlu0 %5391
    %5393 = vrot.lane.b32.xlu0 %v5223, 16
    %v5394 = vpop.permute.xlu0 %5393
    %5395 = vrot.lane.b32.xlu0 %v5224, 16
    %v5396 = vpop.permute.xlu0 %5395
    %5397 = vrot.lane.b32.xlu0 %v5225, 16
    %v5398 = vpop.permute.xlu0 %5397
    %5399 = vrot.lane.b32.xlu0 %v5226, 16
    %v5400 = vpop.permute.xlu0 %5399
    %5401 = vrot.lane.b32.xlu0 %v5227, 16
    %v5402 = vpop.permute.xlu0 %5401
    %5403 = vrot.lane.b32.xlu0 %v5228, 16
    %v5404 = vpop.permute.xlu0 %5403
    %5405 = vrot.lane.b32.xlu0 %v5229, 16
    %v5406 = vpop.permute.xlu0 %5405
    %5407 = vrot.lane.b32.xlu0 %v5230, 16
    %v5408 = vpop.permute.xlu0 %5407
    %5409 = vrot.lane.b32.xlu0 %v5231, 16
    %v5410 = vpop.permute.xlu0 %5409
    %5411 = vrot.lane.b32.xlu0 %v5232, 16
    %v5412 = vpop.permute.xlu0 %5411
    %5413 = vrot.lane.b32.xlu0 %v5233, 16
    %v5414 = vpop.permute.xlu0 %5413
    %5415 = vrot.lane.b32.xlu0 %v5234, 16
    %v5416 = vpop.permute.xlu0 %5415
    %5417 = vrot.lane.b32.xlu0 %v5235, 16
    %v5418 = vpop.permute.xlu0 %5417
    %5419 = vrot.lane.b32.xlu0 %v5236, 16
    %v5420 = vpop.permute.xlu0 %5419
    %5421 = vrot.lane.b32.xlu0 %v5237, 16
    %v5422 = vpop.permute.xlu0 %5421
    %5423 = vrot.lane.b32.xlu0 %v5238, 16
    %v5424 = vpop.permute.xlu0 %5423
    %5425 = vrot.lane.b32.xlu0 %v5239, 16
    %v5426 = vpop.permute.xlu0 %5425
    %5427 = vrot.lane.b32.xlu0 %v5240, 16
    %v5428 = vpop.permute.xlu0 %5427
    %5429 = vrot.lane.b32.xlu0 %v5241, 16
    %v5430 = vpop.permute.xlu0 %5429
    %5431 = vrot.lane.b32.xlu0 %v5242, 16
    %v5432 = vpop.permute.xlu0 %5431
    %5433 = vrot.lane.b32.xlu0 %v5243, 16
    %v5434 = vpop.permute.xlu0 %5433
    %5435 = vrot.lane.b32.xlu0 %v5244, 16
    %v5436 = vpop.permute.xlu0 %5435
    %vm5501 = vcmask 195712
    %5502 = vst.msk [vmem:[#allocation5] sm:$0xff] %vm5501, %v5310
    %5503 = vst.msk [vmem:[#allocation5 + $0x8] sm:$0xff] %vm5501, %v5312
    %5504 = vst.msk [vmem:[#allocation5 + $0x10] sm:$0xff] %vm5501, %v5314
    %5505 = vst.msk [vmem:[#allocation5 + $0x18] sm:$0xff] %vm5501, %v5316
    %5506 = vst.msk [vmem:[#allocation5 + $0x20] sm:$0xff] %vm5501, %v5318
    %5507 = vst.msk [vmem:[#allocation5 + $0x28] sm:$0xff] %vm5501, %v5320
    %5508 = vst.msk [vmem:[#allocation5 + $0x30] sm:$0xff] %vm5501, %v5322
    %5509 = vst.msk [vmem:[#allocation5 + $0x38] sm:$0xff] %vm5501, %v5324
    %5510 = vst.msk [vmem:[#allocation5 + $0x40] sm:$0xff] %vm5501, %v5326
    %5511 = vst.msk [vmem:[#allocation5 + $0x48] sm:$0xff] %vm5501, %v5328
    %5512 = vst.msk [vmem:[#allocation5 + $0x50] sm:$0xff] %vm5501, %v5330
    %5513 = vst.msk [vmem:[#allocation5 + $0x58] sm:$0xff] %vm5501, %v5332
    %5514 = vst.msk [vmem:[#allocation5 + $0x60] sm:$0xff] %vm5501, %v5334
    %5515 = vst.msk [vmem:[#allocation5 + $0x68] sm:$0xff] %vm5501, %v5336
    %5516 = vst.msk [vmem:[#allocation5 + $0x70] sm:$0xff] %vm5501, %v5338
    %5517 = vst.msk [vmem:[#allocation5 + $0x78] sm:$0xff] %vm5501, %v5340
    %5518 = vst.msk [vmem:[#allocation5 + $0x80] sm:$0xff] %vm5501, %v5342
    %5519 = vst.msk [vmem:[#allocation5 + $0x88] sm:$0xff] %vm5501, %v5344
    %5520 = vst.msk [vmem:[#allocation5 + $0x90] sm:$0xff] %vm5501, %v5346
    %5521 = vst.msk [vmem:[#allocation5 + $0x98] sm:$0xff] %vm5501, %v5348
    %5522 = vst.msk [vmem:[#allocation5 + $0xa0] sm:$0xff] %vm5501, %v5350
    %5523 = vst.msk [vmem:[#allocation5 + $0xa8] sm:$0xff] %vm5501, %v5352
    %5524 = vst.msk [vmem:[#allocation5 + $0xb0] sm:$0xff] %vm5501, %v5354
    %5525 = vst.msk [vmem:[#allocation5 + $0xb8] sm:$0xff] %vm5501, %v5356
    %5526 = vst.msk [vmem:[#allocation5 + $0xc0] sm:$0xff] %vm5501, %v5358
    %5527 = vst.msk [vmem:[#allocation5 + $0xc8] sm:$0xff] %vm5501, %v5360
    %5528 = vst.msk [vmem:[#allocation5 + $0xd0] sm:$0xff] %vm5501, %v5362
    %5529 = vst.msk [vmem:[#allocation5 + $0xd8] sm:$0xff] %vm5501, %v5364
    %5530 = vst.msk [vmem:[#allocation5 + $0xe0] sm:$0xff] %vm5501, %v5366
    %5531 = vst.msk [vmem:[#allocation5 + $0xe8] sm:$0xff] %vm5501, %v5368
    %5532 = vst.msk [vmem:[#allocation5 + $0xf0] sm:$0xff] %vm5501, %v5370
    %5533 = vst.msk [vmem:[#allocation5 + $0xf8] sm:$0xff] %vm5501, %v5372
    %5534 = vst.msk [vmem:[#allocation5 + $0x100] sm:$0xff] %vm5501, %v5374
    %5535 = vst.msk [vmem:[#allocation5 + $0x108] sm:$0xff] %vm5501, %v5376
    %5536 = vst.msk [vmem:[#allocation5 + $0x110] sm:$0xff] %vm5501, %v5378
    %5537 = vst.msk [vmem:[#allocation5 + $0x118] sm:$0xff] %vm5501, %v5380
    %5538 = vst.msk [vmem:[#allocation5 + $0x120] sm:$0xff] %vm5501, %v5382
    %5539 = vst.msk [vmem:[#allocation5 + $0x128] sm:$0xff] %vm5501, %v5384
    %5540 = vst.msk [vmem:[#allocation5 + $0x130] sm:$0xff] %vm5501, %v5386
    %5541 = vst.msk [vmem:[#allocation5 + $0x138] sm:$0xff] %vm5501, %v5388
    %5542 = vst.msk [vmem:[#allocation5 + $0x140] sm:$0xff] %vm5501, %v5390
    %5543 = vst.msk [vmem:[#allocation5 + $0x148] sm:$0xff] %vm5501, %v5392
    %5544 = vst.msk [vmem:[#allocation5 + $0x150] sm:$0xff] %vm5501, %v5394
    %5545 = vst.msk [vmem:[#allocation5 + $0x158] sm:$0xff] %vm5501, %v5396
    %5546 = vst.msk [vmem:[#allocation5 + $0x160] sm:$0xff] %vm5501, %v5398
    %5547 = vst.msk [vmem:[#allocation5 + $0x168] sm:$0xff] %vm5501, %v5400
    %5548 = vst.msk [vmem:[#allocation5 + $0x170] sm:$0xff] %vm5501, %v5402
    %5549 = vst.msk [vmem:[#allocation5 + $0x178] sm:$0xff] %vm5501, %v5404
    %5550 = vst.msk [vmem:[#allocation5 + $0x180] sm:$0xff] %vm5501, %v5406
    %5551 = vst.msk [vmem:[#allocation5 + $0x188] sm:$0xff] %vm5501, %v5408
    %5552 = vst.msk [vmem:[#allocation5 + $0x190] sm:$0xff] %vm5501, %v5410
    %5553 = vst.msk [vmem:[#allocation5 + $0x198] sm:$0xff] %vm5501, %v5412
    %5554 = vst.msk [vmem:[#allocation5 + $0x1a0] sm:$0xff] %vm5501, %v5414
    %5555 = vst.msk [vmem:[#allocation5 + $0x1a8] sm:$0xff] %vm5501, %v5416
    %5556 = vst.msk [vmem:[#allocation5 + $0x1b0] sm:$0xff] %vm5501, %v5418
    %5557 = vst.msk [vmem:[#allocation5 + $0x1b8] sm:$0xff] %vm5501, %v5420
    %5558 = vst.msk [vmem:[#allocation5 + $0x1c0] sm:$0xff] %vm5501, %v5422
    %5559 = vst.msk [vmem:[#allocation5 + $0x1c8] sm:$0xff] %vm5501, %v5424
    %5560 = vst.msk [vmem:[#allocation5 + $0x1d0] sm:$0xff] %vm5501, %v5426
    %5561 = vst.msk [vmem:[#allocation5 + $0x1d8] sm:$0xff] %vm5501, %v5428
    %5562 = vst.msk [vmem:[#allocation5 + $0x1e0] sm:$0xff] %vm5501, %v5430
    %5563 = vst.msk [vmem:[#allocation5 + $0x1e8] sm:$0xff] %vm5501, %v5432
    %5564 = vst.msk [vmem:[#allocation5 + $0x1f0] sm:$0xff] %vm5501, %v5434
    %5565 = vst.msk [vmem:[#allocation5 + $0x1f8] sm:$0xff] %vm5501, %v5436
    %v5566 = vld [vmem:[%s4603] sm:$0xff]
    %v5567 = vld [vmem:[%s4603 + $0x8] sm:$0xff]
    %v5568 = vld [vmem:[%s4603 + $0x18] sm:$0xff]
    %v5569 = vld [vmem:[%s4603 + $0x20] sm:$0xff]
    %v5570 = vld [vmem:[%s4603 + $0x30] sm:$0xff]
    %v5571 = vld [vmem:[%s4603 + $0x38] sm:$0xff]
    %v5572 = vld [vmem:[%s4603 + $0x48] sm:$0xff]
    %v5573 = vld [vmem:[%s4603 + $0x50] sm:$0xff]
    %v5574 = vld [vmem:[%s4603 + $0x60] sm:$0xff]
    %v5575 = vld [vmem:[%s4603 + $0x68] sm:$0xff]
    %v5576 = vld [vmem:[%s4603 + $0x78] sm:$0xff]
    %v5577 = vld [vmem:[%s4603 + $0x80] sm:$0xff]
    %v5578 = vld [vmem:[%s4603 + $0x90] sm:$0xff]
    %v5579 = vld [vmem:[%s4603 + $0x98] sm:$0xff]
    %v5580 = vld [vmem:[%s4603 + $0xa8] sm:$0xff]
    %v5581 = vld [vmem:[%s4603 + $0xb0] sm:$0xff]
    %v5582 = vld [vmem:[%s4603 + $0xc0] sm:$0xff]
    %v5583 = vld [vmem:[%s4603 + $0xc8] sm:$0xff]
    %v5584 = vld [vmem:[%s4603 + $0xd8] sm:$0xff]
    %v5585 = vld [vmem:[%s4603 + $0xe0] sm:$0xff]
    %v5586 = vld [vmem:[%s4603 + $0xf0] sm:$0xff]
    %v5587 = vld [vmem:[%s4603 + $0xf8] sm:$0xff]
    %v5588 = vld [vmem:[%s4603 + $0x108] sm:$0xff]
    %v5589 = vld [vmem:[%s4603 + $0x110] sm:$0xff]
    %v5590 = vld [vmem:[%s4603 + $0x120] sm:$0xff]
    %v5591 = vld [vmem:[%s4603 + $0x128] sm:$0xff]
    %v5592 = vld [vmem:[%s4603 + $0x138] sm:$0xff]
    %v5593 = vld [vmem:[%s4603 + $0x140] sm:$0xff]
    %v5594 = vld [vmem:[%s4603 + $0x150] sm:$0xff]
    %v5595 = vld [vmem:[%s4603 + $0x158] sm:$0xff]
    %v5596 = vld [vmem:[%s4603 + $0x168] sm:$0xff]
    %v5597 = vld [vmem:[%s4603 + $0x170] sm:$0xff]
    %v5598 = vld [vmem:[%s4603 + $0x1b0] sm:$0xff]
    %v5599 = vld [vmem:[%s4603 + $0x1b8] sm:$0xff]
    %v5600 = vld [vmem:[%s4603 + $0x1c8] sm:$0xff]
    %v5601 = vld [vmem:[%s4603 + $0x1d0] sm:$0xff]
    %v5602 = vld [vmem:[%s4603 + $0x1e0] sm:$0xff]
    %v5603 = vld [vmem:[%s4603 + $0x1e8] sm:$0xff]
    %v5604 = vld [vmem:[%s4603 + $0x1f8] sm:$0xff]
    %v5605 = vld [vmem:[%s4603 + $0x200] sm:$0xff]
    %v5606 = vld [vmem:[%s4603 + $0x210] sm:$0xff]
    %v5607 = vld [vmem:[%s4603 + $0x218] sm:$0xff]
    %v5608 = vld [vmem:[%s4603 + $0x228] sm:$0xff]
    %v5609 = vld [vmem:[%s4603 + $0x230] sm:$0xff]
    %v5610 = vld [vmem:[%s4603 + $0x240] sm:$0xff]
    %v5611 = vld [vmem:[%s4603 + $0x248] sm:$0xff]
    %v5612 = vld [vmem:[%s4603 + $0x258] sm:$0xff]
    %v5613 = vld [vmem:[%s4603 + $0x260] sm:$0xff]
    %v5614 = vld [vmem:[%s4603 + $0x270] sm:$0xff]
    %v5615 = vld [vmem:[%s4603 + $0x278] sm:$0xff]
    %v5616 = vld [vmem:[%s4603 + $0x288] sm:$0xff]
    %v5617 = vld [vmem:[%s4603 + $0x290] sm:$0xff]
    %v5618 = vld [vmem:[%s4603 + $0x2a0] sm:$0xff]
    %v5619 = vld [vmem:[%s4603 + $0x2a8] sm:$0xff]
    %v5620 = vld [vmem:[%s4603 + $0x2b8] sm:$0xff]
    %v5621 = vld [vmem:[%s4603 + $0x2c0] sm:$0xff]
    %v5622 = vld [vmem:[%s4603 + $0x2d0] sm:$0xff]
    %v5623 = vld [vmem:[%s4603 + $0x2d8] sm:$0xff]
    %v5624 = vld [vmem:[%s4603 + $0x2e8] sm:$0xff]
    %v5625 = vld [vmem:[%s4603 + $0x2f0] sm:$0xff]
    %v5626 = vld [vmem:[%s4603 + $0x300] sm:$0xff]
    %v5627 = vld [vmem:[%s4603 + $0x308] sm:$0xff]
    %v5628 = vld [vmem:[%s4603 + $0x318] sm:$0xff]
    %v5629 = vld [vmem:[%s4603 + $0x320] sm:$0xff]
    %5694 = vrot.lane.b32.xlu0 %v5566, 24
    %v5695 = vpop.permute.xlu0 %5694
    %5696 = vrot.lane.b32.xlu0 %v5567, 24
    %v5697 = vpop.permute.xlu0 %5696
    %5698 = vrot.lane.b32.xlu0 %v5568, 24
    %v5699 = vpop.permute.xlu0 %5698
    %5700 = vrot.lane.b32.xlu0 %v5569, 24
    %v5701 = vpop.permute.xlu0 %5700
    %5702 = vrot.lane.b32.xlu0 %v5570, 24
    %v5703 = vpop.permute.xlu0 %5702
    %5704 = vrot.lane.b32.xlu0 %v5571, 24
    %v5705 = vpop.permute.xlu0 %5704
    %5706 = vrot.lane.b32.xlu0 %v5572, 24
    %v5707 = vpop.permute.xlu0 %5706
    %5708 = vrot.lane.b32.xlu0 %v5573, 24
    %v5709 = vpop.permute.xlu0 %5708
    %5710 = vrot.lane.b32.xlu0 %v5574, 24
    %v5711 = vpop.permute.xlu0 %5710
    %5712 = vrot.lane.b32.xlu0 %v5575, 24
    %v5713 = vpop.permute.xlu0 %5712
    %5714 = vrot.lane.b32.xlu0 %v5576, 24
    %v5715 = vpop.permute.xlu0 %5714
    %5716 = vrot.lane.b32.xlu0 %v5577, 24
    %v5717 = vpop.permute.xlu0 %5716
    %5718 = vrot.lane.b32.xlu0 %v5578, 24
    %v5719 = vpop.permute.xlu0 %5718
    %5720 = vrot.lane.b32.xlu0 %v5579, 24
    %v5721 = vpop.permute.xlu0 %5720
    %5722 = vrot.lane.b32.xlu0 %v5580, 24
    %v5723 = vpop.permute.xlu0 %5722
    %5724 = vrot.lane.b32.xlu0 %v5581, 24
    %v5725 = vpop.permute.xlu0 %5724
    %5726 = vrot.lane.b32.xlu0 %v5582, 24
    %v5727 = vpop.permute.xlu0 %5726
    %5728 = vrot.lane.b32.xlu0 %v5583, 24
    %v5729 = vpop.permute.xlu0 %5728
    %5730 = vrot.lane.b32.xlu0 %v5584, 24
    %v5731 = vpop.permute.xlu0 %5730
    %5732 = vrot.lane.b32.xlu0 %v5585, 24
    %v5733 = vpop.permute.xlu0 %5732
    %5734 = vrot.lane.b32.xlu0 %v5586, 24
    %v5735 = vpop.permute.xlu0 %5734
    %5736 = vrot.lane.b32.xlu0 %v5587, 24
    %v5737 = vpop.permute.xlu0 %5736
    %5738 = vrot.lane.b32.xlu0 %v5588, 24
    %v5739 = vpop.permute.xlu0 %5738
    %5740 = vrot.lane.b32.xlu0 %v5589, 24
    %v5741 = vpop.permute.xlu0 %5740
    %5742 = vrot.lane.b32.xlu0 %v5590, 24
    %v5743 = vpop.permute.xlu0 %5742
    %5744 = vrot.lane.b32.xlu0 %v5591, 24
    %v5745 = vpop.permute.xlu0 %5744
    %5746 = vrot.lane.b32.xlu0 %v5592, 24
    %v5747 = vpop.permute.xlu0 %5746
    %5748 = vrot.lane.b32.xlu0 %v5593, 24
    %v5749 = vpop.permute.xlu0 %5748
    %5750 = vrot.lane.b32.xlu0 %v5594, 24
    %v5751 = vpop.permute.xlu0 %5750
    %5752 = vrot.lane.b32.xlu0 %v5595, 24
    %v5753 = vpop.permute.xlu0 %5752
    %5754 = vrot.lane.b32.xlu0 %v5596, 24
    %v5755 = vpop.permute.xlu0 %5754
    %5756 = vrot.lane.b32.xlu0 %v5597, 24
    %v5757 = vpop.permute.xlu0 %5756
    %5758 = vrot.lane.b32.xlu0 %v5598, 24
    %v5759 = vpop.permute.xlu0 %5758
    %5760 = vrot.lane.b32.xlu0 %v5599, 24
    %v5761 = vpop.permute.xlu0 %5760
    %5762 = vrot.lane.b32.xlu0 %v5600, 24
    %v5763 = vpop.permute.xlu0 %5762
    %5764 = vrot.lane.b32.xlu0 %v5601, 24
    %v5765 = vpop.permute.xlu0 %5764
    %5766 = vrot.lane.b32.xlu0 %v5602, 24
    %v5767 = vpop.permute.xlu0 %5766
    %5768 = vrot.lane.b32.xlu0 %v5603, 24
    %v5769 = vpop.permute.xlu0 %5768
    %5770 = vrot.lane.b32.xlu0 %v5604, 24
    %v5771 = vpop.permute.xlu0 %5770
    %5772 = vrot.lane.b32.xlu0 %v5605, 24
    %v5773 = vpop.permute.xlu0 %5772
    %5774 = vrot.lane.b32.xlu0 %v5606, 24
    %v5775 = vpop.permute.xlu0 %5774
    %5776 = vrot.lane.b32.xlu0 %v5607, 24
    %v5777 = vpop.permute.xlu0 %5776
    %5778 = vrot.lane.b32.xlu0 %v5608, 24
    %v5779 = vpop.permute.xlu0 %5778
    %5780 = vrot.lane.b32.xlu0 %v5609, 24
    %v5781 = vpop.permute.xlu0 %5780
    %5782 = vrot.lane.b32.xlu0 %v5610, 24
    %v5783 = vpop.permute.xlu0 %5782
    %5784 = vrot.lane.b32.xlu0 %v5611, 24
    %v5785 = vpop.permute.xlu0 %5784
    %5786 = vrot.lane.b32.xlu0 %v5612, 24
    %v5787 = vpop.permute.xlu0 %5786
    %5788 = vrot.lane.b32.xlu0 %v5613, 24
    %v5789 = vpop.permute.xlu0 %5788
    %5790 = vrot.lane.b32.xlu0 %v5614, 24
    %v5791 = vpop.permute.xlu0 %5790
    %5792 = vrot.lane.b32.xlu0 %v5615, 24
    %v5793 = vpop.permute.xlu0 %5792
    %5794 = vrot.lane.b32.xlu0 %v5616, 24
    %v5795 = vpop.permute.xlu0 %5794
    %5796 = vrot.lane.b32.xlu0 %v5617, 24
    %v5797 = vpop.permute.xlu0 %5796
    %5798 = vrot.lane.b32.xlu0 %v5618, 24
    %v5799 = vpop.permute.xlu0 %5798
    %5800 = vrot.lane.b32.xlu0 %v5619, 24
    %v5801 = vpop.permute.xlu0 %5800
    %5802 = vrot.lane.b32.xlu0 %v5620, 24
    %v5803 = vpop.permute.xlu0 %5802
    %5804 = vrot.lane.b32.xlu0 %v5621, 24
    %v5805 = vpop.permute.xlu0 %5804
    %5806 = vrot.lane.b32.xlu0 %v5622, 24
    %v5807 = vpop.permute.xlu0 %5806
    %5808 = vrot.lane.b32.xlu0 %v5623, 24
    %v5809 = vpop.permute.xlu0 %5808
    %5810 = vrot.lane.b32.xlu0 %v5624, 24
    %v5811 = vpop.permute.xlu0 %5810
    %5812 = vrot.lane.b32.xlu0 %v5625, 24
    %v5813 = vpop.permute.xlu0 %5812
    %5814 = vrot.lane.b32.xlu0 %v5626, 24
    %v5815 = vpop.permute.xlu0 %5814
    %5816 = vrot.lane.b32.xlu0 %v5627, 24
    %v5817 = vpop.permute.xlu0 %5816
    %5818 = vrot.lane.b32.xlu0 %v5628, 24
    %v5819 = vpop.permute.xlu0 %5818
    %5820 = vrot.lane.b32.xlu0 %v5629, 24
    %v5821 = vpop.permute.xlu0 %5820
    %vm5886 = vcmask 261312
    %5887 = vst.msk [vmem:[#allocation5] sm:$0xff] %vm5886, %v5695
    %5888 = vst.msk [vmem:[#allocation5 + $0x8] sm:$0xff] %vm5886, %v5697
    %5889 = vst.msk [vmem:[#allocation5 + $0x10] sm:$0xff] %vm5886, %v5699
    %5890 = vst.msk [vmem:[#allocation5 + $0x18] sm:$0xff] %vm5886, %v5701
    %5891 = vst.msk [vmem:[#allocation5 + $0x20] sm:$0xff] %vm5886, %v5703
    %5892 = vst.msk [vmem:[#allocation5 + $0x28] sm:$0xff] %vm5886, %v5705
    %5893 = vst.msk [vmem:[#allocation5 + $0x30] sm:$0xff] %vm5886, %v5707
    %5894 = vst.msk [vmem:[#allocation5 + $0x38] sm:$0xff] %vm5886, %v5709
    %5895 = vst.msk [vmem:[#allocation5 + $0x40] sm:$0xff] %vm5886, %v5711
    %5896 = vst.msk [vmem:[#allocation5 + $0x48] sm:$0xff] %vm5886, %v5713
    %5897 = vst.msk [vmem:[#allocation5 + $0x50] sm:$0xff] %vm5886, %v5715
    %5898 = vst.msk [vmem:[#allocation5 + $0x58] sm:$0xff] %vm5886, %v5717
    %5899 = vst.msk [vmem:[#allocation5 + $0x60] sm:$0xff] %vm5886, %v5719
    %5900 = vst.msk [vmem:[#allocation5 + $0x68] sm:$0xff] %vm5886, %v5721
    %5901 = vst.msk [vmem:[#allocation5 + $0x70] sm:$0xff] %vm5886, %v5723
    %5902 = vst.msk [vmem:[#allocation5 + $0x78] sm:$0xff] %vm5886, %v5725
    %5903 = vst.msk [vmem:[#allocation5 + $0x80] sm:$0xff] %vm5886, %v5727
    %5904 = vst.msk [vmem:[#allocation5 + $0x88] sm:$0xff] %vm5886, %v5729
    %5905 = vst.msk [vmem:[#allocation5 + $0x90] sm:$0xff] %vm5886, %v5731
    %5906 = vst.msk [vmem:[#allocation5 + $0x98] sm:$0xff] %vm5886, %v5733
    %5907 = vst.msk [vmem:[#allocation5 + $0xa0] sm:$0xff] %vm5886, %v5735
    %5908 = vst.msk [vmem:[#allocation5 + $0xa8] sm:$0xff] %vm5886, %v5737
    %5909 = vst.msk [vmem:[#allocation5 + $0xb0] sm:$0xff] %vm5886, %v5739
    %5910 = vst.msk [vmem:[#allocation5 + $0xb8] sm:$0xff] %vm5886, %v5741
    %5911 = vst.msk [vmem:[#allocation5 + $0xc0] sm:$0xff] %vm5886, %v5743
    %5912 = vst.msk [vmem:[#allocation5 + $0xc8] sm:$0xff] %vm5886, %v5745
    %5913 = vst.msk [vmem:[#allocation5 + $0xd0] sm:$0xff] %vm5886, %v5747
    %5914 = vst.msk [vmem:[#allocation5 + $0xd8] sm:$0xff] %vm5886, %v5749
    %5915 = vst.msk [vmem:[#allocation5 + $0xe0] sm:$0xff] %vm5886, %v5751
    %5916 = vst.msk [vmem:[#allocation5 + $0xe8] sm:$0xff] %vm5886, %v5753
    %5917 = vst.msk [vmem:[#allocation5 + $0xf0] sm:$0xff] %vm5886, %v5755
    %5918 = vst.msk [vmem:[#allocation5 + $0xf8] sm:$0xff] %vm5886, %v5757
    %5919 = vst.msk [vmem:[#allocation5 + $0x100] sm:$0xff] %vm5886, %v5759
    %5920 = vst.msk [vmem:[#allocation5 + $0x108] sm:$0xff] %vm5886, %v5761
    %5921 = vst.msk [vmem:[#allocation5 + $0x110] sm:$0xff] %vm5886, %v5763
    %5922 = vst.msk [vmem:[#allocation5 + $0x118] sm:$0xff] %vm5886, %v5765
    %5923 = vst.msk [vmem:[#allocation5 + $0x120] sm:$0xff] %vm5886, %v5767
    %5924 = vst.msk [vmem:[#allocation5 + $0x128] sm:$0xff] %vm5886, %v5769
    %5925 = vst.msk [vmem:[#allocation5 + $0x130] sm:$0xff] %vm5886, %v5771
    %5926 = vst.msk [vmem:[#allocation5 + $0x138] sm:$0xff] %vm5886, %v5773
    %5927 = vst.msk [vmem:[#allocation5 + $0x140] sm:$0xff] %vm5886, %v5775
    %5928 = vst.msk [vmem:[#allocation5 + $0x148] sm:$0xff] %vm5886, %v5777
    %5929 = vst.msk [vmem:[#allocation5 + $0x150] sm:$0xff] %vm5886, %v5779
    %5930 = vst.msk [vmem:[#allocation5 + $0x158] sm:$0xff] %vm5886, %v5781
    %5931 = vst.msk [vmem:[#allocation5 + $0x160] sm:$0xff] %vm5886, %v5783
    %5932 = vst.msk [vmem:[#allocation5 + $0x168] sm:$0xff] %vm5886, %v5785
    %5933 = vst.msk [vmem:[#allocation5 + $0x170] sm:$0xff] %vm5886, %v5787
    %5934 = vst.msk [vmem:[#allocation5 + $0x178] sm:$0xff] %vm5886, %v5789
    %5935 = vst.msk [vmem:[#allocation5 + $0x180] sm:$0xff] %vm5886, %v5791
    %5936 = vst.msk [vmem:[#allocation5 + $0x188] sm:$0xff] %vm5886, %v5793
    %5937 = vst.msk [vmem:[#allocation5 + $0x190] sm:$0xff] %vm5886, %v5795
    %5938 = vst.msk [vmem:[#allocation5 + $0x198] sm:$0xff] %vm5886, %v5797
    %5939 = vst.msk [vmem:[#allocation5 + $0x1a0] sm:$0xff] %vm5886, %v5799
    %5940 = vst.msk [vmem:[#allocation5 + $0x1a8] sm:$0xff] %vm5886, %v5801
    %5941 = vst.msk [vmem:[#allocation5 + $0x1b0] sm:$0xff] %vm5886, %v5803
    %5942 = vst.msk [vmem:[#allocation5 + $0x1b8] sm:$0xff] %vm5886, %v5805
    %5943 = vst.msk [vmem:[#allocation5 + $0x1c0] sm:$0xff] %vm5886, %v5807
    %5944 = vst.msk [vmem:[#allocation5 + $0x1c8] sm:$0xff] %vm5886, %v5809
    %5945 = vst.msk [vmem:[#allocation5 + $0x1d0] sm:$0xff] %vm5886, %v5811
    %5946 = vst.msk [vmem:[#allocation5 + $0x1d8] sm:$0xff] %vm5886, %v5813
    %5947 = vst.msk [vmem:[#allocation5 + $0x1e0] sm:$0xff] %vm5886, %v5815
    %5948 = vst.msk [vmem:[#allocation5 + $0x1e8] sm:$0xff] %vm5886, %v5817
    %5949 = vst.msk [vmem:[#allocation5 + $0x1f0] sm:$0xff] %vm5886, %v5819
    %5950 = vst.msk [vmem:[#allocation5 + $0x1f8] sm:$0xff] %vm5886, %v5821
    %v5951 = vld [vmem:[%s4603 + $0x1] sm:$0xff]
    %v5952 = vld [vmem:[%s4603 + $0x9] sm:$0xff]
    %v5953 = vld [vmem:[%s4603 + $0x19] sm:$0xff]
    %v5954 = vld [vmem:[%s4603 + $0x21] sm:$0xff]
    %v5955 = vld [vmem:[%s4603 + $0x31] sm:$0xff]
    %v5956 = vld [vmem:[%s4603 + $0x39] sm:$0xff]
    %v5957 = vld [vmem:[%s4603 + $0x49] sm:$0xff]
    %v5958 = vld [vmem:[%s4603 + $0x51] sm:$0xff]
    %v5959 = vld [vmem:[%s4603 + $0x61] sm:$0xff]
    %v5960 = vld [vmem:[%s4603 + $0x69] sm:$0xff]
    %v5961 = vld [vmem:[%s4603 + $0x79] sm:$0xff]
    %v5962 = vld [vmem:[%s4603 + $0x81] sm:$0xff]
    %v5963 = vld [vmem:[%s4603 + $0x91] sm:$0xff]
    %v5964 = vld [vmem:[%s4603 + $0x99] sm:$0xff]
    %v5965 = vld [vmem:[%s4603 + $0xa9] sm:$0xff]
    %v5966 = vld [vmem:[%s4603 + $0xb1] sm:$0xff]
    %v5967 = vld [vmem:[%s4603 + $0xc1] sm:$0xff]
    %v5968 = vld [vmem:[%s4603 + $0xc9] sm:$0xff]
    %v5969 = vld [vmem:[%s4603 + $0xd9] sm:$0xff]
    %v5970 = vld [vmem:[%s4603 + $0xe1] sm:$0xff]
    %v5971 = vld [vmem:[%s4603 + $0xf1] sm:$0xff]
    %v5972 = vld [vmem:[%s4603 + $0xf9] sm:$0xff]
    %v5973 = vld [vmem:[%s4603 + $0x109] sm:$0xff]
    %v5974 = vld [vmem:[%s4603 + $0x111] sm:$0xff]
    %v5975 = vld [vmem:[%s4603 + $0x121] sm:$0xff]
    %v5976 = vld [vmem:[%s4603 + $0x129] sm:$0xff]
    %v5977 = vld [vmem:[%s4603 + $0x139] sm:$0xff]
    %v5978 = vld [vmem:[%s4603 + $0x141] sm:$0xff]
    %v5979 = vld [vmem:[%s4603 + $0x151] sm:$0xff]
    %v5980 = vld [vmem:[%s4603 + $0x159] sm:$0xff]
    %v5981 = vld [vmem:[%s4603 + $0x169] sm:$0xff]
    %v5982 = vld [vmem:[%s4603 + $0x171] sm:$0xff]
    %v5983 = vld [vmem:[%s4603 + $0x1b1] sm:$0xff]
    %v5984 = vld [vmem:[%s4603 + $0x1b9] sm:$0xff]
    %v5985 = vld [vmem:[%s4603 + $0x1c9] sm:$0xff]
    %v5986 = vld [vmem:[%s4603 + $0x1d1] sm:$0xff]
    %v5987 = vld [vmem:[%s4603 + $0x1e1] sm:$0xff]
    %v5988 = vld [vmem:[%s4603 + $0x1e9] sm:$0xff]
    %v5989 = vld [vmem:[%s4603 + $0x1f9] sm:$0xff]
    %v5990 = vld [vmem:[%s4603 + $0x201] sm:$0xff]
    %v5991 = vld [vmem:[%s4603 + $0x211] sm:$0xff]
    %v5992 = vld [vmem:[%s4603 + $0x219] sm:$0xff]
    %v5993 = vld [vmem:[%s4603 + $0x229] sm:$0xff]
    %v5994 = vld [vmem:[%s4603 + $0x231] sm:$0xff]
    %v5995 = vld [vmem:[%s4603 + $0x241] sm:$0xff]
    %v5996 = vld [vmem:[%s4603 + $0x249] sm:$0xff]
    %v5997 = vld [vmem:[%s4603 + $0x259] sm:$0xff]
    %v5998 = vld [vmem:[%s4603 + $0x261] sm:$0xff]
    %v5999 = vld [vmem:[%s4603 + $0x271] sm:$0xff]
    %v6000 = vld [vmem:[%s4603 + $0x279] sm:$0xff]
    %v6001 = vld [vmem:[%s4603 + $0x289] sm:$0xff]
    %v6002 = vld [vmem:[%s4603 + $0x291] sm:$0xff]
    %v6003 = vld [vmem:[%s4603 + $0x2a1] sm:$0xff]
    %v6004 = vld [vmem:[%s4603 + $0x2a9] sm:$0xff]
    %v6005 = vld [vmem:[%s4603 + $0x2b9] sm:$0xff]
    %v6006 = vld [vmem:[%s4603 + $0x2c1] sm:$0xff]
    %v6007 = vld [vmem:[%s4603 + $0x2d1] sm:$0xff]
    %v6008 = vld [vmem:[%s4603 + $0x2d9] sm:$0xff]
    %v6009 = vld [vmem:[%s4603 + $0x2e9] sm:$0xff]
    %v6010 = vld [vmem:[%s4603 + $0x2f1] sm:$0xff]
    %v6011 = vld [vmem:[%s4603 + $0x301] sm:$0xff]
    %v6012 = vld [vmem:[%s4603 + $0x309] sm:$0xff]
    %v6013 = vld [vmem:[%s4603 + $0x319] sm:$0xff]
    %v6014 = vld [vmem:[%s4603 + $0x321] sm:$0xff]
    %6079 = vrot.lane.b32.xlu0 %v5951, 32
    %v6080 = vpop.permute.xlu0 %6079
    %6081 = vrot.lane.b32.xlu0 %v5952, 32
    %v6082 = vpop.permute.xlu0 %6081
    %6083 = vrot.lane.b32.xlu0 %v5953, 32
    %v6084 = vpop.permute.xlu0 %6083
    %6085 = vrot.lane.b32.xlu0 %v5954, 32
    %v6086 = vpop.permute.xlu0 %6085
    %6087 = vrot.lane.b32.xlu0 %v5955, 32
    %v6088 = vpop.permute.xlu0 %6087
    %6089 = vrot.lane.b32.xlu0 %v5956, 32
    %v6090 = vpop.permute.xlu0 %6089
    %6091 = vrot.lane.b32.xlu0 %v5957, 32
    %v6092 = vpop.permute.xlu0 %6091
    %6093 = vrot.lane.b32.xlu0 %v5958, 32
    %v6094 = vpop.permute.xlu0 %6093
    %6095 = vrot.lane.b32.xlu0 %v5959, 32
    %v6096 = vpop.permute.xlu0 %6095
    %6097 = vrot.lane.b32.xlu0 %v5960, 32
    %v6098 = vpop.permute.xlu0 %6097
    %6099 = vrot.lane.b32.xlu0 %v5961, 32
    %v6100 = vpop.permute.xlu0 %6099
    %6101 = vrot.lane.b32.xlu0 %v5962, 32
    %v6102 = vpop.permute.xlu0 %6101
    %6103 = vrot.lane.b32.xlu0 %v5963, 32
    %v6104 = vpop.permute.xlu0 %6103
    %6105 = vrot.lane.b32.xlu0 %v5964, 32
    %v6106 = vpop.permute.xlu0 %6105
    %6107 = vrot.lane.b32.xlu0 %v5965, 32
    %v6108 = vpop.permute.xlu0 %6107
    %6109 = vrot.lane.b32.xlu0 %v5966, 32
    %v6110 = vpop.permute.xlu0 %6109
    %6111 = vrot.lane.b32.xlu0 %v5967, 32
    %v6112 = vpop.permute.xlu0 %6111
    %6113 = vrot.lane.b32.xlu0 %v5968, 32
    %v6114 = vpop.permute.xlu0 %6113
    %6115 = vrot.lane.b32.xlu0 %v5969, 32
    %v6116 = vpop.permute.xlu0 %6115
    %6117 = vrot.lane.b32.xlu0 %v5970, 32
    %v6118 = vpop.permute.xlu0 %6117
    %6119 = vrot.lane.b32.xlu0 %v5971, 32
    %v6120 = vpop.permute.xlu0 %6119
    %6121 = vrot.lane.b32.xlu0 %v5972, 32
    %v6122 = vpop.permute.xlu0 %6121
    %6123 = vrot.lane.b32.xlu0 %v5973, 32
    %v6124 = vpop.permute.xlu0 %6123
    %6125 = vrot.lane.b32.xlu0 %v5974, 32
    %v6126 = vpop.permute.xlu0 %6125
    %6127 = vrot.lane.b32.xlu0 %v5975, 32
    %v6128 = vpop.permute.xlu0 %6127
    %6129 = vrot.lane.b32.xlu0 %v5976, 32
    %v6130 = vpop.permute.xlu0 %6129
    %6131 = vrot.lane.b32.xlu0 %v5977, 32
    %v6132 = vpop.permute.xlu0 %6131
    %6133 = vrot.lane.b32.xlu0 %v5978, 32
    %v6134 = vpop.permute.xlu0 %6133
    %6135 = vrot.lane.b32.xlu0 %v5979, 32
    %v6136 = vpop.permute.xlu0 %6135
    %6137 = vrot.lane.b32.xlu0 %v5980, 32
    %v6138 = vpop.permute.xlu0 %6137
    %6139 = vrot.lane.b32.xlu0 %v5981, 32
    %v6140 = vpop.permute.xlu0 %6139
    %6141 = vrot.lane.b32.xlu0 %v5982, 32
    %v6142 = vpop.permute.xlu0 %6141
    %6143 = vrot.lane.b32.xlu0 %v5983, 32
    %v6144 = vpop.permute.xlu0 %6143
    %6145 = vrot.lane.b32.xlu0 %v5984, 32
    %v6146 = vpop.permute.xlu0 %6145
    %6147 = vrot.lane.b32.xlu0 %v5985, 32
    %v6148 = vpop.permute.xlu0 %6147
    %6149 = vrot.lane.b32.xlu0 %v5986, 32
    %v6150 = vpop.permute.xlu0 %6149
    %6151 = vrot.lane.b32.xlu0 %v5987, 32
    %v6152 = vpop.permute.xlu0 %6151
    %6153 = vrot.lane.b32.xlu0 %v5988, 32
    %v6154 = vpop.permute.xlu0 %6153
    %6155 = vrot.lane.b32.xlu0 %v5989, 32
    %v6156 = vpop.permute.xlu0 %6155
    %6157 = vrot.lane.b32.xlu0 %v5990, 32
    %v6158 = vpop.permute.xlu0 %6157
    %6159 = vrot.lane.b32.xlu0 %v5991, 32
    %v6160 = vpop.permute.xlu0 %6159
    %6161 = vrot.lane.b32.xlu0 %v5992, 32
    %v6162 = vpop.permute.xlu0 %6161
    %6163 = vrot.lane.b32.xlu0 %v5993, 32
    %v6164 = vpop.permute.xlu0 %6163
    %6165 = vrot.lane.b32.xlu0 %v5994, 32
    %v6166 = vpop.permute.xlu0 %6165
    %6167 = vrot.lane.b32.xlu0 %v5995, 32
    %v6168 = vpop.permute.xlu0 %6167
    %6169 = vrot.lane.b32.xlu0 %v5996, 32
    %v6170 = vpop.permute.xlu0 %6169
    %6171 = vrot.lane.b32.xlu0 %v5997, 32
    %v6172 = vpop.permute.xlu0 %6171
    %6173 = vrot.lane.b32.xlu0 %v5998, 32
    %v6174 = vpop.permute.xlu0 %6173
    %6175 = vrot.lane.b32.xlu0 %v5999, 32
    %v6176 = vpop.permute.xlu0 %6175
    %6177 = vrot.lane.b32.xlu0 %v6000, 32
    %v6178 = vpop.permute.xlu0 %6177
    %6179 = vrot.lane.b32.xlu0 %v6001, 32
    %v6180 = vpop.permute.xlu0 %6179
    %6181 = vrot.lane.b32.xlu0 %v6002, 32
    %v6182 = vpop.permute.xlu0 %6181
    %6183 = vrot.lane.b32.xlu0 %v6003, 32
    %v6184 = vpop.permute.xlu0 %6183
    %6185 = vrot.lane.b32.xlu0 %v6004, 32
    %v6186 = vpop.permute.xlu0 %6185
    %6187 = vrot.lane.b32.xlu0 %v6005, 32
    %v6188 = vpop.permute.xlu0 %6187
    %6189 = vrot.lane.b32.xlu0 %v6006, 32
    %v6190 = vpop.permute.xlu0 %6189
    %6191 = vrot.lane.b32.xlu0 %v6007, 32
    %v6192 = vpop.permute.xlu0 %6191
    %6193 = vrot.lane.b32.xlu0 %v6008, 32
    %v6194 = vpop.permute.xlu0 %6193
    %6195 = vrot.lane.b32.xlu0 %v6009, 32
    %v6196 = vpop.permute.xlu0 %6195
    %6197 = vrot.lane.b32.xlu0 %v6010, 32
    %v6198 = vpop.permute.xlu0 %6197
    %6199 = vrot.lane.b32.xlu0 %v6011, 32
    %v6200 = vpop.permute.xlu0 %6199
    %6201 = vrot.lane.b32.xlu0 %v6012, 32
    %v6202 = vpop.permute.xlu0 %6201
    %6203 = vrot.lane.b32.xlu0 %v6013, 32
    %v6204 = vpop.permute.xlu0 %6203
    %6205 = vrot.lane.b32.xlu0 %v6014, 32
    %v6206 = vpop.permute.xlu0 %6205
    %vm6271 = vcmask 326912
    %6272 = vst.msk [vmem:[#allocation5] sm:$0xff] %vm6271, %v6080
    %6273 = vst.msk [vmem:[#allocation5 + $0x8] sm:$0xff] %vm6271, %v6082
    %6274 = vst.msk [vmem:[#allocation5 + $0x10] sm:$0xff] %vm6271, %v6084
    %6275 = vst.msk [vmem:[#allocation5 + $0x18] sm:$0xff] %vm6271, %v6086
    %6276 = vst.msk [vmem:[#allocation5 + $0x20] sm:$0xff] %vm6271, %v6088
    %6277 = vst.msk [vmem:[#allocation5 + $0x28] sm:$0xff] %vm6271, %v6090
    %6278 = vst.msk [vmem:[#allocation5 + $0x30] sm:$0xff] %vm6271, %v6092
    %6279 = vst.msk [vmem:[#allocation5 + $0x38] sm:$0xff] %vm6271, %v6094
    %6280 = vst.msk [vmem:[#allocation5 + $0x40] sm:$0xff] %vm6271, %v6096
    %6281 = vst.msk [vmem:[#allocation5 + $0x48] sm:$0xff] %vm6271, %v6098
    %6282 = vst.msk [vmem:[#allocation5 + $0x50] sm:$0xff] %vm6271, %v6100
    %6283 = vst.msk [vmem:[#allocation5 + $0x58] sm:$0xff] %vm6271, %v6102
    %6284 = vst.msk [vmem:[#allocation5 + $0x60] sm:$0xff] %vm6271, %v6104
    %6285 = vst.msk [vmem:[#allocation5 + $0x68] sm:$0xff] %vm6271, %v6106
    %6286 = vst.msk [vmem:[#allocation5 + $0x70] sm:$0xff] %vm6271, %v6108
    %6287 = vst.msk [vmem:[#allocation5 + $0x78] sm:$0xff] %vm6271, %v6110
    %6288 = vst.msk [vmem:[#allocation5 + $0x80] sm:$0xff] %vm6271, %v6112
    %6289 = vst.msk [vmem:[#allocation5 + $0x88] sm:$0xff] %vm6271, %v6114
    %6290 = vst.msk [vmem:[#allocation5 + $0x90] sm:$0xff] %vm6271, %v6116
    %6291 = vst.msk [vmem:[#allocation5 + $0x98] sm:$0xff] %vm6271, %v6118
    %6292 = vst.msk [vmem:[#allocation5 + $0xa0] sm:$0xff] %vm6271, %v6120
    %6293 = vst.msk [vmem:[#allocation5 + $0xa8] sm:$0xff] %vm6271, %v6122
    %6294 = vst.msk [vmem:[#allocation5 + $0xb0] sm:$0xff] %vm6271, %v6124
    %6295 = vst.msk [vmem:[#allocation5 + $0xb8] sm:$0xff] %vm6271, %v6126
    %6296 = vst.msk [vmem:[#allocation5 + $0xc0] sm:$0xff] %vm6271, %v6128
    %6297 = vst.msk [vmem:[#allocation5 + $0xc8] sm:$0xff] %vm6271, %v6130
    %6298 = vst.msk [vmem:[#allocation5 + $0xd0] sm:$0xff] %vm6271, %v6132
    %6299 = vst.msk [vmem:[#allocation5 + $0xd8] sm:$0xff] %vm6271, %v6134
    %6300 = vst.msk [vmem:[#allocation5 + $0xe0] sm:$0xff] %vm6271, %v6136
    %6301 = vst.msk [vmem:[#allocation5 + $0xe8] sm:$0xff] %vm6271, %v6138
    %6302 = vst.msk [vmem:[#allocation5 + $0xf0] sm:$0xff] %vm6271, %v6140
    %6303 = vst.msk [vmem:[#allocation5 + $0xf8] sm:$0xff] %vm6271, %v6142
    %6304 = vst.msk [vmem:[#allocation5 + $0x100] sm:$0xff] %vm6271, %v6144
    %6305 = vst.msk [vmem:[#allocation5 + $0x108] sm:$0xff] %vm6271, %v6146
    %6306 = vst.msk [vmem:[#allocation5 + $0x110] sm:$0xff] %vm6271, %v6148
    %6307 = vst.msk [vmem:[#allocation5 + $0x118] sm:$0xff] %vm6271, %v6150
    %6308 = vst.msk [vmem:[#allocation5 + $0x120] sm:$0xff] %vm6271, %v6152
    %6309 = vst.msk [vmem:[#allocation5 + $0x128] sm:$0xff] %vm6271, %v6154
    %6310 = vst.msk [vmem:[#allocation5 + $0x130] sm:$0xff] %vm6271, %v6156
    %6311 = vst.msk [vmem:[#allocation5 + $0x138] sm:$0xff] %vm6271, %v6158
    %6312 = vst.msk [vmem:[#allocation5 + $0x140] sm:$0xff] %vm6271, %v6160
    %6313 = vst.msk [vmem:[#allocation5 + $0x148] sm:$0xff] %vm6271, %v6162
    %6314 = vst.msk [vmem:[#allocation5 + $0x150] sm:$0xff] %vm6271, %v6164
    %6315 = vst.msk [vmem:[#allocation5 + $0x158] sm:$0xff] %vm6271, %v6166
    %6316 = vst.msk [vmem:[#allocation5 + $0x160] sm:$0xff] %vm6271, %v6168
    %6317 = vst.msk [vmem:[#allocation5 + $0x168] sm:$0xff] %vm6271, %v6170
    %6318 = vst.msk [vmem:[#allocation5 + $0x170] sm:$0xff] %vm6271, %v6172
    %6319 = vst.msk [vmem:[#allocation5 + $0x178] sm:$0xff] %vm6271, %v6174
    %6320 = vst.msk [vmem:[#allocation5 + $0x180] sm:$0xff] %vm6271, %v6176
    %6321 = vst.msk [vmem:[#allocation5 + $0x188] sm:$0xff] %vm6271, %v6178
    %6322 = vst.msk [vmem:[#allocation5 + $0x190] sm:$0xff] %vm6271, %v6180
    %6323 = vst.msk [vmem:[#allocation5 + $0x198] sm:$0xff] %vm6271, %v6182
    %6324 = vst.msk [vmem:[#allocation5 + $0x1a0] sm:$0xff] %vm6271, %v6184
    %6325 = vst.msk [vmem:[#allocation5 + $0x1a8] sm:$0xff] %vm6271, %v6186
    %6326 = vst.msk [vmem:[#allocation5 + $0x1b0] sm:$0xff] %vm6271, %v6188
    %6327 = vst.msk [vmem:[#allocation5 + $0x1b8] sm:$0xff] %vm6271, %v6190
    %6328 = vst.msk [vmem:[#allocation5 + $0x1c0] sm:$0xff] %vm6271, %v6192
    %6329 = vst.msk [vmem:[#allocation5 + $0x1c8] sm:$0xff] %vm6271, %v6194
    %6330 = vst.msk [vmem:[#allocation5 + $0x1d0] sm:$0xff] %vm6271, %v6196
    %6331 = vst.msk [vmem:[#allocation5 + $0x1d8] sm:$0xff] %vm6271, %v6198
    %6332 = vst.msk [vmem:[#allocation5 + $0x1e0] sm:$0xff] %vm6271, %v6200
    %6333 = vst.msk [vmem:[#allocation5 + $0x1e8] sm:$0xff] %vm6271, %v6202
    %6334 = vst.msk [vmem:[#allocation5 + $0x1f0] sm:$0xff] %vm6271, %v6204
    %6335 = vst.msk [vmem:[#allocation5 + $0x1f8] sm:$0xff] %vm6271, %v6206
    %v6336 = vld [vmem:[%s4603 + $0x2] sm:$0xff]
    %v6337 = vld [vmem:[%s4603 + $0xa] sm:$0xff]
    %v6338 = vld [vmem:[%s4603 + $0x1a] sm:$0xff]
    %v6339 = vld [vmem:[%s4603 + $0x22] sm:$0xff]
    %v6340 = vld [vmem:[%s4603 + $0x32] sm:$0xff]
    %v6341 = vld [vmem:[%s4603 + $0x3a] sm:$0xff]
    %v6342 = vld [vmem:[%s4603 + $0x4a] sm:$0xff]
    %v6343 = vld [vmem:[%s4603 + $0x52] sm:$0xff]
    %v6344 = vld [vmem:[%s4603 + $0x62] sm:$0xff]
    %v6345 = vld [vmem:[%s4603 + $0x6a] sm:$0xff]
    %v6346 = vld [vmem:[%s4603 + $0x7a] sm:$0xff]
    %v6347 = vld [vmem:[%s4603 + $0x82] sm:$0xff]
    %v6348 = vld [vmem:[%s4603 + $0x92] sm:$0xff]
    %v6349 = vld [vmem:[%s4603 + $0x9a] sm:$0xff]
    %v6350 = vld [vmem:[%s4603 + $0xaa] sm:$0xff]
    %v6351 = vld [vmem:[%s4603 + $0xb2] sm:$0xff]
    %v6352 = vld [vmem:[%s4603 + $0xc2] sm:$0xff]
    %v6353 = vld [vmem:[%s4603 + $0xca] sm:$0xff]
    %v6354 = vld [vmem:[%s4603 + $0xda] sm:$0xff]
    %v6355 = vld [vmem:[%s4603 + $0xe2] sm:$0xff]
    %v6356 = vld [vmem:[%s4603 + $0xf2] sm:$0xff]
    %v6357 = vld [vmem:[%s4603 + $0xfa] sm:$0xff]
    %v6358 = vld [vmem:[%s4603 + $0x10a] sm:$0xff]
    %v6359 = vld [vmem:[%s4603 + $0x112] sm:$0xff]
    %v6360 = vld [vmem:[%s4603 + $0x122] sm:$0xff]
    %v6361 = vld [vmem:[%s4603 + $0x12a] sm:$0xff]
    %v6362 = vld [vmem:[%s4603 + $0x13a] sm:$0xff]
    %v6363 = vld [vmem:[%s4603 + $0x142] sm:$0xff]
    %v6364 = vld [vmem:[%s4603 + $0x152] sm:$0xff]
    %v6365 = vld [vmem:[%s4603 + $0x15a] sm:$0xff]
    %v6366 = vld [vmem:[%s4603 + $0x16a] sm:$0xff]
    %v6367 = vld [vmem:[%s4603 + $0x172] sm:$0xff]
    %v6368 = vld [vmem:[%s4603 + $0x1b2] sm:$0xff]
    %v6369 = vld [vmem:[%s4603 + $0x1ba] sm:$0xff]
    %v6370 = vld [vmem:[%s4603 + $0x1ca] sm:$0xff]
    %v6371 = vld [vmem:[%s4603 + $0x1d2] sm:$0xff]
    %v6372 = vld [vmem:[%s4603 + $0x1e2] sm:$0xff]
    %v6373 = vld [vmem:[%s4603 + $0x1ea] sm:$0xff]
    %v6374 = vld [vmem:[%s4603 + $0x1fa] sm:$0xff]
    %v6375 = vld [vmem:[%s4603 + $0x202] sm:$0xff]
    %v6376 = vld [vmem:[%s4603 + $0x212] sm:$0xff]
    %v6377 = vld [vmem:[%s4603 + $0x21a] sm:$0xff]
    %v6378 = vld [vmem:[%s4603 + $0x22a] sm:$0xff]
    %v6379 = vld [vmem:[%s4603 + $0x232] sm:$0xff]
    %v6380 = vld [vmem:[%s4603 + $0x242] sm:$0xff]
    %v6381 = vld [vmem:[%s4603 + $0x24a] sm:$0xff]
    %v6382 = vld [vmem:[%s4603 + $0x25a] sm:$0xff]
    %v6383 = vld [vmem:[%s4603 + $0x262] sm:$0xff]
    %v6384 = vld [vmem:[%s4603 + $0x272] sm:$0xff]
    %v6385 = vld [vmem:[%s4603 + $0x27a] sm:$0xff]
    %v6386 = vld [vmem:[%s4603 + $0x28a] sm:$0xff]
    %v6387 = vld [vmem:[%s4603 + $0x292] sm:$0xff]
    %v6388 = vld [vmem:[%s4603 + $0x2a2] sm:$0xff]
    %v6389 = vld [vmem:[%s4603 + $0x2aa] sm:$0xff]
    %v6390 = vld [vmem:[%s4603 + $0x2ba] sm:$0xff]
    %v6391 = vld [vmem:[%s4603 + $0x2c2] sm:$0xff]
    %v6392 = vld [vmem:[%s4603 + $0x2d2] sm:$0xff]
    %v6393 = vld [vmem:[%s4603 + $0x2da] sm:$0xff]
    %v6394 = vld [vmem:[%s4603 + $0x2ea] sm:$0xff]
    %v6395 = vld [vmem:[%s4603 + $0x2f2] sm:$0xff]
    %v6396 = vld [vmem:[%s4603 + $0x302] sm:$0xff]
    %v6397 = vld [vmem:[%s4603 + $0x30a] sm:$0xff]
    %v6398 = vld [vmem:[%s4603 + $0x31a] sm:$0xff]
    %v6399 = vld [vmem:[%s4603 + $0x322] sm:$0xff]
    %6464 = vrot.lane.b32.xlu0 %v6336, 40
    %v6465 = vpop.permute.xlu0 %6464
    %6466 = vrot.lane.b32.xlu0 %v6337, 40
    %v6467 = vpop.permute.xlu0 %6466
    %6468 = vrot.lane.b32.xlu0 %v6338, 40
    %v6469 = vpop.permute.xlu0 %6468
    %6470 = vrot.lane.b32.xlu0 %v6339, 40
    %v6471 = vpop.permute.xlu0 %6470
    %6472 = vrot.lane.b32.xlu0 %v6340, 40
    %v6473 = vpop.permute.xlu0 %6472
    %6474 = vrot.lane.b32.xlu0 %v6341, 40
    %v6475 = vpop.permute.xlu0 %6474
    %6476 = vrot.lane.b32.xlu0 %v6342, 40
    %v6477 = vpop.permute.xlu0 %6476
    %6478 = vrot.lane.b32.xlu0 %v6343, 40
    %v6479 = vpop.permute.xlu0 %6478
    %6480 = vrot.lane.b32.xlu0 %v6344, 40
    %v6481 = vpop.permute.xlu0 %6480
    %6482 = vrot.lane.b32.xlu0 %v6345, 40
    %v6483 = vpop.permute.xlu0 %6482
    %6484 = vrot.lane.b32.xlu0 %v6346, 40
    %v6485 = vpop.permute.xlu0 %6484
    %6486 = vrot.lane.b32.xlu0 %v6347, 40
    %v6487 = vpop.permute.xlu0 %6486
    %6488 = vrot.lane.b32.xlu0 %v6348, 40
    %v6489 = vpop.permute.xlu0 %6488
    %6490 = vrot.lane.b32.xlu0 %v6349, 40
    %v6491 = vpop.permute.xlu0 %6490
    %6492 = vrot.lane.b32.xlu0 %v6350, 40
    %v6493 = vpop.permute.xlu0 %6492
    %6494 = vrot.lane.b32.xlu0 %v6351, 40
    %v6495 = vpop.permute.xlu0 %6494
    %6496 = vrot.lane.b32.xlu0 %v6352, 40
    %v6497 = vpop.permute.xlu0 %6496
    %6498 = vrot.lane.b32.xlu0 %v6353, 40
    %v6499 = vpop.permute.xlu0 %6498
    %6500 = vrot.lane.b32.xlu0 %v6354, 40
    %v6501 = vpop.permute.xlu0 %6500
    %6502 = vrot.lane.b32.xlu0 %v6355, 40
    %v6503 = vpop.permute.xlu0 %6502
    %6504 = vrot.lane.b32.xlu0 %v6356, 40
    %v6505 = vpop.permute.xlu0 %6504
    %6506 = vrot.lane.b32.xlu0 %v6357, 40
    %v6507 = vpop.permute.xlu0 %6506
    %6508 = vrot.lane.b32.xlu0 %v6358, 40
    %v6509 = vpop.permute.xlu0 %6508
    %6510 = vrot.lane.b32.xlu0 %v6359, 40
    %v6511 = vpop.permute.xlu0 %6510
    %6512 = vrot.lane.b32.xlu0 %v6360, 40
    %v6513 = vpop.permute.xlu0 %6512
    %6514 = vrot.lane.b32.xlu0 %v6361, 40
    %v6515 = vpop.permute.xlu0 %6514
    %6516 = vrot.lane.b32.xlu0 %v6362, 40
    %v6517 = vpop.permute.xlu0 %6516
    %6518 = vrot.lane.b32.xlu0 %v6363, 40
    %v6519 = vpop.permute.xlu0 %6518
    %6520 = vrot.lane.b32.xlu0 %v6364, 40
    %v6521 = vpop.permute.xlu0 %6520
    %6522 = vrot.lane.b32.xlu0 %v6365, 40
    %v6523 = vpop.permute.xlu0 %6522
    %6524 = vrot.lane.b32.xlu0 %v6366, 40
    %v6525 = vpop.permute.xlu0 %6524
    %6526 = vrot.lane.b32.xlu0 %v6367, 40
    %v6527 = vpop.permute.xlu0 %6526
    %6528 = vrot.lane.b32.xlu0 %v6368, 40
    %v6529 = vpop.permute.xlu0 %6528
    %6530 = vrot.lane.b32.xlu0 %v6369, 40
    %v6531 = vpop.permute.xlu0 %6530
    %6532 = vrot.lane.b32.xlu0 %v6370, 40
    %v6533 = vpop.permute.xlu0 %6532
    %6534 = vrot.lane.b32.xlu0 %v6371, 40
    %v6535 = vpop.permute.xlu0 %6534
    %6536 = vrot.lane.b32.xlu0 %v6372, 40
    %v6537 = vpop.permute.xlu0 %6536
    %6538 = vrot.lane.b32.xlu0 %v6373, 40
    %v6539 = vpop.permute.xlu0 %6538
    %6540 = vrot.lane.b32.xlu0 %v6374, 40
    %v6541 = vpop.permute.xlu0 %6540
    %6542 = vrot.lane.b32.xlu0 %v6375, 40
    %v6543 = vpop.permute.xlu0 %6542
    %6544 = vrot.lane.b32.xlu0 %v6376, 40
    %v6545 = vpop.permute.xlu0 %6544
    %6546 = vrot.lane.b32.xlu0 %v6377, 40
    %v6547 = vpop.permute.xlu0 %6546
    %6548 = vrot.lane.b32.xlu0 %v6378, 40
    %v6549 = vpop.permute.xlu0 %6548
    %6550 = vrot.lane.b32.xlu0 %v6379, 40
    %v6551 = vpop.permute.xlu0 %6550
    %6552 = vrot.lane.b32.xlu0 %v6380, 40
    %v6553 = vpop.permute.xlu0 %6552
    %6554 = vrot.lane.b32.xlu0 %v6381, 40
    %v6555 = vpop.permute.xlu0 %6554
    %6556 = vrot.lane.b32.xlu0 %v6382, 40
    %v6557 = vpop.permute.xlu0 %6556
    %6558 = vrot.lane.b32.xlu0 %v6383, 40
    %v6559 = vpop.permute.xlu0 %6558
    %6560 = vrot.lane.b32.xlu0 %v6384, 40
    %v6561 = vpop.permute.xlu0 %6560
    %6562 = vrot.lane.b32.xlu0 %v6385, 40
    %v6563 = vpop.permute.xlu0 %6562
    %6564 = vrot.lane.b32.xlu0 %v6386, 40
    %v6565 = vpop.permute.xlu0 %6564
    %6566 = vrot.lane.b32.xlu0 %v6387, 40
    %v6567 = vpop.permute.xlu0 %6566
    %6568 = vrot.lane.b32.xlu0 %v6388, 40
    %v6569 = vpop.permute.xlu0 %6568
    %6570 = vrot.lane.b32.xlu0 %v6389, 40
    %v6571 = vpop.permute.xlu0 %6570
    %6572 = vrot.lane.b32.xlu0 %v6390, 40
    %v6573 = vpop.permute.xlu0 %6572
    %6574 = vrot.lane.b32.xlu0 %v6391, 40
    %v6575 = vpop.permute.xlu0 %6574
    %6576 = vrot.lane.b32.xlu0 %v6392, 40
    %v6577 = vpop.permute.xlu0 %6576
    %6578 = vrot.lane.b32.xlu0 %v6393, 40
    %v6579 = vpop.permute.xlu0 %6578
    %6580 = vrot.lane.b32.xlu0 %v6394, 40
    %v6581 = vpop.permute.xlu0 %6580
    %6582 = vrot.lane.b32.xlu0 %v6395, 40
    %v6583 = vpop.permute.xlu0 %6582
    %6584 = vrot.lane.b32.xlu0 %v6396, 40
    %v6585 = vpop.permute.xlu0 %6584
    %6586 = vrot.lane.b32.xlu0 %v6397, 40
    %v6587 = vpop.permute.xlu0 %6586
    %6588 = vrot.lane.b32.xlu0 %v6398, 40
    %v6589 = vpop.permute.xlu0 %6588
    %6590 = vrot.lane.b32.xlu0 %v6399, 40
    %v6591 = vpop.permute.xlu0 %6590
    %vm6656 = vcmask 392512
    %6657 = vst.msk [vmem:[#allocation5] sm:$0xff] %vm6656, %v6465
    %6658 = vst.msk [vmem:[#allocation5 + $0x8] sm:$0xff] %vm6656, %v6467
    %6659 = vst.msk [vmem:[#allocation5 + $0x10] sm:$0xff] %vm6656, %v6469
    %6660 = vst.msk [vmem:[#allocation5 + $0x18] sm:$0xff] %vm6656, %v6471
    %6661 = vst.msk [vmem:[#allocation5 + $0x20] sm:$0xff] %vm6656, %v6473
    %6662 = vst.msk [vmem:[#allocation5 + $0x28] sm:$0xff] %vm6656, %v6475
    %6663 = vst.msk [vmem:[#allocation5 + $0x30] sm:$0xff] %vm6656, %v6477
    %6664 = vst.msk [vmem:[#allocation5 + $0x38] sm:$0xff] %vm6656, %v6479
    %6665 = vst.msk [vmem:[#allocation5 + $0x40] sm:$0xff] %vm6656, %v6481
    %6666 = vst.msk [vmem:[#allocation5 + $0x48] sm:$0xff] %vm6656, %v6483
    %6667 = vst.msk [vmem:[#allocation5 + $0x50] sm:$0xff] %vm6656, %v6485
    %6668 = vst.msk [vmem:[#allocation5 + $0x58] sm:$0xff] %vm6656, %v6487
    %6669 = vst.msk [vmem:[#allocation5 + $0x60] sm:$0xff] %vm6656, %v6489
    %6670 = vst.msk [vmem:[#allocation5 + $0x68] sm:$0xff] %vm6656, %v6491
    %6671 = vst.msk [vmem:[#allocation5 + $0x70] sm:$0xff] %vm6656, %v6493
    %6672 = vst.msk [vmem:[#allocation5 + $0x78] sm:$0xff] %vm6656, %v6495
    %6673 = vst.msk [vmem:[#allocation5 + $0x80] sm:$0xff] %vm6656, %v6497
    %6674 = vst.msk [vmem:[#allocation5 + $0x88] sm:$0xff] %vm6656, %v6499
    %6675 = vst.msk [vmem:[#allocation5 + $0x90] sm:$0xff] %vm6656, %v6501
    %6676 = vst.msk [vmem:[#allocation5 + $0x98] sm:$0xff] %vm6656, %v6503
    %6677 = vst.msk [vmem:[#allocation5 + $0xa0] sm:$0xff] %vm6656, %v6505
    %6678 = vst.msk [vmem:[#allocation5 + $0xa8] sm:$0xff] %vm6656, %v6507
    %6679 = vst.msk [vmem:[#allocation5 + $0xb0] sm:$0xff] %vm6656, %v6509
    %6680 = vst.msk [vmem:[#allocation5 + $0xb8] sm:$0xff] %vm6656, %v6511
    %6681 = vst.msk [vmem:[#allocation5 + $0xc0] sm:$0xff] %vm6656, %v6513
    %6682 = vst.msk [vmem:[#allocation5 + $0xc8] sm:$0xff] %vm6656, %v6515
    %6683 = vst.msk [vmem:[#allocation5 + $0xd0] sm:$0xff] %vm6656, %v6517
    %6684 = vst.msk [vmem:[#allocation5 + $0xd8] sm:$0xff] %vm6656, %v6519
    %6685 = vst.msk [vmem:[#allocation5 + $0xe0] sm:$0xff] %vm6656, %v6521
    %6686 = vst.msk [vmem:[#allocation5 + $0xe8] sm:$0xff] %vm6656, %v6523
    %6687 = vst.msk [vmem:[#allocation5 + $0xf0] sm:$0xff] %vm6656, %v6525
    %6688 = vst.msk [vmem:[#allocation5 + $0xf8] sm:$0xff] %vm6656, %v6527
    %6689 = vst.msk [vmem:[#allocation5 + $0x100] sm:$0xff] %vm6656, %v6529
    %6690 = vst.msk [vmem:[#allocation5 + $0x108] sm:$0xff] %vm6656, %v6531
    %6691 = vst.msk [vmem:[#allocation5 + $0x110] sm:$0xff] %vm6656, %v6533
    %6692 = vst.msk [vmem:[#allocation5 + $0x118] sm:$0xff] %vm6656, %v6535
    %6693 = vst.msk [vmem:[#allocation5 + $0x120] sm:$0xff] %vm6656, %v6537
    %6694 = vst.msk [vmem:[#allocation5 + $0x128] sm:$0xff] %vm6656, %v6539
    %6695 = vst.msk [vmem:[#allocation5 + $0x130] sm:$0xff] %vm6656, %v6541
    %6696 = vst.msk [vmem:[#allocation5 + $0x138] sm:$0xff] %vm6656, %v6543
    %6697 = vst.msk [vmem:[#allocation5 + $0x140] sm:$0xff] %vm6656, %v6545
    %6698 = vst.msk [vmem:[#allocation5 + $0x148] sm:$0xff] %vm6656, %v6547
    %6699 = vst.msk [vmem:[#allocation5 + $0x150] sm:$0xff] %vm6656, %v6549
    %6700 = vst.msk [vmem:[#allocation5 + $0x158] sm:$0xff] %vm6656, %v6551
    %6701 = vst.msk [vmem:[#allocation5 + $0x160] sm:$0xff] %vm6656, %v6553
    %6702 = vst.msk [vmem:[#allocation5 + $0x168] sm:$0xff] %vm6656, %v6555
    %6703 = vst.msk [vmem:[#allocation5 + $0x170] sm:$0xff] %vm6656, %v6557
    %6704 = vst.msk [vmem:[#allocation5 + $0x178] sm:$0xff] %vm6656, %v6559
    %6705 = vst.msk [vmem:[#allocation5 + $0x180] sm:$0xff] %vm6656, %v6561
    %6706 = vst.msk [vmem:[#allocation5 + $0x188] sm:$0xff] %vm6656, %v6563
    %6707 = vst.msk [vmem:[#allocation5 + $0x190] sm:$0xff] %vm6656, %v6565
    %6708 = vst.msk [vmem:[#allocation5 + $0x198] sm:$0xff] %vm6656, %v6567
    %6709 = vst.msk [vmem:[#allocation5 + $0x1a0] sm:$0xff] %vm6656, %v6569
    %6710 = vst.msk [vmem:[#allocation5 + $0x1a8] sm:$0xff] %vm6656, %v6571
    %6711 = vst.msk [vmem:[#allocation5 + $0x1b0] sm:$0xff] %vm6656, %v6573
    %6712 = vst.msk [vmem:[#allocation5 + $0x1b8] sm:$0xff] %vm6656, %v6575
    %6713 = vst.msk [vmem:[#allocation5 + $0x1c0] sm:$0xff] %vm6656, %v6577
    %6714 = vst.msk [vmem:[#allocation5 + $0x1c8] sm:$0xff] %vm6656, %v6579
    %6715 = vst.msk [vmem:[#allocation5 + $0x1d0] sm:$0xff] %vm6656, %v6581
    %6716 = vst.msk [vmem:[#allocation5 + $0x1d8] sm:$0xff] %vm6656, %v6583
    %6717 = vst.msk [vmem:[#allocation5 + $0x1e0] sm:$0xff] %vm6656, %v6585
    %6718 = vst.msk [vmem:[#allocation5 + $0x1e8] sm:$0xff] %vm6656, %v6587
    %6719 = vst.msk [vmem:[#allocation5 + $0x1f0] sm:$0xff] %vm6656, %v6589
    %6720 = vst.msk [vmem:[#allocation5 + $0x1f8] sm:$0xff] %vm6656, %v6591
    %s6721 = scalar_lea.vmem [#allocation3], 48
    %v6722 = vld [vmem:[%s6721] sm:$0xff]
    %v6723 = vld [vmem:[%s6721 + $0x8] sm:$0xff]
    %v6724 = vld [vmem:[%s6721 + $0x18] sm:$0xff]
    %v6725 = vld [vmem:[%s6721 + $0x20] sm:$0xff]
    %v6726 = vld [vmem:[%s6721 + $0x30] sm:$0xff]
    %v6727 = vld [vmem:[%s6721 + $0x38] sm:$0xff]
    %v6728 = vld [vmem:[%s6721 + $0x48] sm:$0xff]
    %v6729 = vld [vmem:[%s6721 + $0x50] sm:$0xff]
    %v6730 = vld [vmem:[%s6721 + $0x60] sm:$0xff]
    %v6731 = vld [vmem:[%s6721 + $0x68] sm:$0xff]
    %v6732 = vld [vmem:[%s6721 + $0x78] sm:$0xff]
    %v6733 = vld [vmem:[%s6721 + $0x80] sm:$0xff]
    %v6734 = vld [vmem:[%s6721 + $0x90] sm:$0xff]
    %v6735 = vld [vmem:[%s6721 + $0x98] sm:$0xff]
    %v6736 = vld [vmem:[%s6721 + $0xa8] sm:$0xff]
    %v6737 = vld [vmem:[%s6721 + $0xb0] sm:$0xff]
    %v6738 = vld [vmem:[%s6721 + $0xc0] sm:$0xff]
    %v6739 = vld [vmem:[%s6721 + $0xc8] sm:$0xff]
    %v6740 = vld [vmem:[%s6721 + $0xd8] sm:$0xff]
    %v6741 = vld [vmem:[%s6721 + $0xe0] sm:$0xff]
    %v6742 = vld [vmem:[%s6721 + $0xf0] sm:$0xff]
    %v6743 = vld [vmem:[%s6721 + $0xf8] sm:$0xff]
    %v6744 = vld [vmem:[%s6721 + $0x108] sm:$0xff]
    %v6745 = vld [vmem:[%s6721 + $0x110] sm:$0xff]
    %v6746 = vld [vmem:[%s6721 + $0x120] sm:$0xff]
    %v6747 = vld [vmem:[%s6721 + $0x128] sm:$0xff]
    %v6748 = vld [vmem:[%s6721 + $0x138] sm:$0xff]
    %v6749 = vld [vmem:[%s6721 + $0x140] sm:$0xff]
    %v6750 = vld [vmem:[%s6721 + $0x150] sm:$0xff]
    %v6751 = vld [vmem:[%s6721 + $0x158] sm:$0xff]
    %v6752 = vld [vmem:[%s6721 + $0x168] sm:$0xff]
    %v6753 = vld [vmem:[%s6721 + $0x170] sm:$0xff]
    %v6754 = vld [vmem:[%s6721 + $0x1b0] sm:$0xff]
    %v6755 = vld [vmem:[%s6721 + $0x1b8] sm:$0xff]
    %v6756 = vld [vmem:[%s6721 + $0x1c8] sm:$0xff]
    %v6757 = vld [vmem:[%s6721 + $0x1d0] sm:$0xff]
    %v6758 = vld [vmem:[%s6721 + $0x1e0] sm:$0xff]
    %v6759 = vld [vmem:[%s6721 + $0x1e8] sm:$0xff]
    %v6760 = vld [vmem:[%s6721 + $0x1f8] sm:$0xff]
    %v6761 = vld [vmem:[%s6721 + $0x200] sm:$0xff]
    %v6762 = vld [vmem:[%s6721 + $0x210] sm:$0xff]
    %v6763 = vld [vmem:[%s6721 + $0x218] sm:$0xff]
    %v6764 = vld [vmem:[%s6721 + $0x228] sm:$0xff]
    %v6765 = vld [vmem:[%s6721 + $0x230] sm:$0xff]
    %v6766 = vld [vmem:[%s6721 + $0x240] sm:$0xff]
    %v6767 = vld [vmem:[%s6721 + $0x248] sm:$0xff]
    %v6768 = vld [vmem:[%s6721 + $0x258] sm:$0xff]
    %v6769 = vld [vmem:[%s6721 + $0x260] sm:$0xff]
    %v6770 = vld [vmem:[%s6721 + $0x270] sm:$0xff]
    %v6771 = vld [vmem:[%s6721 + $0x278] sm:$0xff]
    %v6772 = vld [vmem:[%s6721 + $0x288] sm:$0xff]
    %v6773 = vld [vmem:[%s6721 + $0x290] sm:$0xff]
    %v6774 = vld [vmem:[%s6721 + $0x2a0] sm:$0xff]
    %v6775 = vld [vmem:[%s6721 + $0x2a8] sm:$0xff]
    %v6776 = vld [vmem:[%s6721 + $0x2b8] sm:$0xff]
    %v6777 = vld [vmem:[%s6721 + $0x2c0] sm:$0xff]
    %v6778 = vld [vmem:[%s6721 + $0x2d0] sm:$0xff]
    %v6779 = vld [vmem:[%s6721 + $0x2d8] sm:$0xff]
    %v6780 = vld [vmem:[%s6721 + $0x2e8] sm:$0xff]
    %v6781 = vld [vmem:[%s6721 + $0x2f0] sm:$0xff]
    %v6782 = vld [vmem:[%s6721 + $0x300] sm:$0xff]
    %v6783 = vld [vmem:[%s6721 + $0x308] sm:$0xff]
    %v6784 = vld [vmem:[%s6721 + $0x318] sm:$0xff]
    %v6785 = vld [vmem:[%s6721 + $0x320] sm:$0xff]
    %6850 = vrot.lane.b32.xlu0 %v6722, 48
    %v6851 = vpop.permute.xlu0 %6850
    %6852 = vrot.lane.b32.xlu0 %v6723, 48
    %v6853 = vpop.permute.xlu0 %6852
    %6854 = vrot.lane.b32.xlu0 %v6724, 48
    %v6855 = vpop.permute.xlu0 %6854
    %6856 = vrot.lane.b32.xlu0 %v6725, 48
    %v6857 = vpop.permute.xlu0 %6856
    %6858 = vrot.lane.b32.xlu0 %v6726, 48
    %v6859 = vpop.permute.xlu0 %6858
    %6860 = vrot.lane.b32.xlu0 %v6727, 48
    %v6861 = vpop.permute.xlu0 %6860
    %6862 = vrot.lane.b32.xlu0 %v6728, 48
    %v6863 = vpop.permute.xlu0 %6862
    %6864 = vrot.lane.b32.xlu0 %v6729, 48
    %v6865 = vpop.permute.xlu0 %6864
    %6866 = vrot.lane.b32.xlu0 %v6730, 48
    %v6867 = vpop.permute.xlu0 %6866
    %6868 = vrot.lane.b32.xlu0 %v6731, 48
    %v6869 = vpop.permute.xlu0 %6868
    %6870 = vrot.lane.b32.xlu0 %v6732, 48
    %v6871 = vpop.permute.xlu0 %6870
    %6872 = vrot.lane.b32.xlu0 %v6733, 48
    %v6873 = vpop.permute.xlu0 %6872
    %6874 = vrot.lane.b32.xlu0 %v6734, 48
    %v6875 = vpop.permute.xlu0 %6874
    %6876 = vrot.lane.b32.xlu0 %v6735, 48
    %v6877 = vpop.permute.xlu0 %6876
    %6878 = vrot.lane.b32.xlu0 %v6736, 48
    %v6879 = vpop.permute.xlu0 %6878
    %6880 = vrot.lane.b32.xlu0 %v6737, 48
    %v6881 = vpop.permute.xlu0 %6880
    %6882 = vrot.lane.b32.xlu0 %v6738, 48
    %v6883 = vpop.permute.xlu0 %6882
    %6884 = vrot.lane.b32.xlu0 %v6739, 48
    %v6885 = vpop.permute.xlu0 %6884
    %6886 = vrot.lane.b32.xlu0 %v6740, 48
    %v6887 = vpop.permute.xlu0 %6886
    %6888 = vrot.lane.b32.xlu0 %v6741, 48
    %v6889 = vpop.permute.xlu0 %6888
    %6890 = vrot.lane.b32.xlu0 %v6742, 48
    %v6891 = vpop.permute.xlu0 %6890
    %6892 = vrot.lane.b32.xlu0 %v6743, 48
    %v6893 = vpop.permute.xlu0 %6892
    %6894 = vrot.lane.b32.xlu0 %v6744, 48
    %v6895 = vpop.permute.xlu0 %6894
    %6896 = vrot.lane.b32.xlu0 %v6745, 48
    %v6897 = vpop.permute.xlu0 %6896
    %6898 = vrot.lane.b32.xlu0 %v6746, 48
    %v6899 = vpop.permute.xlu0 %6898
    %6900 = vrot.lane.b32.xlu0 %v6747, 48
    %v6901 = vpop.permute.xlu0 %6900
    %6902 = vrot.lane.b32.xlu0 %v6748, 48
    %v6903 = vpop.permute.xlu0 %6902
    %6904 = vrot.lane.b32.xlu0 %v6749, 48
    %v6905 = vpop.permute.xlu0 %6904
    %6906 = vrot.lane.b32.xlu0 %v6750, 48
    %v6907 = vpop.permute.xlu0 %6906
    %6908 = vrot.lane.b32.xlu0 %v6751, 48
    %v6909 = vpop.permute.xlu0 %6908
    %6910 = vrot.lane.b32.xlu0 %v6752, 48
    %v6911 = vpop.permute.xlu0 %6910
    %6912 = vrot.lane.b32.xlu0 %v6753, 48
    %v6913 = vpop.permute.xlu0 %6912
    %6914 = vrot.lane.b32.xlu0 %v6754, 48
    %v6915 = vpop.permute.xlu0 %6914
    %6916 = vrot.lane.b32.xlu0 %v6755, 48
    %v6917 = vpop.permute.xlu0 %6916
    %6918 = vrot.lane.b32.xlu0 %v6756, 48
    %v6919 = vpop.permute.xlu0 %6918
    %6920 = vrot.lane.b32.xlu0 %v6757, 48
    %v6921 = vpop.permute.xlu0 %6920
    %6922 = vrot.lane.b32.xlu0 %v6758, 48
    %v6923 = vpop.permute.xlu0 %6922
    %6924 = vrot.lane.b32.xlu0 %v6759, 48
    %v6925 = vpop.permute.xlu0 %6924
    %6926 = vrot.lane.b32.xlu0 %v6760, 48
    %v6927 = vpop.permute.xlu0 %6926
    %6928 = vrot.lane.b32.xlu0 %v6761, 48
    %v6929 = vpop.permute.xlu0 %6928
    %6930 = vrot.lane.b32.xlu0 %v6762, 48
    %v6931 = vpop.permute.xlu0 %6930
    %6932 = vrot.lane.b32.xlu0 %v6763, 48
    %v6933 = vpop.permute.xlu0 %6932
    %6934 = vrot.lane.b32.xlu0 %v6764, 48
    %v6935 = vpop.permute.xlu0 %6934
    %6936 = vrot.lane.b32.xlu0 %v6765, 48
    %v6937 = vpop.permute.xlu0 %6936
    %6938 = vrot.lane.b32.xlu0 %v6766, 48
    %v6939 = vpop.permute.xlu0 %6938
    %6940 = vrot.lane.b32.xlu0 %v6767, 48
    %v6941 = vpop.permute.xlu0 %6940
    %6942 = vrot.lane.b32.xlu0 %v6768, 48
    %v6943 = vpop.permute.xlu0 %6942
    %6944 = vrot.lane.b32.xlu0 %v6769, 48
    %v6945 = vpop.permute.xlu0 %6944
    %6946 = vrot.lane.b32.xlu0 %v6770, 48
    %v6947 = vpop.permute.xlu0 %6946
    %6948 = vrot.lane.b32.xlu0 %v6771, 48
    %v6949 = vpop.permute.xlu0 %6948
    %6950 = vrot.lane.b32.xlu0 %v6772, 48
    %v6951 = vpop.permute.xlu0 %6950
    %6952 = vrot.lane.b32.xlu0 %v6773, 48
    %v6953 = vpop.permute.xlu0 %6952
    %6954 = vrot.lane.b32.xlu0 %v6774, 48
    %v6955 = vpop.permute.xlu0 %6954
    %6956 = vrot.lane.b32.xlu0 %v6775, 48
    %v6957 = vpop.permute.xlu0 %6956
    %6958 = vrot.lane.b32.xlu0 %v6776, 48
    %v6959 = vpop.permute.xlu0 %6958
    %6960 = vrot.lane.b32.xlu0 %v6777, 48
    %v6961 = vpop.permute.xlu0 %6960
    %6962 = vrot.lane.b32.xlu0 %v6778, 48
    %v6963 = vpop.permute.xlu0 %6962
    %6964 = vrot.lane.b32.xlu0 %v6779, 48
    %v6965 = vpop.permute.xlu0 %6964
    %6966 = vrot.lane.b32.xlu0 %v6780, 48
    %v6967 = vpop.permute.xlu0 %6966
    %6968 = vrot.lane.b32.xlu0 %v6781, 48
    %v6969 = vpop.permute.xlu0 %6968
    %6970 = vrot.lane.b32.xlu0 %v6782, 48
    %v6971 = vpop.permute.xlu0 %6970
    %6972 = vrot.lane.b32.xlu0 %v6783, 48
    %v6973 = vpop.permute.xlu0 %6972
    %6974 = vrot.lane.b32.xlu0 %v6784, 48
    %v6975 = vpop.permute.xlu0 %6974
    %6976 = vrot.lane.b32.xlu0 %v6785, 48
    %v6977 = vpop.permute.xlu0 %6976
    %vm7042 = vcmask 458112
    %7043 = vst.msk [vmem:[#allocation5] sm:$0xff] %vm7042, %v6851
    %7044 = vst.msk [vmem:[#allocation5 + $0x8] sm:$0xff] %vm7042, %v6853
    %7045 = vst.msk [vmem:[#allocation5 + $0x10] sm:$0xff] %vm7042, %v6855
    %7046 = vst.msk [vmem:[#allocation5 + $0x18] sm:$0xff] %vm7042, %v6857
    %7047 = vst.msk [vmem:[#allocation5 + $0x20] sm:$0xff] %vm7042, %v6859
    %7048 = vst.msk [vmem:[#allocation5 + $0x28] sm:$0xff] %vm7042, %v6861
    %7049 = vst.msk [vmem:[#allocation5 + $0x30] sm:$0xff] %vm7042, %v6863
    %7050 = vst.msk [vmem:[#allocation5 + $0x38] sm:$0xff] %vm7042, %v6865
    %7051 = vst.msk [vmem:[#allocation5 + $0x40] sm:$0xff] %vm7042, %v6867
    %7052 = vst.msk [vmem:[#allocation5 + $0x48] sm:$0xff] %vm7042, %v6869
    %7053 = vst.msk [vmem:[#allocation5 + $0x50] sm:$0xff] %vm7042, %v6871
    %7054 = vst.msk [vmem:[#allocation5 + $0x58] sm:$0xff] %vm7042, %v6873
    %7055 = vst.msk [vmem:[#allocation5 + $0x60] sm:$0xff] %vm7042, %v6875
    %7056 = vst.msk [vmem:[#allocation5 + $0x68] sm:$0xff] %vm7042, %v6877
    %7057 = vst.msk [vmem:[#allocation5 + $0x70] sm:$0xff] %vm7042, %v6879
    %7058 = vst.msk [vmem:[#allocation5 + $0x78] sm:$0xff] %vm7042, %v6881
    %7059 = vst.msk [vmem:[#allocation5 + $0x80] sm:$0xff] %vm7042, %v6883
    %7060 = vst.msk [vmem:[#allocation5 + $0x88] sm:$0xff] %vm7042, %v6885
    %7061 = vst.msk [vmem:[#allocation5 + $0x90] sm:$0xff] %vm7042, %v6887
    %7062 = vst.msk [vmem:[#allocation5 + $0x98] sm:$0xff] %vm7042, %v6889
    %7063 = vst.msk [vmem:[#allocation5 + $0xa0] sm:$0xff] %vm7042, %v6891
    %7064 = vst.msk [vmem:[#allocation5 + $0xa8] sm:$0xff] %vm7042, %v6893
    %7065 = vst.msk [vmem:[#allocation5 + $0xb0] sm:$0xff] %vm7042, %v6895
    %7066 = vst.msk [vmem:[#allocation5 + $0xb8] sm:$0xff] %vm7042, %v6897
    %7067 = vst.msk [vmem:[#allocation5 + $0xc0] sm:$0xff] %vm7042, %v6899
    %7068 = vst.msk [vmem:[#allocation5 + $0xc8] sm:$0xff] %vm7042, %v6901
    %7069 = vst.msk [vmem:[#allocation5 + $0xd0] sm:$0xff] %vm7042, %v6903
    %7070 = vst.msk [vmem:[#allocation5 + $0xd8] sm:$0xff] %vm7042, %v6905
    %7071 = vst.msk [vmem:[#allocation5 + $0xe0] sm:$0xff] %vm7042, %v6907
    %7072 = vst.msk [vmem:[#allocation5 + $0xe8] sm:$0xff] %vm7042, %v6909
    %7073 = vst.msk [vmem:[#allocation5 + $0xf0] sm:$0xff] %vm7042, %v6911
    %7074 = vst.msk [vmem:[#allocation5 + $0xf8] sm:$0xff] %vm7042, %v6913
    %7075 = vst.msk [vmem:[#allocation5 + $0x100] sm:$0xff] %vm7042, %v6915
    %7076 = vst.msk [vmem:[#allocation5 + $0x108] sm:$0xff] %vm7042, %v6917
    %7077 = vst.msk [vmem:[#allocation5 + $0x110] sm:$0xff] %vm7042, %v6919
    %7078 = vst.msk [vmem:[#allocation5 + $0x118] sm:$0xff] %vm7042, %v6921
    %7079 = vst.msk [vmem:[#allocation5 + $0x120] sm:$0xff] %vm7042, %v6923
    %7080 = vst.msk [vmem:[#allocation5 + $0x128] sm:$0xff] %vm7042, %v6925
    %7081 = vst.msk [vmem:[#allocation5 + $0x130] sm:$0xff] %vm7042, %v6927
    %7082 = vst.msk [vmem:[#allocation5 + $0x138] sm:$0xff] %vm7042, %v6929
    %7083 = vst.msk [vmem:[#allocation5 + $0x140] sm:$0xff] %vm7042, %v6931
    %7084 = vst.msk [vmem:[#allocation5 + $0x148] sm:$0xff] %vm7042, %v6933
    %7085 = vst.msk [vmem:[#allocation5 + $0x150] sm:$0xff] %vm7042, %v6935
    %7086 = vst.msk [vmem:[#allocation5 + $0x158] sm:$0xff] %vm7042, %v6937
    %7087 = vst.msk [vmem:[#allocation5 + $0x160] sm:$0xff] %vm7042, %v6939
    %7088 = vst.msk [vmem:[#allocation5 + $0x168] sm:$0xff] %vm7042, %v6941
    %7089 = vst.msk [vmem:[#allocation5 + $0x170] sm:$0xff] %vm7042, %v6943
    %7090 = vst.msk [vmem:[#allocation5 + $0x178] sm:$0xff] %vm7042, %v6945
    %7091 = vst.msk [vmem:[#allocation5 + $0x180] sm:$0xff] %vm7042, %v6947
    %7092 = vst.msk [vmem:[#allocation5 + $0x188] sm:$0xff] %vm7042, %v6949
    %7093 = vst.msk [vmem:[#allocation5 + $0x190] sm:$0xff] %vm7042, %v6951
    %7094 = vst.msk [vmem:[#allocation5 + $0x198] sm:$0xff] %vm7042, %v6953
    %7095 = vst.msk [vmem:[#allocation5 + $0x1a0] sm:$0xff] %vm7042, %v6955
    %7096 = vst.msk [vmem:[#allocation5 + $0x1a8] sm:$0xff] %vm7042, %v6957
    %7097 = vst.msk [vmem:[#allocation5 + $0x1b0] sm:$0xff] %vm7042, %v6959
    %7098 = vst.msk [vmem:[#allocation5 + $0x1b8] sm:$0xff] %vm7042, %v6961
    %7099 = vst.msk [vmem:[#allocation5 + $0x1c0] sm:$0xff] %vm7042, %v6963
    %7100 = vst.msk [vmem:[#allocation5 + $0x1c8] sm:$0xff] %vm7042, %v6965
    %7101 = vst.msk [vmem:[#allocation5 + $0x1d0] sm:$0xff] %vm7042, %v6967
    %7102 = vst.msk [vmem:[#allocation5 + $0x1d8] sm:$0xff] %vm7042, %v6969
    %7103 = vst.msk [vmem:[#allocation5 + $0x1e0] sm:$0xff] %vm7042, %v6971
    %7104 = vst.msk [vmem:[#allocation5 + $0x1e8] sm:$0xff] %vm7042, %v6973
    %7105 = vst.msk [vmem:[#allocation5 + $0x1f0] sm:$0xff] %vm7042, %v6975
    %7106 = vst.msk [vmem:[#allocation5 + $0x1f8] sm:$0xff] %vm7042, %v6977
    %v7107 = vld [vmem:[%s6721 + $0x1] sm:$0xff]
    %v7108 = vld [vmem:[%s6721 + $0x9] sm:$0xff]
    %v7109 = vld [vmem:[%s6721 + $0x19] sm:$0xff]
    %v7110 = vld [vmem:[%s6721 + $0x21] sm:$0xff]
    %v7111 = vld [vmem:[%s6721 + $0x31] sm:$0xff]
    %v7112 = vld [vmem:[%s6721 + $0x39] sm:$0xff]
    %v7113 = vld [vmem:[%s6721 + $0x49] sm:$0xff]
    %v7114 = vld [vmem:[%s6721 + $0x51] sm:$0xff]
    %v7115 = vld [vmem:[%s6721 + $0x61] sm:$0xff]
    %v7116 = vld [vmem:[%s6721 + $0x69] sm:$0xff]
    %v7117 = vld [vmem:[%s6721 + $0x79] sm:$0xff]
    %v7118 = vld [vmem:[%s6721 + $0x81] sm:$0xff]
    %v7119 = vld [vmem:[%s6721 + $0x91] sm:$0xff]
    %v7120 = vld [vmem:[%s6721 + $0x99] sm:$0xff]
    %v7121 = vld [vmem:[%s6721 + $0xa9] sm:$0xff]
    %v7122 = vld [vmem:[%s6721 + $0xb1] sm:$0xff]
    %v7123 = vld [vmem:[%s6721 + $0xc1] sm:$0xff]
    %v7124 = vld [vmem:[%s6721 + $0xc9] sm:$0xff]
    %v7125 = vld [vmem:[%s6721 + $0xd9] sm:$0xff]
    %v7126 = vld [vmem:[%s6721 + $0xe1] sm:$0xff]
    %v7127 = vld [vmem:[%s6721 + $0xf1] sm:$0xff]
    %v7128 = vld [vmem:[%s6721 + $0xf9] sm:$0xff]
    %v7129 = vld [vmem:[%s6721 + $0x109] sm:$0xff]
    %v7130 = vld [vmem:[%s6721 + $0x111] sm:$0xff]
    %v7131 = vld [vmem:[%s6721 + $0x121] sm:$0xff]
    %v7132 = vld [vmem:[%s6721 + $0x129] sm:$0xff]
    %v7133 = vld [vmem:[%s6721 + $0x139] sm:$0xff]
    %v7134 = vld [vmem:[%s6721 + $0x141] sm:$0xff]
    %v7135 = vld [vmem:[%s6721 + $0x151] sm:$0xff]
    %v7136 = vld [vmem:[%s6721 + $0x159] sm:$0xff]
    %v7137 = vld [vmem:[%s6721 + $0x169] sm:$0xff]
    %v7138 = vld [vmem:[%s6721 + $0x171] sm:$0xff]
    %v7139 = vld [vmem:[%s6721 + $0x1b1] sm:$0xff]
    %v7140 = vld [vmem:[%s6721 + $0x1b9] sm:$0xff]
    %v7141 = vld [vmem:[%s6721 + $0x1c9] sm:$0xff]
    %v7142 = vld [vmem:[%s6721 + $0x1d1] sm:$0xff]
    %v7143 = vld [vmem:[%s6721 + $0x1e1] sm:$0xff]
    %v7144 = vld [vmem:[%s6721 + $0x1e9] sm:$0xff]
    %v7145 = vld [vmem:[%s6721 + $0x1f9] sm:$0xff]
    %v7146 = vld [vmem:[%s6721 + $0x201] sm:$0xff]
    %v7147 = vld [vmem:[%s6721 + $0x211] sm:$0xff]
    %v7148 = vld [vmem:[%s6721 + $0x219] sm:$0xff]
    %v7149 = vld [vmem:[%s6721 + $0x229] sm:$0xff]
    %v7150 = vld [vmem:[%s6721 + $0x231] sm:$0xff]
    %v7151 = vld [vmem:[%s6721 + $0x241] sm:$0xff]
    %v7152 = vld [vmem:[%s6721 + $0x249] sm:$0xff]
    %v7153 = vld [vmem:[%s6721 + $0x259] sm:$0xff]
    %v7154 = vld [vmem:[%s6721 + $0x261] sm:$0xff]
    %v7155 = vld [vmem:[%s6721 + $0x271] sm:$0xff]
    %v7156 = vld [vmem:[%s6721 + $0x279] sm:$0xff]
    %v7157 = vld [vmem:[%s6721 + $0x289] sm:$0xff]
    %v7158 = vld [vmem:[%s6721 + $0x291] sm:$0xff]
    %v7159 = vld [vmem:[%s6721 + $0x2a1] sm:$0xff]
    %v7160 = vld [vmem:[%s6721 + $0x2a9] sm:$0xff]
    %v7161 = vld [vmem:[%s6721 + $0x2b9] sm:$0xff]
    %v7162 = vld [vmem:[%s6721 + $0x2c1] sm:$0xff]
    %v7163 = vld [vmem:[%s6721 + $0x2d1] sm:$0xff]
    %v7164 = vld [vmem:[%s6721 + $0x2d9] sm:$0xff]
    %v7165 = vld [vmem:[%s6721 + $0x2e9] sm:$0xff]
    %v7166 = vld [vmem:[%s6721 + $0x2f1] sm:$0xff]
    %v7167 = vld [vmem:[%s6721 + $0x301] sm:$0xff]
    %v7168 = vld [vmem:[%s6721 + $0x309] sm:$0xff]
    %v7169 = vld [vmem:[%s6721 + $0x319] sm:$0xff]
    %v7170 = vld [vmem:[%s6721 + $0x321] sm:$0xff]
    %7235 = vrot.lane.b32.xlu0 %v7107, 56
    %v7236 = vpop.permute.xlu0 %7235
    %7237 = vrot.lane.b32.xlu0 %v7108, 56
    %v7238 = vpop.permute.xlu0 %7237
    %7239 = vrot.lane.b32.xlu0 %v7109, 56
    %v7240 = vpop.permute.xlu0 %7239
    %7241 = vrot.lane.b32.xlu0 %v7110, 56
    %v7242 = vpop.permute.xlu0 %7241
    %7243 = vrot.lane.b32.xlu0 %v7111, 56
    %v7244 = vpop.permute.xlu0 %7243
    %7245 = vrot.lane.b32.xlu0 %v7112, 56
    %v7246 = vpop.permute.xlu0 %7245
    %7247 = vrot.lane.b32.xlu0 %v7113, 56
    %v7248 = vpop.permute.xlu0 %7247
    %7249 = vrot.lane.b32.xlu0 %v7114, 56
    %v7250 = vpop.permute.xlu0 %7249
    %7251 = vrot.lane.b32.xlu0 %v7115, 56
    %v7252 = vpop.permute.xlu0 %7251
    %7253 = vrot.lane.b32.xlu0 %v7116, 56
    %v7254 = vpop.permute.xlu0 %7253
    %7255 = vrot.lane.b32.xlu0 %v7117, 56
    %v7256 = vpop.permute.xlu0 %7255
    %7257 = vrot.lane.b32.xlu0 %v7118, 56
    %v7258 = vpop.permute.xlu0 %7257
    %7259 = vrot.lane.b32.xlu0 %v7119, 56
    %v7260 = vpop.permute.xlu0 %7259
    %7261 = vrot.lane.b32.xlu0 %v7120, 56
    %v7262 = vpop.permute.xlu0 %7261
    %7263 = vrot.lane.b32.xlu0 %v7121, 56
    %v7264 = vpop.permute.xlu0 %7263
    %7265 = vrot.lane.b32.xlu0 %v7122, 56
    %v7266 = vpop.permute.xlu0 %7265
    %7267 = vrot.lane.b32.xlu0 %v7123, 56
    %v7268 = vpop.permute.xlu0 %7267
    %7269 = vrot.lane.b32.xlu0 %v7124, 56
    %v7270 = vpop.permute.xlu0 %7269
    %7271 = vrot.lane.b32.xlu0 %v7125, 56
    %v7272 = vpop.permute.xlu0 %7271
    %7273 = vrot.lane.b32.xlu0 %v7126, 56
    %v7274 = vpop.permute.xlu0 %7273
    %7275 = vrot.lane.b32.xlu0 %v7127, 56
    %v7276 = vpop.permute.xlu0 %7275
    %7277 = vrot.lane.b32.xlu0 %v7128, 56
    %v7278 = vpop.permute.xlu0 %7277
    %7279 = vrot.lane.b32.xlu0 %v7129, 56
    %v7280 = vpop.permute.xlu0 %7279
    %7281 = vrot.lane.b32.xlu0 %v7130, 56
    %v7282 = vpop.permute.xlu0 %7281
    %7283 = vrot.lane.b32.xlu0 %v7131, 56
    %v7284 = vpop.permute.xlu0 %7283
    %7285 = vrot.lane.b32.xlu0 %v7132, 56
    %v7286 = vpop.permute.xlu0 %7285
    %7287 = vrot.lane.b32.xlu0 %v7133, 56
    %v7288 = vpop.permute.xlu0 %7287
    %7289 = vrot.lane.b32.xlu0 %v7134, 56
    %v7290 = vpop.permute.xlu0 %7289
    %7291 = vrot.lane.b32.xlu0 %v7135, 56
    %v7292 = vpop.permute.xlu0 %7291
    %7293 = vrot.lane.b32.xlu0 %v7136, 56
    %v7294 = vpop.permute.xlu0 %7293
    %7295 = vrot.lane.b32.xlu0 %v7137, 56
    %v7296 = vpop.permute.xlu0 %7295
    %7297 = vrot.lane.b32.xlu0 %v7138, 56
    %v7298 = vpop.permute.xlu0 %7297
    %7299 = vrot.lane.b32.xlu0 %v7139, 56
    %v7300 = vpop.permute.xlu0 %7299
    %7301 = vrot.lane.b32.xlu0 %v7140, 56
    %v7302 = vpop.permute.xlu0 %7301
    %7303 = vrot.lane.b32.xlu0 %v7141, 56
    %v7304 = vpop.permute.xlu0 %7303
    %7305 = vrot.lane.b32.xlu0 %v7142, 56
    %v7306 = vpop.permute.xlu0 %7305
    %7307 = vrot.lane.b32.xlu0 %v7143, 56
    %v7308 = vpop.permute.xlu0 %7307
    %7309 = vrot.lane.b32.xlu0 %v7144, 56
    %v7310 = vpop.permute.xlu0 %7309
    %7311 = vrot.lane.b32.xlu0 %v7145, 56
    %v7312 = vpop.permute.xlu0 %7311
    %7313 = vrot.lane.b32.xlu0 %v7146, 56
    %v7314 = vpop.permute.xlu0 %7313
    %7315 = vrot.lane.b32.xlu0 %v7147, 56
    %v7316 = vpop.permute.xlu0 %7315
    %7317 = vrot.lane.b32.xlu0 %v7148, 56
    %v7318 = vpop.permute.xlu0 %7317
    %7319 = vrot.lane.b32.xlu0 %v7149, 56
    %v7320 = vpop.permute.xlu0 %7319
    %7321 = vrot.lane.b32.xlu0 %v7150, 56
    %v7322 = vpop.permute.xlu0 %7321
    %7323 = vrot.lane.b32.xlu0 %v7151, 56
    %v7324 = vpop.permute.xlu0 %7323
    %7325 = vrot.lane.b32.xlu0 %v7152, 56
    %v7326 = vpop.permute.xlu0 %7325
    %7327 = vrot.lane.b32.xlu0 %v7153, 56
    %v7328 = vpop.permute.xlu0 %7327
    %7329 = vrot.lane.b32.xlu0 %v7154, 56
    %v7330 = vpop.permute.xlu0 %7329
    %7331 = vrot.lane.b32.xlu0 %v7155, 56
    %v7332 = vpop.permute.xlu0 %7331
    %7333 = vrot.lane.b32.xlu0 %v7156, 56
    %v7334 = vpop.permute.xlu0 %7333
    %7335 = vrot.lane.b32.xlu0 %v7157, 56
    %v7336 = vpop.permute.xlu0 %7335
    %7337 = vrot.lane.b32.xlu0 %v7158, 56
    %v7338 = vpop.permute.xlu0 %7337
    %7339 = vrot.lane.b32.xlu0 %v7159, 56
    %v7340 = vpop.permute.xlu0 %7339
    %7341 = vrot.lane.b32.xlu0 %v7160, 56
    %v7342 = vpop.permute.xlu0 %7341
    %7343 = vrot.lane.b32.xlu0 %v7161, 56
    %v7344 = vpop.permute.xlu0 %7343
    %7345 = vrot.lane.b32.xlu0 %v7162, 56
    %v7346 = vpop.permute.xlu0 %7345
    %7347 = vrot.lane.b32.xlu0 %v7163, 56
    %v7348 = vpop.permute.xlu0 %7347
    %7349 = vrot.lane.b32.xlu0 %v7164, 56
    %v7350 = vpop.permute.xlu0 %7349
    %7351 = vrot.lane.b32.xlu0 %v7165, 56
    %v7352 = vpop.permute.xlu0 %7351
    %7353 = vrot.lane.b32.xlu0 %v7166, 56
    %v7354 = vpop.permute.xlu0 %7353
    %7355 = vrot.lane.b32.xlu0 %v7167, 56
    %v7356 = vpop.permute.xlu0 %7355
    %7357 = vrot.lane.b32.xlu0 %v7168, 56
    %v7358 = vpop.permute.xlu0 %7357
    %7359 = vrot.lane.b32.xlu0 %v7169, 56
    %v7360 = vpop.permute.xlu0 %7359
    %7361 = vrot.lane.b32.xlu0 %v7170, 56
    %v7362 = vpop.permute.xlu0 %7361
    %vm7427 = vcmask 523712
    %7428 = vst.msk [vmem:[#allocation5] sm:$0xff] %vm7427, %v7236
    %7429 = vst.msk [vmem:[#allocation5 + $0x8] sm:$0xff] %vm7427, %v7238
    %7430 = vst.msk [vmem:[#allocation5 + $0x10] sm:$0xff] %vm7427, %v7240
    %7431 = vst.msk [vmem:[#allocation5 + $0x18] sm:$0xff] %vm7427, %v7242
    %7432 = vst.msk [vmem:[#allocation5 + $0x20] sm:$0xff] %vm7427, %v7244
    %7433 = vst.msk [vmem:[#allocation5 + $0x28] sm:$0xff] %vm7427, %v7246
    %7434 = vst.msk [vmem:[#allocation5 + $0x30] sm:$0xff] %vm7427, %v7248
    %7435 = vst.msk [vmem:[#allocation5 + $0x38] sm:$0xff] %vm7427, %v7250
    %7436 = vst.msk [vmem:[#allocation5 + $0x40] sm:$0xff] %vm7427, %v7252
    %7437 = vst.msk [vmem:[#allocation5 + $0x48] sm:$0xff] %vm7427, %v7254
    %7438 = vst.msk [vmem:[#allocation5 + $0x50] sm:$0xff] %vm7427, %v7256
    %7439 = vst.msk [vmem:[#allocation5 + $0x58] sm:$0xff] %vm7427, %v7258
    %7440 = vst.msk [vmem:[#allocation5 + $0x60] sm:$0xff] %vm7427, %v7260
    %7441 = vst.msk [vmem:[#allocation5 + $0x68] sm:$0xff] %vm7427, %v7262
    %7442 = vst.msk [vmem:[#allocation5 + $0x70] sm:$0xff] %vm7427, %v7264
    %7443 = vst.msk [vmem:[#allocation5 + $0x78] sm:$0xff] %vm7427, %v7266
    %7444 = vst.msk [vmem:[#allocation5 + $0x80] sm:$0xff] %vm7427, %v7268
    %7445 = vst.msk [vmem:[#allocation5 + $0x88] sm:$0xff] %vm7427, %v7270
    %7446 = vst.msk [vmem:[#allocation5 + $0x90] sm:$0xff] %vm7427, %v7272
    %7447 = vst.msk [vmem:[#allocation5 + $0x98] sm:$0xff] %vm7427, %v7274
    %7448 = vst.msk [vmem:[#allocation5 + $0xa0] sm:$0xff] %vm7427, %v7276
    %7449 = vst.msk [vmem:[#allocation5 + $0xa8] sm:$0xff] %vm7427, %v7278
    %7450 = vst.msk [vmem:[#allocation5 + $0xb0] sm:$0xff] %vm7427, %v7280
    %7451 = vst.msk [vmem:[#allocation5 + $0xb8] sm:$0xff] %vm7427, %v7282
    %7452 = vst.msk [vmem:[#allocation5 + $0xc0] sm:$0xff] %vm7427, %v7284
    %7453 = vst.msk [vmem:[#allocation5 + $0xc8] sm:$0xff] %vm7427, %v7286
    %7454 = vst.msk [vmem:[#allocation5 + $0xd0] sm:$0xff] %vm7427, %v7288
    %7455 = vst.msk [vmem:[#allocation5 + $0xd8] sm:$0xff] %vm7427, %v7290
    %7456 = vst.msk [vmem:[#allocation5 + $0xe0] sm:$0xff] %vm7427, %v7292
    %7457 = vst.msk [vmem:[#allocation5 + $0xe8] sm:$0xff] %vm7427, %v7294
    %7458 = vst.msk [vmem:[#allocation5 + $0xf0] sm:$0xff] %vm7427, %v7296
    %7459 = vst.msk [vmem:[#allocation5 + $0xf8] sm:$0xff] %vm7427, %v7298
    %7460 = vst.msk [vmem:[#allocation5 + $0x100] sm:$0xff] %vm7427, %v7300
    %7461 = vst.msk [vmem:[#allocation5 + $0x108] sm:$0xff] %vm7427, %v7302
    %7462 = vst.msk [vmem:[#allocation5 + $0x110] sm:$0xff] %vm7427, %v7304
    %7463 = vst.msk [vmem:[#allocation5 + $0x118] sm:$0xff] %vm7427, %v7306
    %7464 = vst.msk [vmem:[#allocation5 + $0x120] sm:$0xff] %vm7427, %v7308
    %7465 = vst.msk [vmem:[#allocation5 + $0x128] sm:$0xff] %vm7427, %v7310
    %7466 = vst.msk [vmem:[#allocation5 + $0x130] sm:$0xff] %vm7427, %v7312
    %7467 = vst.msk [vmem:[#allocation5 + $0x138] sm:$0xff] %vm7427, %v7314
    %7468 = vst.msk [vmem:[#allocation5 + $0x140] sm:$0xff] %vm7427, %v7316
    %7469 = vst.msk [vmem:[#allocation5 + $0x148] sm:$0xff] %vm7427, %v7318
    %7470 = vst.msk [vmem:[#allocation5 + $0x150] sm:$0xff] %vm7427, %v7320
    %7471 = vst.msk [vmem:[#allocation5 + $0x158] sm:$0xff] %vm7427, %v7322
    %7472 = vst.msk [vmem:[#allocation5 + $0x160] sm:$0xff] %vm7427, %v7324
    %7473 = vst.msk [vmem:[#allocation5 + $0x168] sm:$0xff] %vm7427, %v7326
    %7474 = vst.msk [vmem:[#allocation5 + $0x170] sm:$0xff] %vm7427, %v7328
    %7475 = vst.msk [vmem:[#allocation5 + $0x178] sm:$0xff] %vm7427, %v7330
    %7476 = vst.msk [vmem:[#allocation5 + $0x180] sm:$0xff] %vm7427, %v7332
    %7477 = vst.msk [vmem:[#allocation5 + $0x188] sm:$0xff] %vm7427, %v7334
    %7478 = vst.msk [vmem:[#allocation5 + $0x190] sm:$0xff] %vm7427, %v7336
    %7479 = vst.msk [vmem:[#allocation5 + $0x198] sm:$0xff] %vm7427, %v7338
    %7480 = vst.msk [vmem:[#allocation5 + $0x1a0] sm:$0xff] %vm7427, %v7340
    %7481 = vst.msk [vmem:[#allocation5 + $0x1a8] sm:$0xff] %vm7427, %v7342
    %7482 = vst.msk [vmem:[#allocation5 + $0x1b0] sm:$0xff] %vm7427, %v7344
    %7483 = vst.msk [vmem:[#allocation5 + $0x1b8] sm:$0xff] %vm7427, %v7346
    %7484 = vst.msk [vmem:[#allocation5 + $0x1c0] sm:$0xff] %vm7427, %v7348
    %7485 = vst.msk [vmem:[#allocation5 + $0x1c8] sm:$0xff] %vm7427, %v7350
    %7486 = vst.msk [vmem:[#allocation5 + $0x1d0] sm:$0xff] %vm7427, %v7352
    %7487 = vst.msk [vmem:[#allocation5 + $0x1d8] sm:$0xff] %vm7427, %v7354
    %7488 = vst.msk [vmem:[#allocation5 + $0x1e0] sm:$0xff] %vm7427, %v7356
    %7489 = vst.msk [vmem:[#allocation5 + $0x1e8] sm:$0xff] %vm7427, %v7358
    %7490 = vst.msk [vmem:[#allocation5 + $0x1f0] sm:$0xff] %vm7427, %v7360
    %7491 = vst.msk [vmem:[#allocation5 + $0x1f8] sm:$0xff] %vm7427, %v7362
    %v7492 = vld [vmem:[%s6721 + $0x2] sm:$0xff]
    %v7493 = vld [vmem:[%s6721 + $0xa] sm:$0xff]
    %v7494 = vld [vmem:[%s6721 + $0x1a] sm:$0xff]
    %v7495 = vld [vmem:[%s6721 + $0x22] sm:$0xff]
    %v7496 = vld [vmem:[%s6721 + $0x32] sm:$0xff]
    %v7497 = vld [vmem:[%s6721 + $0x3a] sm:$0xff]
    %v7498 = vld [vmem:[%s6721 + $0x4a] sm:$0xff]
    %v7499 = vld [vmem:[%s6721 + $0x52] sm:$0xff]
    %v7500 = vld [vmem:[%s6721 + $0x62] sm:$0xff]
    %v7501 = vld [vmem:[%s6721 + $0x6a] sm:$0xff]
    %v7502 = vld [vmem:[%s6721 + $0x7a] sm:$0xff]
    %v7503 = vld [vmem:[%s6721 + $0x82] sm:$0xff]
    %v7504 = vld [vmem:[%s6721 + $0x92] sm:$0xff]
    %v7505 = vld [vmem:[%s6721 + $0x9a] sm:$0xff]
    %v7506 = vld [vmem:[%s6721 + $0xaa] sm:$0xff]
    %v7507 = vld [vmem:[%s6721 + $0xb2] sm:$0xff]
    %v7508 = vld [vmem:[%s6721 + $0xc2] sm:$0xff]
    %v7509 = vld [vmem:[%s6721 + $0xca] sm:$0xff]
    %v7510 = vld [vmem:[%s6721 + $0xda] sm:$0xff]
    %v7511 = vld [vmem:[%s6721 + $0xe2] sm:$0xff]
    %v7512 = vld [vmem:[%s6721 + $0xf2] sm:$0xff]
    %v7513 = vld [vmem:[%s6721 + $0xfa] sm:$0xff]
    %v7514 = vld [vmem:[%s6721 + $0x10a] sm:$0xff]
    %v7515 = vld [vmem:[%s6721 + $0x112] sm:$0xff]
    %v7516 = vld [vmem:[%s6721 + $0x122] sm:$0xff]
    %v7517 = vld [vmem:[%s6721 + $0x12a] sm:$0xff]
    %v7518 = vld [vmem:[%s6721 + $0x13a] sm:$0xff]
    %v7519 = vld [vmem:[%s6721 + $0x142] sm:$0xff]
    %v7520 = vld [vmem:[%s6721 + $0x152] sm:$0xff]
    %v7521 = vld [vmem:[%s6721 + $0x15a] sm:$0xff]
    %v7522 = vld [vmem:[%s6721 + $0x16a] sm:$0xff]
    %v7523 = vld [vmem:[%s6721 + $0x172] sm:$0xff]
    %v7524 = vld [vmem:[%s6721 + $0x1b2] sm:$0xff]
    %v7525 = vld [vmem:[%s6721 + $0x1ba] sm:$0xff]
    %v7526 = vld [vmem:[%s6721 + $0x1ca] sm:$0xff]
    %v7527 = vld [vmem:[%s6721 + $0x1d2] sm:$0xff]
    %v7528 = vld [vmem:[%s6721 + $0x1e2] sm:$0xff]
    %v7529 = vld [vmem:[%s6721 + $0x1ea] sm:$0xff]
    %v7530 = vld [vmem:[%s6721 + $0x1fa] sm:$0xff]
    %v7531 = vld [vmem:[%s6721 + $0x202] sm:$0xff]
    %v7532 = vld [vmem:[%s6721 + $0x212] sm:$0xff]
    %v7533 = vld [vmem:[%s6721 + $0x21a] sm:$0xff]
    %v7534 = vld [vmem:[%s6721 + $0x22a] sm:$0xff]
    %v7535 = vld [vmem:[%s6721 + $0x232] sm:$0xff]
    %v7536 = vld [vmem:[%s6721 + $0x242] sm:$0xff]
    %v7537 = vld [vmem:[%s6721 + $0x24a] sm:$0xff]
    %v7538 = vld [vmem:[%s6721 + $0x25a] sm:$0xff]
    %v7539 = vld [vmem:[%s6721 + $0x262] sm:$0xff]
    %v7540 = vld [vmem:[%s6721 + $0x272] sm:$0xff]
    %v7541 = vld [vmem:[%s6721 + $0x27a] sm:$0xff]
    %v7542 = vld [vmem:[%s6721 + $0x28a] sm:$0xff]
    %v7543 = vld [vmem:[%s6721 + $0x292] sm:$0xff]
    %v7544 = vld [vmem:[%s6721 + $0x2a2] sm:$0xff]
    %v7545 = vld [vmem:[%s6721 + $0x2aa] sm:$0xff]
    %v7546 = vld [vmem:[%s6721 + $0x2ba] sm:$0xff]
    %v7547 = vld [vmem:[%s6721 + $0x2c2] sm:$0xff]
    %v7548 = vld [vmem:[%s6721 + $0x2d2] sm:$0xff]
    %v7549 = vld [vmem:[%s6721 + $0x2da] sm:$0xff]
    %v7550 = vld [vmem:[%s6721 + $0x2ea] sm:$0xff]
    %v7551 = vld [vmem:[%s6721 + $0x2f2] sm:$0xff]
    %v7552 = vld [vmem:[%s6721 + $0x302] sm:$0xff]
    %v7553 = vld [vmem:[%s6721 + $0x30a] sm:$0xff]
    %v7554 = vld [vmem:[%s6721 + $0x31a] sm:$0xff]
    %v7555 = vld [vmem:[%s6721 + $0x322] sm:$0xff]
    %7620 = vrot.lane.b32.xlu0 %v7492, 64
    %v7621 = vpop.permute.xlu0 %7620
    %7622 = vrot.lane.b32.xlu0 %v7493, 64
    %v7623 = vpop.permute.xlu0 %7622
    %7624 = vrot.lane.b32.xlu0 %v7494, 64
    %v7625 = vpop.permute.xlu0 %7624
    %7626 = vrot.lane.b32.xlu0 %v7495, 64
    %v7627 = vpop.permute.xlu0 %7626
    %7628 = vrot.lane.b32.xlu0 %v7496, 64
    %v7629 = vpop.permute.xlu0 %7628
    %7630 = vrot.lane.b32.xlu0 %v7497, 64
    %v7631 = vpop.permute.xlu0 %7630
    %7632 = vrot.lane.b32.xlu0 %v7498, 64
    %v7633 = vpop.permute.xlu0 %7632
    %7634 = vrot.lane.b32.xlu0 %v7499, 64
    %v7635 = vpop.permute.xlu0 %7634
    %7636 = vrot.lane.b32.xlu0 %v7500, 64
    %v7637 = vpop.permute.xlu0 %7636
    %7638 = vrot.lane.b32.xlu0 %v7501, 64
    %v7639 = vpop.permute.xlu0 %7638
    %7640 = vrot.lane.b32.xlu0 %v7502, 64
    %v7641 = vpop.permute.xlu0 %7640
    %7642 = vrot.lane.b32.xlu0 %v7503, 64
    %v7643 = vpop.permute.xlu0 %7642
    %7644 = vrot.lane.b32.xlu0 %v7504, 64
    %v7645 = vpop.permute.xlu0 %7644
    %7646 = vrot.lane.b32.xlu0 %v7505, 64
    %v7647 = vpop.permute.xlu0 %7646
    %7648 = vrot.lane.b32.xlu0 %v7506, 64
    %v7649 = vpop.permute.xlu0 %7648
    %7650 = vrot.lane.b32.xlu0 %v7507, 64
    %v7651 = vpop.permute.xlu0 %7650
    %7652 = vrot.lane.b32.xlu0 %v7508, 64
    %v7653 = vpop.permute.xlu0 %7652
    %7654 = vrot.lane.b32.xlu0 %v7509, 64
    %v7655 = vpop.permute.xlu0 %7654
    %7656 = vrot.lane.b32.xlu0 %v7510, 64
    %v7657 = vpop.permute.xlu0 %7656
    %7658 = vrot.lane.b32.xlu0 %v7511, 64
    %v7659 = vpop.permute.xlu0 %7658
    %7660 = vrot.lane.b32.xlu0 %v7512, 64
    %v7661 = vpop.permute.xlu0 %7660
    %7662 = vrot.lane.b32.xlu0 %v7513, 64
    %v7663 = vpop.permute.xlu0 %7662
    %7664 = vrot.lane.b32.xlu0 %v7514, 64
    %v7665 = vpop.permute.xlu0 %7664
    %7666 = vrot.lane.b32.xlu0 %v7515, 64
    %v7667 = vpop.permute.xlu0 %7666
    %7668 = vrot.lane.b32.xlu0 %v7516, 64
    %v7669 = vpop.permute.xlu0 %7668
    %7670 = vrot.lane.b32.xlu0 %v7517, 64
    %v7671 = vpop.permute.xlu0 %7670
    %7672 = vrot.lane.b32.xlu0 %v7518, 64
    %v7673 = vpop.permute.xlu0 %7672
    %7674 = vrot.lane.b32.xlu0 %v7519, 64
    %v7675 = vpop.permute.xlu0 %7674
    %7676 = vrot.lane.b32.xlu0 %v7520, 64
    %v7677 = vpop.permute.xlu0 %7676
    %7678 = vrot.lane.b32.xlu0 %v7521, 64
    %v7679 = vpop.permute.xlu0 %7678
    %7680 = vrot.lane.b32.xlu0 %v7522, 64
    %v7681 = vpop.permute.xlu0 %7680
    %7682 = vrot.lane.b32.xlu0 %v7523, 64
    %v7683 = vpop.permute.xlu0 %7682
    %7684 = vrot.lane.b32.xlu0 %v7524, 64
    %v7685 = vpop.permute.xlu0 %7684
    %7686 = vrot.lane.b32.xlu0 %v7525, 64
    %v7687 = vpop.permute.xlu0 %7686
    %7688 = vrot.lane.b32.xlu0 %v7526, 64
    %v7689 = vpop.permute.xlu0 %7688
    %7690 = vrot.lane.b32.xlu0 %v7527, 64
    %v7691 = vpop.permute.xlu0 %7690
    %7692 = vrot.lane.b32.xlu0 %v7528, 64
    %v7693 = vpop.permute.xlu0 %7692
    %7694 = vrot.lane.b32.xlu0 %v7529, 64
    %v7695 = vpop.permute.xlu0 %7694
    %7696 = vrot.lane.b32.xlu0 %v7530, 64
    %v7697 = vpop.permute.xlu0 %7696
    %7698 = vrot.lane.b32.xlu0 %v7531, 64
    %v7699 = vpop.permute.xlu0 %7698
    %7700 = vrot.lane.b32.xlu0 %v7532, 64
    %v7701 = vpop.permute.xlu0 %7700
    %7702 = vrot.lane.b32.xlu0 %v7533, 64
    %v7703 = vpop.permute.xlu0 %7702
    %7704 = vrot.lane.b32.xlu0 %v7534, 64
    %v7705 = vpop.permute.xlu0 %7704
    %7706 = vrot.lane.b32.xlu0 %v7535, 64
    %v7707 = vpop.permute.xlu0 %7706
    %7708 = vrot.lane.b32.xlu0 %v7536, 64
    %v7709 = vpop.permute.xlu0 %7708
    %7710 = vrot.lane.b32.xlu0 %v7537, 64
    %v7711 = vpop.permute.xlu0 %7710
    %7712 = vrot.lane.b32.xlu0 %v7538, 64
    %v7713 = vpop.permute.xlu0 %7712
    %7714 = vrot.lane.b32.xlu0 %v7539, 64
    %v7715 = vpop.permute.xlu0 %7714
    %7716 = vrot.lane.b32.xlu0 %v7540, 64
    %v7717 = vpop.permute.xlu0 %7716
    %7718 = vrot.lane.b32.xlu0 %v7541, 64
    %v7719 = vpop.permute.xlu0 %7718
    %7720 = vrot.lane.b32.xlu0 %v7542, 64
    %v7721 = vpop.permute.xlu0 %7720
    %7722 = vrot.lane.b32.xlu0 %v7543, 64
    %v7723 = vpop.permute.xlu0 %7722
    %7724 = vrot.lane.b32.xlu0 %v7544, 64
    %v7725 = vpop.permute.xlu0 %7724
    %7726 = vrot.lane.b32.xlu0 %v7545, 64
    %v7727 = vpop.permute.xlu0 %7726
    %7728 = vrot.lane.b32.xlu0 %v7546, 64
    %v7729 = vpop.permute.xlu0 %7728
    %7730 = vrot.lane.b32.xlu0 %v7547, 64
    %v7731 = vpop.permute.xlu0 %7730
    %7732 = vrot.lane.b32.xlu0 %v7548, 64
    %v7733 = vpop.permute.xlu0 %7732
    %7734 = vrot.lane.b32.xlu0 %v7549, 64
    %v7735 = vpop.permute.xlu0 %7734
    %7736 = vrot.lane.b32.xlu0 %v7550, 64
    %v7737 = vpop.permute.xlu0 %7736
    %7738 = vrot.lane.b32.xlu0 %v7551, 64
    %v7739 = vpop.permute.xlu0 %7738
    %7740 = vrot.lane.b32.xlu0 %v7552, 64
    %v7741 = vpop.permute.xlu0 %7740
    %7742 = vrot.lane.b32.xlu0 %v7553, 64
    %v7743 = vpop.permute.xlu0 %7742
    %7744 = vrot.lane.b32.xlu0 %v7554, 64
    %v7745 = vpop.permute.xlu0 %7744
    %7746 = vrot.lane.b32.xlu0 %v7555, 64
    %v7747 = vpop.permute.xlu0 %7746
    %vm7812 = vcmask 589312
    %7813 = vst.msk [vmem:[#allocation5] sm:$0xff] %vm7812, %v7621
    %7814 = vst.msk [vmem:[#allocation5 + $0x8] sm:$0xff] %vm7812, %v7623
    %7815 = vst.msk [vmem:[#allocation5 + $0x10] sm:$0xff] %vm7812, %v7625
    %7816 = vst.msk [vmem:[#allocation5 + $0x18] sm:$0xff] %vm7812, %v7627
    %7817 = vst.msk [vmem:[#allocation5 + $0x20] sm:$0xff] %vm7812, %v7629
    %7818 = vst.msk [vmem:[#allocation5 + $0x28] sm:$0xff] %vm7812, %v7631
    %7819 = vst.msk [vmem:[#allocation5 + $0x30] sm:$0xff] %vm7812, %v7633
    %7820 = vst.msk [vmem:[#allocation5 + $0x38] sm:$0xff] %vm7812, %v7635
    %7821 = vst.msk [vmem:[#allocation5 + $0x40] sm:$0xff] %vm7812, %v7637
    %7822 = vst.msk [vmem:[#allocation5 + $0x48] sm:$0xff] %vm7812, %v7639
    %7823 = vst.msk [vmem:[#allocation5 + $0x50] sm:$0xff] %vm7812, %v7641
    %7824 = vst.msk [vmem:[#allocation5 + $0x58] sm:$0xff] %vm7812, %v7643
    %7825 = vst.msk [vmem:[#allocation5 + $0x60] sm:$0xff] %vm7812, %v7645
    %7826 = vst.msk [vmem:[#allocation5 + $0x68] sm:$0xff] %vm7812, %v7647
    %7827 = vst.msk [vmem:[#allocation5 + $0x70] sm:$0xff] %vm7812, %v7649
    %7828 = vst.msk [vmem:[#allocation5 + $0x78] sm:$0xff] %vm7812, %v7651
    %7829 = vst.msk [vmem:[#allocation5 + $0x80] sm:$0xff] %vm7812, %v7653
    %7830 = vst.msk [vmem:[#allocation5 + $0x88] sm:$0xff] %vm7812, %v7655
    %7831 = vst.msk [vmem:[#allocation5 + $0x90] sm:$0xff] %vm7812, %v7657
    %7832 = vst.msk [vmem:[#allocation5 + $0x98] sm:$0xff] %vm7812, %v7659
    %7833 = vst.msk [vmem:[#allocation5 + $0xa0] sm:$0xff] %vm7812, %v7661
    %7834 = vst.msk [vmem:[#allocation5 + $0xa8] sm:$0xff] %vm7812, %v7663
    %7835 = vst.msk [vmem:[#allocation5 + $0xb0] sm:$0xff] %vm7812, %v7665
    %7836 = vst.msk [vmem:[#allocation5 + $0xb8] sm:$0xff] %vm7812, %v7667
    %7837 = vst.msk [vmem:[#allocation5 + $0xc0] sm:$0xff] %vm7812, %v7669
    %7838 = vst.msk [vmem:[#allocation5 + $0xc8] sm:$0xff] %vm7812, %v7671
    %7839 = vst.msk [vmem:[#allocation5 + $0xd0] sm:$0xff] %vm7812, %v7673
    %7840 = vst.msk [vmem:[#allocation5 + $0xd8] sm:$0xff] %vm7812, %v7675
    %7841 = vst.msk [vmem:[#allocation5 + $0xe0] sm:$0xff] %vm7812, %v7677
    %7842 = vst.msk [vmem:[#allocation5 + $0xe8] sm:$0xff] %vm7812, %v7679
    %7843 = vst.msk [vmem:[#allocation5 + $0xf0] sm:$0xff] %vm7812, %v7681
    %7844 = vst.msk [vmem:[#allocation5 + $0xf8] sm:$0xff] %vm7812, %v7683
    %7845 = vst.msk [vmem:[#allocation5 + $0x100] sm:$0xff] %vm7812, %v7685
    %7846 = vst.msk [vmem:[#allocation5 + $0x108] sm:$0xff] %vm7812, %v7687
    %7847 = vst.msk [vmem:[#allocation5 + $0x110] sm:$0xff] %vm7812, %v7689
    %7848 = vst.msk [vmem:[#allocation5 + $0x118] sm:$0xff] %vm7812, %v7691
    %7849 = vst.msk [vmem:[#allocation5 + $0x120] sm:$0xff] %vm7812, %v7693
    %7850 = vst.msk [vmem:[#allocation5 + $0x128] sm:$0xff] %vm7812, %v7695
    %7851 = vst.msk [vmem:[#allocation5 + $0x130] sm:$0xff] %vm7812, %v7697
    %7852 = vst.msk [vmem:[#allocation5 + $0x138] sm:$0xff] %vm7812, %v7699
    %7853 = vst.msk [vmem:[#allocation5 + $0x140] sm:$0xff] %vm7812, %v7701
    %7854 = vst.msk [vmem:[#allocation5 + $0x148] sm:$0xff] %vm7812, %v7703
    %7855 = vst.msk [vmem:[#allocation5 + $0x150] sm:$0xff] %vm7812, %v7705
    %7856 = vst.msk [vmem:[#allocation5 + $0x158] sm:$0xff] %vm7812, %v7707
    %7857 = vst.msk [vmem:[#allocation5 + $0x160] sm:$0xff] %vm7812, %v7709
    %7858 = vst.msk [vmem:[#allocation5 + $0x168] sm:$0xff] %vm7812, %v7711
    %7859 = vst.msk [vmem:[#allocation5 + $0x170] sm:$0xff] %vm7812, %v7713
    %7860 = vst.msk [vmem:[#allocation5 + $0x178] sm:$0xff] %vm7812, %v7715
    %7861 = vst.msk [vmem:[#allocation5 + $0x180] sm:$0xff] %vm7812, %v7717
    %7862 = vst.msk [vmem:[#allocation5 + $0x188] sm:$0xff] %vm7812, %v7719
    %7863 = vst.msk [vmem:[#allocation5 + $0x190] sm:$0xff] %vm7812, %v7721
    %7864 = vst.msk [vmem:[#allocation5 + $0x198] sm:$0xff] %vm7812, %v7723
    %7865 = vst.msk [vmem:[#allocation5 + $0x1a0] sm:$0xff] %vm7812, %v7725
    %7866 = vst.msk [vmem:[#allocation5 + $0x1a8] sm:$0xff] %vm7812, %v7727
    %7867 = vst.msk [vmem:[#allocation5 + $0x1b0] sm:$0xff] %vm7812, %v7729
    %7868 = vst.msk [vmem:[#allocation5 + $0x1b8] sm:$0xff] %vm7812, %v7731
    %7869 = vst.msk [vmem:[#allocation5 + $0x1c0] sm:$0xff] %vm7812, %v7733
    %7870 = vst.msk [vmem:[#allocation5 + $0x1c8] sm:$0xff] %vm7812, %v7735
    %7871 = vst.msk [vmem:[#allocation5 + $0x1d0] sm:$0xff] %vm7812, %v7737
    %7872 = vst.msk [vmem:[#allocation5 + $0x1d8] sm:$0xff] %vm7812, %v7739
    %7873 = vst.msk [vmem:[#allocation5 + $0x1e0] sm:$0xff] %vm7812, %v7741
    %7874 = vst.msk [vmem:[#allocation5 + $0x1e8] sm:$0xff] %vm7812, %v7743
    %7875 = vst.msk [vmem:[#allocation5 + $0x1f0] sm:$0xff] %vm7812, %v7745
    %7876 = vst.msk [vmem:[#allocation5 + $0x1f8] sm:$0xff] %vm7812, %v7747
    %v7877 = vld [vmem:[#allocation5] sm:$0xff]
    %v7878 = vld [vmem:[#allocation5 + $0x8] sm:$0xff]
    %v7879 = vld [vmem:[#allocation5 + $0x10] sm:$0xff]
    %v7880 = vld [vmem:[#allocation5 + $0x18] sm:$0xff]
    %v7881 = vld [vmem:[#allocation5 + $0x20] sm:$0xff]
    %v7882 = vld [vmem:[#allocation5 + $0x28] sm:$0xff]
    %v7883 = vld [vmem:[#allocation5 + $0x30] sm:$0xff]
    %v7884 = vld [vmem:[#allocation5 + $0x38] sm:$0xff]
    %v7885 = vld [vmem:[#allocation5 + $0x40] sm:$0xff]
    %v7886 = vld [vmem:[#allocation5 + $0x48] sm:$0xff]
    %v7887 = vld [vmem:[#allocation5 + $0x50] sm:$0xff]
    %v7888 = vld [vmem:[#allocation5 + $0x58] sm:$0xff]
    %v7889 = vld [vmem:[#allocation5 + $0x60] sm:$0xff]
    %v7890 = vld [vmem:[#allocation5 + $0x68] sm:$0xff]
    %v7891 = vld [vmem:[#allocation5 + $0x70] sm:$0xff]
    %v7892 = vld [vmem:[#allocation5 + $0x78] sm:$0xff]
    %v7893 = vld [vmem:[#allocation5 + $0x80] sm:$0xff]
    %v7894 = vld [vmem:[#allocation5 + $0x88] sm:$0xff]
    %v7895 = vld [vmem:[#allocation5 + $0x90] sm:$0xff]
    %v7896 = vld [vmem:[#allocation5 + $0x98] sm:$0xff]
    %v7897 = vld [vmem:[#allocation5 + $0xa0] sm:$0xff]
    %v7898 = vld [vmem:[#allocation5 + $0xa8] sm:$0xff]
    %v7899 = vld [vmem:[#allocation5 + $0xb0] sm:$0xff]
    %v7900 = vld [vmem:[#allocation5 + $0xb8] sm:$0xff]
    %v7901 = vld [vmem:[#allocation5 + $0xc0] sm:$0xff]
    %v7902 = vld [vmem:[#allocation5 + $0xc8] sm:$0xff]
    %v7903 = vld [vmem:[#allocation5 + $0xd0] sm:$0xff]
    %v7904 = vld [vmem:[#allocation5 + $0xd8] sm:$0xff]
    %v7905 = vld [vmem:[#allocation5 + $0xe0] sm:$0xff]
    %v7906 = vld [vmem:[#allocation5 + $0xe8] sm:$0xff]
    %v7907 = vld [vmem:[#allocation5 + $0xf0] sm:$0xff]
    %v7908 = vld [vmem:[#allocation5 + $0xf8] sm:$0xff]
    %v7909 = vld [vmem:[#allocation5 + $0x100] sm:$0xff]
    %v7910 = vld [vmem:[#allocation5 + $0x108] sm:$0xff]
    %v7911 = vld [vmem:[#allocation5 + $0x110] sm:$0xff]
    %v7912 = vld [vmem:[#allocation5 + $0x118] sm:$0xff]
    %v7913 = vld [vmem:[#allocation5 + $0x120] sm:$0xff]
    %v7914 = vld [vmem:[#allocation5 + $0x128] sm:$0xff]
    %v7915 = vld [vmem:[#allocation5 + $0x130] sm:$0xff]
    %v7916 = vld [vmem:[#allocation5 + $0x138] sm:$0xff]
    %v7917 = vld [vmem:[#allocation5 + $0x140] sm:$0xff]
    %v7918 = vld [vmem:[#allocation5 + $0x148] sm:$0xff]
    %v7919 = vld [vmem:[#allocation5 + $0x150] sm:$0xff]
    %v7920 = vld [vmem:[#allocation5 + $0x158] sm:$0xff]
    %v7921 = vld [vmem:[#allocation5 + $0x160] sm:$0xff]
    %v7922 = vld [vmem:[#allocation5 + $0x168] sm:$0xff]
    %v7923 = vld [vmem:[#allocation5 + $0x170] sm:$0xff]
    %v7924 = vld [vmem:[#allocation5 + $0x178] sm:$0xff]
    %v7925 = vld [vmem:[#allocation5 + $0x180] sm:$0xff]
    %v7926 = vld [vmem:[#allocation5 + $0x188] sm:$0xff]
    %v7927 = vld [vmem:[#allocation5 + $0x190] sm:$0xff]
    %v7928 = vld [vmem:[#allocation5 + $0x198] sm:$0xff]
    %v7929 = vld [vmem:[#allocation5 + $0x1a0] sm:$0xff]
    %v7930 = vld [vmem:[#allocation5 + $0x1a8] sm:$0xff]
    %v7931 = vld [vmem:[#allocation5 + $0x1b0] sm:$0xff]
    %v7932 = vld [vmem:[#allocation5 + $0x1b8] sm:$0xff]
    %v7933 = vld [vmem:[#allocation5 + $0x1c0] sm:$0xff]
    %v7934 = vld [vmem:[#allocation5 + $0x1c8] sm:$0xff]
    %v7935 = vld [vmem:[#allocation5 + $0x1d0] sm:$0xff]
    %v7936 = vld [vmem:[#allocation5 + $0x1d8] sm:$0xff]
    %v7937 = vld [vmem:[#allocation5 + $0x1e0] sm:$0xff]
    %v7938 = vld [vmem:[#allocation5 + $0x1e8] sm:$0xff]
    %v7939 = vld [vmem:[#allocation5 + $0x1f0] sm:$0xff]
    %v7940 = vld [vmem:[#allocation5 + $0x1f8] sm:$0xff]
    %v7941 = vpack.c.bf16 %v7878, %v7877
    %v7942 = vpack.c.bf16 %v7880, %v7879
    %v7943 = vpack.c.bf16 %v7882, %v7881
    %v7944 = vpack.c.bf16 %v7884, %v7883
    %v7945 = vpack.c.bf16 %v7886, %v7885
    %v7946 = vpack.c.bf16 %v7888, %v7887
    %v7947 = vpack.c.bf16 %v7890, %v7889
    %v7948 = vpack.c.bf16 %v7892, %v7891
    %v7949 = vpack.c.bf16 %v7894, %v7893
    %v7950 = vpack.c.bf16 %v7896, %v7895
    %v7951 = vpack.c.bf16 %v7898, %v7897
    %v7952 = vpack.c.bf16 %v7900, %v7899
    %v7953 = vpack.c.bf16 %v7902, %v7901
    %v7954 = vpack.c.bf16 %v7904, %v7903
    %v7955 = vpack.c.bf16 %v7906, %v7905
    %v7956 = vpack.c.bf16 %v7908, %v7907
    %v7957 = vpack.c.bf16 %v7910, %v7909
    %v7958 = vpack.c.bf16 %v7912, %v7911
    %v7959 = vpack.c.bf16 %v7914, %v7913
    %v7960 = vpack.c.bf16 %v7916, %v7915
    %v7961 = vpack.c.bf16 %v7918, %v7917
    %v7962 = vpack.c.bf16 %v7920, %v7919
    %v7963 = vpack.c.bf16 %v7922, %v7921
    %v7964 = vpack.c.bf16 %v7924, %v7923
    %v7965 = vpack.c.bf16 %v7926, %v7925
    %v7966 = vpack.c.bf16 %v7928, %v7927
    %v7967 = vpack.c.bf16 %v7930, %v7929
    %v7968 = vpack.c.bf16 %v7932, %v7931
    %v7969 = vpack.c.bf16 %v7934, %v7933
    %v7970 = vpack.c.bf16 %v7936, %v7935
    %v7971 = vpack.c.bf16 %v7938, %v7937
    %v7972 = vpack.c.bf16 %v7940, %v7939
    %v7973 = vld [vmem:[%s2] sm:$0xf]
    %v7974 = vld [vmem:[%s2 + $0x4] sm:$0xf]
    %v7975 = vld [vmem:[%s2 + $0x8] sm:$0xf]
    %v7976 = vld [vmem:[%s2 + $0xc] sm:$0xf]
    %v7977 = vld [vmem:[%s2 + $0x10] sm:$0xf]
    %v7978 = vld [vmem:[%s2 + $0x14] sm:$0xf]
    %v7979 = vld [vmem:[%s2 + $0x18] sm:$0xf]
    %v7980 = vld [vmem:[%s2 + $0x1c] sm:$0xf]
    %v7981 = vld [vmem:[%s2 + $0x20] sm:$0xf]
    %v7991 = vunpack.c.l.b16 %v7973
    %v7992 = vunpack.c.l.b16 %v7974
    %v7993 = vunpack.c.l.b16 %v7975
    %v7994 = vunpack.c.l.b16 %v7976
    %v7995 = vunpack.c.l.b16 %v7977
    %v7996 = vunpack.c.l.b16 %v7978
    %v7997 = vunpack.c.l.b16 %v7979
    %v7998 = vunpack.c.l.b16 %v7980
    %v7999 = vunpack.c.l.b16 %v7981
    %v8000 = vpack.c.b16 %v7992, %v7991
    %v8001 = vpack.c.b16 %v7994, %v7993
    %v8002 = vpack.c.b16 %v7996, %v7995
    %v8003 = vpack.c.b16 %v7998, %v7997
    %v8004 = vpack.c.b16 %v7999, %v7999
    %vm8009 = vcmask 588800
    %v8011 = vsel %vm8009, %v7941, 0
    %v8014 = vsel %vm8009, %v7942, 0
    %v8017 = vsel %vm8009, %v7943, 0
    %v8020 = vsel %vm8009, %v7944, 0
    %v8023 = vsel %vm8009, %v7945, 0
    %v8026 = vsel %vm8009, %v7946, 0
    %v8029 = vsel %vm8009, %v7947, 0
    %v8032 = vsel %vm8009, %v7948, 0
    %v8035 = vsel %vm8009, %v7949, 0
    %v8038 = vsel %vm8009, %v7950, 0
    %v8041 = vsel %vm8009, %v7951, 0
    %v8044 = vsel %vm8009, %v7952, 0
    %v8047 = vsel %vm8009, %v7953, 0
    %v8050 = vsel %vm8009, %v7954, 0
    %v8053 = vsel %vm8009, %v7955, 0
    %v8056 = vsel %vm8009, %v7956, 0
    %v8059 = vsel %vm8009, %v7957, 0
    %v8062 = vsel %vm8009, %v7958, 0
    %v8065 = vsel %vm8009, %v7959, 0
    %v8068 = vsel %vm8009, %v7960, 0
    %v8071 = vsel %vm8009, %v7961, 0
    %v8074 = vsel %vm8009, %v7962, 0
    %v8077 = vsel %vm8009, %v7963, 0
    %v8080 = vsel %vm8009, %v7964, 0
    %v8083 = vsel %vm8009, %v7965, 0
    %v8086 = vsel %vm8009, %v7966, 0
    %v8089 = vsel %vm8009, %v7967, 0
    %v8092 = vsel %vm8009, %v7968, 0
    %v8095 = vsel %vm8009, %v7969, 0
    %v8098 = vsel %vm8009, %v7970, 0
    %v8101 = vsel %vm8009, %v7971, 0
    %v8104 = vsel %vm8009, %v7972, 0
    %vm8106 = vcmask 1043456
    %v8108 = vsel %vm8106, %v8004, 0
    %8110 = vmatprep.subr.bf16.mxu0 0
    %8111 = vmatpush1.bf16.msra.mxu0 %v8000
    %8112 = vmatprep.subr.bf16.mxu0 0
    %8113 = vmatpush1.bf16.msra.mxu0 %v8001
    %8114 = vmatprep.subr.bf16.mxu0 0
    %8115 = vmatpush1.bf16.msra.mxu0 %v8002
    %8116 = vmatprep.subr.bf16.mxu0 0
    %8117 = vmatpush1.bf16.msra.mxu0 %v8003
    %8118 = vmatprep.subr.bf16.mxu0 0
    %8119 = vmatpush1.bf16.msra.mxu0 %v8108
    %8120 = vmatprep.subr.bf16.mxu0 0
    %8121 = vmatpush1.bf16.msra.mxu0 0
    %8122 = vmatprep.subr.bf16.mxu0 0
    %8123 = vmatpush1.bf16.msra.mxu0 0
    %8124 = vmatprep.subr.bf16.mxu0 0
    %8125 = vmatpush1.bf16.msra.mxu0 0
    %8126 = vmatprep.subr.bf16.mxu0 0
    %8127 = vmatpush1.bf16.msra.mxu0 0
    %8128 = vmatprep.subr.bf16.mxu0 0
    %8129 = vmatpush1.bf16.msra.mxu0 0
    %8130 = vmatprep.subr.bf16.mxu0 0
    %8131 = vmatpush1.bf16.msra.mxu0 0
    %8132 = vmatprep.subr.bf16.mxu0 0
    %8133 = vmatpush1.bf16.msra.mxu0 0
    %8134 = vmatprep.subr.bf16.mxu0 0
    %8135 = vmatpush1.bf16.msra.mxu0 0
    %8136 = vmatprep.subr.bf16.mxu0 0
    %8137 = vmatpush1.bf16.msra.mxu0 0
    %8138 = vmatprep.subr.bf16.mxu0 0
    %8139 = vmatpush1.bf16.msra.mxu0 0
    %8140 = vmatprep.subr.bf16.mxu0 0
    %8141 = vmatpush1.bf16.msra.mxu0 0
    %8142 = vmatprep.mubr.bf16.mxu0 0
    %8143 = vmatmul.mubr.bf16.gmra.mrb[0].mxu0 %v8011
    %v8144 = vpop.f32.mrb[0].mxu0
    %v8145 = vadd.f32 0.0, %v8144
    %v8146 = vpop.f32.mrb[0].mxu0
    %v8147 = vpop.f32.mrb[0].mxu0
    %v8148 = vadd.f32 0.0, %v8147
    %v8149 = vpop.f32.mrb[0].mxu0
    %8150 = vmatprep.mubr.bf16.mxu0 0
    %8151 = vmatmul.mubr.bf16.gmra.mrb[0].mxu0 %v8014
    %v8152 = vpop.f32.mrb[0].mxu0
    %v8153 = vadd.f32 0.0, %v8152
    %v8154 = vpop.f32.mrb[0].mxu0
    %v8155 = vpop.f32.mrb[0].mxu0
    %v8156 = vadd.f32 0.0, %v8155
    %v8157 = vpop.f32.mrb[0].mxu0
    %8158 = vmatprep.mubr.bf16.mxu0 0
    %8159 = vmatmul.mubr.bf16.gmra.mrb[0].mxu0 %v8017
    %v8160 = vpop.f32.mrb[0].mxu0
    %v8161 = vadd.f32 0.0, %v8160
    %v8162 = vpop.f32.mrb[0].mxu0
    %v8163 = vpop.f32.mrb[0].mxu0
    %v8164 = vadd.f32 0.0, %v8163
    %v8165 = vpop.f32.mrb[0].mxu0
    %8166 = vmatprep.mubr.bf16.mxu0 0
    %8167 = vmatmul.mubr.bf16.gmra.mrb[0].mxu0 %v8020
    %v8168 = vpop.f32.mrb[0].mxu0
    %v8169 = vadd.f32 0.0, %v8168
    %v8170 = vpop.f32.mrb[0].mxu0
    %v8171 = vpop.f32.mrb[0].mxu0
    %v8172 = vadd.f32 0.0, %v8171
    %v8173 = vpop.f32.mrb[0].mxu0
    %8174 = vmatprep.mubr.bf16.mxu0 0
    %8175 = vmatmul.mubr.bf16.gmra.mrb[0].mxu0 %v8023
    %v8176 = vpop.f32.mrb[0].mxu0
    %v8177 = vadd.f32 0.0, %v8176
    %v8178 = vpop.f32.mrb[0].mxu0
    %v8179 = vpop.f32.mrb[0].mxu0
    %v8180 = vadd.f32 0.0, %v8179
    %v8181 = vpop.f32.mrb[0].mxu0
    %8182 = vmatprep.mubr.bf16.mxu0 0
    %8183 = vmatmul.mubr.bf16.gmra.mrb[0].mxu0 %v8026
    %v8184 = vpop.f32.mrb[0].mxu0
    %v8185 = vadd.f32 0.0, %v8184
    %v8186 = vpop.f32.mrb[0].mxu0
    %v8187 = vpop.f32.mrb[0].mxu0
    %v8188 = vadd.f32 0.0, %v8187
    %v8189 = vpop.f32.mrb[0].mxu0
    %8190 = vmatprep.mubr.bf16.mxu0 0
    %8191 = vmatmul.mubr.bf16.gmra.mrb[0].mxu0 %v8029
    %v8192 = vpop.f32.mrb[0].mxu0
    %v8193 = vadd.f32 0.0, %v8192
    %v8194 = vpop.f32.mrb[0].mxu0
    %v8195 = vpop.f32.mrb[0].mxu0
    %v8196 = vadd.f32 0.0, %v8195
    %v8197 = vpop.f32.mrb[0].mxu0
    %8198 = vmatprep.mubr.bf16.mxu0 0
    %8199 = vmatmul.mubr.bf16.gmra.mrb[0].mxu0 %v8032
    %v8200 = vpop.f32.mrb[0].mxu0
    %v8201 = vadd.f32 0.0, %v8200
    %v8202 = vpop.f32.mrb[0].mxu0
    %v8203 = vpop.f32.mrb[0].mxu0
    %v8204 = vadd.f32 0.0, %v8203
    %v8205 = vpop.f32.mrb[0].mxu0
    %8206 = vmatprep.mubr.bf16.mxu0 0
    %8207 = vmatmul.mubr.bf16.gmra.mrb[0].mxu0 %v8035
    %v8208 = vpop.f32.mrb[0].mxu0
    %v8209 = vadd.f32 0.0, %v8208
    %v8210 = vpop.f32.mrb[0].mxu0
    %v8211 = vpop.f32.mrb[0].mxu0
    %v8212 = vadd.f32 0.0, %v8211
    %v8213 = vpop.f32.mrb[0].mxu0
    %8214 = vmatprep.mubr.bf16.mxu0 0
    %8215 = vmatmul.mubr.bf16.gmra.mrb[0].mxu0 %v8038
    %v8216 = vpop.f32.mrb[0].mxu0
    %v8217 = vadd.f32 0.0, %v8216
    %v8218 = vpop.f32.mrb[0].mxu0
    %v8219 = vpop.f32.mrb[0].mxu0
    %v8220 = vadd.f32 0.0, %v8219
    %v8221 = vpop.f32.mrb[0].mxu0
    %8222 = vmatprep.mubr.bf16.mxu0 0
    %8223 = vmatmul.mubr.bf16.gmra.mrb[0].mxu0 %v8041
    %v8224 = vpop.f32.mrb[0].mxu0
    %v8225 = vadd.f32 0.0, %v8224
    %v8226 = vpop.f32.mrb[0].mxu0
    %v8227 = vpop.f32.mrb[0].mxu0
    %v8228 = vadd.f32 0.0, %v8227
    %v8229 = vpop.f32.mrb[0].mxu0
    %8230 = vmatprep.mubr.bf16.mxu0 0
    %8231 = vmatmul.mubr.bf16.gmra.mrb[0].mxu0 %v8044
    %v8232 = vpop.f32.mrb[0].mxu0
    %v8233 = vadd.f32 0.0, %v8232
    %v8234 = vpop.f32.mrb[0].mxu0
    %v8235 = vpop.f32.mrb[0].mxu0
    %v8236 = vadd.f32 0.0, %v8235
    %v8237 = vpop.f32.mrb[0].mxu0
    %8238 = vmatprep.mubr.bf16.mxu0 0
    %8239 = vmatmul.mubr.bf16.gmra.mrb[0].mxu0 %v8047
    %v8240 = vpop.f32.mrb[0].mxu0
    %v8241 = vadd.f32 0.0, %v8240
    %v8242 = vpop.f32.mrb[0].mxu0
    %v8243 = vpop.f32.mrb[0].mxu0
    %v8244 = vadd.f32 0.0, %v8243
    %v8245 = vpop.f32.mrb[0].mxu0
    %8246 = vmatprep.mubr.bf16.mxu0 0
    %8247 = vmatmul.mubr.bf16.gmra.mrb[0].mxu0 %v8050
    %v8248 = vpop.f32.mrb[0].mxu0
    %v8249 = vadd.f32 0.0, %v8248
    %v8250 = vpop.f32.mrb[0].mxu0
    %v8251 = vpop.f32.mrb[0].mxu0
    %v8252 = vadd.f32 0.0, %v8251
    %v8253 = vpop.f32.mrb[0].mxu0
    %8254 = vmatprep.mubr.bf16.mxu0 0
    %8255 = vmatmul.mubr.bf16.gmra.mrb[0].mxu0 %v8053
    %v8256 = vpop.f32.mrb[0].mxu0
    %v8257 = vadd.f32 0.0, %v8256
    %v8258 = vpop.f32.mrb[0].mxu0
    %v8259 = vpop.f32.mrb[0].mxu0
    %v8260 = vadd.f32 0.0, %v8259
    %v8261 = vpop.f32.mrb[0].mxu0
    %8262 = vmatprep.mubr.bf16.mxu0 0
    %8263 = vmatmul.mubr.bf16.gmra.mrb[0].mxu0 %v8056
    %v8264 = vpop.f32.mrb[0].mxu0
    %v8265 = vadd.f32 0.0, %v8264
    %v8266 = vpop.f32.mrb[0].mxu0
    %v8267 = vpop.f32.mrb[0].mxu0
    %v8268 = vadd.f32 0.0, %v8267
    %v8269 = vpop.f32.mrb[0].mxu0
    %8270 = vmatprep.mubr.bf16.mxu0 0
    %8271 = vmatmul.mubr.bf16.gmra.mrb[0].mxu0 %v8059
    %v8272 = vpop.f32.mrb[0].mxu0
    %v8273 = vadd.f32 0.0, %v8272
    %v8274 = vpop.f32.mrb[0].mxu0
    %v8275 = vpop.f32.mrb[0].mxu0
    %v8276 = vadd.f32 0.0, %v8275
    %v8277 = vpop.f32.mrb[0].mxu0
    %8278 = vmatprep.mubr.bf16.mxu0 0
    %8279 = vmatmul.mubr.bf16.gmra.mrb[0].mxu0 %v8062
    %v8280 = vpop.f32.mrb[0].mxu0
    %v8281 = vadd.f32 0.0, %v8280
    %v8282 = vpop.f32.mrb[0].mxu0
    %v8283 = vpop.f32.mrb[0].mxu0
    %v8284 = vadd.f32 0.0, %v8283
    %v8285 = vpop.f32.mrb[0].mxu0
    %8286 = vmatprep.mubr.bf16.mxu0 0
    %8287 = vmatmul.mubr.bf16.gmra.mrb[0].mxu0 %v8065
    %v8288 = vpop.f32.mrb[0].mxu0
    %v8289 = vadd.f32 0.0, %v8288
    %v8290 = vpop.f32.mrb[0].mxu0
    %v8291 = vpop.f32.mrb[0].mxu0
    %v8292 = vadd.f32 0.0, %v8291
    %v8293 = vpop.f32.mrb[0].mxu0
    %8294 = vmatprep.mubr.bf16.mxu0 0
    %8295 = vmatmul.mubr.bf16.gmra.mrb[0].mxu0 %v8068
    %v8296 = vpop.f32.mrb[0].mxu0
    %v8297 = vadd.f32 0.0, %v8296
    %v8298 = vpop.f32.mrb[0].mxu0
    %v8299 = vpop.f32.mrb[0].mxu0
    %v8300 = vadd.f32 0.0, %v8299
    %v8301 = vpop.f32.mrb[0].mxu0
    %8302 = vmatprep.mubr.bf16.mxu0 0
    %8303 = vmatmul.mubr.bf16.gmra.mrb[0].mxu0 %v8071
    %v8304 = vpop.f32.mrb[0].mxu0
    %v8305 = vadd.f32 0.0, %v8304
    %v8306 = vpop.f32.mrb[0].mxu0
    %v8307 = vpop.f32.mrb[0].mxu0
    %v8308 = vadd.f32 0.0, %v8307
    %v8309 = vpop.f32.mrb[0].mxu0
    %8310 = vmatprep.mubr.bf16.mxu0 0
    %8311 = vmatmul.mubr.bf16.gmra.mrb[0].mxu0 %v8074
    %v8312 = vpop.f32.mrb[0].mxu0
    %v8313 = vadd.f32 0.0, %v8312
    %v8314 = vpop.f32.mrb[0].mxu0
    %v8315 = vpop.f32.mrb[0].mxu0
    %v8316 = vadd.f32 0.0, %v8315
    %v8317 = vpop.f32.mrb[0].mxu0
    %8318 = vmatprep.mubr.bf16.mxu0 0
    %8319 = vmatmul.mubr.bf16.gmra.mrb[0].mxu0 %v8077
    %v8320 = vpop.f32.mrb[0].mxu0
    %v8321 = vadd.f32 0.0, %v8320
    %v8322 = vpop.f32.mrb[0].mxu0
    %v8323 = vpop.f32.mrb[0].mxu0
    %v8324 = vadd.f32 0.0, %v8323
    %v8325 = vpop.f32.mrb[0].mxu0
    %8326 = vmatprep.mubr.bf16.mxu0 0
    %8327 = vmatmul.mubr.bf16.gmra.mrb[0].mxu0 %v8080
    %v8328 = vpop.f32.mrb[0].mxu0
    %v8329 = vadd.f32 0.0, %v8328
    %v8330 = vpop.f32.mrb[0].mxu0
    %v8331 = vpop.f32.mrb[0].mxu0
    %v8332 = vadd.f32 0.0, %v8331
    %v8333 = vpop.f32.mrb[0].mxu0
    %8334 = vmatprep.mubr.bf16.mxu0 0
    %8335 = vmatmul.mubr.bf16.gmra.mrb[0].mxu0 %v8083
    %v8336 = vpop.f32.mrb[0].mxu0
    %v8337 = vadd.f32 0.0, %v8336
    %v8338 = vpop.f32.mrb[0].mxu0
    %v8339 = vpop.f32.mrb[0].mxu0
    %v8340 = vadd.f32 0.0, %v8339
    %v8341 = vpop.f32.mrb[0].mxu0
    %8342 = vmatprep.mubr.bf16.mxu0 0
    %8343 = vmatmul.mubr.bf16.gmra.mrb[0].mxu0 %v8086
    %v8344 = vpop.f32.mrb[0].mxu0
    %v8345 = vadd.f32 0.0, %v8344
    %v8346 = vpop.f32.mrb[0].mxu0
    %v8347 = vpop.f32.mrb[0].mxu0
    %v8348 = vadd.f32 0.0, %v8347
    %v8349 = vpop.f32.mrb[0].mxu0
    %8350 = vmatprep.mubr.bf16.mxu0 0
    %8351 = vmatmul.mubr.bf16.gmra.mrb[0].mxu0 %v8089
    %v8352 = vpop.f32.mrb[0].mxu0
    %v8353 = vadd.f32 0.0, %v8352
    %v8354 = vpop.f32.mrb[0].mxu0
    %v8355 = vpop.f32.mrb[0].mxu0
    %v8356 = vadd.f32 0.0, %v8355
    %v8357 = vpop.f32.mrb[0].mxu0
    %8358 = vmatprep.mubr.bf16.mxu0 0
    %8359 = vmatmul.mubr.bf16.gmra.mrb[0].mxu0 %v8092
    %v8360 = vpop.f32.mrb[0].mxu0
    %v8361 = vadd.f32 0.0, %v8360
    %v8362 = vpop.f32.mrb[0].mxu0
    %v8363 = vpop.f32.mrb[0].mxu0
    %v8364 = vadd.f32 0.0, %v8363
    %v8365 = vpop.f32.mrb[0].mxu0
    %8366 = vmatprep.mubr.bf16.mxu0 0
    %8367 = vmatmul.mubr.bf16.gmra.mrb[0].mxu0 %v8095
    %v8368 = vpop.f32.mrb[0].mxu0
    %v8369 = vadd.f32 0.0, %v8368
    %v8370 = vpop.f32.mrb[0].mxu0
    %v8371 = vpop.f32.mrb[0].mxu0
    %v8372 = vadd.f32 0.0, %v8371
    %v8373 = vpop.f32.mrb[0].mxu0
    %8374 = vmatprep.mubr.bf16.mxu0 0
    %8375 = vmatmul.mubr.bf16.gmra.mrb[0].mxu0 %v8098
    %v8376 = vpop.f32.mrb[0].mxu0
    %v8377 = vadd.f32 0.0, %v8376
    %v8378 = vpop.f32.mrb[0].mxu0
    %v8379 = vpop.f32.mrb[0].mxu0
    %v8380 = vadd.f32 0.0, %v8379
    %v8381 = vpop.f32.mrb[0].mxu0
    %8382 = vmatprep.mubr.bf16.mxu0 0
    %8383 = vmatmul.mubr.bf16.gmra.mrb[0].mxu0 %v8101
    %v8384 = vpop.f32.mrb[0].mxu0
    %v8385 = vadd.f32 0.0, %v8384
    %v8386 = vpop.f32.mrb[0].mxu0
    %v8387 = vpop.f32.mrb[0].mxu0
    %v8388 = vadd.f32 0.0, %v8387
    %v8389 = vpop.f32.mrb[0].mxu0
    %8390 = vmatprep.mubr.bf16.mxu0 0
    %8391 = vmatmul.mubr.bf16.gmra.mrb[0].mxu0 %v8104
    %v8392 = vpop.f32.mrb[0].mxu0
    %v8393 = vadd.f32 0.0, %v8392
    %v8394 = vpop.f32.mrb[0].mxu0
    %v8395 = vpop.f32.mrb[0].mxu0
    %v8396 = vadd.f32 0.0, %v8395
    %v8397 = vpop.f32.mrb[0].mxu0
    %8398 = vdwg.mxu0
    %v8399 = vsel %vm3969, %v8145, 0.0
    %v8400 = vsel %vm3969, %v8148, 0.0
    %v8401 = vadd.f32 %v8399, %v8400
    %v8402 = vsel %vm3969, %v8153, 0.0
    %v8403 = vadd.f32 %v8401, %v8402
    %v8404 = vsel %vm3969, %v8156, 0.0
    %v8405 = vadd.f32 %v8403, %v8404
    %v8406 = vsel %vm3969, %v8161, 0.0
    %v8407 = vadd.f32 %v8405, %v8406
    %v8408 = vsel %vm3969, %v8164, 0.0
    %v8409 = vadd.f32 %v8407, %v8408
    %v8410 = vsel %vm3969, %v8169, 0.0
    %v8411 = vadd.f32 %v8409, %v8410
    %v8412 = vsel %vm3969, %v8172, 0.0
    %v8413 = vadd.f32 %v8411, %v8412
    %v8414 = vsel %vm3969, %v8177, 0.0
    %v8415 = vadd.f32 %v8413, %v8414
    %v8416 = vsel %vm3969, %v8180, 0.0
    %v8417 = vadd.f32 %v8415, %v8416
    %v8418 = vsel %vm3969, %v8185, 0.0
    %v8419 = vadd.f32 %v8417, %v8418
    %v8420 = vsel %vm3969, %v8188, 0.0
    %v8421 = vadd.f32 %v8419, %v8420
    %v8422 = vsel %vm3969, %v8193, 0.0
    %v8423 = vadd.f32 %v8421, %v8422
    %v8424 = vsel %vm3969, %v8196, 0.0
    %v8425 = vadd.f32 %v8423, %v8424
    %v8426 = vsel %vm3969, %v8201, 0.0
    %v8427 = vadd.f32 %v8425, %v8426
    %v8428 = vsel %vm3969, %v8204, 0.0
    %v8429 = vadd.f32 %v8427, %v8428
    %v8430 = vsel %vm3969, %v8209, 0.0
    %v8431 = vadd.f32 %v8429, %v8430
    %v8432 = vsel %vm3969, %v8212, 0.0
    %v8433 = vadd.f32 %v8431, %v8432
    %v8434 = vsel %vm3969, %v8217, 0.0
    %v8435 = vadd.f32 %v8433, %v8434
    %v8436 = vsel %vm3969, %v8220, 0.0
    %v8437 = vadd.f32 %v8435, %v8436
    %v8438 = vsel %vm3969, %v8225, 0.0
    %v8439 = vadd.f32 %v8437, %v8438
    %v8440 = vsel %vm3969, %v8228, 0.0
    %v8441 = vadd.f32 %v8439, %v8440
    %v8442 = vsel %vm3969, %v8233, 0.0
    %v8443 = vadd.f32 %v8441, %v8442
    %v8444 = vsel %vm3969, %v8236, 0.0
    %v8445 = vadd.f32 %v8443, %v8444
    %v8446 = vsel %vm3969, %v8241, 0.0
    %v8447 = vadd.f32 %v8445, %v8446
    %v8448 = vsel %vm3969, %v8244, 0.0
    %v8449 = vadd.f32 %v8447, %v8448
    %v8450 = vsel %vm3969, %v8249, 0.0
    %v8451 = vadd.f32 %v8449, %v8450
    %v8452 = vsel %vm3969, %v8252, 0.0
    %v8453 = vadd.f32 %v8451, %v8452
    %v8454 = vsel %vm3969, %v8257, 0.0
    %v8455 = vadd.f32 %v8453, %v8454
    %v8456 = vsel %vm3969, %v8260, 0.0
    %v8457 = vadd.f32 %v8455, %v8456
    %v8458 = vsel %vm3969, %v8265, 0.0
    %v8459 = vadd.f32 %v8457, %v8458
    %v8460 = vsel %vm3969, %v8268, 0.0
    %v8461 = vadd.f32 %v8459, %v8460
    %v8462 = vsel %vm3969, %v8273, 0.0
    %v8463 = vadd.f32 %v8461, %v8462
    %v8464 = vsel %vm3969, %v8276, 0.0
    %v8465 = vadd.f32 %v8463, %v8464
    %v8466 = vsel %vm3969, %v8281, 0.0
    %v8467 = vadd.f32 %v8465, %v8466
    %v8468 = vsel %vm3969, %v8284, 0.0
    %v8469 = vadd.f32 %v8467, %v8468
    %v8470 = vsel %vm3969, %v8289, 0.0
    %v8471 = vadd.f32 %v8469, %v8470
    %v8472 = vsel %vm3969, %v8292, 0.0
    %v8473 = vadd.f32 %v8471, %v8472
    %v8474 = vsel %vm3969, %v8297, 0.0
    %v8475 = vadd.f32 %v8473, %v8474
    %v8476 = vsel %vm3969, %v8300, 0.0
    %v8477 = vadd.f32 %v8475, %v8476
    %v8478 = vsel %vm3969, %v8305, 0.0
    %v8479 = vadd.f32 %v8477, %v8478
    %v8480 = vsel %vm3969, %v8308, 0.0
    %v8481 = vadd.f32 %v8479, %v8480
    %v8482 = vsel %vm3969, %v8313, 0.0
    %v8483 = vadd.f32 %v8481, %v8482
    %v8484 = vsel %vm3969, %v8316, 0.0
    %v8485 = vadd.f32 %v8483, %v8484
    %v8486 = vsel %vm3969, %v8321, 0.0
    %v8487 = vadd.f32 %v8485, %v8486
    %v8488 = vsel %vm3969, %v8324, 0.0
    %v8489 = vadd.f32 %v8487, %v8488
    %v8490 = vsel %vm3969, %v8329, 0.0
    %v8491 = vadd.f32 %v8489, %v8490
    %v8492 = vsel %vm3969, %v8332, 0.0
    %v8493 = vadd.f32 %v8491, %v8492
    %v8494 = vsel %vm3969, %v8337, 0.0
    %v8495 = vadd.f32 %v8493, %v8494
    %v8496 = vsel %vm3969, %v8340, 0.0
    %v8497 = vadd.f32 %v8495, %v8496
    %v8498 = vsel %vm3969, %v8345, 0.0
    %v8499 = vadd.f32 %v8497, %v8498
    %v8500 = vsel %vm3969, %v8348, 0.0
    %v8501 = vadd.f32 %v8499, %v8500
    %v8502 = vsel %vm3969, %v8353, 0.0
    %v8503 = vadd.f32 %v8501, %v8502
    %v8504 = vsel %vm3969, %v8356, 0.0
    %v8505 = vadd.f32 %v8503, %v8504
    %v8506 = vsel %vm3969, %v8361, 0.0
    %v8507 = vadd.f32 %v8505, %v8506
    %v8508 = vsel %vm3969, %v8364, 0.0
    %v8509 = vadd.f32 %v8507, %v8508
    %v8510 = vsel %vm3969, %v8369, 0.0
    %v8511 = vadd.f32 %v8509, %v8510
    %v8512 = vsel %vm3969, %v8372, 0.0
    %v8513 = vadd.f32 %v8511, %v8512
    %v8514 = vsel %vm3969, %v8377, 0.0
    %v8515 = vadd.f32 %v8513, %v8514
    %v8516 = vsel %vm3969, %v8380, 0.0
    %v8517 = vadd.f32 %v8515, %v8516
    %v8518 = vsel %vm3969, %v8385, 0.0
    %v8519 = vadd.f32 %v8517, %v8518
    %v8520 = vsel %vm3969, %v8388, 0.0
    %v8521 = vadd.f32 %v8519, %v8520
    %v8522 = vsel %vm3969, %v8393, 0.0
    %v8523 = vadd.f32 %v8521, %v8522
    %v8524 = vsel %vm3969, %v8396, 0.0
    %v8525 = vadd.f32 %v8523, %v8524
    %v8526 = vrot.slane %v8525, 4
    %v8527 = vadd.f32 %v8525, %v8526
    %v8528 = vrot.slane %v8527, 2
    %v8529 = vadd.f32 %v8527, %v8528
    %v8530 = vrot.slane %v8529, 1
    %v8531 = vadd.f32 %v8529, %v8530
    %v8532 = vmul.f32 %v8531, %v4103
    %v8533 = vmul.f32 %v8145, %v8145
    %v8534 = vmul.f32 %v8148, %v8148
    %v8535 = vmul.f32 %v8153, %v8153
    %v8536 = vmul.f32 %v8156, %v8156
    %v8537 = vmul.f32 %v8161, %v8161
    %v8538 = vmul.f32 %v8164, %v8164
    %v8539 = vmul.f32 %v8169, %v8169
    %v8540 = vmul.f32 %v8172, %v8172
    %v8541 = vmul.f32 %v8177, %v8177
    %v8542 = vmul.f32 %v8180, %v8180
    %v8543 = vmul.f32 %v8185, %v8185
    %v8544 = vmul.f32 %v8188, %v8188
    %v8545 = vmul.f32 %v8193, %v8193
    %v8546 = vmul.f32 %v8196, %v8196
    %v8547 = vmul.f32 %v8201, %v8201
    %v8548 = vmul.f32 %v8204, %v8204
    %v8549 = vmul.f32 %v8209, %v8209
    %v8550 = vmul.f32 %v8212, %v8212
    %v8551 = vmul.f32 %v8217, %v8217
    %v8552 = vmul.f32 %v8220, %v8220
    %v8553 = vmul.f32 %v8225, %v8225
    %v8554 = vmul.f32 %v8228, %v8228
    %v8555 = vmul.f32 %v8233, %v8233
    %v8556 = vmul.f32 %v8236, %v8236
    %v8557 = vmul.f32 %v8241, %v8241
    %v8558 = vmul.f32 %v8244, %v8244
    %v8559 = vmul.f32 %v8249, %v8249
    %v8560 = vmul.f32 %v8252, %v8252
    %v8561 = vmul.f32 %v8257, %v8257
    %v8562 = vmul.f32 %v8260, %v8260
    %v8563 = vmul.f32 %v8265, %v8265
    %v8564 = vmul.f32 %v8268, %v8268
    %v8565 = vmul.f32 %v8273, %v8273
    %v8566 = vmul.f32 %v8276, %v8276
    %v8567 = vmul.f32 %v8281, %v8281
    %v8568 = vmul.f32 %v8284, %v8284
    %v8569 = vmul.f32 %v8289, %v8289
    %v8570 = vmul.f32 %v8292, %v8292
    %v8571 = vmul.f32 %v8297, %v8297
    %v8572 = vmul.f32 %v8300, %v8300
    %v8573 = vmul.f32 %v8305, %v8305
    %v8574 = vmul.f32 %v8308, %v8308
    %v8575 = vmul.f32 %v8313, %v8313
    %v8576 = vmul.f32 %v8316, %v8316
    %v8577 = vmul.f32 %v8321, %v8321
    %v8578 = vmul.f32 %v8324, %v8324
    %v8579 = vmul.f32 %v8329, %v8329
    %v8580 = vmul.f32 %v8332, %v8332
    %v8581 = vmul.f32 %v8337, %v8337
    %v8582 = vmul.f32 %v8340, %v8340
    %v8583 = vmul.f32 %v8345, %v8345
    %v8584 = vmul.f32 %v8348, %v8348
    %v8585 = vmul.f32 %v8353, %v8353
    %v8586 = vmul.f32 %v8356, %v8356
    %v8587 = vmul.f32 %v8361, %v8361
    %v8588 = vmul.f32 %v8364, %v8364
    %v8589 = vmul.f32 %v8369, %v8369
    %v8590 = vmul.f32 %v8372, %v8372
    %v8591 = vmul.f32 %v8377, %v8377
    %v8592 = vmul.f32 %v8380, %v8380
    %v8593 = vmul.f32 %v8385, %v8385
    %v8594 = vmul.f32 %v8388, %v8388
    %v8595 = vmul.f32 %v8393, %v8393
    %v8596 = vmul.f32 %v8396, %v8396
    %v8597 = vsel %vm3969, %v8533, 0.0
    %v8598 = vsel %vm3969, %v8534, 0.0
    %v8599 = vadd.f32 %v8597, %v8598
    %v8600 = vsel %vm3969, %v8535, 0.0
    %v8601 = vadd.f32 %v8599, %v8600
    %v8602 = vsel %vm3969, %v8536, 0.0
    %v8603 = vadd.f32 %v8601, %v8602
    %v8604 = vsel %vm3969, %v8537, 0.0
    %v8605 = vadd.f32 %v8603, %v8604
    %v8606 = vsel %vm3969, %v8538, 0.0
    %v8607 = vadd.f32 %v8605, %v8606
    %v8608 = vsel %vm3969, %v8539, 0.0
    %v8609 = vadd.f32 %v8607, %v8608
    %v8610 = vsel %vm3969, %v8540, 0.0
    %v8611 = vadd.f32 %v8609, %v8610
    %v8612 = vsel %vm3969, %v8541, 0.0
    %v8613 = vadd.f32 %v8611, %v8612
    %v8614 = vsel %vm3969, %v8542, 0.0
    %v8615 = vadd.f32 %v8613, %v8614
    %v8616 = vsel %vm3969, %v8543, 0.0
    %v8617 = vadd.f32 %v8615, %v8616
    %v8618 = vsel %vm3969, %v8544, 0.0
    %v8619 = vadd.f32 %v8617, %v8618
    %v8620 = vsel %vm3969, %v8545, 0.0
    %v8621 = vadd.f32 %v8619, %v8620
    %v8622 = vsel %vm3969, %v8546, 0.0
    %v8623 = vadd.f32 %v8621, %v8622
    %v8624 = vsel %vm3969, %v8547, 0.0
    %v8625 = vadd.f32 %v8623, %v8624
    %v8626 = vsel %vm3969, %v8548, 0.0
    %v8627 = vadd.f32 %v8625, %v8626
    %v8628 = vsel %vm3969, %v8549, 0.0
    %v8629 = vadd.f32 %v8627, %v8628
    %v8630 = vsel %vm3969, %v8550, 0.0
    %v8631 = vadd.f32 %v8629, %v8630
    %v8632 = vsel %vm3969, %v8551, 0.0
    %v8633 = vadd.f32 %v8631, %v8632
    %v8634 = vsel %vm3969, %v8552, 0.0
    %v8635 = vadd.f32 %v8633, %v8634
    %v8636 = vsel %vm3969, %v8553, 0.0
    %v8637 = vadd.f32 %v8635, %v8636
    %v8638 = vsel %vm3969, %v8554, 0.0
    %v8639 = vadd.f32 %v8637, %v8638
    %v8640 = vsel %vm3969, %v8555, 0.0
    %v8641 = vadd.f32 %v8639, %v8640
    %v8642 = vsel %vm3969, %v8556, 0.0
    %v8643 = vadd.f32 %v8641, %v8642
    %v8644 = vsel %vm3969, %v8557, 0.0
    %v8645 = vadd.f32 %v8643, %v8644
    %v8646 = vsel %vm3969, %v8558, 0.0
    %v8647 = vadd.f32 %v8645, %v8646
    %v8648 = vsel %vm3969, %v8559, 0.0
    %v8649 = vadd.f32 %v8647, %v8648
    %v8650 = vsel %vm3969, %v8560, 0.0
    %v8651 = vadd.f32 %v8649, %v8650
    %v8652 = vsel %vm3969, %v8561, 0.0
    %v8653 = vadd.f32 %v8651, %v8652
    %v8654 = vsel %vm3969, %v8562, 0.0
    %v8655 = vadd.f32 %v8653, %v8654
    %v8656 = vsel %vm3969, %v8563, 0.0
    %v8657 = vadd.f32 %v8655, %v8656
    %v8658 = vsel %vm3969, %v8564, 0.0
    %v8659 = vadd.f32 %v8657, %v8658
    %v8660 = vsel %vm3969, %v8565, 0.0
    %v8661 = vadd.f32 %v8659, %v8660
    %v8662 = vsel %vm3969, %v8566, 0.0
    %v8663 = vadd.f32 %v8661, %v8662
    %v8664 = vsel %vm3969, %v8567, 0.0
    %v8665 = vadd.f32 %v8663, %v8664
    %v8666 = vsel %vm3969, %v8568, 0.0
    %v8667 = vadd.f32 %v8665, %v8666
    %v8668 = vsel %vm3969, %v8569, 0.0
    %v8669 = vadd.f32 %v8667, %v8668
    %v8670 = vsel %vm3969, %v8570, 0.0
    %v8671 = vadd.f32 %v8669, %v8670
    %v8672 = vsel %vm3969, %v8571, 0.0
    %v8673 = vadd.f32 %v8671, %v8672
    %v8674 = vsel %vm3969, %v8572, 0.0
    %v8675 = vadd.f32 %v8673, %v8674
    %v8676 = vsel %vm3969, %v8573, 0.0
    %v8677 = vadd.f32 %v8675, %v8676
    %v8678 = vsel %vm3969, %v8574, 0.0
    %v8679 = vadd.f32 %v8677, %v8678
    %v8680 = vsel %vm3969, %v8575, 0.0
    %v8681 = vadd.f32 %v8679, %v8680
    %v8682 = vsel %vm3969, %v8576, 0.0
    %v8683 = vadd.f32 %v8681, %v8682
    %v8684 = vsel %vm3969, %v8577, 0.0
    %v8685 = vadd.f32 %v8683, %v8684
    %v8686 = vsel %vm3969, %v8578, 0.0
    %v8687 = vadd.f32 %v8685, %v8686
    %v8688 = vsel %vm3969, %v8579, 0.0
    %v8689 = vadd.f32 %v8687, %v8688
    %v8690 = vsel %vm3969, %v8580, 0.0
    %v8691 = vadd.f32 %v8689, %v8690
    %v8692 = vsel %vm3969, %v8581, 0.0
    %v8693 = vadd.f32 %v8691, %v8692
    %v8694 = vsel %vm3969, %v8582, 0.0
    %v8695 = vadd.f32 %v8693, %v8694
    %v8696 = vsel %vm3969, %v8583, 0.0
    %v8697 = vadd.f32 %v8695, %v8696
    %v8698 = vsel %vm3969, %v8584, 0.0
    %v8699 = vadd.f32 %v8697, %v8698
    %v8700 = vsel %vm3969, %v8585, 0.0
    %v8701 = vadd.f32 %v8699, %v8700
    %v8702 = vsel %vm3969, %v8586, 0.0
    %v8703 = vadd.f32 %v8701, %v8702
    %v8704 = vsel %vm3969, %v8587, 0.0
    %v8705 = vadd.f32 %v8703, %v8704
    %v8706 = vsel %vm3969, %v8588, 0.0
    %v8707 = vadd.f32 %v8705, %v8706
    %v8708 = vsel %vm3969, %v8589, 0.0
    %v8709 = vadd.f32 %v8707, %v8708
    %v8710 = vsel %vm3969, %v8590, 0.0
    %v8711 = vadd.f32 %v8709, %v8710
    %v8712 = vsel %vm3969, %v8591, 0.0
    %v8713 = vadd.f32 %v8711, %v8712
    %v8714 = vsel %vm3969, %v8592, 0.0
    %v8715 = vadd.f32 %v8713, %v8714
    %v8716 = vsel %vm3969, %v8593, 0.0
    %v8717 = vadd.f32 %v8715, %v8716
    %v8718 = vsel %vm3969, %v8594, 0.0
    %v8719 = vadd.f32 %v8717, %v8718
    %v8720 = vsel %vm3969, %v8595, 0.0
    %v8721 = vadd.f32 %v8719, %v8720
    %v8722 = vsel %vm3969, %v8596, 0.0
    %v8723 = vadd.f32 %v8721, %v8722
    %v8724 = vrot.slane %v8723, 4
    %v8725 = vadd.f32 %v8723, %v8724
    %v8726 = vrot.slane %v8725, 2
    %v8727 = vadd.f32 %v8725, %v8726
    %v8728 = vrot.slane %v8727, 1
    %v8729 = vadd.f32 %v8727, %v8728
    %v8730 = vmul.f32 %v8729, %v4103
    %v8731 = vmul.f32 %v8532, %v8532
    %v8732 = vsub.f32 %v8730, %v8731
    %v8733 = vld [vmem:[%s6] sm:$0x1]
    %v8734 = vadd.f32 %v8732, 1e-05
    %v8735 = vrsqrt.pop %v8734
    %v8736 = vmul.f32 %v8733, %v8735
    %v8737 = vld [vmem:[%s7] sm:$0x1]
    %v8738 = vmul.f32 %v8532, %v8736
    %v8739 = vsub.f32 %v8737, %v8738
    %v8741 = vlaneseq
    %v8742 = vshrl.u32 %v8741, 7
    %v8743 = vsub.s32 0, %v8742
    %v8744 = vrot.slane %v8736, %v8743
    %v8746 = vmul.f32 %v8145, %v8744
    %v8747 = vmul.f32 %v8148, %v8744
    %v8748 = vmul.f32 %v8153, %v8744
    %v8749 = vmul.f32 %v8156, %v8744
    %v8750 = vmul.f32 %v8161, %v8744
    %v8751 = vmul.f32 %v8164, %v8744
    %v8752 = vmul.f32 %v8169, %v8744
    %v8753 = vmul.f32 %v8172, %v8744
    %v8754 = vmul.f32 %v8177, %v8744
    %v8755 = vmul.f32 %v8180, %v8744
    %v8756 = vmul.f32 %v8185, %v8744
    %v8757 = vmul.f32 %v8188, %v8744
    %v8758 = vmul.f32 %v8193, %v8744
    %v8759 = vmul.f32 %v8196, %v8744
    %v8760 = vmul.f32 %v8201, %v8744
    %v8761 = vmul.f32 %v8204, %v8744
    %v8762 = vmul.f32 %v8209, %v8744
    %v8763 = vmul.f32 %v8212, %v8744
    %v8764 = vmul.f32 %v8217, %v8744
    %v8765 = vmul.f32 %v8220, %v8744
    %v8766 = vmul.f32 %v8225, %v8744
    %v8767 = vmul.f32 %v8228, %v8744
    %v8768 = vmul.f32 %v8233, %v8744
    %v8769 = vmul.f32 %v8236, %v8744
    %v8770 = vmul.f32 %v8241, %v8744
    %v8771 = vmul.f32 %v8244, %v8744
    %v8772 = vmul.f32 %v8249, %v8744
    %v8773 = vmul.f32 %v8252, %v8744
    %v8774 = vmul.f32 %v8257, %v8744
    %v8775 = vmul.f32 %v8260, %v8744
    %v8776 = vmul.f32 %v8265, %v8744
    %v8777 = vmul.f32 %v8268, %v8744
    %v8778 = vmul.f32 %v8273, %v8744
    %v8779 = vmul.f32 %v8276, %v8744
    %v8780 = vmul.f32 %v8281, %v8744
    %v8781 = vmul.f32 %v8284, %v8744
    %v8782 = vmul.f32 %v8289, %v8744
    %v8783 = vmul.f32 %v8292, %v8744
    %v8784 = vmul.f32 %v8297, %v8744
    %v8785 = vmul.f32 %v8300, %v8744
    %v8786 = vmul.f32 %v8305, %v8744
    %v8787 = vmul.f32 %v8308, %v8744
    %v8788 = vmul.f32 %v8313, %v8744
    %v8789 = vmul.f32 %v8316, %v8744
    %v8790 = vmul.f32 %v8321, %v8744
    %v8791 = vmul.f32 %v8324, %v8744
    %v8792 = vmul.f32 %v8329, %v8744
    %v8793 = vmul.f32 %v8332, %v8744
    %v8794 = vmul.f32 %v8337, %v8744
    %v8795 = vmul.f32 %v8340, %v8744
    %v8796 = vmul.f32 %v8345, %v8744
    %v8797 = vmul.f32 %v8348, %v8744
    %v8798 = vmul.f32 %v8353, %v8744
    %v8799 = vmul.f32 %v8356, %v8744
    %v8800 = vmul.f32 %v8361, %v8744
    %v8801 = vmul.f32 %v8364, %v8744
    %v8802 = vmul.f32 %v8369, %v8744
    %v8803 = vmul.f32 %v8372, %v8744
    %v8804 = vmul.f32 %v8377, %v8744
    %v8805 = vmul.f32 %v8380, %v8744
    %v8806 = vmul.f32 %v8385, %v8744
    %v8807 = vmul.f32 %v8388, %v8744
    %v8808 = vmul.f32 %v8393, %v8744
    %v8809 = vmul.f32 %v8396, %v8744
    %v8811 = vlaneseq
    %v8812 = vshrl.u32 %v8811, 7
    %v8813 = vsub.s32 0, %v8812
    %v8814 = vrot.slane %v8739, %v8813
    %v8816 = vadd.f32 %v8746, %v8814
    %v8817 = vadd.f32 %v8747, %v8814
    %v8818 = vadd.f32 %v8748, %v8814
    %v8819 = vadd.f32 %v8749, %v8814
    %v8820 = vadd.f32 %v8750, %v8814
    %v8821 = vadd.f32 %v8751, %v8814
    %v8822 = vadd.f32 %v8752, %v8814
    %v8823 = vadd.f32 %v8753, %v8814
    %v8824 = vadd.f32 %v8754, %v8814
    %v8825 = vadd.f32 %v8755, %v8814
    %v8826 = vadd.f32 %v8756, %v8814
    %v8827 = vadd.f32 %v8757, %v8814
    %v8828 = vadd.f32 %v8758, %v8814
    %v8829 = vadd.f32 %v8759, %v8814
    %v8830 = vadd.f32 %v8760, %v8814
    %v8831 = vadd.f32 %v8761, %v8814
    %v8832 = vadd.f32 %v8762, %v8814
    %v8833 = vadd.f32 %v8763, %v8814
    %v8834 = vadd.f32 %v8764, %v8814
    %v8835 = vadd.f32 %v8765, %v8814
    %v8836 = vadd.f32 %v8766, %v8814
    %v8837 = vadd.f32 %v8767, %v8814
    %v8838 = vadd.f32 %v8768, %v8814
    %v8839 = vadd.f32 %v8769, %v8814
    %v8840 = vadd.f32 %v8770, %v8814
    %v8841 = vadd.f32 %v8771, %v8814
    %v8842 = vadd.f32 %v8772, %v8814
    %v8843 = vadd.f32 %v8773, %v8814
    %v8844 = vadd.f32 %v8774, %v8814
    %v8845 = vadd.f32 %v8775, %v8814
    %v8846 = vadd.f32 %v8776, %v8814
    %v8847 = vadd.f32 %v8777, %v8814
    %v8848 = vadd.f32 %v8778, %v8814
    %v8849 = vadd.f32 %v8779, %v8814
    %v8850 = vadd.f32 %v8780, %v8814
    %v8851 = vadd.f32 %v8781, %v8814
    %v8852 = vadd.f32 %v8782, %v8814
    %v8853 = vadd.f32 %v8783, %v8814
    %v8854 = vadd.f32 %v8784, %v8814
    %v8855 = vadd.f32 %v8785, %v8814
    %v8856 = vadd.f32 %v8786, %v8814
    %v8857 = vadd.f32 %v8787, %v8814
    %v8858 = vadd.f32 %v8788, %v8814
    %v8859 = vadd.f32 %v8789, %v8814
    %v8860 = vadd.f32 %v8790, %v8814
    %v8861 = vadd.f32 %v8791, %v8814
    %v8862 = vadd.f32 %v8792, %v8814
    %v8863 = vadd.f32 %v8793, %v8814
    %v8864 = vadd.f32 %v8794, %v8814
    %v8865 = vadd.f32 %v8795, %v8814
    %v8866 = vadd.f32 %v8796, %v8814
    %v8867 = vadd.f32 %v8797, %v8814
    %v8868 = vadd.f32 %v8798, %v8814
    %v8869 = vadd.f32 %v8799, %v8814
    %v8870 = vadd.f32 %v8800, %v8814
    %v8871 = vadd.f32 %v8801, %v8814
    %v8872 = vadd.f32 %v8802, %v8814
    %v8873 = vadd.f32 %v8803, %v8814
    %v8874 = vadd.f32 %v8804, %v8814
    %v8875 = vadd.f32 %v8805, %v8814
    %v8876 = vadd.f32 %v8806, %v8814
    %v8877 = vadd.f32 %v8807, %v8814
    %v8878 = vadd.f32 %v8808, %v8814
    %v8879 = vadd.f32 %v8809, %v8814
    %v8880 = vld [vmem:[%s0] sm:$0xff]
    %v8881 = vld [vmem:[%s0 + $0x8] sm:$0xff]
    %v8882 = vld [vmem:[%s0 + $0x10] sm:$0xff]
    %v8883 = vld [vmem:[%s0 + $0x18] sm:$0xff]
    %v8884 = vld [vmem:[%s0 + $0x20] sm:$0xff]
    %v8885 = vld [vmem:[%s0 + $0x28] sm:$0xff]
    %v8886 = vld [vmem:[%s0 + $0x30] sm:$0xff]
    %v8887 = vld [vmem:[%s0 + $0x38] sm:$0xff]
    %v8888 = vld [vmem:[%s0 + $0x40] sm:$0xff]
    %v8889 = vld [vmem:[%s0 + $0x48] sm:$0xff]
    %v8890 = vld [vmem:[%s0 + $0x50] sm:$0xff]
    %v8891 = vld [vmem:[%s0 + $0x58] sm:$0xff]
    %v8892 = vld [vmem:[%s0 + $0x60] sm:$0xff]
    %v8893 = vld [vmem:[%s0 + $0x68] sm:$0xff]
    %v8894 = vld [vmem:[%s0 + $0x70] sm:$0xff]
    %v8895 = vld [vmem:[%s0 + $0x78] sm:$0xff]
    %v8896 = vld [vmem:[%s0 + $0x80] sm:$0xff]
    %v8897 = vld [vmem:[%s0 + $0x88] sm:$0xff]
    %v8898 = vld [vmem:[%s0 + $0x90] sm:$0xff]
    %v8899 = vld [vmem:[%s0 + $0x98] sm:$0xff]
    %v8900 = vld [vmem:[%s0 + $0xa0] sm:$0xff]
    %v8901 = vld [vmem:[%s0 + $0xa8] sm:$0xff]
    %v8902 = vld [vmem:[%s0 + $0xb0] sm:$0xff]
    %v8903 = vld [vmem:[%s0 + $0xb8] sm:$0xff]
    %v8904 = vld [vmem:[%s0 + $0xc0] sm:$0xff]
    %v8905 = vld [vmem:[%s0 + $0xc8] sm:$0xff]
    %v8906 = vld [vmem:[%s0 + $0xd0] sm:$0xff]
    %v8907 = vld [vmem:[%s0 + $0xd8] sm:$0xff]
    %v8908 = vld [vmem:[%s0 + $0xe0] sm:$0xff]
    %v8909 = vld [vmem:[%s0 + $0xe8] sm:$0xff]
    %v8910 = vld [vmem:[%s0 + $0xf0] sm:$0xff]
    %v8911 = vld [vmem:[%s0 + $0xf8] sm:$0xff]
    %v8912 = vld [vmem:[%s0 + $0x100] sm:$0xff]
    %v8913 = vld [vmem:[%s0 + $0x108] sm:$0xff]
    %v8914 = vld [vmem:[%s0 + $0x110] sm:$0xff]
    %v8915 = vld [vmem:[%s0 + $0x118] sm:$0xff]
    %v8916 = vld [vmem:[%s0 + $0x120] sm:$0xff]
    %v8917 = vld [vmem:[%s0 + $0x128] sm:$0xff]
    %v8918 = vld [vmem:[%s0 + $0x130] sm:$0xff]
    %v8919 = vld [vmem:[%s0 + $0x138] sm:$0xff]
    %v8920 = vld [vmem:[%s0 + $0x140] sm:$0xff]
    %v8921 = vld [vmem:[%s0 + $0x148] sm:$0xff]
    %v8922 = vld [vmem:[%s0 + $0x150] sm:$0xff]
    %v8923 = vld [vmem:[%s0 + $0x158] sm:$0xff]
    %v8924 = vld [vmem:[%s0 + $0x160] sm:$0xff]
    %v8925 = vld [vmem:[%s0 + $0x168] sm:$0xff]
    %v8926 = vld [vmem:[%s0 + $0x170] sm:$0xff]
    %v8927 = vld [vmem:[%s0 + $0x178] sm:$0xff]
    %v8928 = vld [vmem:[%s0 + $0x180] sm:$0xff]
    %v8929 = vld [vmem:[%s0 + $0x188] sm:$0xff]
    %v8930 = vld [vmem:[%s0 + $0x190] sm:$0xff]
    %v8931 = vld [vmem:[%s0 + $0x198] sm:$0xff]
    %v8932 = vld [vmem:[%s0 + $0x1a0] sm:$0xff]
    %v8933 = vld [vmem:[%s0 + $0x1a8] sm:$0xff]
    %v8934 = vld [vmem:[%s0 + $0x1b0] sm:$0xff]
    %v8935 = vld [vmem:[%s0 + $0x1b8] sm:$0xff]
    %v8936 = vld [vmem:[%s0 + $0x1c0] sm:$0xff]
    %v8937 = vld [vmem:[%s0 + $0x1c8] sm:$0xff]
    %v8938 = vld [vmem:[%s0 + $0x1d0] sm:$0xff]
    %v8939 = vld [vmem:[%s0 + $0x1d8] sm:$0xff]
    %v8940 = vld [vmem:[%s0 + $0x1e0] sm:$0xff]
    %v8941 = vld [vmem:[%s0 + $0x1e8] sm:$0xff]
    %v8942 = vld [vmem:[%s0 + $0x1f0] sm:$0xff]
    %v8943 = vld [vmem:[%s0 + $0x1f8] sm:$0xff]
    %v8944 = vpack.c.bf16 %v8881, %v8880
    %v8945 = vpack.c.bf16 %v8883, %v8882
    %v8946 = vpack.c.bf16 %v8885, %v8884
    %v8947 = vpack.c.bf16 %v8887, %v8886
    %v8948 = vpack.c.bf16 %v8889, %v8888
    %v8949 = vpack.c.bf16 %v8891, %v8890
    %v8950 = vpack.c.bf16 %v8893, %v8892
    %v8951 = vpack.c.bf16 %v8895, %v8894
    %v8952 = vpack.c.bf16 %v8897, %v8896
    %v8953 = vpack.c.bf16 %v8899, %v8898
    %v8954 = vpack.c.bf16 %v8901, %v8900
    %v8955 = vpack.c.bf16 %v8903, %v8902
    %v8956 = vpack.c.bf16 %v8905, %v8904
    %v8957 = vpack.c.bf16 %v8907, %v8906
    %v8958 = vpack.c.bf16 %v8909, %v8908
    %v8959 = vpack.c.bf16 %v8911, %v8910
    %v8960 = vpack.c.bf16 %v8913, %v8912
    %v8961 = vpack.c.bf16 %v8915, %v8914
    %v8962 = vpack.c.bf16 %v8917, %v8916
    %v8963 = vpack.c.bf16 %v8919, %v8918
    %v8964 = vpack.c.bf16 %v8921, %v8920
    %v8965 = vpack.c.bf16 %v8923, %v8922
    %v8966 = vpack.c.bf16 %v8925, %v8924
    %v8967 = vpack.c.bf16 %v8927, %v8926
    %v8968 = vpack.c.bf16 %v8929, %v8928
    %v8969 = vpack.c.bf16 %v8931, %v8930
    %v8970 = vpack.c.bf16 %v8933, %v8932
    %v8971 = vpack.c.bf16 %v8935, %v8934
    %v8972 = vpack.c.bf16 %v8937, %v8936
    %v8973 = vpack.c.bf16 %v8939, %v8938
    %v8974 = vpack.c.bf16 %v8941, %v8940
    %v8975 = vpack.c.bf16 %v8943, %v8942
    %v8976 = vld [vmem:[%s3] sm:$0x3]
    %v8978 = vsel %vm101, %v8944, 0
    %v8981 = vsel %vm101, %v8945, 0
    %v8984 = vsel %vm101, %v8946, 0
    %v8987 = vsel %vm101, %v8947, 0
    %v8990 = vsel %vm101, %v8948, 0
    %v8993 = vsel %vm101, %v8949, 0
    %v8996 = vsel %vm101, %v8950, 0
    %v8999 = vsel %vm101, %v8951, 0
    %v9002 = vsel %vm101, %v8952, 0
    %v9005 = vsel %vm101, %v8953, 0
    %v9008 = vsel %vm101, %v8954, 0
    %v9011 = vsel %vm101, %v8955, 0
    %v9014 = vsel %vm101, %v8956, 0
    %v9017 = vsel %vm101, %v8957, 0
    %v9020 = vsel %vm101, %v8958, 0
    %v9023 = vsel %vm101, %v8959, 0
    %v9026 = vsel %vm101, %v8960, 0
    %v9029 = vsel %vm101, %v8961, 0
    %v9032 = vsel %vm101, %v8962, 0
    %v9035 = vsel %vm101, %v8963, 0
    %v9038 = vsel %vm101, %v8964, 0
    %v9041 = vsel %vm101, %v8965, 0
    %v9044 = vsel %vm101, %v8966, 0
    %v9047 = vsel %vm101, %v8967, 0
    %v9050 = vsel %vm101, %v8968, 0
    %v9053 = vsel %vm101, %v8969, 0
    %v9056 = vsel %vm101, %v8970, 0
    %v9059 = vsel %vm101, %v8971, 0
    %v9062 = vsel %vm101, %v8972, 0
    %v9065 = vsel %vm101, %v8973, 0
    %v9068 = vsel %vm101, %v8974, 0
    %v9071 = vsel %vm101, %v8975, 0
    %v9074 = vsel %vm3676, %v8976, 0
    %9076 = vmatprep.subr.bf16.mxu0 0
    %9077 = vmatpush1.bf16.msra.mxu0 %v9074
    %9078 = vmatprep.subr.bf16.mxu0 0
    %9079 = vmatpush1.bf16.msra.mxu0 0
    %9080 = vmatprep.subr.bf16.mxu0 0
    %9081 = vmatpush1.bf16.msra.mxu0 0
    %9082 = vmatprep.subr.bf16.mxu0 0
    %9083 = vmatpush1.bf16.msra.mxu0 0
    %9084 = vmatprep.subr.bf16.mxu0 0
    %9085 = vmatpush1.bf16.msra.mxu0 0
    %9086 = vmatprep.subr.bf16.mxu0 0
    %9087 = vmatpush1.bf16.msra.mxu0 0
    %9088 = vmatprep.subr.bf16.mxu0 0
    %9089 = vmatpush1.bf16.msra.mxu0 0
    %9090 = vmatprep.subr.bf16.mxu0 0
    %9091 = vmatpush1.bf16.msra.mxu0 0
    %9092 = vmatprep.subr.bf16.mxu0 0
    %9093 = vmatpush1.bf16.msra.mxu0 0
    %9094 = vmatprep.subr.bf16.mxu0 0
    %9095 = vmatpush1.bf16.msra.mxu0 0
    %9096 = vmatprep.subr.bf16.mxu0 0
    %9097 = vmatpush1.bf16.msra.mxu0 0
    %9098 = vmatprep.subr.bf16.mxu0 0
    %9099 = vmatpush1.bf16.msra.mxu0 0
    %9100 = vmatprep.subr.bf16.mxu0 0
    %9101 = vmatpush1.bf16.msra.mxu0 0
    %9102 = vmatprep.subr.bf16.mxu0 0
    %9103 = vmatpush1.bf16.msra.mxu0 0
    %9104 = vmatprep.subr.bf16.mxu0 0
    %9105 = vmatpush1.bf16.msra.mxu0 0
    %9106 = vmatprep.subr.bf16.mxu0 0
    %9107 = vmatpush1.bf16.msra.mxu0 0
    %9108 = vmatprep.mubr.bf16.mxu0 0
    %9109 = vmatmul.mubr.bf16.gmra.mrb[0].mxu0 %v8978
    %v9110 = vpop.f32.mrb[0].mxu0
    %v9111 = vadd.f32 0.0, %v9110
    %v9112 = vpop.f32.mrb[0].mxu0
    %v9113 = vpop.f32.mrb[0].mxu0
    %v9114 = vadd.f32 0.0, %v9113
    %v9115 = vpop.f32.mrb[0].mxu0
    %9116 = vmatprep.mubr.bf16.mxu0 0
    %9117 = vmatmul.mubr.bf16.gmra.mrb[0].mxu0 %v8981
    %v9118 = vpop.f32.mrb[0].mxu0
    %v9119 = vadd.f32 0.0, %v9118
    %v9120 = vpop.f32.mrb[0].mxu0
    %v9121 = vpop.f32.mrb[0].mxu0
    %v9122 = vadd.f32 0.0, %v9121
    %v9123 = vpop.f32.mrb[0].mxu0
    %9124 = vmatprep.mubr.bf16.mxu0 0
    %9125 = vmatmul.mubr.bf16.gmra.mrb[0].mxu0 %v8984
    %v9126 = vpop.f32.mrb[0].mxu0
    %v9127 = vadd.f32 0.0, %v9126
    %v9128 = vpop.f32.mrb[0].mxu0
    %v9129 = vpop.f32.mrb[0].mxu0
    %v9130 = vadd.f32 0.0, %v9129
    %v9131 = vpop.f32.mrb[0].mxu0
    %9132 = vmatprep.mubr.bf16.mxu0 0
    %9133 = vmatmul.mubr.bf16.gmra.mrb[0].mxu0 %v8987
    %v9134 = vpop.f32.mrb[0].mxu0
    %v9135 = vadd.f32 0.0, %v9134
    %v9136 = vpop.f32.mrb[0].mxu0
    %v9137 = vpop.f32.mrb[0].mxu0
    %v9138 = vadd.f32 0.0, %v9137
    %v9139 = vpop.f32.mrb[0].mxu0
    %9140 = vmatprep.mubr.bf16.mxu0 0
    %9141 = vmatmul.mubr.bf16.gmra.mrb[0].mxu0 %v8990
    %v9142 = vpop.f32.mrb[0].mxu0
    %v9143 = vadd.f32 0.0, %v9142
    %v9144 = vpop.f32.mrb[0].mxu0
    %v9145 = vpop.f32.mrb[0].mxu0
    %v9146 = vadd.f32 0.0, %v9145
    %v9147 = vpop.f32.mrb[0].mxu0
    %9148 = vmatprep.mubr.bf16.mxu0 0
    %9149 = vmatmul.mubr.bf16.gmra.mrb[0].mxu0 %v8993
    %v9150 = vpop.f32.mrb[0].mxu0
    %v9151 = vadd.f32 0.0, %v9150
    %v9152 = vpop.f32.mrb[0].mxu0
    %v9153 = vpop.f32.mrb[0].mxu0
    %v9154 = vadd.f32 0.0, %v9153
    %v9155 = vpop.f32.mrb[0].mxu0
    %9156 = vmatprep.mubr.bf16.mxu0 0
    %9157 = vmatmul.mubr.bf16.gmra.mrb[0].mxu0 %v8996
    %v9158 = vpop.f32.mrb[0].mxu0
    %v9159 = vadd.f32 0.0, %v9158
    %v9160 = vpop.f32.mrb[0].mxu0
    %v9161 = vpop.f32.mrb[0].mxu0
    %v9162 = vadd.f32 0.0, %v9161
    %v9163 = vpop.f32.mrb[0].mxu0
    %9164 = vmatprep.mubr.bf16.mxu0 0
    %9165 = vmatmul.mubr.bf16.gmra.mrb[0].mxu0 %v8999
    %v9166 = vpop.f32.mrb[0].mxu0
    %v9167 = vadd.f32 0.0, %v9166
    %v9168 = vpop.f32.mrb[0].mxu0
    %v9169 = vpop.f32.mrb[0].mxu0
    %v9170 = vadd.f32 0.0, %v9169
    %v9171 = vpop.f32.mrb[0].mxu0
    %9172 = vmatprep.mubr.bf16.mxu0 0
    %9173 = vmatmul.mubr.bf16.gmra.mrb[0].mxu0 %v9002
    %v9174 = vpop.f32.mrb[0].mxu0
    %v9175 = vadd.f32 0.0, %v9174
    %v9176 = vpop.f32.mrb[0].mxu0
    %v9177 = vpop.f32.mrb[0].mxu0
    %v9178 = vadd.f32 0.0, %v9177
    %v9179 = vpop.f32.mrb[0].mxu0
    %9180 = vmatprep.mubr.bf16.mxu0 0
    %9181 = vmatmul.mubr.bf16.gmra.mrb[0].mxu0 %v9005
    %v9182 = vpop.f32.mrb[0].mxu0
    %v9183 = vadd.f32 0.0, %v9182
    %v9184 = vpop.f32.mrb[0].mxu0
    %v9185 = vpop.f32.mrb[0].mxu0
    %v9186 = vadd.f32 0.0, %v9185
    %v9187 = vpop.f32.mrb[0].mxu0
    %9188 = vmatprep.mubr.bf16.mxu0 0
    %9189 = vmatmul.mubr.bf16.gmra.mrb[0].mxu0 %v9008
    %v9190 = vpop.f32.mrb[0].mxu0
    %v9191 = vadd.f32 0.0, %v9190
    %v9192 = vpop.f32.mrb[0].mxu0
    %v9193 = vpop.f32.mrb[0].mxu0
    %v9194 = vadd.f32 0.0, %v9193
    %v9195 = vpop.f32.mrb[0].mxu0
    %9196 = vmatprep.mubr.bf16.mxu0 0
    %9197 = vmatmul.mubr.bf16.gmra.mrb[0].mxu0 %v9011
    %v9198 = vpop.f32.mrb[0].mxu0
    %v9199 = vadd.f32 0.0, %v9198
    %v9200 = vpop.f32.mrb[0].mxu0
    %v9201 = vpop.f32.mrb[0].mxu0
    %v9202 = vadd.f32 0.0, %v9201
    %v9203 = vpop.f32.mrb[0].mxu0
    %9204 = vmatprep.mubr.bf16.mxu0 0
    %9205 = vmatmul.mubr.bf16.gmra.mrb[0].mxu0 %v9014
    %v9206 = vpop.f32.mrb[0].mxu0
    %v9207 = vadd.f32 0.0, %v9206
    %v9208 = vpop.f32.mrb[0].mxu0
    %v9209 = vpop.f32.mrb[0].mxu0
    %v9210 = vadd.f32 0.0, %v9209
    %v9211 = vpop.f32.mrb[0].mxu0
    %9212 = vmatprep.mubr.bf16.mxu0 0
    %9213 = vmatmul.mubr.bf16.gmra.mrb[0].mxu0 %v9017
    %v9214 = vpop.f32.mrb[0].mxu0
    %v9215 = vadd.f32 0.0, %v9214
    %v9216 = vpop.f32.mrb[0].mxu0
    %v9217 = vpop.f32.mrb[0].mxu0
    %v9218 = vadd.f32 0.0, %v9217
    %v9219 = vpop.f32.mrb[0].mxu0
    %9220 = vmatprep.mubr.bf16.mxu0 0
    %9221 = vmatmul.mubr.bf16.gmra.mrb[0].mxu0 %v9020
    %v9222 = vpop.f32.mrb[0].mxu0
    %v9223 = vadd.f32 0.0, %v9222
    %v9224 = vpop.f32.mrb[0].mxu0
    %v9225 = vpop.f32.mrb[0].mxu0
    %v9226 = vadd.f32 0.0, %v9225
    %v9227 = vpop.f32.mrb[0].mxu0
    %9228 = vmatprep.mubr.bf16.mxu0 0
    %9229 = vmatmul.mubr.bf16.gmra.mrb[0].mxu0 %v9023
    %v9230 = vpop.f32.mrb[0].mxu0
    %v9231 = vadd.f32 0.0, %v9230
    %v9232 = vpop.f32.mrb[0].mxu0
    %v9233 = vpop.f32.mrb[0].mxu0
    %v9234 = vadd.f32 0.0, %v9233
    %v9235 = vpop.f32.mrb[0].mxu0
    %9236 = vmatprep.mubr.bf16.mxu0 0
    %9237 = vmatmul.mubr.bf16.gmra.mrb[0].mxu0 %v9026
    %v9238 = vpop.f32.mrb[0].mxu0
    %v9239 = vadd.f32 0.0, %v9238
    %v9240 = vpop.f32.mrb[0].mxu0
    %v9241 = vpop.f32.mrb[0].mxu0
    %v9242 = vadd.f32 0.0, %v9241
    %v9243 = vpop.f32.mrb[0].mxu0
    %9244 = vmatprep.mubr.bf16.mxu0 0
    %9245 = vmatmul.mubr.bf16.gmra.mrb[0].mxu0 %v9029
    %v9246 = vpop.f32.mrb[0].mxu0
    %v9247 = vadd.f32 0.0, %v9246
    %v9248 = vpop.f32.mrb[0].mxu0
    %v9249 = vpop.f32.mrb[0].mxu0
    %v9250 = vadd.f32 0.0, %v9249
    %v9251 = vpop.f32.mrb[0].mxu0
    %9252 = vmatprep.mubr.bf16.mxu0 0
    %9253 = vmatmul.mubr.bf16.gmra.mrb[0].mxu0 %v9032
    %v9254 = vpop.f32.mrb[0].mxu0
    %v9255 = vadd.f32 0.0, %v9254
    %v9256 = vpop.f32.mrb[0].mxu0
    %v9257 = vpop.f32.mrb[0].mxu0
    %v9258 = vadd.f32 0.0, %v9257
    %v9259 = vpop.f32.mrb[0].mxu0
    %9260 = vmatprep.mubr.bf16.mxu0 0
    %9261 = vmatmul.mubr.bf16.gmra.mrb[0].mxu0 %v9035
    %v9262 = vpop.f32.mrb[0].mxu0
    %v9263 = vadd.f32 0.0, %v9262
    %v9264 = vpop.f32.mrb[0].mxu0
    %v9265 = vpop.f32.mrb[0].mxu0
    %v9266 = vadd.f32 0.0, %v9265
    %v9267 = vpop.f32.mrb[0].mxu0
    %9268 = vmatprep.mubr.bf16.mxu0 0
    %9269 = vmatmul.mubr.bf16.gmra.mrb[0].mxu0 %v9038
    %v9270 = vpop.f32.mrb[0].mxu0
    %v9271 = vadd.f32 0.0, %v9270
    %v9272 = vpop.f32.mrb[0].mxu0
    %v9273 = vpop.f32.mrb[0].mxu0
    %v9274 = vadd.f32 0.0, %v9273
    %v9275 = vpop.f32.mrb[0].mxu0
    %9276 = vmatprep.mubr.bf16.mxu0 0
    %9277 = vmatmul.mubr.bf16.gmra.mrb[0].mxu0 %v9041
    %v9278 = vpop.f32.mrb[0].mxu0
    %v9279 = vadd.f32 0.0, %v9278
    %v9280 = vpop.f32.mrb[0].mxu0
    %v9281 = vpop.f32.mrb[0].mxu0
    %v9282 = vadd.f32 0.0, %v9281
    %v9283 = vpop.f32.mrb[0].mxu0
    %9284 = vmatprep.mubr.bf16.mxu0 0
    %9285 = vmatmul.mubr.bf16.gmra.mrb[0].mxu0 %v9044
    %v9286 = vpop.f32.mrb[0].mxu0
    %v9287 = vadd.f32 0.0, %v9286
    %v9288 = vpop.f32.mrb[0].mxu0
    %v9289 = vpop.f32.mrb[0].mxu0
    %v9290 = vadd.f32 0.0, %v9289
    %v9291 = vpop.f32.mrb[0].mxu0
    %9292 = vmatprep.mubr.bf16.mxu0 0
    %9293 = vmatmul.mubr.bf16.gmra.mrb[0].mxu0 %v9047
    %v9294 = vpop.f32.mrb[0].mxu0
    %v9295 = vadd.f32 0.0, %v9294
    %v9296 = vpop.f32.mrb[0].mxu0
    %v9297 = vpop.f32.mrb[0].mxu0
    %v9298 = vadd.f32 0.0, %v9297
    %v9299 = vpop.f32.mrb[0].mxu0
    %9300 = vmatprep.mubr.bf16.mxu0 0
    %9301 = vmatmul.mubr.bf16.gmra.mrb[0].mxu0 %v9050
    %v9302 = vpop.f32.mrb[0].mxu0
    %v9303 = vadd.f32 0.0, %v9302
    %v9304 = vpop.f32.mrb[0].mxu0
    %v9305 = vpop.f32.mrb[0].mxu0
    %v9306 = vadd.f32 0.0, %v9305
    %v9307 = vpop.f32.mrb[0].mxu0
    %9308 = vmatprep.mubr.bf16.mxu0 0
    %9309 = vmatmul.mubr.bf16.gmra.mrb[0].mxu0 %v9053
    %v9310 = vpop.f32.mrb[0].mxu0
    %v9311 = vadd.f32 0.0, %v9310
    %v9312 = vpop.f32.mrb[0].mxu0
    %v9313 = vpop.f32.mrb[0].mxu0
    %v9314 = vadd.f32 0.0, %v9313
    %v9315 = vpop.f32.mrb[0].mxu0
    %9316 = vmatprep.mubr.bf16.mxu0 0
    %9317 = vmatmul.mubr.bf16.gmra.mrb[0].mxu0 %v9056
    %v9318 = vpop.f32.mrb[0].mxu0
    %v9319 = vadd.f32 0.0, %v9318
    %v9320 = vpop.f32.mrb[0].mxu0
    %v9321 = vpop.f32.mrb[0].mxu0
    %v9322 = vadd.f32 0.0, %v9321
    %v9323 = vpop.f32.mrb[0].mxu0
    %9324 = vmatprep.mubr.bf16.mxu0 0
    %9325 = vmatmul.mubr.bf16.gmra.mrb[0].mxu0 %v9059
    %v9326 = vpop.f32.mrb[0].mxu0
    %v9327 = vadd.f32 0.0, %v9326
    %v9328 = vpop.f32.mrb[0].mxu0
    %v9329 = vpop.f32.mrb[0].mxu0
    %v9330 = vadd.f32 0.0, %v9329
    %v9331 = vpop.f32.mrb[0].mxu0
    %9332 = vmatprep.mubr.bf16.mxu0 0
    %9333 = vmatmul.mubr.bf16.gmra.mrb[0].mxu0 %v9062
    %v9334 = vpop.f32.mrb[0].mxu0
    %v9335 = vadd.f32 0.0, %v9334
    %v9336 = vpop.f32.mrb[0].mxu0
    %v9337 = vpop.f32.mrb[0].mxu0
    %v9338 = vadd.f32 0.0, %v9337
    %v9339 = vpop.f32.mrb[0].mxu0
    %9340 = vmatprep.mubr.bf16.mxu0 0
    %9341 = vmatmul.mubr.bf16.gmra.mrb[0].mxu0 %v9065
    %v9342 = vpop.f32.mrb[0].mxu0
    %v9343 = vadd.f32 0.0, %v9342
    %v9344 = vpop.f32.mrb[0].mxu0
    %v9345 = vpop.f32.mrb[0].mxu0
    %v9346 = vadd.f32 0.0, %v9345
    %v9347 = vpop.f32.mrb[0].mxu0
    %9348 = vmatprep.mubr.bf16.mxu0 0
    %9349 = vmatmul.mubr.bf16.gmra.mrb[0].mxu0 %v9068
    %v9350 = vpop.f32.mrb[0].mxu0
    %v9351 = vadd.f32 0.0, %v9350
    %v9352 = vpop.f32.mrb[0].mxu0
    %v9353 = vpop.f32.mrb[0].mxu0
    %v9354 = vadd.f32 0.0, %v9353
    %v9355 = vpop.f32.mrb[0].mxu0
    %9356 = vmatprep.mubr.bf16.mxu0 0
    %9357 = vmatmul.mubr.bf16.gmra.mrb[0].mxu0 %v9071
    %v9358 = vpop.f32.mrb[0].mxu0
    %v9359 = vadd.f32 0.0, %v9358
    %v9360 = vpop.f32.mrb[0].mxu0
    %v9361 = vpop.f32.mrb[0].mxu0
    %v9362 = vadd.f32 0.0, %v9361
    %v9363 = vpop.f32.mrb[0].mxu0
    %9364 = vdwg.mxu0
    %v9365 = vsel %vm3969, %v9111, 0.0
    %v9366 = vsel %vm3969, %v9114, 0.0
    %v9367 = vadd.f32 %v9365, %v9366
    %v9368 = vsel %vm3969, %v9119, 0.0
    %v9369 = vadd.f32 %v9367, %v9368
    %v9370 = vsel %vm3969, %v9122, 0.0
    %v9371 = vadd.f32 %v9369, %v9370
    %v9372 = vsel %vm3969, %v9127, 0.0
    %v9373 = vadd.f32 %v9371, %v9372
    %v9374 = vsel %vm3969, %v9130, 0.0
    %v9375 = vadd.f32 %v9373, %v9374
    %v9376 = vsel %vm3969, %v9135, 0.0
    %v9377 = vadd.f32 %v9375, %v9376
    %v9378 = vsel %vm3969, %v9138, 0.0
    %v9379 = vadd.f32 %v9377, %v9378
    %v9380 = vsel %vm3969, %v9143, 0.0
    %v9381 = vadd.f32 %v9379, %v9380
    %v9382 = vsel %vm3969, %v9146, 0.0
    %v9383 = vadd.f32 %v9381, %v9382
    %v9384 = vsel %vm3969, %v9151, 0.0
    %v9385 = vadd.f32 %v9383, %v9384
    %v9386 = vsel %vm3969, %v9154, 0.0
    %v9387 = vadd.f32 %v9385, %v9386
    %v9388 = vsel %vm3969, %v9159, 0.0
    %v9389 = vadd.f32 %v9387, %v9388
    %v9390 = vsel %vm3969, %v9162, 0.0
    %v9391 = vadd.f32 %v9389, %v9390
    %v9392 = vsel %vm3969, %v9167, 0.0
    %v9393 = vadd.f32 %v9391, %v9392
    %v9394 = vsel %vm3969, %v9170, 0.0
    %v9395 = vadd.f32 %v9393, %v9394
    %v9396 = vsel %vm3969, %v9175, 0.0
    %v9397 = vadd.f32 %v9395, %v9396
    %v9398 = vsel %vm3969, %v9178, 0.0
    %v9399 = vadd.f32 %v9397, %v9398
    %v9400 = vsel %vm3969, %v9183, 0.0
    %v9401 = vadd.f32 %v9399, %v9400
    %v9402 = vsel %vm3969, %v9186, 0.0
    %v9403 = vadd.f32 %v9401, %v9402
    %v9404 = vsel %vm3969, %v9191, 0.0
    %v9405 = vadd.f32 %v9403, %v9404
    %v9406 = vsel %vm3969, %v9194, 0.0
    %v9407 = vadd.f32 %v9405, %v9406
    %v9408 = vsel %vm3969, %v9199, 0.0
    %v9409 = vadd.f32 %v9407, %v9408
    %v9410 = vsel %vm3969, %v9202, 0.0
    %v9411 = vadd.f32 %v9409, %v9410
    %v9412 = vsel %vm3969, %v9207, 0.0
    %v9413 = vadd.f32 %v9411, %v9412
    %v9414 = vsel %vm3969, %v9210, 0.0
    %v9415 = vadd.f32 %v9413, %v9414
    %v9416 = vsel %vm3969, %v9215, 0.0
    %v9417 = vadd.f32 %v9415, %v9416
    %v9418 = vsel %vm3969, %v9218, 0.0
    %v9419 = vadd.f32 %v9417, %v9418
    %v9420 = vsel %vm3969, %v9223, 0.0
    %v9421 = vadd.f32 %v9419, %v9420
    %v9422 = vsel %vm3969, %v9226, 0.0
    %v9423 = vadd.f32 %v9421, %v9422
    %v9424 = vsel %vm3969, %v9231, 0.0
    %v9425 = vadd.f32 %v9423, %v9424
    %v9426 = vsel %vm3969, %v9234, 0.0
    %v9427 = vadd.f32 %v9425, %v9426
    %v9428 = vsel %vm3969, %v9239, 0.0
    %v9429 = vadd.f32 %v9427, %v9428
    %v9430 = vsel %vm3969, %v9242, 0.0
    %v9431 = vadd.f32 %v9429, %v9430
    %v9432 = vsel %vm3969, %v9247, 0.0
    %v9433 = vadd.f32 %v9431, %v9432
    %v9434 = vsel %vm3969, %v9250, 0.0
    %v9435 = vadd.f32 %v9433, %v9434
    %v9436 = vsel %vm3969, %v9255, 0.0
    %v9437 = vadd.f32 %v9435, %v9436
    %v9438 = vsel %vm3969, %v9258, 0.0
    %v9439 = vadd.f32 %v9437, %v9438
    %v9440 = vsel %vm3969, %v9263, 0.0
    %v9441 = vadd.f32 %v9439, %v9440
    %v9442 = vsel %vm3969, %v9266, 0.0
    %v9443 = vadd.f32 %v9441, %v9442
    %v9444 = vsel %vm3969, %v9271, 0.0
    %v9445 = vadd.f32 %v9443, %v9444
    %v9446 = vsel %vm3969, %v9274, 0.0
    %v9447 = vadd.f32 %v9445, %v9446
    %v9448 = vsel %vm3969, %v9279, 0.0
    %v9449 = vadd.f32 %v9447, %v9448
    %v9450 = vsel %vm3969, %v9282, 0.0
    %v9451 = vadd.f32 %v9449, %v9450
    %v9452 = vsel %vm3969, %v9287, 0.0
    %v9453 = vadd.f32 %v9451, %v9452
    %v9454 = vsel %vm3969, %v9290, 0.0
    %v9455 = vadd.f32 %v9453, %v9454
    %v9456 = vsel %vm3969, %v9295, 0.0
    %v9457 = vadd.f32 %v9455, %v9456
    %v9458 = vsel %vm3969, %v9298, 0.0
    %v9459 = vadd.f32 %v9457, %v9458
    %v9460 = vsel %vm3969, %v9303, 0.0
    %v9461 = vadd.f32 %v9459, %v9460
    %v9462 = vsel %vm3969, %v9306, 0.0
    %v9463 = vadd.f32 %v9461, %v9462
    %v9464 = vsel %vm3969, %v9311, 0.0
    %v9465 = vadd.f32 %v9463, %v9464
    %v9466 = vsel %vm3969, %v9314, 0.0
    %v9467 = vadd.f32 %v9465, %v9466
    %v9468 = vsel %vm3969, %v9319, 0.0
    %v9469 = vadd.f32 %v9467, %v9468
    %v9470 = vsel %vm3969, %v9322, 0.0
    %v9471 = vadd.f32 %v9469, %v9470
    %v9472 = vsel %vm3969, %v9327, 0.0
    %v9473 = vadd.f32 %v9471, %v9472
    %v9474 = vsel %vm3969, %v9330, 0.0
    %v9475 = vadd.f32 %v9473, %v9474
    %v9476 = vsel %vm3969, %v9335, 0.0
    %v9477 = vadd.f32 %v9475, %v9476
    %v9478 = vsel %vm3969, %v9338, 0.0
    %v9479 = vadd.f32 %v9477, %v9478
    %v9480 = vsel %vm3969, %v9343, 0.0
    %v9481 = vadd.f32 %v9479, %v9480
    %v9482 = vsel %vm3969, %v9346, 0.0
    %v9483 = vadd.f32 %v9481, %v9482
    %v9484 = vsel %vm3969, %v9351, 0.0
    %v9485 = vadd.f32 %v9483, %v9484
    %v9486 = vsel %vm3969, %v9354, 0.0
    %v9487 = vadd.f32 %v9485, %v9486
    %v9488 = vsel %vm3969, %v9359, 0.0
    %v9489 = vadd.f32 %v9487, %v9488
    %v9490 = vsel %vm3969, %v9362, 0.0
    %v9491 = vadd.f32 %v9489, %v9490
    %v9492 = vrot.slane %v9491, 4
    %v9493 = vadd.f32 %v9491, %v9492
    %v9494 = vrot.slane %v9493, 2
    %v9495 = vadd.f32 %v9493, %v9494
    %v9496 = vrot.slane %v9495, 1
    %v9497 = vadd.f32 %v9495, %v9496
    %v9498 = vmul.f32 %v9497, %v4103
    %v9499 = vmul.f32 %v9111, %v9111
    %v9500 = vmul.f32 %v9114, %v9114
    %v9501 = vmul.f32 %v9119, %v9119
    %v9502 = vmul.f32 %v9122, %v9122
    %v9503 = vmul.f32 %v9127, %v9127
    %v9504 = vmul.f32 %v9130, %v9130
    %v9505 = vmul.f32 %v9135, %v9135
    %v9506 = vmul.f32 %v9138, %v9138
    %v9507 = vmul.f32 %v9143, %v9143
    %v9508 = vmul.f32 %v9146, %v9146
    %v9509 = vmul.f32 %v9151, %v9151
    %v9510 = vmul.f32 %v9154, %v9154
    %v9511 = vmul.f32 %v9159, %v9159
    %v9512 = vmul.f32 %v9162, %v9162
    %v9513 = vmul.f32 %v9167, %v9167
    %v9514 = vmul.f32 %v9170, %v9170
    %v9515 = vmul.f32 %v9175, %v9175
    %v9516 = vmul.f32 %v9178, %v9178
    %v9517 = vmul.f32 %v9183, %v9183
    %v9518 = vmul.f32 %v9186, %v9186
    %v9519 = vmul.f32 %v9191, %v9191
    %v9520 = vmul.f32 %v9194, %v9194
    %v9521 = vmul.f32 %v9199, %v9199
    %v9522 = vmul.f32 %v9202, %v9202
    %v9523 = vmul.f32 %v9207, %v9207
    %v9524 = vmul.f32 %v9210, %v9210
    %v9525 = vmul.f32 %v9215, %v9215
    %v9526 = vmul.f32 %v9218, %v9218
    %v9527 = vmul.f32 %v9223, %v9223
    %v9528 = vmul.f32 %v9226, %v9226
    %v9529 = vmul.f32 %v9231, %v9231
    %v9530 = vmul.f32 %v9234, %v9234
    %v9531 = vmul.f32 %v9239, %v9239
    %v9532 = vmul.f32 %v9242, %v9242
    %v9533 = vmul.f32 %v9247, %v9247
    %v9534 = vmul.f32 %v9250, %v9250
    %v9535 = vmul.f32 %v9255, %v9255
    %v9536 = vmul.f32 %v9258, %v9258
    %v9537 = vmul.f32 %v9263, %v9263
    %v9538 = vmul.f32 %v9266, %v9266
    %v9539 = vmul.f32 %v9271, %v9271
    %v9540 = vmul.f32 %v9274, %v9274
    %v9541 = vmul.f32 %v9279, %v9279
    %v9542 = vmul.f32 %v9282, %v9282
    %v9543 = vmul.f32 %v9287, %v9287
    %v9544 = vmul.f32 %v9290, %v9290
    %v9545 = vmul.f32 %v9295, %v9295
    %v9546 = vmul.f32 %v9298, %v9298
    %v9547 = vmul.f32 %v9303, %v9303
    %v9548 = vmul.f32 %v9306, %v9306
    %v9549 = vmul.f32 %v9311, %v9311
    %v9550 = vmul.f32 %v9314, %v9314
    %v9551 = vmul.f32 %v9319, %v9319
    %v9552 = vmul.f32 %v9322, %v9322
    %v9553 = vmul.f32 %v9327, %v9327
    %v9554 = vmul.f32 %v9330, %v9330
    %v9555 = vmul.f32 %v9335, %v9335
    %v9556 = vmul.f32 %v9338, %v9338
    %v9557 = vmul.f32 %v9343, %v9343
    %v9558 = vmul.f32 %v9346, %v9346
    %v9559 = vmul.f32 %v9351, %v9351
    %v9560 = vmul.f32 %v9354, %v9354
    %v9561 = vmul.f32 %v9359, %v9359
    %v9562 = vmul.f32 %v9362, %v9362
    %v9563 = vsel %vm3969, %v9499, 0.0
    %v9564 = vsel %vm3969, %v9500, 0.0
    %v9565 = vadd.f32 %v9563, %v9564
    %v9566 = vsel %vm3969, %v9501, 0.0
    %v9567 = vadd.f32 %v9565, %v9566
    %v9568 = vsel %vm3969, %v9502, 0.0
    %v9569 = vadd.f32 %v9567, %v9568
    %v9570 = vsel %vm3969, %v9503, 0.0
    %v9571 = vadd.f32 %v9569, %v9570
    %v9572 = vsel %vm3969, %v9504, 0.0
    %v9573 = vadd.f32 %v9571, %v9572
    %v9574 = vsel %vm3969, %v9505, 0.0
    %v9575 = vadd.f32 %v9573, %v9574
    %v9576 = vsel %vm3969, %v9506, 0.0
    %v9577 = vadd.f32 %v9575, %v9576
    %v9578 = vsel %vm3969, %v9507, 0.0
    %v9579 = vadd.f32 %v9577, %v9578
    %v9580 = vsel %vm3969, %v9508, 0.0
    %v9581 = vadd.f32 %v9579, %v9580
    %v9582 = vsel %vm3969, %v9509, 0.0
    %v9583 = vadd.f32 %v9581, %v9582
    %v9584 = vsel %vm3969, %v9510, 0.0
    %v9585 = vadd.f32 %v9583, %v9584
    %v9586 = vsel %vm3969, %v9511, 0.0
    %v9587 = vadd.f32 %v9585, %v9586
    %v9588 = vsel %vm3969, %v9512, 0.0
    %v9589 = vadd.f32 %v9587, %v9588
    %v9590 = vsel %vm3969, %v9513, 0.0
    %v9591 = vadd.f32 %v9589, %v9590
    %v9592 = vsel %vm3969, %v9514, 0.0
    %v9593 = vadd.f32 %v9591, %v9592
    %v9594 = vsel %vm3969, %v9515, 0.0
    %v9595 = vadd.f32 %v9593, %v9594
    %v9596 = vsel %vm3969, %v9516, 0.0
    %v9597 = vadd.f32 %v9595, %v9596
    %v9598 = vsel %vm3969, %v9517, 0.0
    %v9599 = vadd.f32 %v9597, %v9598
    %v9600 = vsel %vm3969, %v9518, 0.0
    %v9601 = vadd.f32 %v9599, %v9600
    %v9602 = vsel %vm3969, %v9519, 0.0
    %v9603 = vadd.f32 %v9601, %v9602
    %v9604 = vsel %vm3969, %v9520, 0.0
    %v9605 = vadd.f32 %v9603, %v9604
    %v9606 = vsel %vm3969, %v9521, 0.0
    %v9607 = vadd.f32 %v9605, %v9606
    %v9608 = vsel %vm3969, %v9522, 0.0
    %v9609 = vadd.f32 %v9607, %v9608
    %v9610 = vsel %vm3969, %v9523, 0.0
    %v9611 = vadd.f32 %v9609, %v9610
    %v9612 = vsel %vm3969, %v9524, 0.0
    %v9613 = vadd.f32 %v9611, %v9612
    %v9614 = vsel %vm3969, %v9525, 0.0
    %v9615 = vadd.f32 %v9613, %v9614
    %v9616 = vsel %vm3969, %v9526, 0.0
    %v9617 = vadd.f32 %v9615, %v9616
    %v9618 = vsel %vm3969, %v9527, 0.0
    %v9619 = vadd.f32 %v9617, %v9618
    %v9620 = vsel %vm3969, %v9528, 0.0
    %v9621 = vadd.f32 %v9619, %v9620
    %v9622 = vsel %vm3969, %v9529, 0.0
    %v9623 = vadd.f32 %v9621, %v9622
    %v9624 = vsel %vm3969, %v9530, 0.0
    %v9625 = vadd.f32 %v9623, %v9624
    %v9626 = vsel %vm3969, %v9531, 0.0
    %v9627 = vadd.f32 %v9625, %v9626
    %v9628 = vsel %vm3969, %v9532, 0.0
    %v9629 = vadd.f32 %v9627, %v9628
    %v9630 = vsel %vm3969, %v9533, 0.0
    %v9631 = vadd.f32 %v9629, %v9630
    %v9632 = vsel %vm3969, %v9534, 0.0
    %v9633 = vadd.f32 %v9631, %v9632
    %v9634 = vsel %vm3969, %v9535, 0.0
    %v9635 = vadd.f32 %v9633, %v9634
    %v9636 = vsel %vm3969, %v9536, 0.0
    %v9637 = vadd.f32 %v9635, %v9636
    %v9638 = vsel %vm3969, %v9537, 0.0
    %v9639 = vadd.f32 %v9637, %v9638
    %v9640 = vsel %vm3969, %v9538, 0.0
    %v9641 = vadd.f32 %v9639, %v9640
    %v9642 = vsel %vm3969, %v9539, 0.0
    %v9643 = vadd.f32 %v9641, %v9642
    %v9644 = vsel %vm3969, %v9540, 0.0
    %v9645 = vadd.f32 %v9643, %v9644
    %v9646 = vsel %vm3969, %v9541, 0.0
    %v9647 = vadd.f32 %v9645, %v9646
    %v9648 = vsel %vm3969, %v9542, 0.0
    %v9649 = vadd.f32 %v9647, %v9648
    %v9650 = vsel %vm3969, %v9543, 0.0
    %v9651 = vadd.f32 %v9649, %v9650
    %v9652 = vsel %vm3969, %v9544, 0.0
    %v9653 = vadd.f32 %v9651, %v9652
    %v9654 = vsel %vm3969, %v9545, 0.0
    %v9655 = vadd.f32 %v9653, %v9654
    %v9656 = vsel %vm3969, %v9546, 0.0
    %v9657 = vadd.f32 %v9655, %v9656
    %v9658 = vsel %vm3969, %v9547, 0.0
    %v9659 = vadd.f32 %v9657, %v9658
    %v9660 = vsel %vm3969, %v9548, 0.0
    %v9661 = vadd.f32 %v9659, %v9660
    %v9662 = vsel %vm3969, %v9549, 0.0
    %v9663 = vadd.f32 %v9661, %v9662
    %v9664 = vsel %vm3969, %v9550, 0.0
    %v9665 = vadd.f32 %v9663, %v9664
    %v9666 = vsel %vm3969, %v9551, 0.0
    %v9667 = vadd.f32 %v9665, %v9666
    %v9668 = vsel %vm3969, %v9552, 0.0
    %v9669 = vadd.f32 %v9667, %v9668
    %v9670 = vsel %vm3969, %v9553, 0.0
    %v9671 = vadd.f32 %v9669, %v9670
    %v9672 = vsel %vm3969, %v9554, 0.0
    %v9673 = vadd.f32 %v9671, %v9672
    %v9674 = vsel %vm3969, %v9555, 0.0
    %v9675 = vadd.f32 %v9673, %v9674
    %v9676 = vsel %vm3969, %v9556, 0.0
    %v9677 = vadd.f32 %v9675, %v9676
    %v9678 = vsel %vm3969, %v9557, 0.0
    %v9679 = vadd.f32 %v9677, %v9678
    %v9680 = vsel %vm3969, %v9558, 0.0
    %v9681 = vadd.f32 %v9679, %v9680
    %v9682 = vsel %vm3969, %v9559, 0.0
    %v9683 = vadd.f32 %v9681, %v9682
    %v9684 = vsel %vm3969, %v9560, 0.0
    %v9685 = vadd.f32 %v9683, %v9684
    %v9686 = vsel %vm3969, %v9561, 0.0
    %v9687 = vadd.f32 %v9685, %v9686
    %v9688 = vsel %vm3969, %v9562, 0.0
    %v9689 = vadd.f32 %v9687, %v9688
    %v9690 = vrot.slane %v9689, 4
    %v9691 = vadd.f32 %v9689, %v9690
    %v9692 = vrot.slane %v9691, 2
    %v9693 = vadd.f32 %v9691, %v9692
    %v9694 = vrot.slane %v9693, 1
    %v9695 = vadd.f32 %v9693, %v9694
    %v9696 = vmul.f32 %v9695, %v4103
    %v9697 = vmul.f32 %v9498, %v9498
    %v9698 = vsub.f32 %v9696, %v9697
    %v9699 = vld [vmem:[%s8] sm:$0x1]
    %v9700 = vadd.f32 %v9698, 1e-05
    %v9701 = vrsqrt.pop %v9700
    %v9702 = vmul.f32 %v9699, %v9701
    %v9703 = vld [vmem:[%s9] sm:$0x1]
    %v9704 = vmul.f32 %v9498, %v9702
    %v9705 = vsub.f32 %v9703, %v9704
    %v9707 = vlaneseq
    %v9708 = vshrl.u32 %v9707, 7
    %v9709 = vsub.s32 0, %v9708
    %v9710 = vrot.slane %v9702, %v9709
    %v9712 = vmul.f32 %v9111, %v9710
    %v9713 = vmul.f32 %v9114, %v9710
    %v9714 = vmul.f32 %v9119, %v9710
    %v9715 = vmul.f32 %v9122, %v9710
    %v9716 = vmul.f32 %v9127, %v9710
    %v9717 = vmul.f32 %v9130, %v9710
    %v9718 = vmul.f32 %v9135, %v9710
    %v9719 = vmul.f32 %v9138, %v9710
    %v9720 = vmul.f32 %v9143, %v9710
    %v9721 = vmul.f32 %v9146, %v9710
    %v9722 = vmul.f32 %v9151, %v9710
    %v9723 = vmul.f32 %v9154, %v9710
    %v9724 = vmul.f32 %v9159, %v9710
    %v9725 = vmul.f32 %v9162, %v9710
    %v9726 = vmul.f32 %v9167, %v9710
    %v9727 = vmul.f32 %v9170, %v9710
    %v9728 = vmul.f32 %v9175, %v9710
    %v9729 = vmul.f32 %v9178, %v9710
    %v9730 = vmul.f32 %v9183, %v9710
    %v9731 = vmul.f32 %v9186, %v9710
    %v9732 = vmul.f32 %v9191, %v9710
    %v9733 = vmul.f32 %v9194, %v9710
    %v9734 = vmul.f32 %v9199, %v9710
    %v9735 = vmul.f32 %v9202, %v9710
    %v9736 = vmul.f32 %v9207, %v9710
    %v9737 = vmul.f32 %v9210, %v9710
    %v9738 = vmul.f32 %v9215, %v9710
    %v9739 = vmul.f32 %v9218, %v9710
    %v9740 = vmul.f32 %v9223, %v9710
    %v9741 = vmul.f32 %v9226, %v9710
    %v9742 = vmul.f32 %v9231, %v9710
    %v9743 = vmul.f32 %v9234, %v9710
    %v9744 = vmul.f32 %v9239, %v9710
    %v9745 = vmul.f32 %v9242, %v9710
    %v9746 = vmul.f32 %v9247, %v9710
    %v9747 = vmul.f32 %v9250, %v9710
    %v9748 = vmul.f32 %v9255, %v9710
    %v9749 = vmul.f32 %v9258, %v9710
    %v9750 = vmul.f32 %v9263, %v9710
    %v9751 = vmul.f32 %v9266, %v9710
    %v9752 = vmul.f32 %v9271, %v9710
    %v9753 = vmul.f32 %v9274, %v9710
    %v9754 = vmul.f32 %v9279, %v9710
    %v9755 = vmul.f32 %v9282, %v9710
    %v9756 = vmul.f32 %v9287, %v9710
    %v9757 = vmul.f32 %v9290, %v9710
    %v9758 = vmul.f32 %v9295, %v9710
    %v9759 = vmul.f32 %v9298, %v9710
    %v9760 = vmul.f32 %v9303, %v9710
    %v9761 = vmul.f32 %v9306, %v9710
    %v9762 = vmul.f32 %v9311, %v9710
    %v9763 = vmul.f32 %v9314, %v9710
    %v9764 = vmul.f32 %v9319, %v9710
    %v9765 = vmul.f32 %v9322, %v9710
    %v9766 = vmul.f32 %v9327, %v9710
    %v9767 = vmul.f32 %v9330, %v9710
    %v9768 = vmul.f32 %v9335, %v9710
    %v9769 = vmul.f32 %v9338, %v9710
    %v9770 = vmul.f32 %v9343, %v9710
    %v9771 = vmul.f32 %v9346, %v9710
    %v9772 = vmul.f32 %v9351, %v9710
    %v9773 = vmul.f32 %v9354, %v9710
    %v9774 = vmul.f32 %v9359, %v9710
    %v9775 = vmul.f32 %v9362, %v9710
    %v9777 = vlaneseq
    %v9778 = vshrl.u32 %v9777, 7
    %v9779 = vsub.s32 0, %v9778
    %v9780 = vrot.slane %v9705, %v9779
    %v9782 = vadd.f32 %v9712, %v9780
    %v9783 = vadd.f32 %v9713, %v9780
    %v9784 = vadd.f32 %v9714, %v9780
    %v9785 = vadd.f32 %v9715, %v9780
    %v9786 = vadd.f32 %v9716, %v9780
    %v9787 = vadd.f32 %v9717, %v9780
    %v9788 = vadd.f32 %v9718, %v9780
    %v9789 = vadd.f32 %v9719, %v9780
    %v9790 = vadd.f32 %v9720, %v9780
    %v9791 = vadd.f32 %v9721, %v9780
    %v9792 = vadd.f32 %v9722, %v9780
    %v9793 = vadd.f32 %v9723, %v9780
    %v9794 = vadd.f32 %v9724, %v9780
    %v9795 = vadd.f32 %v9725, %v9780
    %v9796 = vadd.f32 %v9726, %v9780
    %v9797 = vadd.f32 %v9727, %v9780
    %v9798 = vadd.f32 %v9728, %v9780
    %v9799 = vadd.f32 %v9729, %v9780
    %v9800 = vadd.f32 %v9730, %v9780
    %v9801 = vadd.f32 %v9731, %v9780
    %v9802 = vadd.f32 %v9732, %v9780
    %v9803 = vadd.f32 %v9733, %v9780
    %v9804 = vadd.f32 %v9734, %v9780
    %v9805 = vadd.f32 %v9735, %v9780
    %v9806 = vadd.f32 %v9736, %v9780
    %v9807 = vadd.f32 %v9737, %v9780
    %v9808 = vadd.f32 %v9738, %v9780
    %v9809 = vadd.f32 %v9739, %v9780
    %v9810 = vadd.f32 %v9740, %v9780
    %v9811 = vadd.f32 %v9741, %v9780
    %v9812 = vadd.f32 %v9742, %v9780
    %v9813 = vadd.f32 %v9743, %v9780
    %v9814 = vadd.f32 %v9744, %v9780
    %v9815 = vadd.f32 %v9745, %v9780
    %v9816 = vadd.f32 %v9746, %v9780
    %v9817 = vadd.f32 %v9747, %v9780
    %v9818 = vadd.f32 %v9748, %v9780
    %v9819 = vadd.f32 %v9749, %v9780
    %v9820 = vadd.f32 %v9750, %v9780
    %v9821 = vadd.f32 %v9751, %v9780
    %v9822 = vadd.f32 %v9752, %v9780
    %v9823 = vadd.f32 %v9753, %v9780
    %v9824 = vadd.f32 %v9754, %v9780
    %v9825 = vadd.f32 %v9755, %v9780
    %v9826 = vadd.f32 %v9756, %v9780
    %v9827 = vadd.f32 %v9757, %v9780
    %v9828 = vadd.f32 %v9758, %v9780
    %v9829 = vadd.f32 %v9759, %v9780
    %v9830 = vadd.f32 %v9760, %v9780
    %v9831 = vadd.f32 %v9761, %v9780
    %v9832 = vadd.f32 %v9762, %v9780
    %v9833 = vadd.f32 %v9763, %v9780
    %v9834 = vadd.f32 %v9764, %v9780
    %v9835 = vadd.f32 %v9765, %v9780
    %v9836 = vadd.f32 %v9766, %v9780
    %v9837 = vadd.f32 %v9767, %v9780
    %v9838 = vadd.f32 %v9768, %v9780
    %v9839 = vadd.f32 %v9769, %v9780
    %v9840 = vadd.f32 %v9770, %v9780
    %v9841 = vadd.f32 %v9771, %v9780
    %v9842 = vadd.f32 %v9772, %v9780
    %v9843 = vadd.f32 %v9773, %v9780
    %v9844 = vadd.f32 %v9774, %v9780
    %v9845 = vadd.f32 %v9775, %v9780
    %v9846 = vadd.f32 %v8816, %v9782
    %v9847 = vadd.f32 %v8817, %v9783
    %v9848 = vadd.f32 %v8818, %v9784
    %v9849 = vadd.f32 %v8819, %v9785
    %v9850 = vadd.f32 %v8820, %v9786
    %v9851 = vadd.f32 %v8821, %v9787
    %v9852 = vadd.f32 %v8822, %v9788
    %v9853 = vadd.f32 %v8823, %v9789
    %v9854 = vadd.f32 %v8824, %v9790
    %v9855 = vadd.f32 %v8825, %v9791
    %v9856 = vadd.f32 %v8826, %v9792
    %v9857 = vadd.f32 %v8827, %v9793
    %v9858 = vadd.f32 %v8828, %v9794
    %v9859 = vadd.f32 %v8829, %v9795
    %v9860 = vadd.f32 %v8830, %v9796
    %v9861 = vadd.f32 %v8831, %v9797
    %v9862 = vadd.f32 %v8832, %v9798
    %v9863 = vadd.f32 %v8833, %v9799
    %v9864 = vadd.f32 %v8834, %v9800
    %v9865 = vadd.f32 %v8835, %v9801
    %v9866 = vadd.f32 %v8836, %v9802
    %v9867 = vadd.f32 %v8837, %v9803
    %v9868 = vadd.f32 %v8838, %v9804
    %v9869 = vadd.f32 %v8839, %v9805
    %v9870 = vadd.f32 %v8840, %v9806
    %v9871 = vadd.f32 %v8841, %v9807
    %v9872 = vadd.f32 %v8842, %v9808
    %v9873 = vadd.f32 %v8843, %v9809
    %v9874 = vadd.f32 %v8844, %v9810
    %v9875 = vadd.f32 %v8845, %v9811
    %v9876 = vadd.f32 %v8846, %v9812
    %v9877 = vadd.f32 %v8847, %v9813
    %v9878 = vadd.f32 %v8848, %v9814
    %v9879 = vadd.f32 %v8849, %v9815
    %v9880 = vadd.f32 %v8850, %v9816
    %v9881 = vadd.f32 %v8851, %v9817
    %v9882 = vadd.f32 %v8852, %v9818
    %v9883 = vadd.f32 %v8853, %v9819
    %v9884 = vadd.f32 %v8854, %v9820
    %v9885 = vadd.f32 %v8855, %v9821
    %v9886 = vadd.f32 %v8856, %v9822
    %v9887 = vadd.f32 %v8857, %v9823
    %v9888 = vadd.f32 %v8858, %v9824
    %v9889 = vadd.f32 %v8859, %v9825
    %v9890 = vadd.f32 %v8860, %v9826
    %v9891 = vadd.f32 %v8861, %v9827
    %v9892 = vadd.f32 %v8862, %v9828
    %v9893 = vadd.f32 %v8863, %v9829
    %v9894 = vadd.f32 %v8864, %v9830
    %v9895 = vadd.f32 %v8865, %v9831
    %v9896 = vadd.f32 %v8866, %v9832
    %v9897 = vadd.f32 %v8867, %v9833
    %v9898 = vadd.f32 %v8868, %v9834
    %v9899 = vadd.f32 %v8869, %v9835
    %v9900 = vadd.f32 %v8870, %v9836
    %v9901 = vadd.f32 %v8871, %v9837
    %v9902 = vadd.f32 %v8872, %v9838
    %v9903 = vadd.f32 %v8873, %v9839
    %v9904 = vadd.f32 %v8874, %v9840
    %v9905 = vadd.f32 %v8875, %v9841
    %v9906 = vadd.f32 %v8876, %v9842
    %v9907 = vadd.f32 %v8877, %v9843
    %v9908 = vadd.f32 %v8878, %v9844
    %v9909 = vadd.f32 %v8879, %v9845
    %v9910 = vmax.f32 %v9846, 0.0
    %v9911 = vmax.f32 %v9847, 0.0
    %v9912 = vmax.f32 %v9848, 0.0
    %v9913 = vmax.f32 %v9849, 0.0
    %v9914 = vmax.f32 %v9850, 0.0
    %v9915 = vmax.f32 %v9851, 0.0
    %v9916 = vmax.f32 %v9852, 0.0
    %v9917 = vmax.f32 %v9853, 0.0
    %v9918 = vmax.f32 %v9854, 0.0
    %v9919 = vmax.f32 %v9855, 0.0
    %v9920 = vmax.f32 %v9856, 0.0
    %v9921 = vmax.f32 %v9857, 0.0
    %v9922 = vmax.f32 %v9858, 0.0
    %v9923 = vmax.f32 %v9859, 0.0
    %v9924 = vmax.f32 %v9860, 0.0
    %v9925 = vmax.f32 %v9861, 0.0
    %v9926 = vmax.f32 %v9862, 0.0
    %v9927 = vmax.f32 %v9863, 0.0
    %v9928 = vmax.f32 %v9864, 0.0
    %v9929 = vmax.f32 %v9865, 0.0
    %v9930 = vmax.f32 %v9866, 0.0
    %v9931 = vmax.f32 %v9867, 0.0
    %v9932 = vmax.f32 %v9868, 0.0
    %v9933 = vmax.f32 %v9869, 0.0
    %v9934 = vmax.f32 %v9870, 0.0
    %v9935 = vmax.f32 %v9871, 0.0
    %v9936 = vmax.f32 %v9872, 0.0
    %v9937 = vmax.f32 %v9873, 0.0
    %v9938 = vmax.f32 %v9874, 0.0
    %v9939 = vmax.f32 %v9875, 0.0
    %v9940 = vmax.f32 %v9876, 0.0
    %v9941 = vmax.f32 %v9877, 0.0
    %v9942 = vmax.f32 %v9878, 0.0
    %v9943 = vmax.f32 %v9879, 0.0
    %v9944 = vmax.f32 %v9880, 0.0
    %v9945 = vmax.f32 %v9881, 0.0
    %v9946 = vmax.f32 %v9882, 0.0
    %v9947 = vmax.f32 %v9883, 0.0
    %v9948 = vmax.f32 %v9884, 0.0
    %v9949 = vmax.f32 %v9885, 0.0
    %v9950 = vmax.f32 %v9886, 0.0
    %v9951 = vmax.f32 %v9887, 0.0
    %v9952 = vmax.f32 %v9888, 0.0
    %v9953 = vmax.f32 %v9889, 0.0
    %v9954 = vmax.f32 %v9890, 0.0
    %v9955 = vmax.f32 %v9891, 0.0
    %v9956 = vmax.f32 %v9892, 0.0
    %v9957 = vmax.f32 %v9893, 0.0
    %v9958 = vmax.f32 %v9894, 0.0
    %v9959 = vmax.f32 %v9895, 0.0
    %v9960 = vmax.f32 %v9896, 0.0
    %v9961 = vmax.f32 %v9897, 0.0
    %v9962 = vmax.f32 %v9898, 0.0
    %v9963 = vmax.f32 %v9899, 0.0
    %v9964 = vmax.f32 %v9900, 0.0
    %v9965 = vmax.f32 %v9901, 0.0
    %v9966 = vmax.f32 %v9902, 0.0
    %v9967 = vmax.f32 %v9903, 0.0
    %v9968 = vmax.f32 %v9904, 0.0
    %v9969 = vmax.f32 %v9905, 0.0
    %v9970 = vmax.f32 %v9906, 0.0
    %v9971 = vmax.f32 %v9907, 0.0
    %v9972 = vmax.f32 %v9908, 0.0
    %v9973 = vmax.f32 %v9909, 0.0
    %v10006 = vrot.slane %v9912, 7
    %vm10007 = vcmask 1041409
    %v10008 = vsel %vm10007, %v10006, %v9910
    %v10009 = vrot.slane %v9914, 6
    %vm10010 = vcmask 1042434
    %v10011 = vsel %vm10010, %v10009, %v10008
    %v10012 = vrot.slane %v9916, 5
    %vm10013 = vcmask 1043459
    %v10014 = vsel %vm10013, %v10012, %v10011
    %v10015 = vrot.slane %v9918, 4
    %vm10016 = vcmask 1044484
    %v10017 = vsel %vm10016, %v10015, %v10014
    %v10018 = vrot.slane %v9920, 3
    %vm10019 = vcmask 1045509
    %v10020 = vsel %vm10019, %v10018, %v10017
    %v10021 = vrot.slane %v9922, 2
    %vm10022 = vcmask 1046534
    %v10023 = vsel %vm10022, %v10021, %v10020
    %v10024 = vrot.slane %v9924, 1
    %vm10025 = vcmask 1047559
    %v10026 = vsel %vm10025, %v10024, %v10023
    %v10027 = vrot.slane %v9928, 7
    %v10028 = vsel %vm10007, %v10027, %v9926
    %v10029 = vrot.slane %v9930, 6
    %v10030 = vsel %vm10010, %v10029, %v10028
    %v10031 = vrot.slane %v9932, 5
    %v10032 = vsel %vm10013, %v10031, %v10030
    %v10033 = vrot.slane %v9934, 4
    %v10034 = vsel %vm10016, %v10033, %v10032
    %v10035 = vrot.slane %v9936, 3
    %v10036 = vsel %vm10019, %v10035, %v10034
    %v10037 = vrot.slane %v9938, 2
    %v10038 = vsel %vm10022, %v10037, %v10036
    %v10039 = vrot.slane %v9940, 1
    %v10040 = vsel %vm10025, %v10039, %v10038
    %v10041 = vrot.slane %v9944, 7
    %v10042 = vsel %vm10007, %v10041, %v9942
    %v10043 = vrot.slane %v9946, 6
    %v10044 = vsel %vm10010, %v10043, %v10042
    %v10045 = vrot.slane %v9948, 5
    %v10046 = vsel %vm10013, %v10045, %v10044
    %v10047 = vrot.slane %v9950, 4
    %v10048 = vsel %vm10016, %v10047, %v10046
    %v10049 = vrot.slane %v9952, 3
    %v10050 = vsel %vm10019, %v10049, %v10048
    %v10051 = vrot.slane %v9954, 2
    %v10052 = vsel %vm10022, %v10051, %v10050
    %v10053 = vrot.slane %v9956, 1
    %v10054 = vsel %vm10025, %v10053, %v10052
    %v10055 = vrot.slane %v9960, 7
    %v10056 = vsel %vm10007, %v10055, %v9958
    %v10057 = vrot.slane %v9962, 6
    %v10058 = vsel %vm10010, %v10057, %v10056
    %v10059 = vrot.slane %v9964, 5
    %v10060 = vsel %vm10013, %v10059, %v10058
    %v10061 = vrot.slane %v9966, 4
    %v10062 = vsel %vm10016, %v10061, %v10060
    %v10063 = vrot.slane %v9968, 3
    %v10064 = vsel %vm10019, %v10063, %v10062
    %v10065 = vrot.slane %v9970, 2
    %v10066 = vsel %vm10022, %v10065, %v10064
    %v10067 = vrot.slane %v9972, 1
    %v10068 = vsel %vm10025, %v10067, %v10066
    %10073 = vst.msk [vmem:[#allocation6] sm:$0xff] %vm3969, %v10026
    %10074 = vst.msk [vmem:[#allocation6 + $0x8] sm:$0xff] %vm3969, %v10040
    %10075 = vst.msk [vmem:[#allocation6 + $0x10] sm:$0xff] %vm3969, %v10054
    %10076 = vst.msk [vmem:[#allocation6 + $0x18] sm:$0xff] %vm3969, %v10068
    %v10077 = vsel %vm10010, %v10006, %v9910
    %v10078 = vsel %vm10013, %v10009, %v10077
    %v10079 = vsel %vm10016, %v10012, %v10078
    %v10080 = vsel %vm10019, %v10015, %v10079
    %v10081 = vsel %vm10022, %v10018, %v10080
    %v10082 = vsel %vm10025, %v10021, %v10081
    %v10083 = vsel %vm10007, %v9926, %v10024
    %v10084 = vsel %vm10010, %v10027, %v10083
    %v10085 = vsel %vm10013, %v10029, %v10084
    %v10086 = vsel %vm10016, %v10031, %v10085
    %v10087 = vsel %vm10019, %v10033, %v10086
    %v10088 = vsel %vm10022, %v10035, %v10087
    %v10089 = vsel %vm10025, %v10037, %v10088
    %v10090 = vsel %vm10010, %v10041, %v9942
    %v10091 = vsel %vm10013, %v10043, %v10090
    %v10092 = vsel %vm10016, %v10045, %v10091
    %v10093 = vsel %vm10019, %v10047, %v10092
    %v10094 = vsel %vm10022, %v10049, %v10093
    %v10095 = vsel %vm10025, %v10051, %v10094
    %v10096 = vsel %vm10007, %v9958, %v10053
    %v10097 = vsel %vm10010, %v10055, %v10096
    %v10098 = vsel %vm10013, %v10057, %v10097
    %v10099 = vsel %vm10016, %v10059, %v10098
    %v10100 = vsel %vm10019, %v10061, %v10099
    %v10101 = vsel %vm10022, %v10063, %v10100
    %v10102 = vsel %vm10025, %v10065, %v10101
    %10103 = vrot.lane.b32.xlu0 %v10082, 8
    %v10104 = vpop.permute.xlu0 %10103
    %10105 = vrot.lane.b32.xlu0 %v10089, 8
    %v10106 = vpop.permute.xlu0 %10105
    %10107 = vrot.lane.b32.xlu0 %v10039, 8
    %v10108 = vpop.permute.xlu0 %10107
    %10109 = vrot.lane.b32.xlu0 %v10095, 8
    %v10110 = vpop.permute.xlu0 %10109
    %10111 = vrot.lane.b32.xlu0 %v10102, 8
    %v10112 = vpop.permute.xlu0 %10111
    %10113 = vrot.lane.b32.xlu0 %v10067, 8
    %v10114 = vpop.permute.xlu0 %10113
    %vm10121 = vcmask 130113
    %10122 = vst.msk [vmem:[#allocation6 - $0x1] sm:$0xfe] %vm10121, %v10104
    %10123 = vst.msk [vmem:[#allocation6 + $0x7] sm:$0xff] %vm5116, %v10106
    %vm10124 = vcmask 122944
    %10125 = vst.msk [vmem:[#allocation6 + $0xf] sm:$0x1] %vm10124, %v10108
    %10126 = vst.msk [vmem:[#allocation6 + $0xf] sm:$0xfe] %vm10121, %v10110
    %10127 = vst.msk [vmem:[#allocation6 + $0x17] sm:$0xff] %vm5116, %v10112
    %10128 = vst.msk [vmem:[#allocation6 + $0x1f] sm:$0x1] %vm10124, %v10114
    %v10129 = vsel %vm10013, %v10006, %v9910
    %v10130 = vsel %vm10016, %v10009, %v10129
    %v10131 = vsel %vm10019, %v10012, %v10130
    %v10132 = vsel %vm10022, %v10015, %v10131
    %v10133 = vsel %vm10025, %v10018, %v10132
    %v10134 = vsel %vm10007, %v10024, %v10021
    %v10135 = vsel %vm10010, %v9926, %v10134
    %v10136 = vsel %vm10013, %v10027, %v10135
    %v10137 = vsel %vm10016, %v10029, %v10136
    %v10138 = vsel %vm10019, %v10031, %v10137
    %v10139 = vsel %vm10022, %v10033, %v10138
    %v10140 = vsel %vm10025, %v10035, %v10139
    %v10141 = vsel %vm10007, %v10039, %v10037
    %v10142 = vsel %vm10013, %v10041, %v9942
    %v10143 = vsel %vm10016, %v10043, %v10142
    %v10144 = vsel %vm10019, %v10045, %v10143
    %v10145 = vsel %vm10022, %v10047, %v10144
    %v10146 = vsel %vm10025, %v10049, %v10145
    %v10147 = vsel %vm10007, %v10053, %v10051
    %v10148 = vsel %vm10010, %v9958, %v10147
    %v10149 = vsel %vm10013, %v10055, %v10148
    %v10150 = vsel %vm10016, %v10057, %v10149
    %v10151 = vsel %vm10019, %v10059, %v10150
    %v10152 = vsel %vm10022, %v10061, %v10151
    %v10153 = vsel %vm10025, %v10063, %v10152
    %v10154 = vsel %vm10007, %v10067, %v10065
    %10155 = vrot.lane.b32.xlu0 %v10133, 16
    %v10156 = vpop.permute.xlu0 %10155
    %10157 = vrot.lane.b32.xlu0 %v10140, 16
    %v10158 = vpop.permute.xlu0 %10157
    %10159 = vrot.lane.b32.xlu0 %v10141, 16
    %v10160 = vpop.permute.xlu0 %10159
    %10161 = vrot.lane.b32.xlu0 %v10146, 16
    %v10162 = vpop.permute.xlu0 %10161
    %10163 = vrot.lane.b32.xlu0 %v10153, 16
    %v10164 = vpop.permute.xlu0 %10163
    %10165 = vrot.lane.b32.xlu0 %v10154, 16
    %v10166 = vpop.permute.xlu0 %10165
    %vm10173 = vcmask 195714
    %10174 = vst.msk [vmem:[#allocation6 - $0x2] sm:$0xfc] %vm10173, %v10156
    %10175 = vst.msk [vmem:[#allocation6 + $0x6] sm:$0xff] %vm5501, %v10158
    %vm10176 = vcmask 189568
    %10177 = vst.msk [vmem:[#allocation6 + $0xe] sm:$0x3] %vm10176, %v10160
    %10178 = vst.msk [vmem:[#allocation6 + $0xe] sm:$0xfc] %vm10173, %v10162
    %10179 = vst.msk [vmem:[#allocation6 + $0x16] sm:$0xff] %vm5501, %v10164
    %10180 = vst.msk [vmem:[#allocation6 + $0x1e] sm:$0x3] %vm10176, %v10166
    %v10181 = vsel %vm10016, %v10006, %v9910
    %v10182 = vsel %vm10019, %v10009, %v10181
    %v10183 = vsel %vm10022, %v10012, %v10182
    %v10184 = vsel %vm10025, %v10015, %v10183
    %v10185 = vsel %vm10007, %v10021, %v10018
    %v10186 = vsel %vm10010, %v10024, %v10185
    %v10187 = vsel %vm10013, %v9926, %v10186
    %v10188 = vsel %vm10016, %v10027, %v10187
    %v10189 = vsel %vm10019, %v10029, %v10188
    %v10190 = vsel %vm10022, %v10031, %v10189
    %v10191 = vsel %vm10025, %v10033, %v10190
    %v10192 = vsel %vm10007, %v10037, %v10035
    %v10193 = vsel %vm10010, %v10039, %v10192
    %v10194 = vsel %vm10016, %v10041, %v9942
    %v10195 = vsel %vm10019, %v10043, %v10194
    %v10196 = vsel %vm10022, %v10045, %v10195
    %v10197 = vsel %vm10025, %v10047, %v10196
    %v10198 = vsel %vm10007, %v10051, %v10049
    %v10199 = vsel %vm10010, %v10053, %v10198
    %v10200 = vsel %vm10013, %v9958, %v10199
    %v10201 = vsel %vm10016, %v10055, %v10200
    %v10202 = vsel %vm10019, %v10057, %v10201
    %v10203 = vsel %vm10022, %v10059, %v10202
    %v10204 = vsel %vm10025, %v10061, %v10203
    %v10205 = vsel %vm10007, %v10065, %v10063
    %v10206 = vsel %vm10010, %v10067, %v10205
    %10207 = vrot.lane.b32.xlu0 %v10184, 24
    %v10208 = vpop.permute.xlu0 %10207
    %10209 = vrot.lane.b32.xlu0 %v10191, 24
    %v10210 = vpop.permute.xlu0 %10209
    %10211 = vrot.lane.b32.xlu0 %v10193, 24
    %v10212 = vpop.permute.xlu0 %10211
    %10213 = vrot.lane.b32.xlu0 %v10197, 24
    %v10214 = vpop.permute.xlu0 %10213
    %10215 = vrot.lane.b32.xlu0 %v10204, 24
    %v10216 = vpop.permute.xlu0 %10215
    %10217 = vrot.lane.b32.xlu0 %v10206, 24
    %v10218 = vpop.permute.xlu0 %10217
    %vm10225 = vcmask 261315
    %10226 = vst.msk [vmem:[#allocation6 - $0x3] sm:$0xf8] %vm10225, %v10208
    %10227 = vst.msk [vmem:[#allocation6 + $0x5] sm:$0xff] %vm5886, %v10210
    %vm10228 = vcmask 256192
    %10229 = vst.msk [vmem:[#allocation6 + $0xd] sm:$0x7] %vm10228, %v10212
    %10230 = vst.msk [vmem:[#allocation6 + $0xd] sm:$0xf8] %vm10225, %v10214
    %10231 = vst.msk [vmem:[#allocation6 + $0x15] sm:$0xff] %vm5886, %v10216
    %10232 = vst.msk [vmem:[#allocation6 + $0x1d] sm:$0x7] %vm10228, %v10218
    %v10233 = vsel %vm10019, %v10006, %v9910
    %v10234 = vsel %vm10022, %v10009, %v10233
    %v10235 = vsel %vm10025, %v10012, %v10234
    %v10236 = vsel %vm10007, %v10018, %v10015
    %v10237 = vsel %vm10010, %v10021, %v10236
    %v10238 = vsel %vm10013, %v10024, %v10237
    %v10239 = vsel %vm10016, %v9926, %v10238
    %v10240 = vsel %vm10019, %v10027, %v10239
    %v10241 = vsel %vm10022, %v10029, %v10240
    %v10242 = vsel %vm10025, %v10031, %v10241
    %v10243 = vsel %vm10007, %v10035, %v10033
    %v10244 = vsel %vm10010, %v10037, %v10243
    %v10245 = vsel %vm10013, %v10039, %v10244
    %v10246 = vsel %vm10019, %v10041, %v9942
    %v10247 = vsel %vm10022, %v10043, %v10246
    %v10248 = vsel %vm10025, %v10045, %v10247
    %v10249 = vsel %vm10007, %v10049, %v10047
    %v10250 = vsel %vm10010, %v10051, %v10249
    %v10251 = vsel %vm10013, %v10053, %v10250
    %v10252 = vsel %vm10016, %v9958, %v10251
    %v10253 = vsel %vm10019, %v10055, %v10252
    %v10254 = vsel %vm10022, %v10057, %v10253
    %v10255 = vsel %vm10025, %v10059, %v10254
    %v10256 = vsel %vm10007, %v10063, %v10061
    %v10257 = vsel %vm10010, %v10065, %v10256
    %v10258 = vsel %vm10013, %v10067, %v10257
    %10259 = vrot.lane.b32.xlu0 %v10235, 32
    %v10260 = vpop.permute.xlu0 %10259
    %10261 = vrot.lane.b32.xlu0 %v10242, 32
    %v10262 = vpop.permute.xlu0 %10261
    %10263 = vrot.lane.b32.xlu0 %v10245, 32
    %v10264 = vpop.permute.xlu0 %10263
    %10265 = vrot.lane.b32.xlu0 %v10248, 32
    %v10266 = vpop.permute.xlu0 %10265
    %10267 = vrot.lane.b32.xlu0 %v10255, 32
    %v10268 = vpop.permute.xlu0 %10267
    %10269 = vrot.lane.b32.xlu0 %v10258, 32
    %v10270 = vpop.permute.xlu0 %10269
    %vm10277 = vcmask 326916
    %10278 = vst.msk [vmem:[#allocation6 - $0x4] sm:$0xf0] %vm10277, %v10260
    %10279 = vst.msk [vmem:[#allocation6 + $0x4] sm:$0xff] %vm6271, %v10262
    %vm10280 = vcmask 322816
    %10281 = vst.msk [vmem:[#allocation6 + $0xc] sm:$0xf] %vm10280, %v10264
    %10282 = vst.msk [vmem:[#allocation6 + $0xc] sm:$0xf0] %vm10277, %v10266
    %10283 = vst.msk [vmem:[#allocation6 + $0x14] sm:$0xff] %vm6271, %v10268
    %10284 = vst.msk [vmem:[#allocation6 + $0x1c] sm:$0xf] %vm10280, %v10270
    %v10285 = vsel %vm10022, %v10006, %v9910
    %v10286 = vsel %vm10025, %v10009, %v10285
    %v10287 = vsel %vm10007, %v10015, %v10012
    %v10288 = vsel %vm10010, %v10018, %v10287
    %v10289 = vsel %vm10013, %v10021, %v10288
    %v10290 = vsel %vm10016, %v10024, %v10289
    %v10291 = vsel %vm10019, %v9926, %v10290
    %v10292 = vsel %vm10022, %v10027, %v10291
    %v10293 = vsel %vm10025, %v10029, %v10292
    %v10294 = vsel %vm10007, %v10033, %v10031
    %v10295 = vsel %vm10010, %v10035, %v10294
    %v10296 = vsel %vm10013, %v10037, %v10295
    %v10297 = vsel %vm10016, %v10039, %v10296
    %v10298 = vsel %vm10022, %v10041, %v9942
    %v10299 = vsel %vm10025, %v10043, %v10298
    %v10300 = vsel %vm10007, %v10047, %v10045
    %v10301 = vsel %vm10010, %v10049, %v10300
    %v10302 = vsel %vm10013, %v10051, %v10301
    %v10303 = vsel %vm10016, %v10053, %v10302
    %v10304 = vsel %vm10019, %v9958, %v10303
    %v10305 = vsel %vm10022, %v10055, %v10304
    %v10306 = vsel %vm10025, %v10057, %v10305
    %v10307 = vsel %vm10007, %v10061, %v10059
    %v10308 = vsel %vm10010, %v10063, %v10307
    %v10309 = vsel %vm10013, %v10065, %v10308
    %v10310 = vsel %vm10016, %v10067, %v10309
    %10311 = vrot.lane.b32.xlu0 %v10286, 40
    %v10312 = vpop.permute.xlu0 %10311
    %10313 = vrot.lane.b32.xlu0 %v10293, 40
    %v10314 = vpop.permute.xlu0 %10313
    %10315 = vrot.lane.b32.xlu0 %v10297, 40
    %v10316 = vpop.permute.xlu0 %10315
    %10317 = vrot.lane.b32.xlu0 %v10299, 40
    %v10318 = vpop.permute.xlu0 %10317
    %10319 = vrot.lane.b32.xlu0 %v10306, 40
    %v10320 = vpop.permute.xlu0 %10319
    %10321 = vrot.lane.b32.xlu0 %v10310, 40
    %v10322 = vpop.permute.xlu0 %10321
    %vm10329 = vcmask 392517
    %10330 = vst.msk [vmem:[#allocation6 - $0x5] sm:$0xe0] %vm10329, %v10312
    %10331 = vst.msk [vmem:[#allocation6 + $0x3] sm:$0xff] %vm6656, %v10314
    %vm10332 = vcmask 389440
    %10333 = vst.msk [vmem:[#allocation6 + $0xb] sm:$0x1f] %vm10332, %v10316
    %10334 = vst.msk [vmem:[#allocation6 + $0xb] sm:$0xe0] %vm10329, %v10318
    %10335 = vst.msk [vmem:[#allocation6 + $0x13] sm:$0xff] %vm6656, %v10320
    %10336 = vst.msk [vmem:[#allocation6 + $0x1b] sm:$0x1f] %vm10332, %v10322
    %v10337 = vsel %vm10025, %v10006, %v9910
    %v10338 = vsel %vm10007, %v10012, %v10009
    %v10339 = vsel %vm10010, %v10015, %v10338
    %v10340 = vsel %vm10013, %v10018, %v10339
    %v10341 = vsel %vm10016, %v10021, %v10340
    %v10342 = vsel %vm10019, %v10024, %v10341
    %v10343 = vsel %vm10022, %v9926, %v10342
    %v10344 = vsel %vm10025, %v10027, %v10343
    %v10345 = vsel %vm10007, %v10031, %v10029
    %v10346 = vsel %vm10010, %v10033, %v10345
    %v10347 = vsel %vm10013, %v10035, %v10346
    %v10348 = vsel %vm10016, %v10037, %v10347
    %v10349 = vsel %vm10019, %v10039, %v10348
    %v10350 = vsel %vm10025, %v10041, %v9942
    %v10351 = vsel %vm10007, %v10045, %v10043
    %v10352 = vsel %vm10010, %v10047, %v10351
    %v10353 = vsel %vm10013, %v10049, %v10352
    %v10354 = vsel %vm10016, %v10051, %v10353
    %v10355 = vsel %vm10019, %v10053, %v10354
    %v10356 = vsel %vm10022, %v9958, %v10355
    %v10357 = vsel %vm10025, %v10055, %v10356
    %v10358 = vsel %vm10007, %v10059, %v10057
    %v10359 = vsel %vm10010, %v10061, %v10358
    %v10360 = vsel %vm10013, %v10063, %v10359
    %v10361 = vsel %vm10016, %v10065, %v10360
    %v10362 = vsel %vm10019, %v10067, %v10361
    %10363 = vrot.lane.b32.xlu0 %v10337, 48
    %v10364 = vpop.permute.xlu0 %10363
    %10365 = vrot.lane.b32.xlu0 %v10344, 48
    %v10366 = vpop.permute.xlu0 %10365
    %10367 = vrot.lane.b32.xlu0 %v10349, 48
    %v10368 = vpop.permute.xlu0 %10367
    %10369 = vrot.lane.b32.xlu0 %v10350, 48
    %v10370 = vpop.permute.xlu0 %10369
    %10371 = vrot.lane.b32.xlu0 %v10357, 48
    %v10372 = vpop.permute.xlu0 %10371
    %10373 = vrot.lane.b32.xlu0 %v10362, 48
    %v10374 = vpop.permute.xlu0 %10373
    %vm10381 = vcmask 458118
    %10382 = vst.msk [vmem:[#allocation6 - $0x6] sm:$0xc0] %vm10381, %v10364
    %10383 = vst.msk [vmem:[#allocation6 + $0x2] sm:$0xff] %vm7042, %v10366
    %vm10384 = vcmask 456064
    %10385 = vst.msk [vmem:[#allocation6 + $0xa] sm:$0x3f] %vm10384, %v10368
    %10386 = vst.msk [vmem:[#allocation6 + $0xa] sm:$0xc0] %vm10381, %v10370
    %10387 = vst.msk [vmem:[#allocation6 + $0x12] sm:$0xff] %vm7042, %v10372
    %10388 = vst.msk [vmem:[#allocation6 + $0x1a] sm:$0x3f] %vm10384, %v10374
    %v10389 = vsel %vm10007, %v10009, %v10006
    %v10390 = vsel %vm10010, %v10012, %v10389
    %v10391 = vsel %vm10013, %v10015, %v10390
    %v10392 = vsel %vm10016, %v10018, %v10391
    %v10393 = vsel %vm10019, %v10021, %v10392
    %v10394 = vsel %vm10022, %v10024, %v10393
    %v10395 = vsel %vm10025, %v9926, %v10394
    %v10396 = vsel %vm10007, %v10029, %v10027
    %v10397 = vsel %vm10010, %v10031, %v10396
    %v10398 = vsel %vm10013, %v10033, %v10397
    %v10399 = vsel %vm10016, %v10035, %v10398
    %v10400 = vsel %vm10019, %v10037, %v10399
    %v10401 = vsel %vm10022, %v10039, %v10400
    %v10402 = vsel %vm10007, %v10043, %v10041
    %v10403 = vsel %vm10010, %v10045, %v10402
    %v10404 = vsel %vm10013, %v10047, %v10403
    %v10405 = vsel %vm10016, %v10049, %v10404
    %v10406 = vsel %vm10019, %v10051, %v10405
    %v10407 = vsel %vm10022, %v10053, %v10406
    %v10408 = vsel %vm10025, %v9958, %v10407
    %v10409 = vsel %vm10007, %v10057, %v10055
    %v10410 = vsel %vm10010, %v10059, %v10409
    %v10411 = vsel %vm10013, %v10061, %v10410
    %v10412 = vsel %vm10016, %v10063, %v10411
    %v10413 = vsel %vm10019, %v10065, %v10412
    %v10414 = vsel %vm10022, %v10067, %v10413
    %10415 = vrot.lane.b32.xlu0 %v9910, 56
    %v10416 = vpop.permute.xlu0 %10415
    %10417 = vrot.lane.b32.xlu0 %v10395, 56
    %v10418 = vpop.permute.xlu0 %10417
    %10419 = vrot.lane.b32.xlu0 %v10401, 56
    %v10420 = vpop.permute.xlu0 %10419
    %10421 = vrot.lane.b32.xlu0 %v9942, 56
    %v10422 = vpop.permute.xlu0 %10421
    %10423 = vrot.lane.b32.xlu0 %v10408, 56
    %v10424 = vpop.permute.xlu0 %10423
    %10425 = vrot.lane.b32.xlu0 %v10414, 56
    %v10426 = vpop.permute.xlu0 %10425
    %vm10433 = vcmask 523719
    %10434 = vst.msk [vmem:[#allocation6 - $0x7] sm:$0x80] %vm10433, %v10416
    %10435 = vst.msk [vmem:[#allocation6 + $0x1] sm:$0xff] %vm7427, %v10418
    %vm10436 = vcmask 522688
    %10437 = vst.msk [vmem:[#allocation6 + $0x9] sm:$0x7f] %vm10436, %v10420
    %10438 = vst.msk [vmem:[#allocation6 + $0x9] sm:$0x80] %vm10433, %v10422
    %10439 = vst.msk [vmem:[#allocation6 + $0x11] sm:$0xff] %vm7427, %v10424
    %10440 = vst.msk [vmem:[#allocation6 + $0x19] sm:$0x7f] %vm10436, %v10426
    %v10473 = vrot.slane %v9913, 7
    %v10474 = vsel %vm10007, %v10473, %v9911
    %v10475 = vrot.slane %v9915, 6
    %v10476 = vsel %vm10010, %v10475, %v10474
    %v10477 = vrot.slane %v9917, 5
    %v10478 = vsel %vm10013, %v10477, %v10476
    %v10479 = vrot.slane %v9919, 4
    %v10480 = vsel %vm10016, %v10479, %v10478
    %v10481 = vrot.slane %v9921, 3
    %v10482 = vsel %vm10019, %v10481, %v10480
    %v10483 = vrot.slane %v9923, 2
    %v10484 = vsel %vm10022, %v10483, %v10482
    %v10485 = vrot.slane %v9925, 1
    %v10486 = vsel %vm10025, %v10485, %v10484
    %v10487 = vrot.slane %v9929, 7
    %v10488 = vsel %vm10007, %v10487, %v9927
    %v10489 = vrot.slane %v9931, 6
    %v10490 = vsel %vm10010, %v10489, %v10488
    %v10491 = vrot.slane %v9933, 5
    %v10492 = vsel %vm10013, %v10491, %v10490
    %v10493 = vrot.slane %v9935, 4
    %v10494 = vsel %vm10016, %v10493, %v10492
    %v10495 = vrot.slane %v9937, 3
    %v10496 = vsel %vm10019, %v10495, %v10494
    %v10497 = vrot.slane %v9939, 2
    %v10498 = vsel %vm10022, %v10497, %v10496
    %v10499 = vrot.slane %v9941, 1
    %v10500 = vsel %vm10025, %v10499, %v10498
    %v10501 = vrot.slane %v9945, 7
    %v10502 = vsel %vm10007, %v10501, %v9943
    %v10503 = vrot.slane %v9947, 6
    %v10504 = vsel %vm10010, %v10503, %v10502
    %v10505 = vrot.slane %v9949, 5
    %v10506 = vsel %vm10013, %v10505, %v10504
    %v10507 = vrot.slane %v9951, 4
    %v10508 = vsel %vm10016, %v10507, %v10506
    %v10509 = vrot.slane %v9953, 3
    %v10510 = vsel %vm10019, %v10509, %v10508
    %v10511 = vrot.slane %v9955, 2
    %v10512 = vsel %vm10022, %v10511, %v10510
    %v10513 = vrot.slane %v9957, 1
    %v10514 = vsel %vm10025, %v10513, %v10512
    %v10515 = vrot.slane %v9961, 7
    %v10516 = vsel %vm10007, %v10515, %v9959
    %v10517 = vrot.slane %v9963, 6
    %v10518 = vsel %vm10010, %v10517, %v10516
    %v10519 = vrot.slane %v9965, 5
    %v10520 = vsel %vm10013, %v10519, %v10518
    %v10521 = vrot.slane %v9967, 4
    %v10522 = vsel %vm10016, %v10521, %v10520
    %v10523 = vrot.slane %v9969, 3
    %v10524 = vsel %vm10019, %v10523, %v10522
    %v10525 = vrot.slane %v9971, 2
    %v10526 = vsel %vm10022, %v10525, %v10524
    %v10527 = vrot.slane %v9973, 1
    %v10528 = vsel %vm10025, %v10527, %v10526
    %10529 = vrot.lane.b32.xlu0 %v10486, 64
    %v10530 = vpop.permute.xlu0 %10529
    %10531 = vrot.lane.b32.xlu0 %v10500, 64
    %v10532 = vpop.permute.xlu0 %10531
    %10533 = vrot.lane.b32.xlu0 %v10514, 64
    %v10534 = vpop.permute.xlu0 %10533
    %10535 = vrot.lane.b32.xlu0 %v10528, 64
    %v10536 = vpop.permute.xlu0 %10535
    %10541 = vst.msk [vmem:[#allocation6] sm:$0xff] %vm7812, %v10530
    %10542 = vst.msk [vmem:[#allocation6 + $0x8] sm:$0xff] %vm7812, %v10532
    %10543 = vst.msk [vmem:[#allocation6 + $0x10] sm:$0xff] %vm7812, %v10534
    %10544 = vst.msk [vmem:[#allocation6 + $0x18] sm:$0xff] %vm7812, %v10536
    %v10545 = vsel %vm10010, %v10473, %v9911
    %v10546 = vsel %vm10013, %v10475, %v10545
    %v10547 = vsel %vm10016, %v10477, %v10546
    %v10548 = vsel %vm10019, %v10479, %v10547
    %v10549 = vsel %vm10022, %v10481, %v10548
    %v10550 = vsel %vm10025, %v10483, %v10549
    %v10551 = vsel %vm10007, %v9927, %v10485
    %v10552 = vsel %vm10010, %v10487, %v10551
    %v10553 = vsel %vm10013, %v10489, %v10552
    %v10554 = vsel %vm10016, %v10491, %v10553
    %v10555 = vsel %vm10019, %v10493, %v10554
    %v10556 = vsel %vm10022, %v10495, %v10555
    %v10557 = vsel %vm10025, %v10497, %v10556
    %v10558 = vsel %vm10010, %v10501, %v9943
    %v10559 = vsel %vm10013, %v10503, %v10558
    %v10560 = vsel %vm10016, %v10505, %v10559
    %v10561 = vsel %vm10019, %v10507, %v10560
    %v10562 = vsel %vm10022, %v10509, %v10561
    %v10563 = vsel %vm10025, %v10511, %v10562
    %v10564 = vsel %vm10007, %v9959, %v10513
    %v10565 = vsel %vm10010, %v10515, %v10564
    %v10566 = vsel %vm10013, %v10517, %v10565
    %v10567 = vsel %vm10016, %v10519, %v10566
    %v10568 = vsel %vm10019, %v10521, %v10567
    %v10569 = vsel %vm10022, %v10523, %v10568
    %v10570 = vsel %vm10025, %v10525, %v10569
    %10571 = vrot.lane.b32.xlu0 %v10550, 72
    %v10572 = vpop.permute.xlu0 %10571
    %10573 = vrot.lane.b32.xlu0 %v10557, 72
    %v10574 = vpop.permute.xlu0 %10573
    %10575 = vrot.lane.b32.xlu0 %v10499, 72
    %v10576 = vpop.permute.xlu0 %10575
    %10577 = vrot.lane.b32.xlu0 %v10563, 72
    %v10578 = vpop.permute.xlu0 %10577
    %10579 = vrot.lane.b32.xlu0 %v10570, 72
    %v10580 = vpop.permute.xlu0 %10579
    %10581 = vrot.lane.b32.xlu0 %v10527, 72
    %v10582 = vpop.permute.xlu0 %10581
    %vm10589 = vcmask 654913
    %10590 = vst.msk [vmem:[#allocation6 - $0x1] sm:$0xfe] %vm10589, %v10572
    %vm10591 = vcmask 654912
    %10592 = vst.msk [vmem:[#allocation6 + $0x7] sm:$0xff] %vm10591, %v10574
    %vm10593 = vcmask 647744
    %10594 = vst.msk [vmem:[#allocation6 + $0xf] sm:$0x1] %vm10593, %v10576
    %10595 = vst.msk [vmem:[#allocation6 + $0xf] sm:$0xfe] %vm10589, %v10578
    %10596 = vst.msk [vmem:[#allocation6 + $0x17] sm:$0xff] %vm10591, %v10580
    %10597 = vst.msk [vmem:[#allocation6 + $0x1f] sm:$0x1] %vm10593, %v10582
    %v10598 = vsel %vm10013, %v10473, %v9911
    %v10599 = vsel %vm10016, %v10475, %v10598
    %v10600 = vsel %vm10019, %v10477, %v10599
    %v10601 = vsel %vm10022, %v10479, %v10600
    %v10602 = vsel %vm10025, %v10481, %v10601
    %v10603 = vsel %vm10007, %v10485, %v10483
    %v10604 = vsel %vm10010, %v9927, %v10603
    %v10605 = vsel %vm10013, %v10487, %v10604
    %v10606 = vsel %vm10016, %v10489, %v10605
    %v10607 = vsel %vm10019, %v10491, %v10606
    %v10608 = vsel %vm10022, %v10493, %v10607
    %v10609 = vsel %vm10025, %v10495, %v10608
    %v10610 = vsel %vm10007, %v10499, %v10497
    %v10611 = vsel %vm10013, %v10501, %v9943
    %v10612 = vsel %vm10016, %v10503, %v10611
    %v10613 = vsel %vm10019, %v10505, %v10612
    %v10614 = vsel %vm10022, %v10507, %v10613
    %v10615 = vsel %vm10025, %v10509, %v10614
    %v10616 = vsel %vm10007, %v10513, %v10511
    %v10617 = vsel %vm10010, %v9959, %v10616
    %v10618 = vsel %vm10013, %v10515, %v10617
    %v10619 = vsel %vm10016, %v10517, %v10618
    %v10620 = vsel %vm10019, %v10519, %v10619
    %v10621 = vsel %vm10022, %v10521, %v10620
    %v10622 = vsel %vm10025, %v10523, %v10621
    %v10623 = vsel %vm10007, %v10527, %v10525
    %10624 = vrot.lane.b32.xlu0 %v10602, 80
    %v10625 = vpop.permute.xlu0 %10624
    %10626 = vrot.lane.b32.xlu0 %v10609, 80
    %v10627 = vpop.permute.xlu0 %10626
    %10628 = vrot.lane.b32.xlu0 %v10610, 80
    %v10629 = vpop.permute.xlu0 %10628
    %10630 = vrot.lane.b32.xlu0 %v10615, 80
    %v10631 = vpop.permute.xlu0 %10630
    %10632 = vrot.lane.b32.xlu0 %v10622, 80
    %v10633 = vpop.permute.xlu0 %10632
    %10634 = vrot.lane.b32.xlu0 %v10623, 80
    %v10635 = vpop.permute.xlu0 %10634
    %vm10642 = vcmask 720514
    %10643 = vst.msk [vmem:[#allocation6 - $0x2] sm:$0xfc] %vm10642, %v10625
    %vm10644 = vcmask 720512
    %10645 = vst.msk [vmem:[#allocation6 + $0x6] sm:$0xff] %vm10644, %v10627
    %vm10646 = vcmask 714368
    %10647 = vst.msk [vmem:[#allocation6 + $0xe] sm:$0x3] %vm10646, %v10629
    %10648 = vst.msk [vmem:[#allocation6 + $0xe] sm:$0xfc] %vm10642, %v10631
    %10649 = vst.msk [vmem:[#allocation6 + $0x16] sm:$0xff] %vm10644, %v10633
    %10650 = vst.msk [vmem:[#allocation6 + $0x1e] sm:$0x3] %vm10646, %v10635
    %v10651 = vsel %vm10016, %v10473, %v9911
    %v10652 = vsel %vm10019, %v10475, %v10651
    %v10653 = vsel %vm10022, %v10477, %v10652
    %v10654 = vsel %vm10025, %v10479, %v10653
    %v10655 = vsel %vm10007, %v10483, %v10481
    %v10656 = vsel %vm10010, %v10485, %v10655
    %v10657 = vsel %vm10013, %v9927, %v10656
    %v10658 = vsel %vm10016, %v10487, %v10657
    %v10659 = vsel %vm10019, %v10489, %v10658
    %v10660 = vsel %vm10022, %v10491, %v10659
    %v10661 = vsel %vm10025, %v10493, %v10660
    %v10662 = vsel %vm10007, %v10497, %v10495
    %v10663 = vsel %vm10010, %v10499, %v10662
    %v10664 = vsel %vm10016, %v10501, %v9943
    %v10665 = vsel %vm10019, %v10503, %v10664
    %v10666 = vsel %vm10022, %v10505, %v10665
    %v10667 = vsel %vm10025, %v10507, %v10666
    %v10668 = vsel %vm10007, %v10511, %v10509
    %v10669 = vsel %vm10010, %v10513, %v10668
    %v10670 = vsel %vm10013, %v9959, %v10669
    %v10671 = vsel %vm10016, %v10515, %v10670
    %v10672 = vsel %vm10019, %v10517, %v10671
    %v10673 = vsel %vm10022, %v10519, %v10672
    %v10674 = vsel %vm10025, %v10521, %v10673
    %v10675 = vsel %vm10007, %v10525, %v10523
    %v10676 = vsel %vm10010, %v10527, %v10675
    %10677 = vrot.lane.b32.xlu0 %v10654, 88
    %v10678 = vpop.permute.xlu0 %10677
    %10679 = vrot.lane.b32.xlu0 %v10661, 88
    %v10680 = vpop.permute.xlu0 %10679
    %10681 = vrot.lane.b32.xlu0 %v10663, 88
    %v10682 = vpop.permute.xlu0 %10681
    %10683 = vrot.lane.b32.xlu0 %v10667, 88
    %v10684 = vpop.permute.xlu0 %10683
    %10685 = vrot.lane.b32.xlu0 %v10674, 88
    %v10686 = vpop.permute.xlu0 %10685
    %10687 = vrot.lane.b32.xlu0 %v10676, 88
    %v10688 = vpop.permute.xlu0 %10687
    %vm10695 = vcmask 786115
    %10696 = vst.msk [vmem:[#allocation6 - $0x3] sm:$0xf8] %vm10695, %v10678
    %vm10697 = vcmask 786112
    %10698 = vst.msk [vmem:[#allocation6 + $0x5] sm:$0xff] %vm10697, %v10680
    %vm10699 = vcmask 780992
    %10700 = vst.msk [vmem:[#allocation6 + $0xd] sm:$0x7] %vm10699, %v10682
    %10701 = vst.msk [vmem:[#allocation6 + $0xd] sm:$0xf8] %vm10695, %v10684
    %10702 = vst.msk [vmem:[#allocation6 + $0x15] sm:$0xff] %vm10697, %v10686
    %10703 = vst.msk [vmem:[#allocation6 + $0x1d] sm:$0x7] %vm10699, %v10688
    %v10704 = vsel %vm10019, %v10473, %v9911
    %v10705 = vsel %vm10022, %v10475, %v10704
    %v10706 = vsel %vm10025, %v10477, %v10705
    %v10707 = vsel %vm10007, %v10481, %v10479
    %v10708 = vsel %vm10010, %v10483, %v10707
    %v10709 = vsel %vm10013, %v10485, %v10708
    %v10710 = vsel %vm10016, %v9927, %v10709
    %v10711 = vsel %vm10019, %v10487, %v10710
    %v10712 = vsel %vm10022, %v10489, %v10711
    %v10713 = vsel %vm10025, %v10491, %v10712
    %v10714 = vsel %vm10007, %v10495, %v10493
    %v10715 = vsel %vm10010, %v10497, %v10714
    %v10716 = vsel %vm10013, %v10499, %v10715
    %v10717 = vsel %vm10019, %v10501, %v9943
    %v10718 = vsel %vm10022, %v10503, %v10717
    %v10719 = vsel %vm10025, %v10505, %v10718
    %v10720 = vsel %vm10007, %v10509, %v10507
    %v10721 = vsel %vm10010, %v10511, %v10720
    %v10722 = vsel %vm10013, %v10513, %v10721
    %v10723 = vsel %vm10016, %v9959, %v10722
    %v10724 = vsel %vm10019, %v10515, %v10723
    %v10725 = vsel %vm10022, %v10517, %v10724
    %v10726 = vsel %vm10025, %v10519, %v10725
    %v10727 = vsel %vm10007, %v10523, %v10521
    %v10728 = vsel %vm10010, %v10525, %v10727
    %v10729 = vsel %vm10013, %v10527, %v10728
    %10730 = vrot.lane.b32.xlu0 %v10706, 96
    %v10731 = vpop.permute.xlu0 %10730
    %10732 = vrot.lane.b32.xlu0 %v10713, 96
    %v10733 = vpop.permute.xlu0 %10732
    %10734 = vrot.lane.b32.xlu0 %v10716, 96
    %v10735 = vpop.permute.xlu0 %10734
    %10736 = vrot.lane.b32.xlu0 %v10719, 96
    %v10737 = vpop.permute.xlu0 %10736
    %10738 = vrot.lane.b32.xlu0 %v10726, 96
    %v10739 = vpop.permute.xlu0 %10738
    %10740 = vrot.lane.b32.xlu0 %v10729, 96
    %v10741 = vpop.permute.xlu0 %10740
    %vm10748 = vcmask 851716
    %10749 = vst.msk [vmem:[#allocation6 - $0x4] sm:$0xf0] %vm10748, %v10731
    %vm10750 = vcmask 851712
    %10751 = vst.msk [vmem:[#allocation6 + $0x4] sm:$0xff] %vm10750, %v10733
    %vm10752 = vcmask 847616
    %10753 = vst.msk [vmem:[#allocation6 + $0xc] sm:$0xf] %vm10752, %v10735
    %10754 = vst.msk [vmem:[#allocation6 + $0xc] sm:$0xf0] %vm10748, %v10737
    %10755 = vst.msk [vmem:[#allocation6 + $0x14] sm:$0xff] %vm10750, %v10739
    %10756 = vst.msk [vmem:[#allocation6 + $0x1c] sm:$0xf] %vm10752, %v10741
    %v10757 = vsel %vm10022, %v10473, %v9911
    %v10758 = vsel %vm10025, %v10475, %v10757
    %v10759 = vsel %vm10007, %v10479, %v10477
    %v10760 = vsel %vm10010, %v10481, %v10759
    %v10761 = vsel %vm10013, %v10483, %v10760
    %v10762 = vsel %vm10016, %v10485, %v10761
    %v10763 = vsel %vm10019, %v9927, %v10762
    %v10764 = vsel %vm10022, %v10487, %v10763
    %v10765 = vsel %vm10025, %v10489, %v10764
    %v10766 = vsel %vm10007, %v10493, %v10491
    %v10767 = vsel %vm10010, %v10495, %v10766
    %v10768 = vsel %vm10013, %v10497, %v10767
    %v10769 = vsel %vm10016, %v10499, %v10768
    %v10770 = vsel %vm10022, %v10501, %v9943
    %v10771 = vsel %vm10025, %v10503, %v10770
    %v10772 = vsel %vm10007, %v10507, %v10505
    %v10773 = vsel %vm10010, %v10509, %v10772
    %v10774 = vsel %vm10013, %v10511, %v10773
    %v10775 = vsel %vm10016, %v10513, %v10774
    %v10776 = vsel %vm10019, %v9959, %v10775
    %v10777 = vsel %vm10022, %v10515, %v10776
    %v10778 = vsel %vm10025, %v10517, %v10777
    %v10779 = vsel %vm10007, %v10521, %v10519
    %v10780 = vsel %vm10010, %v10523, %v10779
    %v10781 = vsel %vm10013, %v10525, %v10780
    %v10782 = vsel %vm10016, %v10527, %v10781
    %10783 = vrot.lane.b32.xlu0 %v10758, 104
    %v10784 = vpop.permute.xlu0 %10783
    %10785 = vrot.lane.b32.xlu0 %v10765, 104
    %v10786 = vpop.permute.xlu0 %10785
    %10787 = vrot.lane.b32.xlu0 %v10769, 104
    %v10788 = vpop.permute.xlu0 %10787
    %10789 = vrot.lane.b32.xlu0 %v10771, 104
    %v10790 = vpop.permute.xlu0 %10789
    %10791 = vrot.lane.b32.xlu0 %v10778, 104
    %v10792 = vpop.permute.xlu0 %10791
    %10793 = vrot.lane.b32.xlu0 %v10782, 104
    %v10794 = vpop.permute.xlu0 %10793
    %vm10801 = vcmask 917317
    %10802 = vst.msk [vmem:[#allocation6 - $0x5] sm:$0xe0] %vm10801, %v10784
    %vm10803 = vcmask 917312
    %10804 = vst.msk [vmem:[#allocation6 + $0x3] sm:$0xff] %vm10803, %v10786
    %vm10805 = vcmask 914240
    %10806 = vst.msk [vmem:[#allocation6 + $0xb] sm:$0x1f] %vm10805, %v10788
    %10807 = vst.msk [vmem:[#allocation6 + $0xb] sm:$0xe0] %vm10801, %v10790
    %10808 = vst.msk [vmem:[#allocation6 + $0x13] sm:$0xff] %vm10803, %v10792
    %10809 = vst.msk [vmem:[#allocation6 + $0x1b] sm:$0x1f] %vm10805, %v10794
    %v10810 = vsel %vm10025, %v10473, %v9911
    %v10811 = vsel %vm10007, %v10477, %v10475
    %v10812 = vsel %vm10010, %v10479, %v10811
    %v10813 = vsel %vm10013, %v10481, %v10812
    %v10814 = vsel %vm10016, %v10483, %v10813
    %v10815 = vsel %vm10019, %v10485, %v10814
    %v10816 = vsel %vm10022, %v9927, %v10815
    %v10817 = vsel %vm10025, %v10487, %v10816
    %v10818 = vsel %vm10007, %v10491, %v10489
    %v10819 = vsel %vm10010, %v10493, %v10818
    %v10820 = vsel %vm10013, %v10495, %v10819
    %v10821 = vsel %vm10016, %v10497, %v10820
    %v10822 = vsel %vm10019, %v10499, %v10821
    %v10823 = vsel %vm10025, %v10501, %v9943
    %v10824 = vsel %vm10007, %v10505, %v10503
    %v10825 = vsel %vm10010, %v10507, %v10824
    %v10826 = vsel %vm10013, %v10509, %v10825
    %v10827 = vsel %vm10016, %v10511, %v10826
    %v10828 = vsel %vm10019, %v10513, %v10827
    %v10829 = vsel %vm10022, %v9959, %v10828
    %v10830 = vsel %vm10025, %v10515, %v10829
    %v10831 = vsel %vm10007, %v10519, %v10517
    %v10832 = vsel %vm10010, %v10521, %v10831
    %v10833 = vsel %vm10013, %v10523, %v10832
    %v10834 = vsel %vm10016, %v10525, %v10833
    %v10835 = vsel %vm10019, %v10527, %v10834
    %10836 = vrot.lane.b32.xlu0 %v10810, 112
    %v10837 = vpop.permute.xlu0 %10836
    %10838 = vrot.lane.b32.xlu0 %v10817, 112
    %v10839 = vpop.permute.xlu0 %10838
    %10840 = vrot.lane.b32.xlu0 %v10822, 112
    %v10841 = vpop.permute.xlu0 %10840
    %10842 = vrot.lane.b32.xlu0 %v10823, 112
    %v10843 = vpop.permute.xlu0 %10842
    %10844 = vrot.lane.b32.xlu0 %v10830, 112
    %v10845 = vpop.permute.xlu0 %10844
    %10846 = vrot.lane.b32.xlu0 %v10835, 112
    %v10847 = vpop.permute.xlu0 %10846
    %vm10854 = vcmask 982918
    %10855 = vst.msk [vmem:[#allocation6 - $0x6] sm:$0xc0] %vm10854, %v10837
    %vm10856 = vcmask 982912
    %10857 = vst.msk [vmem:[#allocation6 + $0x2] sm:$0xff] %vm10856, %v10839
    %vm10858 = vcmask 980864
    %10859 = vst.msk [vmem:[#allocation6 + $0xa] sm:$0x3f] %vm10858, %v10841
    %10860 = vst.msk [vmem:[#allocation6 + $0xa] sm:$0xc0] %vm10854, %v10843
    %10861 = vst.msk [vmem:[#allocation6 + $0x12] sm:$0xff] %vm10856, %v10845
    %10862 = vst.msk [vmem:[#allocation6 + $0x1a] sm:$0x3f] %vm10858, %v10847
    %v10863 = vsel %vm10007, %v10475, %v10473
    %v10864 = vsel %vm10010, %v10477, %v10863
    %v10865 = vsel %vm10013, %v10479, %v10864
    %v10866 = vsel %vm10016, %v10481, %v10865
    %v10867 = vsel %vm10019, %v10483, %v10866
    %v10868 = vsel %vm10022, %v10485, %v10867
    %v10869 = vsel %vm10025, %v9927, %v10868
    %v10870 = vsel %vm10007, %v10489, %v10487
    %v10871 = vsel %vm10010, %v10491, %v10870
    %v10872 = vsel %vm10013, %v10493, %v10871
    %v10873 = vsel %vm10016, %v10495, %v10872
    %v10874 = vsel %vm10019, %v10497, %v10873
    %v10875 = vsel %vm10022, %v10499, %v10874
    %v10876 = vsel %vm10007, %v10503, %v10501
    %v10877 = vsel %vm10010, %v10505, %v10876
    %v10878 = vsel %vm10013, %v10507, %v10877
    %v10879 = vsel %vm10016, %v10509, %v10878
    %v10880 = vsel %vm10019, %v10511, %v10879
    %v10881 = vsel %vm10022, %v10513, %v10880
    %v10882 = vsel %vm10025, %v9959, %v10881
    %v10883 = vsel %vm10007, %v10517, %v10515
    %v10884 = vsel %vm10010, %v10519, %v10883
    %v10885 = vsel %vm10013, %v10521, %v10884
    %v10886 = vsel %vm10016, %v10523, %v10885
    %v10887 = vsel %vm10019, %v10525, %v10886
    %v10888 = vsel %vm10022, %v10527, %v10887
    %10889 = vrot.lane.b32.xlu0 %v9911, 120
    %v10890 = vpop.permute.xlu0 %10889
    %10891 = vrot.lane.b32.xlu0 %v10869, 120
    %v10892 = vpop.permute.xlu0 %10891
    %10893 = vrot.lane.b32.xlu0 %v10875, 120
    %v10894 = vpop.permute.xlu0 %10893
    %10895 = vrot.lane.b32.xlu0 %v9943, 120
    %v10896 = vpop.permute.xlu0 %10895
    %10897 = vrot.lane.b32.xlu0 %v10882, 120
    %v10898 = vpop.permute.xlu0 %10897
    %10899 = vrot.lane.b32.xlu0 %v10888, 120
    %v10900 = vpop.permute.xlu0 %10899
    %vm10907 = vcmask 1048519
    %10908 = vst.msk [vmem:[#allocation6 - $0x7] sm:$0x80] %vm10907, %v10890
    %vm10909 = vcmask 1048512
    %10910 = vst.msk [vmem:[#allocation6 + $0x1] sm:$0xff] %vm10909, %v10892
    %vm10911 = vcmask 1047488
    %10912 = vst.msk [vmem:[#allocation6 + $0x9] sm:$0x7f] %vm10911, %v10894
    %10913 = vst.msk [vmem:[#allocation6 + $0x9] sm:$0x80] %vm10907, %v10896
    %10914 = vst.msk [vmem:[#allocation6 + $0x11] sm:$0xff] %vm10909, %v10898
    %10915 = vst.msk [vmem:[#allocation6 + $0x19] sm:$0x7f] %vm10911, %v10900
    // Predicated region
    $region42: #{tpu_custom_call.1} parent=1 // pred_check
      _
    $region43: #{tpu_custom_call.1} parent=1 // pred_check_branch
      %10917 = sbr.rel (0) target = $region45
    $region44: #{tpu_custom_call.1} parent=1 // pred_region
      %s10919 = ssub.s32 512, 512
      %10920 = vsyncadd [#allocation7], %s10919
      %s10921 = sshll.u32 [#allocation6], 4
      %s10922 = int_to_ptr.vmem [resolvable:$true] %s10921
      %10927 = dma.vmem_to_hbm [thread:$0]  %s10922, 512, %s10, [#allocation7], 128, 128, 8
    $region45: #{tpu_custom_call.1} parent=1 // pred_fallthru
      _
    // Predicated region
    $region46: #{tpu_custom_call.1} parent=1 // pred_check
      _
    $region47: #{tpu_custom_call.1} parent=1 // pred_check_branch
      %10929 = sbr.rel (0) target = $region49
    $region48: #{tpu_custom_call.1} parent=1 // pred_region
      %10930 = dma.done [#allocation7], 512
    $region49: #{tpu_custom_call.1} parent=1 // pred_fallthru
      _
    %10931 = vsyncpa [#allocation7], 1

</llo_original>
